<compile_context>
chip_gen: v7x
topology: tpu7x:2x2x1
jax: 0.10.0
libtpu: 0.0.40
codegen_flags: <defaults>
</compile_context>

<pallas_src>
import functools
import math

import jax
import jax.numpy as jnp
from jax.experimental import pallas as pl
from jax.experimental.pallas import tpu as pltpu

IMG_DIM = 16     # scaled-down stand-in for img_dim = 128 (must be divisible by 8)
LATENT = 32      # scaled-down stand-in for latent_size = 1024
FEAT = 128 * (IMG_DIM // 8) * (IMG_DIM // 8)   # flattened encoder feature size


# ----------------------------- helpers -------------------------------------

def _round_up(x, m):
    return (x + m - 1) // m * m


def _pick_tile(dim, max_tile, step):
    """Largest multiple of `step` that is <= max_tile and divides `dim`."""
    t = min(dim, max_tile)
    t -= t % step
    t = max(t, step)
    while dim % t:
        t -= step
    return t


# ----------------------------- Pallas kernels ------------------------------

def _matmul_bias_kernel(x_ref, w_ref, b_ref, o_ref, acc_ref, *, relu):
    k = pl.program_id(2)

    @pl.when(k == 0)
    def _():
        acc_ref[...] = jnp.zeros_like(acc_ref)

    acc_ref[...] += jnp.dot(x_ref[...], w_ref[...],
                            preferred_element_type=jnp.float32)

    @pl.when(k == pl.num_programs(2) - 1)
    def _():
        out = acc_ref[...] + b_ref[...]
        if relu:
            out = jnp.maximum(out, 0.0)
        o_ref[...] = out


def matmul_bias(x, w, b, *, relu):
    """x: (M, K) f32, w: (K, N) f32, b: (N,) f32 -> (M, N) f32.

    Tiled, pipelined MXU matmul: bf16 operands, f32 accumulator scratch,
    bias + optional ReLU fused in the last-K-step epilogue.  M/N/K are
    zero-padded so that N and K are 128-aligned (lane-dense, unmasked stores)
    and the padding is sliced off on return.
    """
    M, K = x.shape
    K2, N = w.shape
    assert K == K2

    Mp = _round_up(M, 8)
    Kp = _round_up(K, 128)
    Np = _round_up(N, 128)
    tm = _pick_tile(Mp, 256, 8)
    tk = _pick_tile(Kp, 512, 128)
    tn = _pick_tile(Np, 256, 128)

    xp = jnp.pad(x, ((0, Mp - M), (0, Kp - K))).astype(jnp.bfloat16)
    wp = jnp.pad(w, ((0, Kp - K), (0, Np - N))).astype(jnp.bfloat16)
    bp = jnp.pad(b.astype(jnp.float32), (0, Np - N)).reshape(1, Np)

    grid = (Mp // tm, Np // tn, Kp // tk)
    kernel = functools.partial(_matmul_bias_kernel, relu=relu)

    out = pl.pallas_call(
        kernel,
        out_shape=jax.ShapeDtypeStruct((Mp, Np), jnp.float32),
        grid_spec=pltpu.PrefetchScalarGridSpec(
            num_scalar_prefetch=0,
            grid=grid,
            in_specs=[
                pl.BlockSpec((tm, tk), lambda i, j, k: (i, k)),
                pl.BlockSpec((tk, tn), lambda i, j, k: (k, j)),
                pl.BlockSpec((1, tn), lambda i, j, k: (0, j)),
            ],
            out_specs=pl.BlockSpec((tm, tn), lambda i, j, k: (i, j)),
            scratch_shapes=[pltpu.VMEM((tm, tn), jnp.float32)],
        ),
        compiler_params=pltpu.CompilerParams(
            dimension_semantics=("parallel", "parallel", "arbitrary"),
            vmem_limit_bytes=64 * 1024 * 1024,
        ),
        cost_estimate=pl.CostEstimate(
            flops=2 * Mp * Np * Kp,
            transcendentals=0,
            bytes_accessed=Mp * Kp * 2 + Kp * Np * 2 + Mp * Np * 4,
        ),
    )(xp, wp, bp)
    return out[:M, :N]


def _reparam_kernel(mu_ref, logvar_ref, eps_ref, z_ref):
    std = jnp.exp(0.5 * logvar_ref[...])
    z_ref[...] = mu_ref[...] + eps_ref[...] * std


def reparameterize(mu, logvar, eps):
    # TODO(synk): fuse this into the encoder-FC matmul epilogue; kept as a tiny
    # padded element-wise kernel (negligible at model scale).
    B, L = mu.shape
    Bp = _round_up(B, 8)
    Lp = _round_up(L, 128)
    pad = lambda a: jnp.pad(a, ((0, Bp - B), (0, Lp - L)))
    z = pl.pallas_call(
        _reparam_kernel,
        out_shape=jax.ShapeDtypeStruct((Bp, Lp), jnp.float32),
        grid=(1,),
        in_specs=[pl.BlockSpec((Bp, Lp), lambda i: (0, 0))] * 3,
        out_specs=pl.BlockSpec((Bp, Lp), lambda i: (0, 0)),
    )(pad(mu), pad(logvar), pad(eps))
    return z[:B, :L]


# ------------------------------ JAX glue (NHWC) -----------------------------

def _im2col_nhwc(xp, kh, kw, stride):
    """xp: padded NHWC -> (N*Ho*Wo, kh*kw*C) patch matrix, cols ordered (kh, kw, C)."""
    # TODO(synk): fuse patch extraction into the Pallas kernel (halo-tile DMA)
    # to avoid the kh*kw x patch-matrix HBM round trip; currently XLA glue.
    N, Hp, Wp, C = xp.shape
    Ho = (Hp - kh) // stride + 1
    Wo = (Wp - kw) // stride + 1
    taps = []
    for i in range(kh):
        for j in range(kw):
            taps.append(xp[:, i:i + stride * Ho:stride, j:j + stride * Wo:stride, :])
    p = jnp.stack(taps, axis=3)                       # (N, Ho, Wo, kh*kw, C)
    return p.reshape(N * Ho * Wo, kh * kw * C), Ho, Wo


def _calc_same_pad(i, k, s, d=1):
    return max((math.ceil(i / s) - 1) * s + (k - 1) * d + 1 - i, 0)


def conv2d_same(x, w, b, *, stride, relu):
    """Conv2dSame / nn.Conv2d(padding='same').  x: NHWC, w: (Cout, Cin, kh, kw)."""
    N, H, W, C = x.shape
    Cout, Cin, kh, kw = w.shape
    pad_h = _calc_same_pad(H, kh, stride)
    pad_w = _calc_same_pad(W, kw, stride)
    xp = jnp.pad(x, ((0, 0),
                     (pad_h // 2, pad_h - pad_h // 2),
                     (pad_w // 2, pad_w - pad_w // 2),
                     (0, 0)))
    cols, Ho, Wo = _im2col_nhwc(xp, kh, kw, stride)
    wmat = w.transpose(2, 3, 1, 0).reshape(kh * kw * Cin, Cout)   # (kh,kw,Cin,Cout)
    out = matmul_bias(cols, wmat, b, relu=relu)
    return out.reshape(N, Ho, Wo, Cout)


def conv_transpose2d_s1(x, w, b, *, padding, relu):
    """nn.ConvTranspose2d, stride=1.  x: NHWC, w: (Cin, Cout, kh, kw) (PyTorch layout)."""
    N, H, W, C = x.shape
    Cin, Cout, kh, kw = w.shape
    pad = kh - 1 - padding
    xp = jnp.pad(x, ((0, 0), (pad, pad), (pad, pad), (0, 0)))
    cols, Ho, Wo = _im2col_nhwc(xp, kh, kw, 1)
    # equivalent forward conv: spatially flipped kernel, in/out channels swapped
    wmat = jnp.flip(w, axis=(-2, -1)).transpose(2, 3, 0, 1).reshape(kh * kw * Cin, Cout)
    out = matmul_bias(cols, wmat, b, relu=relu)
    return out.reshape(N, Ho, Wo, Cout)


def conv_transpose2d_s2(x, w, b, *, relu):
    """nn.ConvTranspose2d(kernel_size=3, stride=2, padding=1, output_padding=1).

    Phase (sub-pixel) decomposition: the four output parities only ever see
    1, 2, 2 and 4 kernel taps of the un-dilated input, so we run four small
    matmuls and interleave — ~4x fewer flops/bytes than dilate+conv.
    """
    N, H, W, Cin = x.shape
    _, Cout, kh, kw = w.shape
    assert kh == 3 and kw == 3
    xp = jnp.pad(x, ((0, 0), (0, 1), (0, 1), (0, 0)))   # one zero row/col bottom-right

    def run(cols, taps):
        wmat = jnp.concatenate([w[:, :, ky, kx] for (ky, kx) in taps], axis=0)
        return matmul_bias(cols, wmat, b, relu=relu).reshape(N, H, W, Cout)

    # out[2i, 2j]     = x[i,j].w[1,1]
    ee = run(x.reshape(N * H * W, Cin), [(1, 1)])
    # out[2i, 2j+1]   = x[i,j].w[1,2] + x[i,j+1].w[1,0]
    cols_eo, _, _ = _im2col_nhwc(xp[:, :H, :, :], 1, 2, 1)
    eo = run(cols_eo, [(1, 2), (1, 0)])
    # out[2i+1, 2j]   = x[i,j].w[2,1] + x[i+1,j].w[0,1]
    cols_oe, _, _ = _im2col_nhwc(xp[:, :, :W, :], 2, 1, 1)
    oe = run(cols_oe, [(2, 1), (0, 1)])
    # out[2i+1, 2j+1] = x[i,j].w[2,2] + x[i,j+1].w[2,0] + x[i+1,j].w[0,2] + x[i+1,j+1].w[0,0]
    cols_oo, _, _ = _im2col_nhwc(xp, 2, 2, 1)
    oo = run(cols_oo, [(2, 2), (2, 0), (0, 2), (0, 0)])

    rows_e = jnp.stack([ee, eo], axis=3).reshape(N, H, 2 * W, Cout)
    rows_o = jnp.stack([oe, oo], axis=3).reshape(N, H, 2 * W, Cout)
    return jnp.stack([rows_e, rows_o], axis=2).reshape(N, 2 * H, 2 * W, Cout)


def linear(x, w, b, *, relu):
    """nn.Linear.  w: (out_features, in_features) (PyTorch layout)."""
    return matmul_bias(x, w.T, b, relu=relu)


# ------------------------------ Forward -------------------------------------

def vae_forward(p, x, eps):
    # x arrives NCHW (PyTorch convention); convert once to NHWC for the whole net.
    h = jnp.transpose(x, (0, 2, 3, 1))
    # encoder
    h = conv2d_same(h, p['e1_w'], p['e1_b'], stride=2, relu=True)   # 3  -> 16,  H/2
    h = conv2d_same(h, p['e2_w'], p['e2_b'], stride=1, relu=True)   # 16 -> 32
    h = conv2d_same(h, p['e3_w'], p['e3_b'], stride=2, relu=True)   # 32 -> 64,  H/4
    h = conv2d_same(h, p['e4_w'], p['e4_b'], stride=1, relu=True)   # 64 -> 128
    h = conv2d_same(h, p['e5_w'], p['e5_b'], stride=2, relu=True)   # 128-> 128, H/8
    # nn.Flatten is NCHW-ordered in PyTorch
    h = jnp.transpose(h, (0, 3, 1, 2)).reshape(h.shape[0], -1)
    lat = linear(h, p['efc_w'], p['efc_b'], relu=False)             # -> 2*LATENT
    mu, logvar = jnp.split(lat, 2, axis=1)                          # torch.chunk(..., 2, dim=1)
    z = reparameterize(mu, logvar, eps)
    # decoder
    d = linear(z, p['dfc_w'], p['dfc_b'], relu=True)
    d = d.reshape(z.shape[0], 128, IMG_DIM // 8, IMG_DIM // 8)      # nn.Unflatten (NCHW)
    d = jnp.transpose(d, (0, 2, 3, 1))                              # -> NHWC
    d = conv_transpose2d_s2(d, p['d1_w'], p['d1_b'], relu=True)
    d = conv_transpose2d_s1(d, p['d2_w'], p['d2_b'], padding=1, relu=True)
    d = conv_transpose2d_s2(d, p['d3_w'], p['d3_b'], relu=True)
    d = conv_transpose2d_s1(d, p['d4_w'], p['d4_b'], padding=1, relu=True)
    d = conv_transpose2d_s2(d, p['d5_w'], p['d5_b'], relu=False)
    recon = jnp.transpose(d, (0, 3, 1, 2))                          # back to NCHW
    return recon, mu, logvar


# --------------------------- Parameter init ---------------------------------

def _init_conv(key, cout, cin, k):
    k1, k2 = jax.random.split(key)
    bound = 1.0 / math.sqrt(cin * k * k)
    w = jax.random.uniform(k1, (cout, cin, k, k), jnp.float32, -bound, bound)
    b = jax.random.uniform(k2, (cout,), jnp.float32, -bound, bound)
    return w, b


def _init_deconv(key, cin, cout, k):
    k1, k2 = jax.random.split(key)
    bound = 1.0 / math.sqrt(cout * k * k)
    w = jax.random.uniform(k1, (cin, cout, k, k), jnp.float32, -bound, bound)
    b = jax.random.uniform(k2, (cout,), jnp.float32, -bound, bound)
    return w, b


def _init_linear(key, out_f, in_f):
    k1, k2 = jax.random.split(key)
    bound = 1.0 / math.sqrt(in_f)
    w = jax.random.uniform(k1, (out_f, in_f), jnp.float32, -bound, bound)
    b = jax.random.uniform(k2, (out_f,), jnp.float32, -bound, bound)
    return w, b


if __name__ == "__main__":
    key = jax.random.PRNGKey(0)
    ks = jax.random.split(key, 16)

    params = {}
    params['e1_w'], params['e1_b'] = _init_conv(ks[0], 16, 3, 3)
    params['e2_w'], params['e2_b'] = _init_conv(ks[1], 32, 16, 3)
    params['e3_w'], params['e3_b'] = _init_conv(ks[2], 64, 32, 3)
    params['e4_w'], params['e4_b'] = _init_conv(ks[3], 128, 64, 3)
    params['e5_w'], params['e5_b'] = _init_conv(ks[4], 128, 128, 3)
    params['efc_w'], params['efc_b'] = _init_linear(ks[5], LATENT * 2, FEAT)
    params['dfc_w'], params['dfc_b'] = _init_linear(ks[6], FEAT, LATENT)
    params['d1_w'], params['d1_b'] = _init_deconv(ks[7], 128, 128, 3)
    params['d2_w'], params['d2_b'] = _init_deconv(ks[8], 128, 64, 3)
    params['d3_w'], params['d3_b'] = _init_deconv(ks[9], 64, 32, 3)
    params['d4_w'], params['d4_b'] = _init_deconv(ks[10], 32, 16, 3)
    params['d5_w'], params['d5_b'] = _init_deconv(ks[11], 16, 3, 3)

    x = jax.random.normal(ks[12], (2, 3, IMG_DIM, IMG_DIM), jnp.float32)
    # torch.randn_like(std) equivalent: host-side gaussian noise fed into the kernel
    eps = jax.random.normal(ks[13], (2, LATENT), jnp.float32)

    fwd = jax.jit(vae_forward)
    recon, mu, logvar = fwd(params, x, eps)
    jax.block_until_ready((recon, mu, logvar))

    assert recon.shape == (2, 3, IMG_DIM, IMG_DIM), recon.shape
    assert mu.shape == (2, LATENT) and logvar.shape == (2, LATENT)
    assert recon.dtype == jnp.float32
    assert bool(jnp.isfinite(recon).all())

    print("KERNEL_OK")
</pallas_src>

<mosaic_0001>
module attributes {stable_mosaic.version = 11 : i64} {
  func.func @_matmul_bias_kernel(%arg0: i32, %arg1: i32, %arg2: i32, %arg3: memref<128x128xbf16, #tpu.memory_space<vmem>>, %arg4: memref<128x128xbf16, #tpu.memory_space<vmem>>, %arg5: memref<1x128xf32, #tpu.memory_space<vmem>>, %arg6: memref<128x128xf32, #tpu.memory_space<vmem>>, %arg7: memref<128x128xf32, #tpu.memory_space<vmem>>) attributes {dimension_semantics = [#tpu.dimension_semantics<parallel>, #tpu.dimension_semantics<parallel>, #tpu.dimension_semantics<arbitrary>], iteration_bounds = array<i64: 1, 1, 1>, scalar_prefetch = 0 : i64, scratch_operands = 1 : i64, tpu.core_type = #tpu.core_type<tc>, window_params = [{transform_indices = @transform_0, window_bounds = array<i64: 128, 128>}, {transform_indices = @transform_1, window_bounds = array<i64: 128, 128>}, {transform_indices = @transform_2, window_bounds = array<i64: 1, 128>}, {transform_indices = @transform_3, window_bounds = array<i64: 128, 128>}]} {
    %c0_i32 = arith.constant 0 : i32
    %0 = arith.cmpi eq, %arg2, %c0_i32 : i32
    %1 = arith.extui %0 : i1 to i32
    %c0_i32_0 = arith.constant 0 : i32
    %2 = arith.cmpi ne, %1, %c0_i32_0 : i32
    scf.if %2 {
      %cst_10 = arith.constant 0.000000e+00 : f32
      %12 = vector.broadcast %cst_10 : f32 to vector<128x128xf32>
      %c0_11 = arith.constant 0 : index
      %c0_12 = arith.constant 0 : index
      %13 = vector.load %arg7[%c0_11, %c0_12] : memref<128x128xf32, #tpu.memory_space<vmem>>, vector<128x128xf32>
      tpu.vector_store %arg7[%c0_11, %c0_12], %12 {strides = array<i32>} : memref<128x128xf32, #tpu.memory_space<vmem>>, vector<128x128xf32>,
    } else {
    }
    %c0 = arith.constant 0 : index
    %c0_1 = arith.constant 0 : index
    %3 = vector.load %arg7[%c0, %c0_1] : memref<128x128xf32, #tpu.memory_space<vmem>>, vector<128x128xf32>
    %c0_2 = arith.constant 0 : index
    %c0_3 = arith.constant 0 : index
    %4 = vector.load %arg3[%c0_2, %c0_3] : memref<128x128xbf16, #tpu.memory_space<vmem>>, vector<128x128xbf16>
    %c0_4 = arith.constant 0 : index
    %c0_5 = arith.constant 0 : index
    %5 = vector.load %arg4[%c0_4, %c0_5] : memref<128x128xbf16, #tpu.memory_space<vmem>>, vector<128x128xbf16>
    %cst = arith.constant dense<0.000000e+00> : vector<128x128xf32>
    %6 = tpu.matmul %4, %5, %cst {dimension_numbers = #tpu.dot_dimension_numbers<[1], [0], [0], [1], [0, 0, 1, 1], [], []>} : vector<128x128xbf16>, vector<128x128xbf16>, vector<128x128xf32> -> vector<128x128xf32>
    %7 = arith.addf %3, %6 : vector<128x128xf32>
    %c0_6 = arith.constant 0 : index
    %c0_7 = arith.constant 0 : index
    %8 = vector.load %arg7[%c0_6, %c0_7] : memref<128x128xf32, #tpu.memory_space<vmem>>, vector<128x128xf32>
    tpu.vector_store %arg7[%c0_6, %c0_7], %7 {strides = array<i32>} : memref<128x128xf32, #tpu.memory_space<vmem>>, vector<128x128xf32>,
    %c0_i32_8 = arith.constant 0 : i32
    %9 = arith.cmpi eq, %arg2, %c0_i32_8 : i32
    %10 = arith.extui %9 : i1 to i32
    %c0_i32_9 = arith.constant 0 : i32
    %11 = arith.cmpi ne, %10, %c0_i32_9 : i32
    scf.if %11 {
      %c0_10 = arith.constant 0 : index
      %c0_11 = arith.constant 0 : index
      %12 = vector.load %arg7[%c0_10, %c0_11] : memref<128x128xf32, #tpu.memory_space<vmem>>, vector<128x128xf32>
      %c0_12 = arith.constant 0 : index
      %c0_13 = arith.constant 0 : index
      %13 = vector.load %arg5[%c0_12, %c0_13] : memref<1x128xf32, #tpu.memory_space<vmem>>, vector<1x128xf32>
      %14 = vector.broadcast %13 : vector<1x128xf32> to vector<128x128xf32>
      %15 = arith.addf %12, %14 : vector<128x128xf32>
      %cst_14 = arith.constant 0.000000e+00 : f32
      %16 = vector.broadcast %cst_14 : f32 to vector<128x128xf32>
      %17 = arith.maximumf %15, %16 : vector<128x128xf32>
      %c0_15 = arith.constant 0 : index
      %c0_16 = arith.constant 0 : index
      %18 = vector.load %arg6[%c0_15, %c0_16] : memref<128x128xf32, #tpu.memory_space<vmem>>, vector<128x128xf32>
      tpu.vector_store %arg6[%c0_15, %c0_16], %17 {strides = array<i32>} : memref<128x128xf32, #tpu.memory_space<vmem>>, vector<128x128xf32>,
    } else {
    }
    return
  }
  func.func @transform_0(%arg0: i32, %arg1: i32, %arg2: i32) -> (i32, i32) {
    %c0_i32 = arith.constant 0 : i32
    return %arg0, %arg2 : i32, i32
  }
  func.func @transform_1(%arg0: i32, %arg1: i32, %arg2: i32) -> (i32, i32) {
    %c0_i32 = arith.constant 0 : i32
    return %arg2, %arg1 : i32, i32
  }
  func.func @transform_2(%arg0: i32, %arg1: i32, %arg2: i32) -> (i32, i32) {
    %c0_i32 = arith.constant 0 : i32
    %c0_i32_0 = arith.constant 0 : i32
    return %c0_i32, %arg1 : i32, i32
  }
  func.func @transform_3(%arg0: i32, %arg1: i32, %arg2: i32) -> (i32, i32) {
    %c0_i32 = arith.constant 0 : i32
    return %arg0, %arg1 : i32, i32
  }
}

module attributes {stable_mosaic.version = 11 : i64} {
  func.func @_matmul_bias_kernel(%arg0: i32, %arg1: i32, %arg2: i32, %arg3: memref<128x256xbf16, #tpu.memory_space<vmem>>, %arg4: memref<256x128xbf16, #tpu.memory_space<vmem>>, %arg5: memref<1x128xf32, #tpu.memory_space<vmem>>, %arg6: memref<128x128xf32, #tpu.memory_space<vmem>>, %arg7: memref<128x128xf32, #tpu.memory_space<vmem>>) attributes {dimension_semantics = [#tpu.dimension_semantics<parallel>, #tpu.dimension_semantics<parallel>, #tpu.dimension_semantics<arbitrary>], iteration_bounds = array<i64: 1, 1, 1>, scalar_prefetch = 0 : i64, scratch_operands = 1 : i64, tpu.core_type = #tpu.core_type<tc>, window_params = [{transform_indices = @transform_0, window_bounds = array<i64: 128, 256>}, {transform_indices = @transform_1, window_bounds = array<i64: 256, 128>}, {transform_indices = @transform_2, window_bounds = array<i64: 1, 128>}, {transform_indices = @transform_3, window_bounds = array<i64: 128, 128>}]} {
    %c0_i32 = arith.constant 0 : i32
    %0 = arith.cmpi eq, %arg2, %c0_i32 : i32
    %1 = arith.extui %0 : i1 to i32
    %c0_i32_0 = arith.constant 0 : i32
    %2 = arith.cmpi ne, %1, %c0_i32_0 : i32
    scf.if %2 {
      %cst_10 = arith.constant 0.000000e+00 : f32
      %12 = vector.broadcast %cst_10 : f32 to vector<128x128xf32>
      %c0_11 = arith.constant 0 : index
      %c0_12 = arith.constant 0 : index
      %13 = vector.load %arg7[%c0_11, %c0_12] : memref<128x128xf32, #tpu.memory_space<vmem>>, vector<128x128xf32>
      tpu.vector_store %arg7[%c0_11, %c0_12], %12 {strides = array<i32>} : memref<128x128xf32, #tpu.memory_space<vmem>>, vector<128x128xf32>,
    } else {
    }
    %c0 = arith.constant 0 : index
    %c0_1 = arith.constant 0 : index
    %3 = vector.load %arg7[%c0, %c0_1] : memref<128x128xf32, #tpu.memory_space<vmem>>, vector<128x128xf32>
    %c0_2 = arith.constant 0 : index
    %c0_3 = arith.constant 0 : index
    %4 = vector.load %arg3[%c0_2, %c0_3] : memref<128x256xbf16, #tpu.memory_space<vmem>>, vector<128x256xbf16>
    %c0_4 = arith.constant 0 : index
    %c0_5 = arith.constant 0 : index
    %5 = vector.load %arg4[%c0_4, %c0_5] : memref<256x128xbf16, #tpu.memory_space<vmem>>, vector<256x128xbf16>
    %cst = arith.constant dense<0.000000e+00> : vector<128x128xf32>
    %6 = tpu.matmul %4, %5, %cst {dimension_numbers = #tpu.dot_dimension_numbers<[1], [0], [0], [1], [0, 0, 1, 1], [], []>} : vector<128x256xbf16>, vector<256x128xbf16>, vector<128x128xf32> -> vector<128x128xf32>
    %7 = arith.addf %3, %6 : vector<128x128xf32>
    %c0_6 = arith.constant 0 : index
    %c0_7 = arith.constant 0 : index
    %8 = vector.load %arg7[%c0_6, %c0_7] : memref<128x128xf32, #tpu.memory_space<vmem>>, vector<128x128xf32>
    tpu.vector_store %arg7[%c0_6, %c0_7], %7 {strides = array<i32>} : memref<128x128xf32, #tpu.memory_space<vmem>>, vector<128x128xf32>,
    %c0_i32_8 = arith.constant 0 : i32
    %9 = arith.cmpi eq, %arg2, %c0_i32_8 : i32
    %10 = arith.extui %9 : i1 to i32
    %c0_i32_9 = arith.constant 0 : i32
    %11 = arith.cmpi ne, %10, %c0_i32_9 : i32
    scf.if %11 {
      %c0_10 = arith.constant 0 : index
      %c0_11 = arith.constant 0 : index
      %12 = vector.load %arg7[%c0_10, %c0_11] : memref<128x128xf32, #tpu.memory_space<vmem>>, vector<128x128xf32>
      %c0_12 = arith.constant 0 : index
      %c0_13 = arith.constant 0 : index
      %13 = vector.load %arg5[%c0_12, %c0_13] : memref<1x128xf32, #tpu.memory_space<vmem>>, vector<1x128xf32>
      %14 = vector.broadcast %13 : vector<1x128xf32> to vector<128x128xf32>
      %15 = arith.addf %12, %14 : vector<128x128xf32>
      %cst_14 = arith.constant 0.000000e+00 : f32
      %16 = vector.broadcast %cst_14 : f32 to vector<128x128xf32>
      %17 = arith.maximumf %15, %16 : vector<128x128xf32>
      %c0_15 = arith.constant 0 : index
      %c0_16 = arith.constant 0 : index
      %18 = vector.load %arg6[%c0_15, %c0_16] : memref<128x128xf32, #tpu.memory_space<vmem>>, vector<128x128xf32>
      tpu.vector_store %arg6[%c0_15, %c0_16], %17 {strides = array<i32>} : memref<128x128xf32, #tpu.memory_space<vmem>>, vector<128x128xf32>,
    } else {
    }
    return
  }
  func.func @transform_0(%arg0: i32, %arg1: i32, %arg2: i32) -> (i32, i32) {
    %c0_i32 = arith.constant 0 : i32
    return %arg0, %arg2 : i32, i32
  }
  func.func @transform_1(%arg0: i32, %arg1: i32, %arg2: i32) -> (i32, i32) {
    %c0_i32 = arith.constant 0 : i32
    return %arg2, %arg1 : i32, i32
  }
  func.func @transform_2(%arg0: i32, %arg1: i32, %arg2: i32) -> (i32, i32) {
    %c0_i32 = arith.constant 0 : i32
    %c0_i32_0 = arith.constant 0 : i32
    return %c0_i32, %arg1 : i32, i32
  }
  func.func @transform_3(%arg0: i32, %arg1: i32, %arg2: i32) -> (i32, i32) {
    %c0_i32 = arith.constant 0 : i32
    return %arg0, %arg1 : i32, i32
  }
}

module attributes {stable_mosaic.version = 11 : i64} {
  func.func @_matmul_bias_kernel(%arg0: i32, %arg1: i32, %arg2: i32, %arg3: memref<32x384xbf16, #tpu.memory_space<vmem>>, %arg4: memref<384x128xbf16, #tpu.memory_space<vmem>>, %arg5: memref<1x128xf32, #tpu.memory_space<vmem>>, %arg6: memref<32x128xf32, #tpu.memory_space<vmem>>, %arg7: memref<32x128xf32, #tpu.memory_space<vmem>>) attributes {dimension_semantics = [#tpu.dimension_semantics<parallel>, #tpu.dimension_semantics<parallel>, #tpu.dimension_semantics<arbitrary>], iteration_bounds = array<i64: 1, 1, 1>, scalar_prefetch = 0 : i64, scratch_operands = 1 : i64, tpu.core_type = #tpu.core_type<tc>, window_params = [{transform_indices = @transform_0, window_bounds = array<i64: 32, 384>}, {transform_indices = @transform_1, window_bounds = array<i64: 384, 128>}, {transform_indices = @transform_2, window_bounds = array<i64: 1, 128>}, {transform_indices = @transform_3, window_bounds = array<i64: 32, 128>}]} {
    %c0_i32 = arith.constant 0 : i32
    %0 = arith.cmpi eq, %arg2, %c0_i32 : i32
    %1 = arith.extui %0 : i1 to i32
    %c0_i32_0 = arith.constant 0 : i32
    %2 = arith.cmpi ne, %1, %c0_i32_0 : i32
    scf.if %2 {
      %cst_10 = arith.constant 0.000000e+00 : f32
      %12 = vector.broadcast %cst_10 : f32 to vector<32x128xf32>
      %c0_11 = arith.constant 0 : index
      %c0_12 = arith.constant 0 : index
      %13 = vector.load %arg7[%c0_11, %c0_12] : memref<32x128xf32, #tpu.memory_space<vmem>>, vector<32x128xf32>
      tpu.vector_store %arg7[%c0_11, %c0_12], %12 {strides = array<i32>} : memref<32x128xf32, #tpu.memory_space<vmem>>, vector<32x128xf32>,
    } else {
    }
    %c0 = arith.constant 0 : index
    %c0_1 = arith.constant 0 : index
    %3 = vector.load %arg7[%c0, %c0_1] : memref<32x128xf32, #tpu.memory_space<vmem>>, vector<32x128xf32>
    %c0_2 = arith.constant 0 : index
    %c0_3 = arith.constant 0 : index
    %4 = vector.load %arg3[%c0_2, %c0_3] : memref<32x384xbf16, #tpu.memory_space<vmem>>, vector<32x384xbf16>
    %c0_4 = arith.constant 0 : index
    %c0_5 = arith.constant 0 : index
    %5 = vector.load %arg4[%c0_4, %c0_5] : memref<384x128xbf16, #tpu.memory_space<vmem>>, vector<384x128xbf16>
    %cst = arith.constant dense<0.000000e+00> : vector<32x128xf32>
    %6 = tpu.matmul %4, %5, %cst {dimension_numbers = #tpu.dot_dimension_numbers<[1], [0], [0], [1], [0, 0, 1, 1], [], []>} : vector<32x384xbf16>, vector<384x128xbf16>, vector<32x128xf32> -> vector<32x128xf32>
    %7 = arith.addf %3, %6 : vector<32x128xf32>
    %c0_6 = arith.constant 0 : index
    %c0_7 = arith.constant 0 : index
    %8 = vector.load %arg7[%c0_6, %c0_7] : memref<32x128xf32, #tpu.memory_space<vmem>>, vector<32x128xf32>
    tpu.vector_store %arg7[%c0_6, %c0_7], %7 {strides = array<i32>} : memref<32x128xf32, #tpu.memory_space<vmem>>, vector<32x128xf32>,
    %c0_i32_8 = arith.constant 0 : i32
    %9 = arith.cmpi eq, %arg2, %c0_i32_8 : i32
    %10 = arith.extui %9 : i1 to i32
    %c0_i32_9 = arith.constant 0 : i32
    %11 = arith.cmpi ne, %10, %c0_i32_9 : i32
    scf.if %11 {
      %c0_10 = arith.constant 0 : index
      %c0_11 = arith.constant 0 : index
      %12 = vector.load %arg7[%c0_10, %c0_11] : memref<32x128xf32, #tpu.memory_space<vmem>>, vector<32x128xf32>
      %c0_12 = arith.constant 0 : index
      %c0_13 = arith.constant 0 : index
      %13 = vector.load %arg5[%c0_12, %c0_13] : memref<1x128xf32, #tpu.memory_space<vmem>>, vector<1x128xf32>
      %14 = vector.broadcast %13 : vector<1x128xf32> to vector<32x128xf32>
      %15 = arith.addf %12, %14 : vector<32x128xf32>
      %cst_14 = arith.constant 0.000000e+00 : f32
      %16 = vector.broadcast %cst_14 : f32 to vector<32x128xf32>
      %17 = arith.maximumf %15, %16 : vector<32x128xf32>
      %c0_15 = arith.constant 0 : index
      %c0_16 = arith.constant 0 : index
      %18 = vector.load %arg6[%c0_15, %c0_16] : memref<32x128xf32, #tpu.memory_space<vmem>>, vector<32x128xf32>
      tpu.vector_store %arg6[%c0_15, %c0_16], %17 {strides = array<i32>} : memref<32x128xf32, #tpu.memory_space<vmem>>, vector<32x128xf32>,
    } else {
    }
    return
  }
  func.func @transform_0(%arg0: i32, %arg1: i32, %arg2: i32) -> (i32, i32) {
    %c0_i32 = arith.constant 0 : i32
    return %arg0, %arg2 : i32, i32
  }
  func.func @transform_1(%arg0: i32, %arg1: i32, %arg2: i32) -> (i32, i32) {
    %c0_i32 = arith.constant 0 : i32
    return %arg2, %arg1 : i32, i32
  }
  func.func @transform_2(%arg0: i32, %arg1: i32, %arg2: i32) -> (i32, i32) {
    %c0_i32 = arith.constant 0 : i32
    %c0_i32_0 = arith.constant 0 : i32
    return %c0_i32, %arg1 : i32, i32
  }
  func.func @transform_3(%arg0: i32, %arg1: i32, %arg2: i32) -> (i32, i32) {
    %c0_i32 = arith.constant 0 : i32
    return %arg0, %arg1 : i32, i32
  }
}

module attributes {stable_mosaic.version = 11 : i64} {
  func.func @_matmul_bias_kernel(%arg0: i32, %arg1: i32, %arg2: i32, %arg3: memref<32x128xbf16, #tpu.memory_space<vmem>>, %arg4: memref<128x128xbf16, #tpu.memory_space<vmem>>, %arg5: memref<1x128xf32, #tpu.memory_space<vmem>>, %arg6: memref<32x128xf32, #tpu.memory_space<vmem>>, %arg7: memref<32x128xf32, #tpu.memory_space<vmem>>) attributes {dimension_semantics = [#tpu.dimension_semantics<parallel>, #tpu.dimension_semantics<parallel>, #tpu.dimension_semantics<arbitrary>], iteration_bounds = array<i64: 1, 1, 5>, scalar_prefetch = 0 : i64, scratch_operands = 1 : i64, tpu.core_type = #tpu.core_type<tc>, window_params = [{transform_indices = @transform_0, window_bounds = array<i64: 32, 128>}, {transform_indices = @transform_1, window_bounds = array<i64: 128, 128>}, {transform_indices = @transform_2, window_bounds = array<i64: 1, 128>}, {transform_indices = @transform_3, window_bounds = array<i64: 32, 128>}]} {
    %c0_i32 = arith.constant 0 : i32
    %0 = arith.cmpi eq, %arg2, %c0_i32 : i32
    %1 = arith.extui %0 : i1 to i32
    %c0_i32_0 = arith.constant 0 : i32
    %2 = arith.cmpi ne, %1, %c0_i32_0 : i32
    scf.if %2 {
      %cst_9 = arith.constant 0.000000e+00 : f32
      %12 = vector.broadcast %cst_9 : f32 to vector<32x128xf32>
      %c0_10 = arith.constant 0 : index
      %c0_11 = arith.constant 0 : index
      %13 = vector.load %arg7[%c0_10, %c0_11] : memref<32x128xf32, #tpu.memory_space<vmem>>, vector<32x128xf32>
      tpu.vector_store %arg7[%c0_10, %c0_11], %12 {strides = array<i32>} : memref<32x128xf32, #tpu.memory_space<vmem>>, vector<32x128xf32>,
    } else {
    }
    %c0 = arith.constant 0 : index
    %c0_1 = arith.constant 0 : index
    %3 = vector.load %arg7[%c0, %c0_1] : memref<32x128xf32, #tpu.memory_space<vmem>>, vector<32x128xf32>
    %c0_2 = arith.constant 0 : index
    %c0_3 = arith.constant 0 : index
    %4 = vector.load %arg3[%c0_2, %c0_3] : memref<32x128xbf16, #tpu.memory_space<vmem>>, vector<32x128xbf16>
    %c0_4 = arith.constant 0 : index
    %c0_5 = arith.constant 0 : index
    %5 = vector.load %arg4[%c0_4, %c0_5] : memref<128x128xbf16, #tpu.memory_space<vmem>>, vector<128x128xbf16>
    %cst = arith.constant dense<0.000000e+00> : vector<32x128xf32>
    %6 = tpu.matmul %4, %5, %cst {dimension_numbers = #tpu.dot_dimension_numbers<[1], [0], [0], [1], [0, 0, 1, 1], [], []>} : vector<32x128xbf16>, vector<128x128xbf16>, vector<32x128xf32> -> vector<32x128xf32>
    %7 = arith.addf %3, %6 : vector<32x128xf32>
    %c0_6 = arith.constant 0 : index
    %c0_7 = arith.constant 0 : index
    %8 = vector.load %arg7[%c0_6, %c0_7] : memref<32x128xf32, #tpu.memory_space<vmem>>, vector<32x128xf32>
    tpu.vector_store %arg7[%c0_6, %c0_7], %7 {strides = array<i32>} : memref<32x128xf32, #tpu.memory_space<vmem>>, vector<32x128xf32>,
    %c4_i32 = arith.constant 4 : i32
    %9 = arith.cmpi eq, %arg2, %c4_i32 : i32
    %10 = arith.extui %9 : i1 to i32
    %c0_i32_8 = arith.constant 0 : i32
    %11 = arith.cmpi ne, %10, %c0_i32_8 : i32
    scf.if %11 {
      %c0_9 = arith.constant 0 : index
      %c0_10 = arith.constant 0 : index
      %12 = vector.load %arg7[%c0_9, %c0_10] : memref<32x128xf32, #tpu.memory_space<vmem>>, vector<32x128xf32>
      %c0_11 = arith.constant 0 : index
      %c0_12 = arith.constant 0 : index
      %13 = vector.load %arg5[%c0_11, %c0_12] : memref<1x128xf32, #tpu.memory_space<vmem>>, vector<1x128xf32>
      %14 = vector.broadcast %13 : vector<1x128xf32> to vector<32x128xf32>
      %15 = arith.addf %12, %14 : vector<32x128xf32>
      %cst_13 = arith.constant 0.000000e+00 : f32
      %16 = vector.broadcast %cst_13 : f32 to vector<32x128xf32>
      %17 = arith.maximumf %15, %16 : vector<32x128xf32>
      %c0_14 = arith.constant 0 : index
      %c0_15 = arith.constant 0 : index
      %18 = vector.load %arg6[%c0_14, %c0_15] : memref<32x128xf32, #tpu.memory_space<vmem>>, vector<32x128xf32>
      tpu.vector_store %arg6[%c0_14, %c0_15], %17 {strides = array<i32>} : memref<32x128xf32, #tpu.memory_space<vmem>>, vector<32x128xf32>,
    } else {
    }
    return
  }
  func.func @transform_0(%arg0: i32, %arg1: i32, %arg2: i32) -> (i32, i32) {
    %c0_i32 = arith.constant 0 : i32
    return %arg0, %arg2 : i32, i32
  }
  func.func @transform_1(%arg0: i32, %arg1: i32, %arg2: i32) -> (i32, i32) {
    %c0_i32 = arith.constant 0 : i32
    return %arg2, %arg1 : i32, i32
  }
  func.func @transform_2(%arg0: i32, %arg1: i32, %arg2: i32) -> (i32, i32) {
    %c0_i32 = arith.constant 0 : i32
    %c0_i32_0 = arith.constant 0 : i32
    return %c0_i32, %arg1 : i32, i32
  }
  func.func @transform_3(%arg0: i32, %arg1: i32, %arg2: i32) -> (i32, i32) {
    %c0_i32 = arith.constant 0 : i32
    return %arg0, %arg1 : i32, i32
  }
}

module attributes {stable_mosaic.version = 11 : i64} {
  func.func @_matmul_bias_kernel(%arg0: i32, %arg1: i32, %arg2: i32, %arg3: memref<8x384xbf16, #tpu.memory_space<vmem>>, %arg4: memref<384x128xbf16, #tpu.memory_space<vmem>>, %arg5: memref<1x128xf32, #tpu.memory_space<vmem>>, %arg6: memref<8x128xf32, #tpu.memory_space<vmem>>, %arg7: memref<8x128xf32, #tpu.memory_space<vmem>>) attributes {dimension_semantics = [#tpu.dimension_semantics<parallel>, #tpu.dimension_semantics<parallel>, #tpu.dimension_semantics<arbitrary>], iteration_bounds = array<i64: 1, 1, 3>, scalar_prefetch = 0 : i64, scratch_operands = 1 : i64, tpu.core_type = #tpu.core_type<tc>, window_params = [{transform_indices = @transform_0, window_bounds = array<i64: 8, 384>}, {transform_indices = @transform_1, window_bounds = array<i64: 384, 128>}, {transform_indices = @transform_2, window_bounds = array<i64: 1, 128>}, {transform_indices = @transform_3, window_bounds = array<i64: 8, 128>}]} {
    %c0_i32 = arith.constant 0 : i32
    %0 = arith.cmpi eq, %arg2, %c0_i32 : i32
    %1 = arith.extui %0 : i1 to i32
    %c0_i32_0 = arith.constant 0 : i32
    %2 = arith.cmpi ne, %1, %c0_i32_0 : i32
    scf.if %2 {
      %cst_9 = arith.constant 0.000000e+00 : f32
      %12 = vector.broadcast %cst_9 : f32 to vector<8x128xf32>
      %c0_10 = arith.constant 0 : index
      %c0_11 = arith.constant 0 : index
      %13 = vector.load %arg7[%c0_10, %c0_11] : memref<8x128xf32, #tpu.memory_space<vmem>>, vector<8x128xf32>
      tpu.vector_store %arg7[%c0_10, %c0_11], %12 {strides = array<i32>} : memref<8x128xf32, #tpu.memory_space<vmem>>, vector<8x128xf32>,
    } else {
    }
    %c0 = arith.constant 0 : index
    %c0_1 = arith.constant 0 : index
    %3 = vector.load %arg7[%c0, %c0_1] : memref<8x128xf32, #tpu.memory_space<vmem>>, vector<8x128xf32>
    %c0_2 = arith.constant 0 : index
    %c0_3 = arith.constant 0 : index
    %4 = vector.load %arg3[%c0_2, %c0_3] : memref<8x384xbf16, #tpu.memory_space<vmem>>, vector<8x384xbf16>
    %c0_4 = arith.constant 0 : index
    %c0_5 = arith.constant 0 : index
    %5 = vector.load %arg4[%c0_4, %c0_5] : memref<384x128xbf16, #tpu.memory_space<vmem>>, vector<384x128xbf16>
    %cst = arith.constant dense<0.000000e+00> : vector<8x128xf32>
    %6 = tpu.matmul %4, %5, %cst {dimension_numbers = #tpu.dot_dimension_numbers<[1], [0], [0], [1], [0, 0, 1, 1], [], []>} : vector<8x384xbf16>, vector<384x128xbf16>, vector<8x128xf32> -> vector<8x128xf32>
    %7 = arith.addf %3, %6 : vector<8x128xf32>
    %c0_6 = arith.constant 0 : index
    %c0_7 = arith.constant 0 : index
    %8 = vector.load %arg7[%c0_6, %c0_7] : memref<8x128xf32, #tpu.memory_space<vmem>>, vector<8x128xf32>
    tpu.vector_store %arg7[%c0_6, %c0_7], %7 {strides = array<i32>} : memref<8x128xf32, #tpu.memory_space<vmem>>, vector<8x128xf32>,
    %c2_i32 = arith.constant 2 : i32
    %9 = arith.cmpi eq, %arg2, %c2_i32 : i32
    %10 = arith.extui %9 : i1 to i32
    %c0_i32_8 = arith.constant 0 : i32
    %11 = arith.cmpi ne, %10, %c0_i32_8 : i32
    scf.if %11 {
      %c0_9 = arith.constant 0 : index
      %c0_10 = arith.constant 0 : index
      %12 = vector.load %arg7[%c0_9, %c0_10] : memref<8x128xf32, #tpu.memory_space<vmem>>, vector<8x128xf32>
      %c0_11 = arith.constant 0 : index
      %c0_12 = arith.constant 0 : index
      %13 = vector.load %arg5[%c0_11, %c0_12] : memref<1x128xf32, #tpu.memory_space<vmem>>, vector<1x128xf32>
      %14 = vector.broadcast %13 : vector<1x128xf32> to vector<8x128xf32>
      %15 = arith.addf %12, %14 : vector<8x128xf32>
      %cst_13 = arith.constant 0.000000e+00 : f32
      %16 = vector.broadcast %cst_13 : f32 to vector<8x128xf32>
      %17 = arith.maximumf %15, %16 : vector<8x128xf32>
      %c0_14 = arith.constant 0 : index
      %c0_15 = arith.constant 0 : index
      %18 = vector.load %arg6[%c0_14, %c0_15] : memref<8x128xf32, #tpu.memory_space<vmem>>, vector<8x128xf32>
      tpu.vector_store %arg6[%c0_14, %c0_15], %17 {strides = array<i32>} : memref<8x128xf32, #tpu.memory_space<vmem>>, vector<8x128xf32>,
    } else {
    }
    return
  }
  func.func @transform_0(%arg0: i32, %arg1: i32, %arg2: i32) -> (i32, i32) {
    %c0_i32 = arith.constant 0 : i32
    return %arg0, %arg2 : i32, i32
  }
  func.func @transform_1(%arg0: i32, %arg1: i32, %arg2: i32) -> (i32, i32) {
    %c0_i32 = arith.constant 0 : i32
    return %arg2, %arg1 : i32, i32
  }
  func.func @transform_2(%arg0: i32, %arg1: i32, %arg2: i32) -> (i32, i32) {
    %c0_i32 = arith.constant 0 : i32
    %c0_i32_0 = arith.constant 0 : i32
    return %c0_i32, %arg1 : i32, i32
  }
  func.func @transform_3(%arg0: i32, %arg1: i32, %arg2: i32) -> (i32, i32) {
    %c0_i32 = arith.constant 0 : i32
    return %arg0, %arg1 : i32, i32
  }
}

module attributes {stable_mosaic.version = 11 : i64} {
  func.func @_matmul_bias_kernel(%arg0: i32, %arg1: i32, %arg2: i32, %arg3: memref<8x512xbf16, #tpu.memory_space<vmem>>, %arg4: memref<512x128xbf16, #tpu.memory_space<vmem>>, %arg5: memref<1x128xf32, #tpu.memory_space<vmem>>, %arg6: memref<8x128xf32, #tpu.memory_space<vmem>>, %arg7: memref<8x128xf32, #tpu.memory_space<vmem>>) attributes {dimension_semantics = [#tpu.dimension_semantics<parallel>, #tpu.dimension_semantics<parallel>, #tpu.dimension_semantics<arbitrary>], iteration_bounds = array<i64: 1, 1, 1>, scalar_prefetch = 0 : i64, scratch_operands = 1 : i64, tpu.core_type = #tpu.core_type<tc>, window_params = [{transform_indices = @transform_0, window_bounds = array<i64: 8, 512>}, {transform_indices = @transform_1, window_bounds = array<i64: 512, 128>}, {transform_indices = @transform_2, window_bounds = array<i64: 1, 128>}, {transform_indices = @transform_3, window_bounds = array<i64: 8, 128>}]} {
    %c0_i32 = arith.constant 0 : i32
    %0 = arith.cmpi eq, %arg2, %c0_i32 : i32
    %1 = arith.extui %0 : i1 to i32
    %c0_i32_0 = arith.constant 0 : i32
    %2 = arith.cmpi ne, %1, %c0_i32_0 : i32
    scf.if %2 {
      %cst_10 = arith.constant 0.000000e+00 : f32
      %12 = vector.broadcast %cst_10 : f32 to vector<8x128xf32>
      %c0_11 = arith.constant 0 : index
      %c0_12 = arith.constant 0 : index
      %13 = vector.load %arg7[%c0_11, %c0_12] : memref<8x128xf32, #tpu.memory_space<vmem>>, vector<8x128xf32>
      tpu.vector_store %arg7[%c0_11, %c0_12], %12 {strides = array<i32>} : memref<8x128xf32, #tpu.memory_space<vmem>>, vector<8x128xf32>,
    } else {
    }
    %c0 = arith.constant 0 : index
    %c0_1 = arith.constant 0 : index
    %3 = vector.load %arg7[%c0, %c0_1] : memref<8x128xf32, #tpu.memory_space<vmem>>, vector<8x128xf32>
    %c0_2 = arith.constant 0 : index
    %c0_3 = arith.constant 0 : index
    %4 = vector.load %arg3[%c0_2, %c0_3] : memref<8x512xbf16, #tpu.memory_space<vmem>>, vector<8x512xbf16>
    %c0_4 = arith.constant 0 : index
    %c0_5 = arith.constant 0 : index
    %5 = vector.load %arg4[%c0_4, %c0_5] : memref<512x128xbf16, #tpu.memory_space<vmem>>, vector<512x128xbf16>
    %cst = arith.constant dense<0.000000e+00> : vector<8x128xf32>
    %6 = tpu.matmul %4, %5, %cst {dimension_numbers = #tpu.dot_dimension_numbers<[1], [0], [0], [1], [0, 0, 1, 1], [], []>} : vector<8x512xbf16>, vector<512x128xbf16>, vector<8x128xf32> -> vector<8x128xf32>
    %7 = arith.addf %3, %6 : vector<8x128xf32>
    %c0_6 = arith.constant 0 : index
    %c0_7 = arith.constant 0 : index
    %8 = vector.load %arg7[%c0_6, %c0_7] : memref<8x128xf32, #tpu.memory_space<vmem>>, vector<8x128xf32>
    tpu.vector_store %arg7[%c0_6, %c0_7], %7 {strides = array<i32>} : memref<8x128xf32, #tpu.memory_space<vmem>>, vector<8x128xf32>,
    %c0_i32_8 = arith.constant 0 : i32
    %9 = arith.cmpi eq, %arg2, %c0_i32_8 : i32
    %10 = arith.extui %9 : i1 to i32
    %c0_i32_9 = arith.constant 0 : i32
    %11 = arith.cmpi ne, %10, %c0_i32_9 : i32
    scf.if %11 {
      %c0_10 = arith.constant 0 : index
      %c0_11 = arith.constant 0 : index
      %12 = vector.load %arg7[%c0_10, %c0_11] : memref<8x128xf32, #tpu.memory_space<vmem>>, vector<8x128xf32>
      %c0_12 = arith.constant 0 : index
      %c0_13 = arith.constant 0 : index
      %13 = vector.load %arg5[%c0_12, %c0_13] : memref<1x128xf32, #tpu.memory_space<vmem>>, vector<1x128xf32>
      %14 = vector.broadcast %13 : vector<1x128xf32> to vector<8x128xf32>
      %15 = arith.addf %12, %14 : vector<8x128xf32>
      %c0_14 = arith.constant 0 : index
      %c0_15 = arith.constant 0 : index
      %16 = vector.load %arg6[%c0_14, %c0_15] : memref<8x128xf32, #tpu.memory_space<vmem>>, vector<8x128xf32>
      tpu.vector_store %arg6[%c0_14, %c0_15], %15 {strides = array<i32>} : memref<8x128xf32, #tpu.memory_space<vmem>>, vector<8x128xf32>,
    } else {
    }
    return
  }
  func.func @transform_0(%arg0: i32, %arg1: i32, %arg2: i32) -> (i32, i32) {
    %c0_i32 = arith.constant 0 : i32
    return %arg0, %arg2 : i32, i32
  }
  func.func @transform_1(%arg0: i32, %arg1: i32, %arg2: i32) -> (i32, i32) {
    %c0_i32 = arith.constant 0 : i32
    return %arg2, %arg1 : i32, i32
  }
  func.func @transform_2(%arg0: i32, %arg1: i32, %arg2: i32) -> (i32, i32) {
    %c0_i32 = arith.constant 0 : i32
    %c0_i32_0 = arith.constant 0 : i32
    return %c0_i32, %arg1 : i32, i32
  }
  func.func @transform_3(%arg0: i32, %arg1: i32, %arg2: i32) -> (i32, i32) {
    %c0_i32 = arith.constant 0 : i32
    return %arg0, %arg1 : i32, i32
  }
}

module attributes {stable_mosaic.version = 11 : i64} {
  func.func @_reparam_kernel(%arg0: i32, %arg1: memref<8x128xf32, #tpu.memory_space<vmem>>, %arg2: memref<8x128xf32, #tpu.memory_space<vmem>>, %arg3: memref<8x128xf32, #tpu.memory_space<vmem>>, %arg4: memref<8x128xf32, #tpu.memory_space<vmem>>) attributes {dimension_semantics = [#tpu.dimension_semantics<arbitrary>], iteration_bounds = array<i64: 1>, scalar_prefetch = 0 : i64, scratch_operands = 0 : i64, tpu.core_type = #tpu.core_type<tc>, window_params = [{pipeline_mode = #tpu.pipeline_mode<synchronous>, transform_indices = @transform_0, window_bounds = array<i64: 8, 128>}, {pipeline_mode = #tpu.pipeline_mode<synchronous>, transform_indices = @transform_1, window_bounds = array<i64: 8, 128>}, {pipeline_mode = #tpu.pipeline_mode<synchronous>, transform_indices = @transform_2, window_bounds = array<i64: 8, 128>}, {pipeline_mode = #tpu.pipeline_mode<synchronous>, transform_indices = @transform_3, window_bounds = array<i64: 8, 128>}]} {
    %c0 = arith.constant 0 : index
    %c0_0 = arith.constant 0 : index
    %0 = vector.load %arg2[%c0, %c0_0] : memref<8x128xf32, #tpu.memory_space<vmem>>, vector<8x128xf32>
    %cst = arith.constant 5.000000e-01 : f32
    %1 = vector.broadcast %cst : f32 to vector<8x128xf32>
    %2 = arith.mulf %1, %0 : vector<8x128xf32>
    %3 = math.exp %2 : vector<8x128xf32>
    %c0_1 = arith.constant 0 : index
    %c0_2 = arith.constant 0 : index
    %4 = vector.load %arg1[%c0_1, %c0_2] : memref<8x128xf32, #tpu.memory_space<vmem>>, vector<8x128xf32>
    %c0_3 = arith.constant 0 : index
    %c0_4 = arith.constant 0 : index
    %5 = vector.load %arg3[%c0_3, %c0_4] : memref<8x128xf32, #tpu.memory_space<vmem>>, vector<8x128xf32>
    %6 = arith.mulf %5, %3 : vector<8x128xf32>
    %7 = arith.addf %4, %6 : vector<8x128xf32>
    %c0_5 = arith.constant 0 : index
    %c0_6 = arith.constant 0 : index
    %8 = vector.load %arg4[%c0_5, %c0_6] : memref<8x128xf32, #tpu.memory_space<vmem>>, vector<8x128xf32>
    tpu.vector_store %arg4[%c0_5, %c0_6], %7 {strides = array<i32>} : memref<8x128xf32, #tpu.memory_space<vmem>>, vector<8x128xf32>,
    return
  }
  func.func @transform_0(%arg0: i32) -> (i32, i32) {
    %c0_i32 = arith.constant 0 : i32
    %c0_i32_0 = arith.constant 0 : i32
    %c0_i32_1 = arith.constant 0 : i32
    return %c0_i32, %c0_i32_0 : i32, i32
  }
  func.func @transform_1(%arg0: i32) -> (i32, i32) {
    %c0_i32 = arith.constant 0 : i32
    %c0_i32_0 = arith.constant 0 : i32
    %c0_i32_1 = arith.constant 0 : i32
    return %c0_i32, %c0_i32_0 : i32, i32
  }
  func.func @transform_2(%arg0: i32) -> (i32, i32) {
    %c0_i32 = arith.constant 0 : i32
    %c0_i32_0 = arith.constant 0 : i32
    %c0_i32_1 = arith.constant 0 : i32
    return %c0_i32, %c0_i32_0 : i32, i32
  }
  func.func @transform_3(%arg0: i32) -> (i32, i32) {
    %c0_i32 = arith.constant 0 : i32
    %c0_i32_0 = arith.constant 0 : i32
    %c0_i32_1 = arith.constant 0 : i32
    return %c0_i32, %c0_i32_0 : i32, i32
  }
}

module attributes {stable_mosaic.version = 11 : i64} {
  func.func @_matmul_bias_kernel(%arg0: i32, %arg1: i32, %arg2: i32, %arg3: memref<8x128xbf16, #tpu.memory_space<vmem>>, %arg4: memref<128x256xbf16, #tpu.memory_space<vmem>>, %arg5: memref<1x256xf32, #tpu.memory_space<vmem>>, %arg6: memref<8x256xf32, #tpu.memory_space<vmem>>, %arg7: memref<8x256xf32, #tpu.memory_space<vmem>>) attributes {dimension_semantics = [#tpu.dimension_semantics<parallel>, #tpu.dimension_semantics<parallel>, #tpu.dimension_semantics<arbitrary>], iteration_bounds = array<i64: 1, 2, 1>, scalar_prefetch = 0 : i64, scratch_operands = 1 : i64, tpu.core_type = #tpu.core_type<tc>, window_params = [{transform_indices = @transform_0, window_bounds = array<i64: 8, 128>}, {transform_indices = @transform_1, window_bounds = array<i64: 128, 256>}, {transform_indices = @transform_2, window_bounds = array<i64: 1, 256>}, {transform_indices = @transform_3, window_bounds = array<i64: 8, 256>}]} {
    %c0_i32 = arith.constant 0 : i32
    %0 = arith.cmpi eq, %arg2, %c0_i32 : i32
    %1 = arith.extui %0 : i1 to i32
    %c0_i32_0 = arith.constant 0 : i32
    %2 = arith.cmpi ne, %1, %c0_i32_0 : i32
    scf.if %2 {
      %cst_10 = arith.constant 0.000000e+00 : f32
      %12 = vector.broadcast %cst_10 : f32 to vector<8x256xf32>
      %c0_11 = arith.constant 0 : index
      %c0_12 = arith.constant 0 : index
      %13 = vector.load %arg7[%c0_11, %c0_12] : memref<8x256xf32, #tpu.memory_space<vmem>>, vector<8x256xf32>
      tpu.vector_store %arg7[%c0_11, %c0_12], %12 {strides = array<i32>} : memref<8x256xf32, #tpu.memory_space<vmem>>, vector<8x256xf32>,
    } else {
    }
    %c0 = arith.constant 0 : index
    %c0_1 = arith.constant 0 : index
    %3 = vector.load %arg7[%c0, %c0_1] : memref<8x256xf32, #tpu.memory_space<vmem>>, vector<8x256xf32>
    %c0_2 = arith.constant 0 : index
    %c0_3 = arith.constant 0 : index
    %4 = vector.load %arg3[%c0_2, %c0_3] : memref<8x128xbf16, #tpu.memory_space<vmem>>, vector<8x128xbf16>
    %c0_4 = arith.constant 0 : index
    %c0_5 = arith.constant 0 : index
    %5 = vector.load %arg4[%c0_4, %c0_5] : memref<128x256xbf16, #tpu.memory_space<vmem>>, vector<128x256xbf16>
    %cst = arith.constant dense<0.000000e+00> : vector<8x256xf32>
    %6 = tpu.matmul %4, %5, %cst {dimension_numbers = #tpu.dot_dimension_numbers<[1], [0], [0], [1], [0, 0, 1, 1], [], []>} : vector<8x128xbf16>, vector<128x256xbf16>, vector<8x256xf32> -> vector<8x256xf32>
    %7 = arith.addf %3, %6 : vector<8x256xf32>
    %c0_6 = arith.constant 0 : index
    %c0_7 = arith.constant 0 : index
    %8 = vector.load %arg7[%c0_6, %c0_7] : memref<8x256xf32, #tpu.memory_space<vmem>>, vector<8x256xf32>
    tpu.vector_store %arg7[%c0_6, %c0_7], %7 {strides = array<i32>} : memref<8x256xf32, #tpu.memory_space<vmem>>, vector<8x256xf32>,
    %c0_i32_8 = arith.constant 0 : i32
    %9 = arith.cmpi eq, %arg2, %c0_i32_8 : i32
    %10 = arith.extui %9 : i1 to i32
    %c0_i32_9 = arith.constant 0 : i32
    %11 = arith.cmpi ne, %10, %c0_i32_9 : i32
    scf.if %11 {
      %c0_10 = arith.constant 0 : index
      %c0_11 = arith.constant 0 : index
      %12 = vector.load %arg7[%c0_10, %c0_11] : memref<8x256xf32, #tpu.memory_space<vmem>>, vector<8x256xf32>
      %c0_12 = arith.constant 0 : index
      %c0_13 = arith.constant 0 : index
      %13 = vector.load %arg5[%c0_12, %c0_13] : memref<1x256xf32, #tpu.memory_space<vmem>>, vector<1x256xf32>
      %14 = vector.broadcast %13 : vector<1x256xf32> to vector<8x256xf32>
      %15 = arith.addf %12, %14 : vector<8x256xf32>
      %cst_14 = arith.constant 0.000000e+00 : f32
      %16 = vector.broadcast %cst_14 : f32 to vector<8x256xf32>
      %17 = arith.maximumf %15, %16 : vector<8x256xf32>
      %c0_15 = arith.constant 0 : index
      %c0_16 = arith.constant 0 : index
      %18 = vector.load %arg6[%c0_15, %c0_16] : memref<8x256xf32, #tpu.memory_space<vmem>>, vector<8x256xf32>
      tpu.vector_store %arg6[%c0_15, %c0_16], %17 {strides = array<i32>} : memref<8x256xf32, #tpu.memory_space<vmem>>, vector<8x256xf32>,
    } else {
    }
    return
  }
  func.func @transform_0(%arg0: i32, %arg1: i32, %arg2: i32) -> (i32, i32) {
    %c0_i32 = arith.constant 0 : i32
    return %arg0, %arg2 : i32, i32
  }
  func.func @transform_1(%arg0: i32, %arg1: i32, %arg2: i32) -> (i32, i32) {
    %c0_i32 = arith.constant 0 : i32
    return %arg2, %arg1 : i32, i32
  }
  func.func @transform_2(%arg0: i32, %arg1: i32, %arg2: i32) -> (i32, i32) {
    %c0_i32 = arith.constant 0 : i32
    %c0_i32_0 = arith.constant 0 : i32
    return %c0_i32, %arg1 : i32, i32
  }
  func.func @transform_3(%arg0: i32, %arg1: i32, %arg2: i32) -> (i32, i32) {
    %c0_i32 = arith.constant 0 : i32
    return %arg0, %arg1 : i32, i32
  }
}

module attributes {stable_mosaic.version = 11 : i64} {
  func.func @_matmul_bias_kernel(%arg0: i32, %arg1: i32, %arg2: i32, %arg3: memref<8x512xbf16, #tpu.memory_space<vmem>>, %arg4: memref<512x128xbf16, #tpu.memory_space<vmem>>, %arg5: memref<1x128xf32, #tpu.memory_space<vmem>>, %arg6: memref<8x128xf32, #tpu.memory_space<vmem>>, %arg7: memref<8x128xf32, #tpu.memory_space<vmem>>) attributes {dimension_semantics = [#tpu.dimension_semantics<parallel>, #tpu.dimension_semantics<parallel>, #tpu.dimension_semantics<arbitrary>], iteration_bounds = array<i64: 1, 1, 1>, scalar_prefetch = 0 : i64, scratch_operands = 1 : i64, tpu.core_type = #tpu.core_type<tc>, window_params = [{transform_indices = @transform_0, window_bounds = array<i64: 8, 512>}, {transform_indices = @transform_1, window_bounds = array<i64: 512, 128>}, {transform_indices = @transform_2, window_bounds = array<i64: 1, 128>}, {transform_indices = @transform_3, window_bounds = array<i64: 8, 128>}]} {
    %c0_i32 = arith.constant 0 : i32
    %0 = arith.cmpi eq, %arg2, %c0_i32 : i32
    %1 = arith.extui %0 : i1 to i32
    %c0_i32_0 = arith.constant 0 : i32
    %2 = arith.cmpi ne, %1, %c0_i32_0 : i32
    scf.if %2 {
      %cst_10 = arith.constant 0.000000e+00 : f32
      %12 = vector.broadcast %cst_10 : f32 to vector<8x128xf32>
      %c0_11 = arith.constant 0 : index
      %c0_12 = arith.constant 0 : index
      %13 = vector.load %arg7[%c0_11, %c0_12] : memref<8x128xf32, #tpu.memory_space<vmem>>, vector<8x128xf32>
      tpu.vector_store %arg7[%c0_11, %c0_12], %12 {strides = array<i32>} : memref<8x128xf32, #tpu.memory_space<vmem>>, vector<8x128xf32>,
    } else {
    }
    %c0 = arith.constant 0 : index
    %c0_1 = arith.constant 0 : index
    %3 = vector.load %arg7[%c0, %c0_1] : memref<8x128xf32, #tpu.memory_space<vmem>>, vector<8x128xf32>
    %c0_2 = arith.constant 0 : index
    %c0_3 = arith.constant 0 : index
    %4 = vector.load %arg3[%c0_2, %c0_3] : memref<8x512xbf16, #tpu.memory_space<vmem>>, vector<8x512xbf16>
    %c0_4 = arith.constant 0 : index
    %c0_5 = arith.constant 0 : index
    %5 = vector.load %arg4[%c0_4, %c0_5] : memref<512x128xbf16, #tpu.memory_space<vmem>>, vector<512x128xbf16>
    %cst = arith.constant dense<0.000000e+00> : vector<8x128xf32>
    %6 = tpu.matmul %4, %5, %cst {dimension_numbers = #tpu.dot_dimension_numbers<[1], [0], [0], [1], [0, 0, 1, 1], [], []>} : vector<8x512xbf16>, vector<512x128xbf16>, vector<8x128xf32> -> vector<8x128xf32>
    %7 = arith.addf %3, %6 : vector<8x128xf32>
    %c0_6 = arith.constant 0 : index
    %c0_7 = arith.constant 0 : index
    %8 = vector.load %arg7[%c0_6, %c0_7] : memref<8x128xf32, #tpu.memory_space<vmem>>, vector<8x128xf32>
    tpu.vector_store %arg7[%c0_6, %c0_7], %7 {strides = array<i32>} : memref<8x128xf32, #tpu.memory_space<vmem>>, vector<8x128xf32>,
    %c0_i32_8 = arith.constant 0 : i32
    %9 = arith.cmpi eq, %arg2, %c0_i32_8 : i32
    %10 = arith.extui %9 : i1 to i32
    %c0_i32_9 = arith.constant 0 : i32
    %11 = arith.cmpi ne, %10, %c0_i32_9 : i32
    scf.if %11 {
      %c0_10 = arith.constant 0 : index
      %c0_11 = arith.constant 0 : index
      %12 = vector.load %arg7[%c0_10, %c0_11] : memref<8x128xf32, #tpu.memory_space<vmem>>, vector<8x128xf32>
      %c0_12 = arith.constant 0 : index
      %c0_13 = arith.constant 0 : index
      %13 = vector.load %arg5[%c0_12, %c0_13] : memref<1x128xf32, #tpu.memory_space<vmem>>, vector<1x128xf32>
      %14 = vector.broadcast %13 : vector<1x128xf32> to vector<8x128xf32>
      %15 = arith.addf %12, %14 : vector<8x128xf32>
      %cst_14 = arith.constant 0.000000e+00 : f32
      %16 = vector.broadcast %cst_14 : f32 to vector<8x128xf32>
      %17 = arith.maximumf %15, %16 : vector<8x128xf32>
      %c0_15 = arith.constant 0 : index
      %c0_16 = arith.constant 0 : index
      %18 = vector.load %arg6[%c0_15, %c0_16] : memref<8x128xf32, #tpu.memory_space<vmem>>, vector<8x128xf32>
      tpu.vector_store %arg6[%c0_15, %c0_16], %17 {strides = array<i32>} : memref<8x128xf32, #tpu.memory_space<vmem>>, vector<8x128xf32>,
    } else {
    }
    return
  }
  func.func @transform_0(%arg0: i32, %arg1: i32, %arg2: i32) -> (i32, i32) {
    %c0_i32 = arith.constant 0 : i32
    return %arg0, %arg2 : i32, i32
  }
  func.func @transform_1(%arg0: i32, %arg1: i32, %arg2: i32) -> (i32, i32) {
    %c0_i32 = arith.constant 0 : i32
    return %arg2, %arg1 : i32, i32
  }
  func.func @transform_2(%arg0: i32, %arg1: i32, %arg2: i32) -> (i32, i32) {
    %c0_i32 = arith.constant 0 : i32
    %c0_i32_0 = arith.constant 0 : i32
    return %c0_i32, %arg1 : i32, i32
  }
  func.func @transform_3(%arg0: i32, %arg1: i32, %arg2: i32) -> (i32, i32) {
    %c0_i32 = arith.constant 0 : i32
    return %arg0, %arg1 : i32, i32
  }
}

module attributes {stable_mosaic.version = 11 : i64} {
  func.func @_matmul_bias_kernel(%arg0: i32, %arg1: i32, %arg2: i32, %arg3: memref<8x256xbf16, #tpu.memory_space<vmem>>, %arg4: memref<256x128xbf16, #tpu.memory_space<vmem>>, %arg5: memref<1x128xf32, #tpu.memory_space<vmem>>, %arg6: memref<8x128xf32, #tpu.memory_space<vmem>>, %arg7: memref<8x128xf32, #tpu.memory_space<vmem>>) attributes {dimension_semantics = [#tpu.dimension_semantics<parallel>, #tpu.dimension_semantics<parallel>, #tpu.dimension_semantics<arbitrary>], iteration_bounds = array<i64: 1, 1, 1>, scalar_prefetch = 0 : i64, scratch_operands = 1 : i64, tpu.core_type = #tpu.core_type<tc>, window_params = [{transform_indices = @transform_0, window_bounds = array<i64: 8, 256>}, {transform_indices = @transform_1, window_bounds = array<i64: 256, 128>}, {transform_indices = @transform_2, window_bounds = array<i64: 1, 128>}, {transform_indices = @transform_3, window_bounds = array<i64: 8, 128>}]} {
    %c0_i32 = arith.constant 0 : i32
    %0 = arith.cmpi eq, %arg2, %c0_i32 : i32
    %1 = arith.extui %0 : i1 to i32
    %c0_i32_0 = arith.constant 0 : i32
    %2 = arith.cmpi ne, %1, %c0_i32_0 : i32
    scf.if %2 {
      %cst_10 = arith.constant 0.000000e+00 : f32
      %12 = vector.broadcast %cst_10 : f32 to vector<8x128xf32>
      %c0_11 = arith.constant 0 : index
      %c0_12 = arith.constant 0 : index
      %13 = vector.load %arg7[%c0_11, %c0_12] : memref<8x128xf32, #tpu.memory_space<vmem>>, vector<8x128xf32>
      tpu.vector_store %arg7[%c0_11, %c0_12], %12 {strides = array<i32>} : memref<8x128xf32, #tpu.memory_space<vmem>>, vector<8x128xf32>,
    } else {
    }
    %c0 = arith.constant 0 : index
    %c0_1 = arith.constant 0 : index
    %3 = vector.load %arg7[%c0, %c0_1] : memref<8x128xf32, #tpu.memory_space<vmem>>, vector<8x128xf32>
    %c0_2 = arith.constant 0 : index
    %c0_3 = arith.constant 0 : index
    %4 = vector.load %arg3[%c0_2, %c0_3] : memref<8x256xbf16, #tpu.memory_space<vmem>>, vector<8x256xbf16>
    %c0_4 = arith.constant 0 : index
    %c0_5 = arith.constant 0 : index
    %5 = vector.load %arg4[%c0_4, %c0_5] : memref<256x128xbf16, #tpu.memory_space<vmem>>, vector<256x128xbf16>
    %cst = arith.constant dense<0.000000e+00> : vector<8x128xf32>
    %6 = tpu.matmul %4, %5, %cst {dimension_numbers = #tpu.dot_dimension_numbers<[1], [0], [0], [1], [0, 0, 1, 1], [], []>} : vector<8x256xbf16>, vector<256x128xbf16>, vector<8x128xf32> -> vector<8x128xf32>
    %7 = arith.addf %3, %6 : vector<8x128xf32>
    %c0_6 = arith.constant 0 : index
    %c0_7 = arith.constant 0 : index
    %8 = vector.load %arg7[%c0_6, %c0_7] : memref<8x128xf32, #tpu.memory_space<vmem>>, vector<8x128xf32>
    tpu.vector_store %arg7[%c0_6, %c0_7], %7 {strides = array<i32>} : memref<8x128xf32, #tpu.memory_space<vmem>>, vector<8x128xf32>,
    %c0_i32_8 = arith.constant 0 : i32
    %9 = arith.cmpi eq, %arg2, %c0_i32_8 : i32
    %10 = arith.extui %9 : i1 to i32
    %c0_i32_9 = arith.constant 0 : i32
    %11 = arith.cmpi ne, %10, %c0_i32_9 : i32
    scf.if %11 {
      %c0_10 = arith.constant 0 : index
      %c0_11 = arith.constant 0 : index
      %12 = vector.load %arg7[%c0_10, %c0_11] : memref<8x128xf32, #tpu.memory_space<vmem>>, vector<8x128xf32>
      %c0_12 = arith.constant 0 : index
      %c0_13 = arith.constant 0 : index
      %13 = vector.load %arg5[%c0_12, %c0_13] : memref<1x128xf32, #tpu.memory_space<vmem>>, vector<1x128xf32>
      %14 = vector.broadcast %13 : vector<1x128xf32> to vector<8x128xf32>
      %15 = arith.addf %12, %14 : vector<8x128xf32>
      %cst_14 = arith.constant 0.000000e+00 : f32
      %16 = vector.broadcast %cst_14 : f32 to vector<8x128xf32>
      %17 = arith.maximumf %15, %16 : vector<8x128xf32>
      %c0_15 = arith.constant 0 : index
      %c0_16 = arith.constant 0 : index
      %18 = vector.load %arg6[%c0_15, %c0_16] : memref<8x128xf32, #tpu.memory_space<vmem>>, vector<8x128xf32>
      tpu.vector_store %arg6[%c0_15, %c0_16], %17 {strides = array<i32>} : memref<8x128xf32, #tpu.memory_space<vmem>>, vector<8x128xf32>,
    } else {
    }
    return
  }
  func.func @transform_0(%arg0: i32, %arg1: i32, %arg2: i32) -> (i32, i32) {
    %c0_i32 = arith.constant 0 : i32
    return %arg0, %arg2 : i32, i32
  }
  func.func @transform_1(%arg0: i32, %arg1: i32, %arg2: i32) -> (i32, i32) {
    %c0_i32 = arith.constant 0 : i32
    return %arg2, %arg1 : i32, i32
  }
  func.func @transform_2(%arg0: i32, %arg1: i32, %arg2: i32) -> (i32, i32) {
    %c0_i32 = arith.constant 0 : i32
    %c0_i32_0 = arith.constant 0 : i32
    return %c0_i32, %arg1 : i32, i32
  }
  func.func @transform_3(%arg0: i32, %arg1: i32, %arg2: i32) -> (i32, i32) {
    %c0_i32 = arith.constant 0 : i32
    return %arg0, %arg1 : i32, i32
  }
}

module attributes {stable_mosaic.version = 11 : i64} {
  func.func @_matmul_bias_kernel(%arg0: i32, %arg1: i32, %arg2: i32, %arg3: memref<8x128xbf16, #tpu.memory_space<vmem>>, %arg4: memref<128x128xbf16, #tpu.memory_space<vmem>>, %arg5: memref<1x128xf32, #tpu.memory_space<vmem>>, %arg6: memref<8x128xf32, #tpu.memory_space<vmem>>, %arg7: memref<8x128xf32, #tpu.memory_space<vmem>>) attributes {dimension_semantics = [#tpu.dimension_semantics<parallel>, #tpu.dimension_semantics<parallel>, #tpu.dimension_semantics<arbitrary>], iteration_bounds = array<i64: 1, 1, 1>, scalar_prefetch = 0 : i64, scratch_operands = 1 : i64, tpu.core_type = #tpu.core_type<tc>, window_params = [{transform_indices = @transform_0, window_bounds = array<i64: 8, 128>}, {transform_indices = @transform_1, window_bounds = array<i64: 128, 128>}, {transform_indices = @transform_2, window_bounds = array<i64: 1, 128>}, {transform_indices = @transform_3, window_bounds = array<i64: 8, 128>}]} {
    %c0_i32 = arith.constant 0 : i32
    %0 = arith.cmpi eq, %arg2, %c0_i32 : i32
    %1 = arith.extui %0 : i1 to i32
    %c0_i32_0 = arith.constant 0 : i32
    %2 = arith.cmpi ne, %1, %c0_i32_0 : i32
    scf.if %2 {
      %cst_10 = arith.constant 0.000000e+00 : f32
      %12 = vector.broadcast %cst_10 : f32 to vector<8x128xf32>
      %c0_11 = arith.constant 0 : index
      %c0_12 = arith.constant 0 : index
      %13 = vector.load %arg7[%c0_11, %c0_12] : memref<8x128xf32, #tpu.memory_space<vmem>>, vector<8x128xf32>
      tpu.vector_store %arg7[%c0_11, %c0_12], %12 {strides = array<i32>} : memref<8x128xf32, #tpu.memory_space<vmem>>, vector<8x128xf32>,
    } else {
    }
    %c0 = arith.constant 0 : index
    %c0_1 = arith.constant 0 : index
    %3 = vector.load %arg7[%c0, %c0_1] : memref<8x128xf32, #tpu.memory_space<vmem>>, vector<8x128xf32>
    %c0_2 = arith.constant 0 : index
    %c0_3 = arith.constant 0 : index
    %4 = vector.load %arg3[%c0_2, %c0_3] : memref<8x128xbf16, #tpu.memory_space<vmem>>, vector<8x128xbf16>
    %c0_4 = arith.constant 0 : index
    %c0_5 = arith.constant 0 : index
    %5 = vector.load %arg4[%c0_4, %c0_5] : memref<128x128xbf16, #tpu.memory_space<vmem>>, vector<128x128xbf16>
    %cst = arith.constant dense<0.000000e+00> : vector<8x128xf32>
    %6 = tpu.matmul %4, %5, %cst {dimension_numbers = #tpu.dot_dimension_numbers<[1], [0], [0], [1], [0, 0, 1, 1], [], []>} : vector<8x128xbf16>, vector<128x128xbf16>, vector<8x128xf32> -> vector<8x128xf32>
    %7 = arith.addf %3, %6 : vector<8x128xf32>
    %c0_6 = arith.constant 0 : index
    %c0_7 = arith.constant 0 : index
    %8 = vector.load %arg7[%c0_6, %c0_7] : memref<8x128xf32, #tpu.memory_space<vmem>>, vector<8x128xf32>
    tpu.vector_store %arg7[%c0_6, %c0_7], %7 {strides = array<i32>} : memref<8x128xf32, #tpu.memory_space<vmem>>, vector<8x128xf32>,
    %c0_i32_8 = arith.constant 0 : i32
    %9 = arith.cmpi eq, %arg2, %c0_i32_8 : i32
    %10 = arith.extui %9 : i1 to i32
    %c0_i32_9 = arith.constant 0 : i32
    %11 = arith.cmpi ne, %10, %c0_i32_9 : i32
    scf.if %11 {
      %c0_10 = arith.constant 0 : index
      %c0_11 = arith.constant 0 : index
      %12 = vector.load %arg7[%c0_10, %c0_11] : memref<8x128xf32, #tpu.memory_space<vmem>>, vector<8x128xf32>
      %c0_12 = arith.constant 0 : index
      %c0_13 = arith.constant 0 : index
      %13 = vector.load %arg5[%c0_12, %c0_13] : memref<1x128xf32, #tpu.memory_space<vmem>>, vector<1x128xf32>
      %14 = vector.broadcast %13 : vector<1x128xf32> to vector<8x128xf32>
      %15 = arith.addf %12, %14 : vector<8x128xf32>
      %cst_14 = arith.constant 0.000000e+00 : f32
      %16 = vector.broadcast %cst_14 : f32 to vector<8x128xf32>
      %17 = arith.maximumf %15, %16 : vector<8x128xf32>
      %c0_15 = arith.constant 0 : index
      %c0_16 = arith.constant 0 : index
      %18 = vector.load %arg6[%c0_15, %c0_16] : memref<8x128xf32, #tpu.memory_space<vmem>>, vector<8x128xf32>
      tpu.vector_store %arg6[%c0_15, %c0_16], %17 {strides = array<i32>} : memref<8x128xf32, #tpu.memory_space<vmem>>, vector<8x128xf32>,
    } else {
    }
    return
  }
  func.func @transform_0(%arg0: i32, %arg1: i32, %arg2: i32) -> (i32, i32) {
    %c0_i32 = arith.constant 0 : i32
    return %arg0, %arg2 : i32, i32
  }
  func.func @transform_1(%arg0: i32, %arg1: i32, %arg2: i32) -> (i32, i32) {
    %c0_i32 = arith.constant 0 : i32
    return %arg2, %arg1 : i32, i32
  }
  func.func @transform_2(%arg0: i32, %arg1: i32, %arg2: i32) -> (i32, i32) {
    %c0_i32 = arith.constant 0 : i32
    %c0_i32_0 = arith.constant 0 : i32
    return %c0_i32, %arg1 : i32, i32
  }
  func.func @transform_3(%arg0: i32, %arg1: i32, %arg2: i32) -> (i32, i32) {
    %c0_i32 = arith.constant 0 : i32
    return %arg0, %arg1 : i32, i32
  }
}

module attributes {stable_mosaic.version = 11 : i64} {
  func.func @_matmul_bias_kernel(%arg0: i32, %arg1: i32, %arg2: i32, %arg3: memref<32x384xbf16, #tpu.memory_space<vmem>>, %arg4: memref<384x128xbf16, #tpu.memory_space<vmem>>, %arg5: memref<1x128xf32, #tpu.memory_space<vmem>>, %arg6: memref<32x128xf32, #tpu.memory_space<vmem>>, %arg7: memref<32x128xf32, #tpu.memory_space<vmem>>) attributes {dimension_semantics = [#tpu.dimension_semantics<parallel>, #tpu.dimension_semantics<parallel>, #tpu.dimension_semantics<arbitrary>], iteration_bounds = array<i64: 1, 1, 3>, scalar_prefetch = 0 : i64, scratch_operands = 1 : i64, tpu.core_type = #tpu.core_type<tc>, window_params = [{transform_indices = @transform_0, window_bounds = array<i64: 32, 384>}, {transform_indices = @transform_1, window_bounds = array<i64: 384, 128>}, {transform_indices = @transform_2, window_bounds = array<i64: 1, 128>}, {transform_indices = @transform_3, window_bounds = array<i64: 32, 128>}]} {
    %c0_i32 = arith.constant 0 : i32
    %0 = arith.cmpi eq, %arg2, %c0_i32 : i32
    %1 = arith.extui %0 : i1 to i32
    %c0_i32_0 = arith.constant 0 : i32
    %2 = arith.cmpi ne, %1, %c0_i32_0 : i32
    scf.if %2 {
      %cst_9 = arith.constant 0.000000e+00 : f32
      %12 = vector.broadcast %cst_9 : f32 to vector<32x128xf32>
      %c0_10 = arith.constant 0 : index
      %c0_11 = arith.constant 0 : index
      %13 = vector.load %arg7[%c0_10, %c0_11] : memref<32x128xf32, #tpu.memory_space<vmem>>, vector<32x128xf32>
      tpu.vector_store %arg7[%c0_10, %c0_11], %12 {strides = array<i32>} : memref<32x128xf32, #tpu.memory_space<vmem>>, vector<32x128xf32>,
    } else {
    }
    %c0 = arith.constant 0 : index
    %c0_1 = arith.constant 0 : index
    %3 = vector.load %arg7[%c0, %c0_1] : memref<32x128xf32, #tpu.memory_space<vmem>>, vector<32x128xf32>
    %c0_2 = arith.constant 0 : index
    %c0_3 = arith.constant 0 : index
    %4 = vector.load %arg3[%c0_2, %c0_3] : memref<32x384xbf16, #tpu.memory_space<vmem>>, vector<32x384xbf16>
    %c0_4 = arith.constant 0 : index
    %c0_5 = arith.constant 0 : index
    %5 = vector.load %arg4[%c0_4, %c0_5] : memref<384x128xbf16, #tpu.memory_space<vmem>>, vector<384x128xbf16>
    %cst = arith.constant dense<0.000000e+00> : vector<32x128xf32>
    %6 = tpu.matmul %4, %5, %cst {dimension_numbers = #tpu.dot_dimension_numbers<[1], [0], [0], [1], [0, 0, 1, 1], [], []>} : vector<32x384xbf16>, vector<384x128xbf16>, vector<32x128xf32> -> vector<32x128xf32>
    %7 = arith.addf %3, %6 : vector<32x128xf32>
    %c0_6 = arith.constant 0 : index
    %c0_7 = arith.constant 0 : index
    %8 = vector.load %arg7[%c0_6, %c0_7] : memref<32x128xf32, #tpu.memory_space<vmem>>, vector<32x128xf32>
    tpu.vector_store %arg7[%c0_6, %c0_7], %7 {strides = array<i32>} : memref<32x128xf32, #tpu.memory_space<vmem>>, vector<32x128xf32>,
    %c2_i32 = arith.constant 2 : i32
    %9 = arith.cmpi eq, %arg2, %c2_i32 : i32
    %10 = arith.extui %9 : i1 to i32
    %c0_i32_8 = arith.constant 0 : i32
    %11 = arith.cmpi ne, %10, %c0_i32_8 : i32
    scf.if %11 {
      %c0_9 = arith.constant 0 : index
      %c0_10 = arith.constant 0 : index
      %12 = vector.load %arg7[%c0_9, %c0_10] : memref<32x128xf32, #tpu.memory_space<vmem>>, vector<32x128xf32>
      %c0_11 = arith.constant 0 : index
      %c0_12 = arith.constant 0 : index
      %13 = vector.load %arg5[%c0_11, %c0_12] : memref<1x128xf32, #tpu.memory_space<vmem>>, vector<1x128xf32>
      %14 = vector.broadcast %13 : vector<1x128xf32> to vector<32x128xf32>
      %15 = arith.addf %12, %14 : vector<32x128xf32>
      %cst_13 = arith.constant 0.000000e+00 : f32
      %16 = vector.broadcast %cst_13 : f32 to vector<32x128xf32>
      %17 = arith.maximumf %15, %16 : vector<32x128xf32>
      %c0_14 = arith.constant 0 : index
      %c0_15 = arith.constant 0 : index
      %18 = vector.load %arg6[%c0_14, %c0_15] : memref<32x128xf32, #tpu.memory_space<vmem>>, vector<32x128xf32>
      tpu.vector_store %arg6[%c0_14, %c0_15], %17 {strides = array<i32>} : memref<32x128xf32, #tpu.memory_space<vmem>>, vector<32x128xf32>,
    } else {
    }
    return
  }
  func.func @transform_0(%arg0: i32, %arg1: i32, %arg2: i32) -> (i32, i32) {
    %c0_i32 = arith.constant 0 : i32
    return %arg0, %arg2 : i32, i32
  }
  func.func @transform_1(%arg0: i32, %arg1: i32, %arg2: i32) -> (i32, i32) {
    %c0_i32 = arith.constant 0 : i32
    return %arg2, %arg1 : i32, i32
  }
  func.func @transform_2(%arg0: i32, %arg1: i32, %arg2: i32) -> (i32, i32) {
    %c0_i32 = arith.constant 0 : i32
    %c0_i32_0 = arith.constant 0 : i32
    return %c0_i32, %arg1 : i32, i32
  }
  func.func @transform_3(%arg0: i32, %arg1: i32, %arg2: i32) -> (i32, i32) {
    %c0_i32 = arith.constant 0 : i32
    return %arg0, %arg1 : i32, i32
  }
}

module attributes {stable_mosaic.version = 11 : i64} {
  func.func @_matmul_bias_kernel(%arg0: i32, %arg1: i32, %arg2: i32, %arg3: memref<32x256xbf16, #tpu.memory_space<vmem>>, %arg4: memref<256x128xbf16, #tpu.memory_space<vmem>>, %arg5: memref<1x128xf32, #tpu.memory_space<vmem>>, %arg6: memref<32x128xf32, #tpu.memory_space<vmem>>, %arg7: memref<32x128xf32, #tpu.memory_space<vmem>>) attributes {dimension_semantics = [#tpu.dimension_semantics<parallel>, #tpu.dimension_semantics<parallel>, #tpu.dimension_semantics<arbitrary>], iteration_bounds = array<i64: 1, 1, 1>, scalar_prefetch = 0 : i64, scratch_operands = 1 : i64, tpu.core_type = #tpu.core_type<tc>, window_params = [{transform_indices = @transform_0, window_bounds = array<i64: 32, 256>}, {transform_indices = @transform_1, window_bounds = array<i64: 256, 128>}, {transform_indices = @transform_2, window_bounds = array<i64: 1, 128>}, {transform_indices = @transform_3, window_bounds = array<i64: 32, 128>}]} {
    %c0_i32 = arith.constant 0 : i32
    %0 = arith.cmpi eq, %arg2, %c0_i32 : i32
    %1 = arith.extui %0 : i1 to i32
    %c0_i32_0 = arith.constant 0 : i32
    %2 = arith.cmpi ne, %1, %c0_i32_0 : i32
    scf.if %2 {
      %cst_10 = arith.constant 0.000000e+00 : f32
      %12 = vector.broadcast %cst_10 : f32 to vector<32x128xf32>
      %c0_11 = arith.constant 0 : index
      %c0_12 = arith.constant 0 : index
      %13 = vector.load %arg7[%c0_11, %c0_12] : memref<32x128xf32, #tpu.memory_space<vmem>>, vector<32x128xf32>
      tpu.vector_store %arg7[%c0_11, %c0_12], %12 {strides = array<i32>} : memref<32x128xf32, #tpu.memory_space<vmem>>, vector<32x128xf32>,
    } else {
    }
    %c0 = arith.constant 0 : index
    %c0_1 = arith.constant 0 : index
    %3 = vector.load %arg7[%c0, %c0_1] : memref<32x128xf32, #tpu.memory_space<vmem>>, vector<32x128xf32>
    %c0_2 = arith.constant 0 : index
    %c0_3 = arith.constant 0 : index
    %4 = vector.load %arg3[%c0_2, %c0_3] : memref<32x256xbf16, #tpu.memory_space<vmem>>, vector<32x256xbf16>
    %c0_4 = arith.constant 0 : index
    %c0_5 = arith.constant 0 : index
    %5 = vector.load %arg4[%c0_4, %c0_5] : memref<256x128xbf16, #tpu.memory_space<vmem>>, vector<256x128xbf16>
    %cst = arith.constant dense<0.000000e+00> : vector<32x128xf32>
    %6 = tpu.matmul %4, %5, %cst {dimension_numbers = #tpu.dot_dimension_numbers<[1], [0], [0], [1], [0, 0, 1, 1], [], []>} : vector<32x256xbf16>, vector<256x128xbf16>, vector<32x128xf32> -> vector<32x128xf32>
    %7 = arith.addf %3, %6 : vector<32x128xf32>
    %c0_6 = arith.constant 0 : index
    %c0_7 = arith.constant 0 : index
    %8 = vector.load %arg7[%c0_6, %c0_7] : memref<32x128xf32, #tpu.memory_space<vmem>>, vector<32x128xf32>
    tpu.vector_store %arg7[%c0_6, %c0_7], %7 {strides = array<i32>} : memref<32x128xf32, #tpu.memory_space<vmem>>, vector<32x128xf32>,
    %c0_i32_8 = arith.constant 0 : i32
    %9 = arith.cmpi eq, %arg2, %c0_i32_8 : i32
    %10 = arith.extui %9 : i1 to i32
    %c0_i32_9 = arith.constant 0 : i32
    %11 = arith.cmpi ne, %10, %c0_i32_9 : i32
    scf.if %11 {
      %c0_10 = arith.constant 0 : index
      %c0_11 = arith.constant 0 : index
      %12 = vector.load %arg7[%c0_10, %c0_11] : memref<32x128xf32, #tpu.memory_space<vmem>>, vector<32x128xf32>
      %c0_12 = arith.constant 0 : index
      %c0_13 = arith.constant 0 : index
      %13 = vector.load %arg5[%c0_12, %c0_13] : memref<1x128xf32, #tpu.memory_space<vmem>>, vector<1x128xf32>
      %14 = vector.broadcast %13 : vector<1x128xf32> to vector<32x128xf32>
      %15 = arith.addf %12, %14 : vector<32x128xf32>
      %cst_14 = arith.constant 0.000000e+00 : f32
      %16 = vector.broadcast %cst_14 : f32 to vector<32x128xf32>
      %17 = arith.maximumf %15, %16 : vector<32x128xf32>
      %c0_15 = arith.constant 0 : index
      %c0_16 = arith.constant 0 : index
      %18 = vector.load %arg6[%c0_15, %c0_16] : memref<32x128xf32, #tpu.memory_space<vmem>>, vector<32x128xf32>
      tpu.vector_store %arg6[%c0_15, %c0_16], %17 {strides = array<i32>} : memref<32x128xf32, #tpu.memory_space<vmem>>, vector<32x128xf32>,
    } else {
    }
    return
  }
  func.func @transform_0(%arg0: i32, %arg1: i32, %arg2: i32) -> (i32, i32) {
    %c0_i32 = arith.constant 0 : i32
    return %arg0, %arg2 : i32, i32
  }
  func.func @transform_1(%arg0: i32, %arg1: i32, %arg2: i32) -> (i32, i32) {
    %c0_i32 = arith.constant 0 : i32
    return %arg2, %arg1 : i32, i32
  }
  func.func @transform_2(%arg0: i32, %arg1: i32, %arg2: i32) -> (i32, i32) {
    %c0_i32 = arith.constant 0 : i32
    %c0_i32_0 = arith.constant 0 : i32
    return %c0_i32, %arg1 : i32, i32
  }
  func.func @transform_3(%arg0: i32, %arg1: i32, %arg2: i32) -> (i32, i32) {
    %c0_i32 = arith.constant 0 : i32
    return %arg0, %arg1 : i32, i32
  }
}

module attributes {stable_mosaic.version = 11 : i64} {
  func.func @_matmul_bias_kernel(%arg0: i32, %arg1: i32, %arg2: i32, %arg3: memref<32x128xbf16, #tpu.memory_space<vmem>>, %arg4: memref<128x128xbf16, #tpu.memory_space<vmem>>, %arg5: memref<1x128xf32, #tpu.memory_space<vmem>>, %arg6: memref<32x128xf32, #tpu.memory_space<vmem>>, %arg7: memref<32x128xf32, #tpu.memory_space<vmem>>) attributes {dimension_semantics = [#tpu.dimension_semantics<parallel>, #tpu.dimension_semantics<parallel>, #tpu.dimension_semantics<arbitrary>], iteration_bounds = array<i64: 1, 1, 1>, scalar_prefetch = 0 : i64, scratch_operands = 1 : i64, tpu.core_type = #tpu.core_type<tc>, window_params = [{transform_indices = @transform_0, window_bounds = array<i64: 32, 128>}, {transform_indices = @transform_1, window_bounds = array<i64: 128, 128>}, {transform_indices = @transform_2, window_bounds = array<i64: 1, 128>}, {transform_indices = @transform_3, window_bounds = array<i64: 32, 128>}]} {
    %c0_i32 = arith.constant 0 : i32
    %0 = arith.cmpi eq, %arg2, %c0_i32 : i32
    %1 = arith.extui %0 : i1 to i32
    %c0_i32_0 = arith.constant 0 : i32
    %2 = arith.cmpi ne, %1, %c0_i32_0 : i32
    scf.if %2 {
      %cst_10 = arith.constant 0.000000e+00 : f32
      %12 = vector.broadcast %cst_10 : f32 to vector<32x128xf32>
      %c0_11 = arith.constant 0 : index
      %c0_12 = arith.constant 0 : index
      %13 = vector.load %arg7[%c0_11, %c0_12] : memref<32x128xf32, #tpu.memory_space<vmem>>, vector<32x128xf32>
      tpu.vector_store %arg7[%c0_11, %c0_12], %12 {strides = array<i32>} : memref<32x128xf32, #tpu.memory_space<vmem>>, vector<32x128xf32>,
    } else {
    }
    %c0 = arith.constant 0 : index
    %c0_1 = arith.constant 0 : index
    %3 = vector.load %arg7[%c0, %c0_1] : memref<32x128xf32, #tpu.memory_space<vmem>>, vector<32x128xf32>
    %c0_2 = arith.constant 0 : index
    %c0_3 = arith.constant 0 : index
    %4 = vector.load %arg3[%c0_2, %c0_3] : memref<32x128xbf16, #tpu.memory_space<vmem>>, vector<32x128xbf16>
    %c0_4 = arith.constant 0 : index
    %c0_5 = arith.constant 0 : index
    %5 = vector.load %arg4[%c0_4, %c0_5] : memref<128x128xbf16, #tpu.memory_space<vmem>>, vector<128x128xbf16>
    %cst = arith.constant dense<0.000000e+00> : vector<32x128xf32>
    %6 = tpu.matmul %4, %5, %cst {dimension_numbers = #tpu.dot_dimension_numbers<[1], [0], [0], [1], [0, 0, 1, 1], [], []>} : vector<32x128xbf16>, vector<128x128xbf16>, vector<32x128xf32> -> vector<32x128xf32>
    %7 = arith.addf %3, %6 : vector<32x128xf32>
    %c0_6 = arith.constant 0 : index
    %c0_7 = arith.constant 0 : index
    %8 = vector.load %arg7[%c0_6, %c0_7] : memref<32x128xf32, #tpu.memory_space<vmem>>, vector<32x128xf32>
    tpu.vector_store %arg7[%c0_6, %c0_7], %7 {strides = array<i32>} : memref<32x128xf32, #tpu.memory_space<vmem>>, vector<32x128xf32>,
    %c0_i32_8 = arith.constant 0 : i32
    %9 = arith.cmpi eq, %arg2, %c0_i32_8 : i32
    %10 = arith.extui %9 : i1 to i32
    %c0_i32_9 = arith.constant 0 : i32
    %11 = arith.cmpi ne, %10, %c0_i32_9 : i32
    scf.if %11 {
      %c0_10 = arith.constant 0 : index
      %c0_11 = arith.constant 0 : index
      %12 = vector.load %arg7[%c0_10, %c0_11] : memref<32x128xf32, #tpu.memory_space<vmem>>, vector<32x128xf32>
      %c0_12 = arith.constant 0 : index
      %c0_13 = arith.constant 0 : index
      %13 = vector.load %arg5[%c0_12, %c0_13] : memref<1x128xf32, #tpu.memory_space<vmem>>, vector<1x128xf32>
      %14 = vector.broadcast %13 : vector<1x128xf32> to vector<32x128xf32>
      %15 = arith.addf %12, %14 : vector<32x128xf32>
      %cst_14 = arith.constant 0.000000e+00 : f32
      %16 = vector.broadcast %cst_14 : f32 to vector<32x128xf32>
      %17 = arith.maximumf %15, %16 : vector<32x128xf32>
      %c0_15 = arith.constant 0 : index
      %c0_16 = arith.constant 0 : index
      %18 = vector.load %arg6[%c0_15, %c0_16] : memref<32x128xf32, #tpu.memory_space<vmem>>, vector<32x128xf32>
      tpu.vector_store %arg6[%c0_15, %c0_16], %17 {strides = array<i32>} : memref<32x128xf32, #tpu.memory_space<vmem>>, vector<32x128xf32>,
    } else {
    }
    return
  }
  func.func @transform_0(%arg0: i32, %arg1: i32, %arg2: i32) -> (i32, i32) {
    %c0_i32 = arith.constant 0 : i32
    return %arg0, %arg2 : i32, i32
  }
  func.func @transform_1(%arg0: i32, %arg1: i32, %arg2: i32) -> (i32, i32) {
    %c0_i32 = arith.constant 0 : i32
    return %arg2, %arg1 : i32, i32
  }
  func.func @transform_2(%arg0: i32, %arg1: i32, %arg2: i32) -> (i32, i32) {
    %c0_i32 = arith.constant 0 : i32
    %c0_i32_0 = arith.constant 0 : i32
    return %c0_i32, %arg1 : i32, i32
  }
  func.func @transform_3(%arg0: i32, %arg1: i32, %arg2: i32) -> (i32, i32) {
    %c0_i32 = arith.constant 0 : i32
    return %arg0, %arg1 : i32, i32
  }
}

module attributes {stable_mosaic.version = 11 : i64} {
  func.func @_matmul_bias_kernel(%arg0: i32, %arg1: i32, %arg2: i32, %arg3: memref<128x384xbf16, #tpu.memory_space<vmem>>, %arg4: memref<384x128xbf16, #tpu.memory_space<vmem>>, %arg5: memref<1x128xf32, #tpu.memory_space<vmem>>, %arg6: memref<128x128xf32, #tpu.memory_space<vmem>>, %arg7: memref<128x128xf32, #tpu.memory_space<vmem>>) attributes {dimension_semantics = [#tpu.dimension_semantics<parallel>, #tpu.dimension_semantics<parallel>, #tpu.dimension_semantics<arbitrary>], iteration_bounds = array<i64: 1, 1, 1>, scalar_prefetch = 0 : i64, scratch_operands = 1 : i64, tpu.core_type = #tpu.core_type<tc>, window_params = [{transform_indices = @transform_0, window_bounds = array<i64: 128, 384>}, {transform_indices = @transform_1, window_bounds = array<i64: 384, 128>}, {transform_indices = @transform_2, window_bounds = array<i64: 1, 128>}, {transform_indices = @transform_3, window_bounds = array<i64: 128, 128>}]} {
    %c0_i32 = arith.constant 0 : i32
    %0 = arith.cmpi eq, %arg2, %c0_i32 : i32
    %1 = arith.extui %0 : i1 to i32
    %c0_i32_0 = arith.constant 0 : i32
    %2 = arith.cmpi ne, %1, %c0_i32_0 : i32
    scf.if %2 {
      %cst_10 = arith.constant 0.000000e+00 : f32
      %12 = vector.broadcast %cst_10 : f32 to vector<128x128xf32>
      %c0_11 = arith.constant 0 : index
      %c0_12 = arith.constant 0 : index
      %13 = vector.load %arg7[%c0_11, %c0_12] : memref<128x128xf32, #tpu.memory_space<vmem>>, vector<128x128xf32>
      tpu.vector_store %arg7[%c0_11, %c0_12], %12 {strides = array<i32>} : memref<128x128xf32, #tpu.memory_space<vmem>>, vector<128x128xf32>,
    } else {
    }
    %c0 = arith.constant 0 : index
    %c0_1 = arith.constant 0 : index
    %3 = vector.load %arg7[%c0, %c0_1] : memref<128x128xf32, #tpu.memory_space<vmem>>, vector<128x128xf32>
    %c0_2 = arith.constant 0 : index
    %c0_3 = arith.constant 0 : index
    %4 = vector.load %arg3[%c0_2, %c0_3] : memref<128x384xbf16, #tpu.memory_space<vmem>>, vector<128x384xbf16>
    %c0_4 = arith.constant 0 : index
    %c0_5 = arith.constant 0 : index
    %5 = vector.load %arg4[%c0_4, %c0_5] : memref<384x128xbf16, #tpu.memory_space<vmem>>, vector<384x128xbf16>
    %cst = arith.constant dense<0.000000e+00> : vector<128x128xf32>
    %6 = tpu.matmul %4, %5, %cst {dimension_numbers = #tpu.dot_dimension_numbers<[1], [0], [0], [1], [0, 0, 1, 1], [], []>} : vector<128x384xbf16>, vector<384x128xbf16>, vector<128x128xf32> -> vector<128x128xf32>
    %7 = arith.addf %3, %6 : vector<128x128xf32>
    %c0_6 = arith.constant 0 : index
    %c0_7 = arith.constant 0 : index
    %8 = vector.load %arg7[%c0_6, %c0_7] : memref<128x128xf32, #tpu.memory_space<vmem>>, vector<128x128xf32>
    tpu.vector_store %arg7[%c0_6, %c0_7], %7 {strides = array<i32>} : memref<128x128xf32, #tpu.memory_space<vmem>>, vector<128x128xf32>,
    %c0_i32_8 = arith.constant 0 : i32
    %9 = arith.cmpi eq, %arg2, %c0_i32_8 : i32
    %10 = arith.extui %9 : i1 to i32
    %c0_i32_9 = arith.constant 0 : i32
    %11 = arith.cmpi ne, %10, %c0_i32_9 : i32
    scf.if %11 {
      %c0_10 = arith.constant 0 : index
      %c0_11 = arith.constant 0 : index
      %12 = vector.load %arg7[%c0_10, %c0_11] : memref<128x128xf32, #tpu.memory_space<vmem>>, vector<128x128xf32>
      %c0_12 = arith.constant 0 : index
      %c0_13 = arith.constant 0 : index
      %13 = vector.load %arg5[%c0_12, %c0_13] : memref<1x128xf32, #tpu.memory_space<vmem>>, vector<1x128xf32>
      %14 = vector.broadcast %13 : vector<1x128xf32> to vector<128x128xf32>
      %15 = arith.addf %12, %14 : vector<128x128xf32>
      %cst_14 = arith.constant 0.000000e+00 : f32
      %16 = vector.broadcast %cst_14 : f32 to vector<128x128xf32>
      %17 = arith.maximumf %15, %16 : vector<128x128xf32>
      %c0_15 = arith.constant 0 : index
      %c0_16 = arith.constant 0 : index
      %18 = vector.load %arg6[%c0_15, %c0_16] : memref<128x128xf32, #tpu.memory_space<vmem>>, vector<128x128xf32>
      tpu.vector_store %arg6[%c0_15, %c0_16], %17 {strides = array<i32>} : memref<128x128xf32, #tpu.memory_space<vmem>>, vector<128x128xf32>,
    } else {
    }
    return
  }
  func.func @transform_0(%arg0: i32, %arg1: i32, %arg2: i32) -> (i32, i32) {
    %c0_i32 = arith.constant 0 : i32
    return %arg0, %arg2 : i32, i32
  }
  func.func @transform_1(%arg0: i32, %arg1: i32, %arg2: i32) -> (i32, i32) {
    %c0_i32 = arith.constant 0 : i32
    return %arg2, %arg1 : i32, i32
  }
  func.func @transform_2(%arg0: i32, %arg1: i32, %arg2: i32) -> (i32, i32) {
    %c0_i32 = arith.constant 0 : i32
    %c0_i32_0 = arith.constant 0 : i32
    return %c0_i32, %arg1 : i32, i32
  }
  func.func @transform_3(%arg0: i32, %arg1: i32, %arg2: i32) -> (i32, i32) {
    %c0_i32 = arith.constant 0 : i32
    return %arg0, %arg1 : i32, i32
  }
}

module attributes {stable_mosaic.version = 11 : i64} {
  func.func @_matmul_bias_kernel(%arg0: i32, %arg1: i32, %arg2: i32, %arg3: memref<128x128xbf16, #tpu.memory_space<vmem>>, %arg4: memref<128x128xbf16, #tpu.memory_space<vmem>>, %arg5: memref<1x128xf32, #tpu.memory_space<vmem>>, %arg6: memref<128x128xf32, #tpu.memory_space<vmem>>, %arg7: memref<128x128xf32, #tpu.memory_space<vmem>>) attributes {dimension_semantics = [#tpu.dimension_semantics<parallel>, #tpu.dimension_semantics<parallel>, #tpu.dimension_semantics<arbitrary>], iteration_bounds = array<i64: 1, 1, 1>, scalar_prefetch = 0 : i64, scratch_operands = 1 : i64, tpu.core_type = #tpu.core_type<tc>, window_params = [{transform_indices = @transform_0, window_bounds = array<i64: 128, 128>}, {transform_indices = @transform_1, window_bounds = array<i64: 128, 128>}, {transform_indices = @transform_2, window_bounds = array<i64: 1, 128>}, {transform_indices = @transform_3, window_bounds = array<i64: 128, 128>}]} {
    %c0_i32 = arith.constant 0 : i32
    %0 = arith.cmpi eq, %arg2, %c0_i32 : i32
    %1 = arith.extui %0 : i1 to i32
    %c0_i32_0 = arith.constant 0 : i32
    %2 = arith.cmpi ne, %1, %c0_i32_0 : i32
    scf.if %2 {
      %cst_10 = arith.constant 0.000000e+00 : f32
      %12 = vector.broadcast %cst_10 : f32 to vector<128x128xf32>
      %c0_11 = arith.constant 0 : index
      %c0_12 = arith.constant 0 : index
      %13 = vector.load %arg7[%c0_11, %c0_12] : memref<128x128xf32, #tpu.memory_space<vmem>>, vector<128x128xf32>
      tpu.vector_store %arg7[%c0_11, %c0_12], %12 {strides = array<i32>} : memref<128x128xf32, #tpu.memory_space<vmem>>, vector<128x128xf32>,
    } else {
    }
    %c0 = arith.constant 0 : index
    %c0_1 = arith.constant 0 : index
    %3 = vector.load %arg7[%c0, %c0_1] : memref<128x128xf32, #tpu.memory_space<vmem>>, vector<128x128xf32>
    %c0_2 = arith.constant 0 : index
    %c0_3 = arith.constant 0 : index
    %4 = vector.load %arg3[%c0_2, %c0_3] : memref<128x128xbf16, #tpu.memory_space<vmem>>, vector<128x128xbf16>
    %c0_4 = arith.constant 0 : index
    %c0_5 = arith.constant 0 : index
    %5 = vector.load %arg4[%c0_4, %c0_5] : memref<128x128xbf16, #tpu.memory_space<vmem>>, vector<128x128xbf16>
    %cst = arith.constant dense<0.000000e+00> : vector<128x128xf32>
    %6 = tpu.matmul %4, %5, %cst {dimension_numbers = #tpu.dot_dimension_numbers<[1], [0], [0], [1], [0, 0, 1, 1], [], []>} : vector<128x128xbf16>, vector<128x128xbf16>, vector<128x128xf32> -> vector<128x128xf32>
    %7 = arith.addf %3, %6 : vector<128x128xf32>
    %c0_6 = arith.constant 0 : index
    %c0_7 = arith.constant 0 : index
    %8 = vector.load %arg7[%c0_6, %c0_7] : memref<128x128xf32, #tpu.memory_space<vmem>>, vector<128x128xf32>
    tpu.vector_store %arg7[%c0_6, %c0_7], %7 {strides = array<i32>} : memref<128x128xf32, #tpu.memory_space<vmem>>, vector<128x128xf32>,
    %c0_i32_8 = arith.constant 0 : i32
    %9 = arith.cmpi eq, %arg2, %c0_i32_8 : i32
    %10 = arith.extui %9 : i1 to i32
    %c0_i32_9 = arith.constant 0 : i32
    %11 = arith.cmpi ne, %10, %c0_i32_9 : i32
    scf.if %11 {
      %c0_10 = arith.constant 0 : index
      %c0_11 = arith.constant 0 : index
      %12 = vector.load %arg7[%c0_10, %c0_11] : memref<128x128xf32, #tpu.memory_space<vmem>>, vector<128x128xf32>
      %c0_12 = arith.constant 0 : index
      %c0_13 = arith.constant 0 : index
      %13 = vector.load %arg5[%c0_12, %c0_13] : memref<1x128xf32, #tpu.memory_space<vmem>>, vector<1x128xf32>
      %14 = vector.broadcast %13 : vector<1x128xf32> to vector<128x128xf32>
      %15 = arith.addf %12, %14 : vector<128x128xf32>
      %c0_14 = arith.constant 0 : index
      %c0_15 = arith.constant 0 : index
      %16 = vector.load %arg6[%c0_14, %c0_15] : memref<128x128xf32, #tpu.memory_space<vmem>>, vector<128x128xf32>
      tpu.vector_store %arg6[%c0_14, %c0_15], %15 {strides = array<i32>} : memref<128x128xf32, #tpu.memory_space<vmem>>, vector<128x128xf32>,
    } else {
    }
    return
  }
  func.func @transform_0(%arg0: i32, %arg1: i32, %arg2: i32) -> (i32, i32) {
    %c0_i32 = arith.constant 0 : i32
    return %arg0, %arg2 : i32, i32
  }
  func.func @transform_1(%arg0: i32, %arg1: i32, %arg2: i32) -> (i32, i32) {
    %c0_i32 = arith.constant 0 : i32
    return %arg2, %arg1 : i32, i32
  }
  func.func @transform_2(%arg0: i32, %arg1: i32, %arg2: i32) -> (i32, i32) {
    %c0_i32 = arith.constant 0 : i32
    %c0_i32_0 = arith.constant 0 : i32
    return %c0_i32, %arg1 : i32, i32
  }
  func.func @transform_3(%arg0: i32, %arg1: i32, %arg2: i32) -> (i32, i32) {
    %c0_i32 = arith.constant 0 : i32
    return %arg0, %arg1 : i32, i32
  }
}

</mosaic_0001>

<llo_original>
// kernel: vae_forward.22
$region0: #{vae_forward.22}
  #allocation0 [shape = 'u32[]', space=smem, size = 0x4, offset = 0x4, fixed_abs, tag = 'smem constant byte address 0x4 - core index']
  #allocation1 [shape = 'u32[144,128]{1,0:T(1,128)}', space=vmem, size = 0x12000, scoped, tag = 'internal scratch']
  #allocation2 [shape = 'f32[128,128]{1,0:T(8,128)}', space=vmem, size = 0x10000, scoped, tag = 'scratch operand']
  %s0 = inlined_call_operand.hbm [shape: bf16[128,128], index: 0, kind: input, shape index: {}]
  %s1 = inlined_call_operand.hbm [shape: bf16[128,128], index: 1, kind: input, shape index: {}]
  %s2 = inlined_call_operand.hbm [shape: f32[1,128], index: 2, kind: input, shape index: {}]
  %s3 = inlined_call_operand.hbm [shape: f32[128,128], index: 3, kind: output, shape index: {}]
  %s4 = sld [smem:[#allocation0]]
  $region42: #{vae_forward.22} parent=0
    _
  %s6 = ssub.s32 1, %s4
  %s7 = scalar_select 0, %s6, %s4
  $region1: #{vae_forward.22} parent=0
    #allocation3 [shape = 'u8[32768]{0}', space=vmem, size = 0x8000, scoped, tag = 'input window, operand 0, single buffered']
    #allocation4 [shape = 's32[1]{0}', space=sflag, size = 0x4, scoped, tag = 'scoped memory for vae_forward.22']
    #allocation5 [shape = 's32[1]{0}', space=sflag, size = 0x4, scoped, tag = 'scoped memory for vae_forward.22']
    #allocation6 [shape = 'u8[32768]{0}', space=vmem, size = 0x8000, scoped, tag = 'input window, operand 1, single buffered']
    #allocation7 [shape = 's32[1]{0}', space=sflag, size = 0x4, scoped, tag = 'scoped memory for vae_forward.22']
    #allocation8 [shape = 'u8[512]{0}', space=vmem, size = 0x400, scoped, tag = 'input window, operand 2, single buffered']
    #allocation9 [shape = 'u8[65536]{0}', space=vmem, size = 0x10000, scoped, tag = 'output window, operand 0, single buffered']
    %8 = vsyncpa [#allocation4], 0
    %9 = vsyncpa [#allocation7], 0
    %10 = vsyncpa [#allocation5], 0
    // Predicated region
    $region2: #{vae_forward.22} parent=1 // pred_check
      _
    $region3: #{vae_forward.22} parent=1 // pred_check_branch
      %12 = sbr.rel (0) target = $region5
    $region4: #{vae_forward.22} parent=1 // pred_region
      %s14 = ssub.s32 1024, 1024
      %15 = vsyncadd [#allocation4], %s14
      %s16 = sshll.u32 [#allocation3], 4
      %s17 = int_to_ptr.vmem [resolvable:$true] %s16
      %22 = dma.hbm_to_vmem [thread:$0]  %s0, 1024, %s17, [#allocation4], 64, 64, 4
    $region5: #{vae_forward.22} parent=1 // pred_fallthru
      _
    // Predicated region
    $region6: #{vae_forward.22} parent=1 // pred_check
      _
    $region7: #{vae_forward.22} parent=1 // pred_check_branch
      %24 = sbr.rel (0) target = $region9
    $region8: #{vae_forward.22} parent=1 // pred_region
      %s26 = ssub.s32 1024, 1024
      %27 = vsyncadd [#allocation7], %s26
      %s28 = sshll.u32 [#allocation6], 4
      %s29 = int_to_ptr.vmem [resolvable:$true] %s28
      %34 = dma.hbm_to_vmem [thread:$0]  %s1, 1024, %s29, [#allocation7], 64, 64, 4
    $region9: #{vae_forward.22} parent=1 // pred_fallthru
      _
    // Predicated region
    $region10: #{vae_forward.22} parent=1 // pred_check
      _
    $region11: #{vae_forward.22} parent=1 // pred_check_branch
      %36 = sbr.rel (0) target = $region13
    $region12: #{vae_forward.22} parent=1 // pred_region
      %s38 = ssub.s32 16, 16
      %39 = vsyncadd [#allocation7], %s38
      %s41 = sshll.u32 [#allocation8], 4
      %s42 = int_to_ptr.vmem [resolvable:$true] %s41
      %44 = dma.hbm_to_vmem [thread:$0]  %s2, 16, %s42, [#allocation7]
    $region13: #{vae_forward.22} parent=1 // pred_fallthru
      _
    // Predicated region
    $region14: #{vae_forward.22} parent=1 // pred_check
      _
    $region15: #{vae_forward.22} parent=1 // pred_check_branch
      %46 = sbr.rel (0) target = $region17
    $region16: #{vae_forward.22} parent=1 // pred_region
      %47 = dma.done [#allocation4], 1024
    $region17: #{vae_forward.22} parent=1 // pred_fallthru
      _
    // Predicated region
    $region18: #{vae_forward.22} parent=1 // pred_check
      _
    $region19: #{vae_forward.22} parent=1 // pred_check_branch
      %49 = sbr.rel (0) target = $region21
    $region20: #{vae_forward.22} parent=1 // pred_region
      %50 = dma.done [#allocation7], 1024
    $region21: #{vae_forward.22} parent=1 // pred_fallthru
      _
    // Predicated region
    $region22: #{vae_forward.22} parent=1 // pred_check
      _
    $region23: #{vae_forward.22} parent=1 // pred_check_branch
      %52 = sbr.rel (0) target = $region25
    $region24: #{vae_forward.22} parent=1 // pred_region
      %53 = dma.done [#allocation7], 16
    $region25: #{vae_forward.22} parent=1 // pred_fallthru
      _
    %p55 = scmp.eq.s32.totalorder 0, 0
    // Predicated region
    $region26: #{vae_forward.22} parent=1 // pred_check
      %p56 = pneg %p55
    $region27: #{vae_forward.22} parent=1 // pred_check_branch
      %58 = sbr.rel (%p56) target = $region29
    $region28: #{vae_forward.22} parent=1 // pred_region
      %59 = vst [vmem:[#allocation2] sm:$0xff] 0.0
      %60 = vst [vmem:[#allocation2 + $0x8] sm:$0xff] 0.0
      %61 = vst [vmem:[#allocation2 + $0x10] sm:$0xff] 0.0
      %62 = vst [vmem:[#allocation2 + $0x18] sm:$0xff] 0.0
      %63 = vst [vmem:[#allocation2 + $0x20] sm:$0xff] 0.0
      %64 = vst [vmem:[#allocation2 + $0x28] sm:$0xff] 0.0
      %65 = vst [vmem:[#allocation2 + $0x30] sm:$0xff] 0.0
      %66 = vst [vmem:[#allocation2 + $0x38] sm:$0xff] 0.0
      %67 = vst [vmem:[#allocation2 + $0x40] sm:$0xff] 0.0
      %68 = vst [vmem:[#allocation2 + $0x48] sm:$0xff] 0.0
      %69 = vst [vmem:[#allocation2 + $0x50] sm:$0xff] 0.0
      %70 = vst [vmem:[#allocation2 + $0x58] sm:$0xff] 0.0
      %71 = vst [vmem:[#allocation2 + $0x60] sm:$0xff] 0.0
      %72 = vst [vmem:[#allocation2 + $0x68] sm:$0xff] 0.0
      %73 = vst [vmem:[#allocation2 + $0x70] sm:$0xff] 0.0
      %74 = vst [vmem:[#allocation2 + $0x78] sm:$0xff] 0.0
    $region29: #{vae_forward.22} parent=1 // pred_fallthru
      _
    %v75 = vld [vmem:[#allocation2] sm:$0xff]
    %v76 = vld [vmem:[#allocation2 + $0x8] sm:$0xff]
    %v77 = vld [vmem:[#allocation2 + $0x10] sm:$0xff]
    %v78 = vld [vmem:[#allocation2 + $0x18] sm:$0xff]
    %v79 = vld [vmem:[#allocation2 + $0x20] sm:$0xff]
    %v80 = vld [vmem:[#allocation2 + $0x28] sm:$0xff]
    %v81 = vld [vmem:[#allocation2 + $0x30] sm:$0xff]
    %v82 = vld [vmem:[#allocation2 + $0x38] sm:$0xff]
    %v83 = vld [vmem:[#allocation2 + $0x40] sm:$0xff]
    %v84 = vld [vmem:[#allocation2 + $0x48] sm:$0xff]
    %v85 = vld [vmem:[#allocation2 + $0x50] sm:$0xff]
    %v86 = vld [vmem:[#allocation2 + $0x58] sm:$0xff]
    %v87 = vld [vmem:[#allocation2 + $0x60] sm:$0xff]
    %v88 = vld [vmem:[#allocation2 + $0x68] sm:$0xff]
    %v89 = vld [vmem:[#allocation2 + $0x70] sm:$0xff]
    %v90 = vld [vmem:[#allocation2 + $0x78] sm:$0xff]
    %v91 = vld [vmem:[#allocation3] sm:$0xf]
    %v92 = vld [vmem:[#allocation3 + $0x4] sm:$0xf]
    %v93 = vld [vmem:[#allocation3 + $0x8] sm:$0xf]
    %v94 = vld [vmem:[#allocation3 + $0xc] sm:$0xf]
    %v95 = vld [vmem:[#allocation3 + $0x10] sm:$0xf]
    %v96 = vld [vmem:[#allocation3 + $0x14] sm:$0xf]
    %v97 = vld [vmem:[#allocation3 + $0x18] sm:$0xf]
    %v98 = vld [vmem:[#allocation3 + $0x1c] sm:$0xf]
    %v99 = vld [vmem:[#allocation3 + $0x20] sm:$0xf]
    %v100 = vld [vmem:[#allocation3 + $0x24] sm:$0xf]
    %v101 = vld [vmem:[#allocation3 + $0x28] sm:$0xf]
    %v102 = vld [vmem:[#allocation3 + $0x2c] sm:$0xf]
    %v103 = vld [vmem:[#allocation3 + $0x30] sm:$0xf]
    %v104 = vld [vmem:[#allocation3 + $0x34] sm:$0xf]
    %v105 = vld [vmem:[#allocation3 + $0x38] sm:$0xf]
    %v106 = vld [vmem:[#allocation3 + $0x3c] sm:$0xf]
    %v107 = vld [vmem:[#allocation6] sm:$0xf]
    %v108 = vld [vmem:[#allocation6 + $0x4] sm:$0xf]
    %v109 = vld [vmem:[#allocation6 + $0x8] sm:$0xf]
    %v110 = vld [vmem:[#allocation6 + $0xc] sm:$0xf]
    %v111 = vld [vmem:[#allocation6 + $0x10] sm:$0xf]
    %v112 = vld [vmem:[#allocation6 + $0x14] sm:$0xf]
    %v113 = vld [vmem:[#allocation6 + $0x18] sm:$0xf]
    %v114 = vld [vmem:[#allocation6 + $0x1c] sm:$0xf]
    %v115 = vld [vmem:[#allocation6 + $0x20] sm:$0xf]
    %v116 = vld [vmem:[#allocation6 + $0x24] sm:$0xf]
    %v117 = vld [vmem:[#allocation6 + $0x28] sm:$0xf]
    %v118 = vld [vmem:[#allocation6 + $0x2c] sm:$0xf]
    %v119 = vld [vmem:[#allocation6 + $0x30] sm:$0xf]
    %v120 = vld [vmem:[#allocation6 + $0x34] sm:$0xf]
    %v121 = vld [vmem:[#allocation6 + $0x38] sm:$0xf]
    %v122 = vld [vmem:[#allocation6 + $0x3c] sm:$0xf]
    %v139 = vunpack.c.l.b16 %v91
    %v140 = vunpack.c.l.b16 %v92
    %v141 = vunpack.c.l.b16 %v93
    %v142 = vunpack.c.l.b16 %v94
    %v143 = vunpack.c.l.b16 %v95
    %v144 = vunpack.c.l.b16 %v96
    %v145 = vunpack.c.l.b16 %v97
    %v146 = vunpack.c.l.b16 %v98
    %v147 = vunpack.c.l.b16 %v99
    %v148 = vunpack.c.l.b16 %v100
    %v149 = vunpack.c.l.b16 %v101
    %v150 = vunpack.c.l.b16 %v102
    %v151 = vunpack.c.l.b16 %v103
    %v152 = vunpack.c.l.b16 %v104
    %v153 = vunpack.c.l.b16 %v105
    %v154 = vunpack.c.l.b16 %v106
    %v155 = vpack.c.b16 %v140, %v139
    %v156 = vpack.c.b16 %v142, %v141
    %v157 = vpack.c.b16 %v144, %v143
    %v158 = vpack.c.b16 %v146, %v145
    %v159 = vpack.c.b16 %v148, %v147
    %v160 = vpack.c.b16 %v150, %v149
    %v161 = vpack.c.b16 %v152, %v151
    %v162 = vpack.c.b16 %v154, %v153
    %v187 = vunpack.c.l.b16 %v107
    %v188 = vunpack.c.l.b16 %v108
    %v189 = vunpack.c.l.b16 %v109
    %v190 = vunpack.c.l.b16 %v110
    %v191 = vunpack.c.l.b16 %v111
    %v192 = vunpack.c.l.b16 %v112
    %v193 = vunpack.c.l.b16 %v113
    %v194 = vunpack.c.l.b16 %v114
    %v195 = vunpack.c.l.b16 %v115
    %v196 = vunpack.c.l.b16 %v116
    %v197 = vunpack.c.l.b16 %v117
    %v198 = vunpack.c.l.b16 %v118
    %v199 = vunpack.c.l.b16 %v119
    %v200 = vunpack.c.l.b16 %v120
    %v201 = vunpack.c.l.b16 %v121
    %v202 = vunpack.c.l.b16 %v122
    %v203 = vpack.c.b16 %v188, %v187
    %v204 = vpack.c.b16 %v190, %v189
    %v205 = vpack.c.b16 %v192, %v191
    %v206 = vpack.c.b16 %v194, %v193
    %v207 = vpack.c.b16 %v196, %v195
    %v208 = vpack.c.b16 %v198, %v197
    %v209 = vpack.c.b16 %v200, %v199
    %v210 = vpack.c.b16 %v202, %v201
    %219 = vmatprep.subr.bf16.mxu0 0
    %220 = vmatpush1.bf16.msra.mxu0 %v203
    %221 = vmatprep.subr.bf16.mxu0 0
    %222 = vmatpush1.bf16.msra.mxu0 %v204
    %223 = vmatprep.subr.bf16.mxu0 0
    %224 = vmatpush1.bf16.msra.mxu0 %v205
    %225 = vmatprep.subr.bf16.mxu0 0
    %226 = vmatpush1.bf16.msra.mxu0 %v206
    %227 = vmatprep.subr.bf16.mxu0 0
    %228 = vmatpush1.bf16.msra.mxu0 %v207
    %229 = vmatprep.subr.bf16.mxu0 0
    %230 = vmatpush1.bf16.msra.mxu0 %v208
    %231 = vmatprep.subr.bf16.mxu0 0
    %232 = vmatpush1.bf16.msra.mxu0 %v209
    %233 = vmatprep.subr.bf16.mxu0 0
    %234 = vmatpush1.bf16.msra.mxu0 %v210
    %235 = vmatprep.subr.bf16.mxu0 0
    %236 = vmatpush1.bf16.msra.mxu0 0
    %237 = vmatprep.subr.bf16.mxu0 0
    %238 = vmatpush1.bf16.msra.mxu0 0
    %239 = vmatprep.subr.bf16.mxu0 0
    %240 = vmatpush1.bf16.msra.mxu0 0
    %241 = vmatprep.subr.bf16.mxu0 0
    %242 = vmatpush1.bf16.msra.mxu0 0
    %243 = vmatprep.subr.bf16.mxu0 0
    %244 = vmatpush1.bf16.msra.mxu0 0
    %245 = vmatprep.subr.bf16.mxu0 0
    %246 = vmatpush1.bf16.msra.mxu0 0
    %247 = vmatprep.subr.bf16.mxu0 0
    %248 = vmatpush1.bf16.msra.mxu0 0
    %249 = vmatprep.subr.bf16.mxu0 0
    %250 = vmatpush1.bf16.msra.mxu0 0
    %251 = vmatprep.mubr.bf16.mxu0 0
    %252 = vmatmul.mubr.bf16.gmra.mrb[0].mxu0 %v155
    %v253 = vpop.f32.mrb[0].mxu0
    %v254 = vadd.f32 0.0, %v253
    %v255 = vpop.f32.mrb[0].mxu0
    %v256 = vpop.f32.mrb[0].mxu0
    %v257 = vadd.f32 0.0, %v256
    %v258 = vpop.f32.mrb[0].mxu0
    %259 = vmatprep.mubr.bf16.mxu0 0
    %260 = vmatmul.mubr.bf16.gmra.mrb[0].mxu0 %v156
    %v261 = vpop.f32.mrb[0].mxu0
    %v262 = vadd.f32 0.0, %v261
    %v263 = vpop.f32.mrb[0].mxu0
    %v264 = vpop.f32.mrb[0].mxu0
    %v265 = vadd.f32 0.0, %v264
    %v266 = vpop.f32.mrb[0].mxu0
    %267 = vmatprep.mubr.bf16.mxu0 0
    %268 = vmatmul.mubr.bf16.gmra.mrb[0].mxu0 %v157
    %v269 = vpop.f32.mrb[0].mxu0
    %v270 = vadd.f32 0.0, %v269
    %v271 = vpop.f32.mrb[0].mxu0
    %v272 = vpop.f32.mrb[0].mxu0
    %v273 = vadd.f32 0.0, %v272
    %v274 = vpop.f32.mrb[0].mxu0
    %275 = vmatprep.mubr.bf16.mxu0 0
    %276 = vmatmul.mubr.bf16.gmra.mrb[0].mxu0 %v158
    %v277 = vpop.f32.mrb[0].mxu0
    %v278 = vadd.f32 0.0, %v277
    %v279 = vpop.f32.mrb[0].mxu0
    %v280 = vpop.f32.mrb[0].mxu0
    %v281 = vadd.f32 0.0, %v280
    %v282 = vpop.f32.mrb[0].mxu0
    %283 = vmatprep.mubr.bf16.mxu0 0
    %284 = vmatmul.mubr.bf16.gmra.mrb[0].mxu0 %v159
    %v285 = vpop.f32.mrb[0].mxu0
    %v286 = vadd.f32 0.0, %v285
    %v287 = vpop.f32.mrb[0].mxu0
    %v288 = vpop.f32.mrb[0].mxu0
    %v289 = vadd.f32 0.0, %v288
    %v290 = vpop.f32.mrb[0].mxu0
    %291 = vmatprep.mubr.bf16.mxu0 0
    %292 = vmatmul.mubr.bf16.gmra.mrb[0].mxu0 %v160
    %v293 = vpop.f32.mrb[0].mxu0
    %v294 = vadd.f32 0.0, %v293
    %v295 = vpop.f32.mrb[0].mxu0
    %v296 = vpop.f32.mrb[0].mxu0
    %v297 = vadd.f32 0.0, %v296
    %v298 = vpop.f32.mrb[0].mxu0
    %299 = vmatprep.mubr.bf16.mxu0 0
    %300 = vmatmul.mubr.bf16.gmra.mrb[0].mxu0 %v161
    %v301 = vpop.f32.mrb[0].mxu0
    %v302 = vadd.f32 0.0, %v301
    %v303 = vpop.f32.mrb[0].mxu0
    %v304 = vpop.f32.mrb[0].mxu0
    %v305 = vadd.f32 0.0, %v304
    %v306 = vpop.f32.mrb[0].mxu0
    %307 = vmatprep.mubr.bf16.mxu0 0
    %308 = vmatmul.mubr.bf16.gmra.mrb[0].mxu0 %v162
    %v309 = vpop.f32.mrb[0].mxu0
    %v310 = vadd.f32 0.0, %v309
    %v311 = vpop.f32.mrb[0].mxu0
    %v312 = vpop.f32.mrb[0].mxu0
    %v313 = vadd.f32 0.0, %v312
    %v314 = vpop.f32.mrb[0].mxu0
    %315 = vdwg.mxu0
    %v316 = vadd.f32 %v75, %v254
    %v317 = vadd.f32 %v76, %v257
    %v318 = vadd.f32 %v77, %v262
    %v319 = vadd.f32 %v78, %v265
    %v320 = vadd.f32 %v79, %v270
    %v321 = vadd.f32 %v80, %v273
    %v322 = vadd.f32 %v81, %v278
    %v323 = vadd.f32 %v82, %v281
    %v324 = vadd.f32 %v83, %v286
    %v325 = vadd.f32 %v84, %v289
    %v326 = vadd.f32 %v85, %v294
    %v327 = vadd.f32 %v86, %v297
    %v328 = vadd.f32 %v87, %v302
    %v329 = vadd.f32 %v88, %v305
    %v330 = vadd.f32 %v89, %v310
    %v331 = vadd.f32 %v90, %v313
    %332 = vst [vmem:[#allocation2] sm:$0xff] %v316
    %333 = vst [vmem:[#allocation2 + $0x8] sm:$0xff] %v317
    %334 = vst [vmem:[#allocation2 + $0x10] sm:$0xff] %v318
    %335 = vst [vmem:[#allocation2 + $0x18] sm:$0xff] %v319
    %336 = vst [vmem:[#allocation2 + $0x20] sm:$0xff] %v320
    %337 = vst [vmem:[#allocation2 + $0x28] sm:$0xff] %v321
    %338 = vst [vmem:[#allocation2 + $0x30] sm:$0xff] %v322
    %339 = vst [vmem:[#allocation2 + $0x38] sm:$0xff] %v323
    %340 = vst [vmem:[#allocation2 + $0x40] sm:$0xff] %v324
    %341 = vst [vmem:[#allocation2 + $0x48] sm:$0xff] %v325
    %342 = vst [vmem:[#allocation2 + $0x50] sm:$0xff] %v326
    %343 = vst [vmem:[#allocation2 + $0x58] sm:$0xff] %v327
    %344 = vst [vmem:[#allocation2 + $0x60] sm:$0xff] %v328
    %345 = vst [vmem:[#allocation2 + $0x68] sm:$0xff] %v329
    %346 = vst [vmem:[#allocation2 + $0x70] sm:$0xff] %v330
    %347 = vst [vmem:[#allocation2 + $0x78] sm:$0xff] %v331
    // Predicated region
    $region30: #{vae_forward.22} parent=1 // pred_check
      %p348 = pneg %p55
    $region31: #{vae_forward.22} parent=1 // pred_check_branch
      %350 = sbr.rel (%p348) target = $region33
    $region32: #{vae_forward.22} parent=1 // pred_region
      %v351 = vld [vmem:[#allocation2] sm:$0xff]
      %v352 = vld [vmem:[#allocation2 + $0x8] sm:$0xff]
      %v353 = vld [vmem:[#allocation2 + $0x10] sm:$0xff]
      %v354 = vld [vmem:[#allocation2 + $0x18] sm:$0xff]
      %v355 = vld [vmem:[#allocation2 + $0x20] sm:$0xff]
      %v356 = vld [vmem:[#allocation2 + $0x28] sm:$0xff]
      %v357 = vld [vmem:[#allocation2 + $0x30] sm:$0xff]
      %v358 = vld [vmem:[#allocation2 + $0x38] sm:$0xff]
      %v359 = vld [vmem:[#allocation2 + $0x40] sm:$0xff]
      %v360 = vld [vmem:[#allocation2 + $0x48] sm:$0xff]
      %v361 = vld [vmem:[#allocation2 + $0x50] sm:$0xff]
      %v362 = vld [vmem:[#allocation2 + $0x58] sm:$0xff]
      %v363 = vld [vmem:[#allocation2 + $0x60] sm:$0xff]
      %v364 = vld [vmem:[#allocation2 + $0x68] sm:$0xff]
      %v365 = vld [vmem:[#allocation2 + $0x70] sm:$0xff]
      %v366 = vld [vmem:[#allocation2 + $0x78] sm:$0xff]
      %v367 = vld [vmem:[#allocation8] sm:$0x1]
      %v369 = vlaneseq
      %v370 = vshrl.u32 %v369, 7
      %v371 = vsub.s32 0, %v370
      %v372 = vrot.slane %v367, %v371
      %v374 = vadd.f32 %v351, %v372
      %v375 = vadd.f32 %v352, %v372
      %v376 = vadd.f32 %v353, %v372
      %v377 = vadd.f32 %v354, %v372
      %v378 = vadd.f32 %v355, %v372
      %v379 = vadd.f32 %v356, %v372
      %v380 = vadd.f32 %v357, %v372
      %v381 = vadd.f32 %v358, %v372
      %v382 = vadd.f32 %v359, %v372
      %v383 = vadd.f32 %v360, %v372
      %v384 = vadd.f32 %v361, %v372
      %v385 = vadd.f32 %v362, %v372
      %v386 = vadd.f32 %v363, %v372
      %v387 = vadd.f32 %v364, %v372
      %v388 = vadd.f32 %v365, %v372
      %v389 = vadd.f32 %v366, %v372
      %v390 = vmax.f32 %v374, 0.0
      %v391 = vmax.f32 %v375, 0.0
      %v392 = vmax.f32 %v376, 0.0
      %v393 = vmax.f32 %v377, 0.0
      %v394 = vmax.f32 %v378, 0.0
      %v395 = vmax.f32 %v379, 0.0
      %v396 = vmax.f32 %v380, 0.0
      %v397 = vmax.f32 %v381, 0.0
      %v398 = vmax.f32 %v382, 0.0
      %v399 = vmax.f32 %v383, 0.0
      %v400 = vmax.f32 %v384, 0.0
      %v401 = vmax.f32 %v385, 0.0
      %v402 = vmax.f32 %v386, 0.0
      %v403 = vmax.f32 %v387, 0.0
      %v404 = vmax.f32 %v388, 0.0
      %v405 = vmax.f32 %v389, 0.0
      %406 = vst [vmem:[#allocation9] sm:$0xff] %v390
      %407 = vst [vmem:[#allocation9 + $0x8] sm:$0xff] %v391
      %408 = vst [vmem:[#allocation9 + $0x10] sm:$0xff] %v392
      %409 = vst [vmem:[#allocation9 + $0x18] sm:$0xff] %v393
      %410 = vst [vmem:[#allocation9 + $0x20] sm:$0xff] %v394
      %411 = vst [vmem:[#allocation9 + $0x28] sm:$0xff] %v395
      %412 = vst [vmem:[#allocation9 + $0x30] sm:$0xff] %v396
      %413 = vst [vmem:[#allocation9 + $0x38] sm:$0xff] %v397
      %414 = vst [vmem:[#allocation9 + $0x40] sm:$0xff] %v398
      %415 = vst [vmem:[#allocation9 + $0x48] sm:$0xff] %v399
      %416 = vst [vmem:[#allocation9 + $0x50] sm:$0xff] %v400
      %417 = vst [vmem:[#allocation9 + $0x58] sm:$0xff] %v401
      %418 = vst [vmem:[#allocation9 + $0x60] sm:$0xff] %v402
      %419 = vst [vmem:[#allocation9 + $0x68] sm:$0xff] %v403
      %420 = vst [vmem:[#allocation9 + $0x70] sm:$0xff] %v404
      %421 = vst [vmem:[#allocation9 + $0x78] sm:$0xff] %v405
    $region33: #{vae_forward.22} parent=1 // pred_fallthru
      _
    // Predicated region
    $region34: #{vae_forward.22} parent=1 // pred_check
      _
    $region35: #{vae_forward.22} parent=1 // pred_check_branch
      %423 = sbr.rel (0) target = $region37
    $region36: #{vae_forward.22} parent=1 // pred_region
      %s425 = ssub.s32 2048, 2048
      %426 = vsyncadd [#allocation5], %s425
      %s427 = sshll.u32 [#allocation9], 4
      %s428 = int_to_ptr.vmem [resolvable:$true] %s427
      %433 = dma.vmem_to_hbm [thread:$0]  %s428, 2048, %s3, [#allocation5], 128, 128, 8
    $region37: #{vae_forward.22} parent=1 // pred_fallthru
      _
    // Predicated region
    $region38: #{vae_forward.22} parent=1 // pred_check
      _
    $region39: #{vae_forward.22} parent=1 // pred_check_branch
      %435 = sbr.rel (0) target = $region41
    $region40: #{vae_forward.22} parent=1 // pred_region
      %436 = dma.done [#allocation5], 2048
    $region41: #{vae_forward.22} parent=1 // pred_fallthru
      _
    %437 = vsyncpa [#allocation4], 1
    %438 = vsyncpa [#allocation7], 1
    %439 = vsyncpa [#allocation5], 1

// kernel: vae_forward.23
$region0: #{vae_forward.23}
  #allocation0 [shape = 'u32[]', space=smem, size = 0x4, offset = 0x4, fixed_abs, tag = 'smem constant byte address 0x4 - core index']
  #allocation1 [shape = 'u32[144,128]{1,0:T(1,128)}', space=vmem, size = 0x12000, scoped, tag = 'internal scratch']
  #allocation2 [shape = 'f32[128,128]{1,0:T(8,128)}', space=vmem, size = 0x10000, scoped, tag = 'scratch operand']
  %s0 = inlined_call_operand.hbm [shape: bf16[128,256], index: 0, kind: input, shape index: {}]
  %s1 = inlined_call_operand.hbm [shape: bf16[256,128], index: 1, kind: input, shape index: {}]
  %s2 = inlined_call_operand.hbm [shape: f32[1,128], index: 2, kind: input, shape index: {}]
  %s3 = inlined_call_operand.hbm [shape: f32[128,128], index: 3, kind: output, shape index: {}]
  %s4 = sld [smem:[#allocation0]]
  $region42: #{vae_forward.23} parent=0
    _
  %s6 = ssub.s32 1, %s4
  %s7 = scalar_select 0, %s6, %s4
  $region1: #{vae_forward.23} parent=0
    #allocation3 [shape = 'u8[65536]{0}', space=vmem, size = 0x10000, scoped, tag = 'input window, operand 0, single buffered']
    #allocation4 [shape = 's32[1]{0}', space=sflag, size = 0x4, scoped, tag = 'scoped memory for vae_forward.23']
    #allocation5 [shape = 's32[1]{0}', space=sflag, size = 0x4, scoped, tag = 'scoped memory for vae_forward.23']
    #allocation6 [shape = 'u8[65536]{0}', space=vmem, size = 0x10000, scoped, tag = 'input window, operand 1, single buffered']
    #allocation7 [shape = 's32[1]{0}', space=sflag, size = 0x4, scoped, tag = 'scoped memory for vae_forward.23']
    #allocation8 [shape = 'u8[512]{0}', space=vmem, size = 0x400, scoped, tag = 'input window, operand 2, single buffered']
    #allocation9 [shape = 'u8[65536]{0}', space=vmem, size = 0x10000, scoped, tag = 'output window, operand 0, single buffered']
    %8 = vsyncpa [#allocation4], 0
    %9 = vsyncpa [#allocation7], 0
    %10 = vsyncpa [#allocation5], 0
    // Predicated region
    $region2: #{vae_forward.23} parent=1 // pred_check
      _
    $region3: #{vae_forward.23} parent=1 // pred_check_branch
      %12 = sbr.rel (0) target = $region5
    $region4: #{vae_forward.23} parent=1 // pred_region
      %s14 = ssub.s32 2048, 2048
      %15 = vsyncadd [#allocation4], %s14
      %s16 = sshll.u32 [#allocation3], 4
      %s17 = int_to_ptr.vmem [resolvable:$true] %s16
      %22 = dma.hbm_to_vmem [thread:$0]  %s0, 2048, %s17, [#allocation4], 128, 128, 8
    $region5: #{vae_forward.23} parent=1 // pred_fallthru
      _
    // Predicated region
    $region6: #{vae_forward.23} parent=1 // pred_check
      _
    $region7: #{vae_forward.23} parent=1 // pred_check_branch
      %24 = sbr.rel (0) target = $region9
    $region8: #{vae_forward.23} parent=1 // pred_region
      %s26 = ssub.s32 2048, 2048
      %27 = vsyncadd [#allocation7], %s26
      %s28 = sshll.u32 [#allocation6], 4
      %s29 = int_to_ptr.vmem [resolvable:$true] %s28
      %34 = dma.hbm_to_vmem [thread:$0]  %s1, 2048, %s29, [#allocation7], 64, 64, 4
    $region9: #{vae_forward.23} parent=1 // pred_fallthru
      _
    // Predicated region
    $region10: #{vae_forward.23} parent=1 // pred_check
      _
    $region11: #{vae_forward.23} parent=1 // pred_check_branch
      %36 = sbr.rel (0) target = $region13
    $region12: #{vae_forward.23} parent=1 // pred_region
      %s38 = ssub.s32 16, 16
      %39 = vsyncadd [#allocation7], %s38
      %s41 = sshll.u32 [#allocation8], 4
      %s42 = int_to_ptr.vmem [resolvable:$true] %s41
      %44 = dma.hbm_to_vmem [thread:$0]  %s2, 16, %s42, [#allocation7]
    $region13: #{vae_forward.23} parent=1 // pred_fallthru
      _
    // Predicated region
    $region14: #{vae_forward.23} parent=1 // pred_check
      _
    $region15: #{vae_forward.23} parent=1 // pred_check_branch
      %46 = sbr.rel (0) target = $region17
    $region16: #{vae_forward.23} parent=1 // pred_region
      %47 = dma.done [#allocation4], 2048
    $region17: #{vae_forward.23} parent=1 // pred_fallthru
      _
    // Predicated region
    $region18: #{vae_forward.23} parent=1 // pred_check
      _
    $region19: #{vae_forward.23} parent=1 // pred_check_branch
      %49 = sbr.rel (0) target = $region21
    $region20: #{vae_forward.23} parent=1 // pred_region
      %50 = dma.done [#allocation7], 2048
    $region21: #{vae_forward.23} parent=1 // pred_fallthru
      _
    // Predicated region
    $region22: #{vae_forward.23} parent=1 // pred_check
      _
    $region23: #{vae_forward.23} parent=1 // pred_check_branch
      %52 = sbr.rel (0) target = $region25
    $region24: #{vae_forward.23} parent=1 // pred_region
      %53 = dma.done [#allocation7], 16
    $region25: #{vae_forward.23} parent=1 // pred_fallthru
      _
    %p55 = scmp.eq.s32.totalorder 0, 0
    // Predicated region
    $region26: #{vae_forward.23} parent=1 // pred_check
      %p56 = pneg %p55
    $region27: #{vae_forward.23} parent=1 // pred_check_branch
      %58 = sbr.rel (%p56) target = $region29
    $region28: #{vae_forward.23} parent=1 // pred_region
      %59 = vst [vmem:[#allocation2] sm:$0xff] 0.0
      %60 = vst [vmem:[#allocation2 + $0x8] sm:$0xff] 0.0
      %61 = vst [vmem:[#allocation2 + $0x10] sm:$0xff] 0.0
      %62 = vst [vmem:[#allocation2 + $0x18] sm:$0xff] 0.0
      %63 = vst [vmem:[#allocation2 + $0x20] sm:$0xff] 0.0
      %64 = vst [vmem:[#allocation2 + $0x28] sm:$0xff] 0.0
      %65 = vst [vmem:[#allocation2 + $0x30] sm:$0xff] 0.0
      %66 = vst [vmem:[#allocation2 + $0x38] sm:$0xff] 0.0
      %67 = vst [vmem:[#allocation2 + $0x40] sm:$0xff] 0.0
      %68 = vst [vmem:[#allocation2 + $0x48] sm:$0xff] 0.0
      %69 = vst [vmem:[#allocation2 + $0x50] sm:$0xff] 0.0
      %70 = vst [vmem:[#allocation2 + $0x58] sm:$0xff] 0.0
      %71 = vst [vmem:[#allocation2 + $0x60] sm:$0xff] 0.0
      %72 = vst [vmem:[#allocation2 + $0x68] sm:$0xff] 0.0
      %73 = vst [vmem:[#allocation2 + $0x70] sm:$0xff] 0.0
      %74 = vst [vmem:[#allocation2 + $0x78] sm:$0xff] 0.0
    $region29: #{vae_forward.23} parent=1 // pred_fallthru
      _
    %v75 = vld [vmem:[#allocation2] sm:$0xff]
    %v76 = vld [vmem:[#allocation2 + $0x8] sm:$0xff]
    %v77 = vld [vmem:[#allocation2 + $0x10] sm:$0xff]
    %v78 = vld [vmem:[#allocation2 + $0x18] sm:$0xff]
    %v79 = vld [vmem:[#allocation2 + $0x20] sm:$0xff]
    %v80 = vld [vmem:[#allocation2 + $0x28] sm:$0xff]
    %v81 = vld [vmem:[#allocation2 + $0x30] sm:$0xff]
    %v82 = vld [vmem:[#allocation2 + $0x38] sm:$0xff]
    %v83 = vld [vmem:[#allocation2 + $0x40] sm:$0xff]
    %v84 = vld [vmem:[#allocation2 + $0x48] sm:$0xff]
    %v85 = vld [vmem:[#allocation2 + $0x50] sm:$0xff]
    %v86 = vld [vmem:[#allocation2 + $0x58] sm:$0xff]
    %v87 = vld [vmem:[#allocation2 + $0x60] sm:$0xff]
    %v88 = vld [vmem:[#allocation2 + $0x68] sm:$0xff]
    %v89 = vld [vmem:[#allocation2 + $0x70] sm:$0xff]
    %v90 = vld [vmem:[#allocation2 + $0x78] sm:$0xff]
    %v91 = vld [vmem:[#allocation3] sm:$0xff]
    %v92 = vld [vmem:[#allocation3 + $0x8] sm:$0xff]
    %v93 = vld [vmem:[#allocation3 + $0x10] sm:$0xff]
    %v94 = vld [vmem:[#allocation3 + $0x18] sm:$0xff]
    %v95 = vld [vmem:[#allocation3 + $0x20] sm:$0xff]
    %v96 = vld [vmem:[#allocation3 + $0x28] sm:$0xff]
    %v97 = vld [vmem:[#allocation3 + $0x30] sm:$0xff]
    %v98 = vld [vmem:[#allocation3 + $0x38] sm:$0xff]
    %v99 = vld [vmem:[#allocation3 + $0x40] sm:$0xff]
    %v100 = vld [vmem:[#allocation3 + $0x48] sm:$0xff]
    %v101 = vld [vmem:[#allocation3 + $0x50] sm:$0xff]
    %v102 = vld [vmem:[#allocation3 + $0x58] sm:$0xff]
    %v103 = vld [vmem:[#allocation3 + $0x60] sm:$0xff]
    %v104 = vld [vmem:[#allocation3 + $0x68] sm:$0xff]
    %v105 = vld [vmem:[#allocation3 + $0x70] sm:$0xff]
    %v106 = vld [vmem:[#allocation3 + $0x78] sm:$0xff]
    %v107 = vld [vmem:[#allocation6] sm:$0xf]
    %v108 = vld [vmem:[#allocation6 + $0x4] sm:$0xf]
    %v109 = vld [vmem:[#allocation6 + $0x8] sm:$0xf]
    %v110 = vld [vmem:[#allocation6 + $0xc] sm:$0xf]
    %v111 = vld [vmem:[#allocation6 + $0x10] sm:$0xf]
    %v112 = vld [vmem:[#allocation6 + $0x14] sm:$0xf]
    %v113 = vld [vmem:[#allocation6 + $0x18] sm:$0xf]
    %v114 = vld [vmem:[#allocation6 + $0x1c] sm:$0xf]
    %v115 = vld [vmem:[#allocation6 + $0x20] sm:$0xf]
    %v116 = vld [vmem:[#allocation6 + $0x24] sm:$0xf]
    %v117 = vld [vmem:[#allocation6 + $0x28] sm:$0xf]
    %v118 = vld [vmem:[#allocation6 + $0x2c] sm:$0xf]
    %v119 = vld [vmem:[#allocation6 + $0x30] sm:$0xf]
    %v120 = vld [vmem:[#allocation6 + $0x34] sm:$0xf]
    %v121 = vld [vmem:[#allocation6 + $0x38] sm:$0xf]
    %v122 = vld [vmem:[#allocation6 + $0x3c] sm:$0xf]
    %v123 = vld [vmem:[#allocation6 + $0x40] sm:$0xf]
    %v124 = vld [vmem:[#allocation6 + $0x44] sm:$0xf]
    %v125 = vld [vmem:[#allocation6 + $0x48] sm:$0xf]
    %v126 = vld [vmem:[#allocation6 + $0x4c] sm:$0xf]
    %v127 = vld [vmem:[#allocation6 + $0x50] sm:$0xf]
    %v128 = vld [vmem:[#allocation6 + $0x54] sm:$0xf]
    %v129 = vld [vmem:[#allocation6 + $0x58] sm:$0xf]
    %v130 = vld [vmem:[#allocation6 + $0x5c] sm:$0xf]
    %v131 = vld [vmem:[#allocation6 + $0x60] sm:$0xf]
    %v132 = vld [vmem:[#allocation6 + $0x64] sm:$0xf]
    %v133 = vld [vmem:[#allocation6 + $0x68] sm:$0xf]
    %v134 = vld [vmem:[#allocation6 + $0x6c] sm:$0xf]
    %v135 = vld [vmem:[#allocation6 + $0x70] sm:$0xf]
    %v136 = vld [vmem:[#allocation6 + $0x74] sm:$0xf]
    %v137 = vld [vmem:[#allocation6 + $0x78] sm:$0xf]
    %v138 = vld [vmem:[#allocation6 + $0x7c] sm:$0xf]
    %v155 = vunpack.c.l.b16 %v91
    %v156 = vunpack.c.h.b16 %v91
    %v157 = vunpack.c.l.b16 %v92
    %v158 = vunpack.c.h.b16 %v92
    %v159 = vunpack.c.l.b16 %v93
    %v160 = vunpack.c.h.b16 %v93
    %v161 = vunpack.c.l.b16 %v94
    %v162 = vunpack.c.h.b16 %v94
    %v163 = vunpack.c.l.b16 %v95
    %v164 = vunpack.c.h.b16 %v95
    %v165 = vunpack.c.l.b16 %v96
    %v166 = vunpack.c.h.b16 %v96
    %v167 = vunpack.c.l.b16 %v97
    %v168 = vunpack.c.h.b16 %v97
    %v169 = vunpack.c.l.b16 %v98
    %v170 = vunpack.c.h.b16 %v98
    %v171 = vunpack.c.l.b16 %v99
    %v172 = vunpack.c.h.b16 %v99
    %v173 = vunpack.c.l.b16 %v100
    %v174 = vunpack.c.h.b16 %v100
    %v175 = vunpack.c.l.b16 %v101
    %v176 = vunpack.c.h.b16 %v101
    %v177 = vunpack.c.l.b16 %v102
    %v178 = vunpack.c.h.b16 %v102
    %v179 = vunpack.c.l.b16 %v103
    %v180 = vunpack.c.h.b16 %v103
    %v181 = vunpack.c.l.b16 %v104
    %v182 = vunpack.c.h.b16 %v104
    %v183 = vunpack.c.l.b16 %v105
    %v184 = vunpack.c.h.b16 %v105
    %v185 = vunpack.c.l.b16 %v106
    %v186 = vunpack.c.h.b16 %v106
    %v187 = vpack.c.b16 %v157, %v155
    %v188 = vpack.c.b16 %v158, %v156
    %v189 = vpack.c.b16 %v161, %v159
    %v190 = vpack.c.b16 %v162, %v160
    %v191 = vpack.c.b16 %v165, %v163
    %v192 = vpack.c.b16 %v166, %v164
    %v193 = vpack.c.b16 %v169, %v167
    %v194 = vpack.c.b16 %v170, %v168
    %v195 = vpack.c.b16 %v173, %v171
    %v196 = vpack.c.b16 %v174, %v172
    %v197 = vpack.c.b16 %v177, %v175
    %v198 = vpack.c.b16 %v178, %v176
    %v199 = vpack.c.b16 %v181, %v179
    %v200 = vpack.c.b16 %v182, %v180
    %v201 = vpack.c.b16 %v185, %v183
    %v202 = vpack.c.b16 %v186, %v184
    %v251 = vunpack.c.l.b16 %v107
    %v252 = vunpack.c.l.b16 %v108
    %v253 = vunpack.c.l.b16 %v109
    %v254 = vunpack.c.l.b16 %v110
    %v255 = vunpack.c.l.b16 %v111
    %v256 = vunpack.c.l.b16 %v112
    %v257 = vunpack.c.l.b16 %v113
    %v258 = vunpack.c.l.b16 %v114
    %v259 = vunpack.c.l.b16 %v115
    %v260 = vunpack.c.l.b16 %v116
    %v261 = vunpack.c.l.b16 %v117
    %v262 = vunpack.c.l.b16 %v118
    %v263 = vunpack.c.l.b16 %v119
    %v264 = vunpack.c.l.b16 %v120
    %v265 = vunpack.c.l.b16 %v121
    %v266 = vunpack.c.l.b16 %v122
    %v267 = vunpack.c.l.b16 %v123
    %v268 = vunpack.c.l.b16 %v124
    %v269 = vunpack.c.l.b16 %v125
    %v270 = vunpack.c.l.b16 %v126
    %v271 = vunpack.c.l.b16 %v127
    %v272 = vunpack.c.l.b16 %v128
    %v273 = vunpack.c.l.b16 %v129
    %v274 = vunpack.c.l.b16 %v130
    %v275 = vunpack.c.l.b16 %v131
    %v276 = vunpack.c.l.b16 %v132
    %v277 = vunpack.c.l.b16 %v133
    %v278 = vunpack.c.l.b16 %v134
    %v279 = vunpack.c.l.b16 %v135
    %v280 = vunpack.c.l.b16 %v136
    %v281 = vunpack.c.l.b16 %v137
    %v282 = vunpack.c.l.b16 %v138
    %v283 = vpack.c.b16 %v252, %v251
    %v284 = vpack.c.b16 %v254, %v253
    %v285 = vpack.c.b16 %v256, %v255
    %v286 = vpack.c.b16 %v258, %v257
    %v287 = vpack.c.b16 %v260, %v259
    %v288 = vpack.c.b16 %v262, %v261
    %v289 = vpack.c.b16 %v264, %v263
    %v290 = vpack.c.b16 %v266, %v265
    %v291 = vpack.c.b16 %v268, %v267
    %v292 = vpack.c.b16 %v270, %v269
    %v293 = vpack.c.b16 %v272, %v271
    %v294 = vpack.c.b16 %v274, %v273
    %v295 = vpack.c.b16 %v276, %v275
    %v296 = vpack.c.b16 %v278, %v277
    %v297 = vpack.c.b16 %v280, %v279
    %v298 = vpack.c.b16 %v282, %v281
    %315 = vmatprep.subr.bf16.mxu0 0
    %316 = vmatpush1.bf16.msra.mxu0 %v283
    %317 = vmatprep.subr.bf16.mxu0 0
    %318 = vmatpush1.bf16.msra.mxu0 %v284
    %319 = vmatprep.subr.bf16.mxu0 0
    %320 = vmatpush1.bf16.msra.mxu0 %v285
    %321 = vmatprep.subr.bf16.mxu0 0
    %322 = vmatpush1.bf16.msra.mxu0 %v286
    %323 = vmatprep.subr.bf16.mxu0 0
    %324 = vmatpush1.bf16.msra.mxu0 %v287
    %325 = vmatprep.subr.bf16.mxu0 0
    %326 = vmatpush1.bf16.msra.mxu0 %v288
    %327 = vmatprep.subr.bf16.mxu0 0
    %328 = vmatpush1.bf16.msra.mxu0 %v289
    %329 = vmatprep.subr.bf16.mxu0 0
    %330 = vmatpush1.bf16.msra.mxu0 %v290
    %331 = vmatprep.subr.bf16.mxu0 0
    %332 = vmatpush1.bf16.msra.mxu0 %v291
    %333 = vmatprep.subr.bf16.mxu0 0
    %334 = vmatpush1.bf16.msra.mxu0 %v292
    %335 = vmatprep.subr.bf16.mxu0 0
    %336 = vmatpush1.bf16.msra.mxu0 %v293
    %337 = vmatprep.subr.bf16.mxu0 0
    %338 = vmatpush1.bf16.msra.mxu0 %v294
    %339 = vmatprep.subr.bf16.mxu0 0
    %340 = vmatpush1.bf16.msra.mxu0 %v295
    %341 = vmatprep.subr.bf16.mxu0 0
    %342 = vmatpush1.bf16.msra.mxu0 %v296
    %343 = vmatprep.subr.bf16.mxu0 0
    %344 = vmatpush1.bf16.msra.mxu0 %v297
    %345 = vmatprep.subr.bf16.mxu0 0
    %346 = vmatpush1.bf16.msra.mxu0 %v298
    %347 = vmatprep.mubr.bf16.mxu0 %v188
    %348 = vmatmul.mubr.bf16.gmra.mrb[0].mxu0 %v187
    %v349 = vpop.f32.mrb[0].mxu0
    %v350 = vadd.f32 0.0, %v349
    %v351 = vpop.f32.mrb[0].mxu0
    %v352 = vpop.f32.mrb[0].mxu0
    %v353 = vadd.f32 0.0, %v352
    %v354 = vpop.f32.mrb[0].mxu0
    %355 = vmatprep.mubr.bf16.mxu0 %v190
    %356 = vmatmul.mubr.bf16.gmra.mrb[0].mxu0 %v189
    %v357 = vpop.f32.mrb[0].mxu0
    %v358 = vadd.f32 0.0, %v357
    %v359 = vpop.f32.mrb[0].mxu0
    %v360 = vpop.f32.mrb[0].mxu0
    %v361 = vadd.f32 0.0, %v360
    %v362 = vpop.f32.mrb[0].mxu0
    %363 = vmatprep.mubr.bf16.mxu0 %v192
    %364 = vmatmul.mubr.bf16.gmra.mrb[0].mxu0 %v191
    %v365 = vpop.f32.mrb[0].mxu0
    %v366 = vadd.f32 0.0, %v365
    %v367 = vpop.f32.mrb[0].mxu0
    %v368 = vpop.f32.mrb[0].mxu0
    %v369 = vadd.f32 0.0, %v368
    %v370 = vpop.f32.mrb[0].mxu0
    %371 = vmatprep.mubr.bf16.mxu0 %v194
    %372 = vmatmul.mubr.bf16.gmra.mrb[0].mxu0 %v193
    %v373 = vpop.f32.mrb[0].mxu0
    %v374 = vadd.f32 0.0, %v373
    %v375 = vpop.f32.mrb[0].mxu0
    %v376 = vpop.f32.mrb[0].mxu0
    %v377 = vadd.f32 0.0, %v376
    %v378 = vpop.f32.mrb[0].mxu0
    %379 = vmatprep.mubr.bf16.mxu0 %v196
    %380 = vmatmul.mubr.bf16.gmra.mrb[0].mxu0 %v195
    %v381 = vpop.f32.mrb[0].mxu0
    %v382 = vadd.f32 0.0, %v381
    %v383 = vpop.f32.mrb[0].mxu0
    %v384 = vpop.f32.mrb[0].mxu0
    %v385 = vadd.f32 0.0, %v384
    %v386 = vpop.f32.mrb[0].mxu0
    %387 = vmatprep.mubr.bf16.mxu0 %v198
    %388 = vmatmul.mubr.bf16.gmra.mrb[0].mxu0 %v197
    %v389 = vpop.f32.mrb[0].mxu0
    %v390 = vadd.f32 0.0, %v389
    %v391 = vpop.f32.mrb[0].mxu0
    %v392 = vpop.f32.mrb[0].mxu0
    %v393 = vadd.f32 0.0, %v392
    %v394 = vpop.f32.mrb[0].mxu0
    %395 = vmatprep.mubr.bf16.mxu0 %v200
    %396 = vmatmul.mubr.bf16.gmra.mrb[0].mxu0 %v199
    %v397 = vpop.f32.mrb[0].mxu0
    %v398 = vadd.f32 0.0, %v397
    %v399 = vpop.f32.mrb[0].mxu0
    %v400 = vpop.f32.mrb[0].mxu0
    %v401 = vadd.f32 0.0, %v400
    %v402 = vpop.f32.mrb[0].mxu0
    %403 = vmatprep.mubr.bf16.mxu0 %v202
    %404 = vmatmul.mubr.bf16.gmra.mrb[0].mxu0 %v201
    %v405 = vpop.f32.mrb[0].mxu0
    %v406 = vadd.f32 0.0, %v405
    %v407 = vpop.f32.mrb[0].mxu0
    %v408 = vpop.f32.mrb[0].mxu0
    %v409 = vadd.f32 0.0, %v408
    %v410 = vpop.f32.mrb[0].mxu0
    %411 = vdwg.mxu0
    %v412 = vadd.f32 %v75, %v350
    %v413 = vadd.f32 %v76, %v353
    %v414 = vadd.f32 %v77, %v358
    %v415 = vadd.f32 %v78, %v361
    %v416 = vadd.f32 %v79, %v366
    %v417 = vadd.f32 %v80, %v369
    %v418 = vadd.f32 %v81, %v374
    %v419 = vadd.f32 %v82, %v377
    %v420 = vadd.f32 %v83, %v382
    %v421 = vadd.f32 %v84, %v385
    %v422 = vadd.f32 %v85, %v390
    %v423 = vadd.f32 %v86, %v393
    %v424 = vadd.f32 %v87, %v398
    %v425 = vadd.f32 %v88, %v401
    %v426 = vadd.f32 %v89, %v406
    %v427 = vadd.f32 %v90, %v409
    %428 = vst [vmem:[#allocation2] sm:$0xff] %v412
    %429 = vst [vmem:[#allocation2 + $0x8] sm:$0xff] %v413
    %430 = vst [vmem:[#allocation2 + $0x10] sm:$0xff] %v414
    %431 = vst [vmem:[#allocation2 + $0x18] sm:$0xff] %v415
    %432 = vst [vmem:[#allocation2 + $0x20] sm:$0xff] %v416
    %433 = vst [vmem:[#allocation2 + $0x28] sm:$0xff] %v417
    %434 = vst [vmem:[#allocation2 + $0x30] sm:$0xff] %v418
    %435 = vst [vmem:[#allocation2 + $0x38] sm:$0xff] %v419
    %436 = vst [vmem:[#allocation2 + $0x40] sm:$0xff] %v420
    %437 = vst [vmem:[#allocation2 + $0x48] sm:$0xff] %v421
    %438 = vst [vmem:[#allocation2 + $0x50] sm:$0xff] %v422
    %439 = vst [vmem:[#allocation2 + $0x58] sm:$0xff] %v423
    %440 = vst [vmem:[#allocation2 + $0x60] sm:$0xff] %v424
    %441 = vst [vmem:[#allocation2 + $0x68] sm:$0xff] %v425
    %442 = vst [vmem:[#allocation2 + $0x70] sm:$0xff] %v426
    %443 = vst [vmem:[#allocation2 + $0x78] sm:$0xff] %v427
    // Predicated region
    $region30: #{vae_forward.23} parent=1 // pred_check
      %p444 = pneg %p55
    $region31: #{vae_forward.23} parent=1 // pred_check_branch
      %446 = sbr.rel (%p444) target = $region33
    $region32: #{vae_forward.23} parent=1 // pred_region
      %v447 = vld [vmem:[#allocation2] sm:$0xff]
      %v448 = vld [vmem:[#allocation2 + $0x8] sm:$0xff]
      %v449 = vld [vmem:[#allocation2 + $0x10] sm:$0xff]
      %v450 = vld [vmem:[#allocation2 + $0x18] sm:$0xff]
      %v451 = vld [vmem:[#allocation2 + $0x20] sm:$0xff]
      %v452 = vld [vmem:[#allocation2 + $0x28] sm:$0xff]
      %v453 = vld [vmem:[#allocation2 + $0x30] sm:$0xff]
      %v454 = vld [vmem:[#allocation2 + $0x38] sm:$0xff]
      %v455 = vld [vmem:[#allocation2 + $0x40] sm:$0xff]
      %v456 = vld [vmem:[#allocation2 + $0x48] sm:$0xff]
      %v457 = vld [vmem:[#allocation2 + $0x50] sm:$0xff]
      %v458 = vld [vmem:[#allocation2 + $0x58] sm:$0xff]
      %v459 = vld [vmem:[#allocation2 + $0x60] sm:$0xff]
      %v460 = vld [vmem:[#allocation2 + $0x68] sm:$0xff]
      %v461 = vld [vmem:[#allocation2 + $0x70] sm:$0xff]
      %v462 = vld [vmem:[#allocation2 + $0x78] sm:$0xff]
      %v463 = vld [vmem:[#allocation8] sm:$0x1]
      %v465 = vlaneseq
      %v466 = vshrl.u32 %v465, 7
      %v467 = vsub.s32 0, %v466
      %v468 = vrot.slane %v463, %v467
      %v470 = vadd.f32 %v447, %v468
      %v471 = vadd.f32 %v448, %v468
      %v472 = vadd.f32 %v449, %v468
      %v473 = vadd.f32 %v450, %v468
      %v474 = vadd.f32 %v451, %v468
      %v475 = vadd.f32 %v452, %v468
      %v476 = vadd.f32 %v453, %v468
      %v477 = vadd.f32 %v454, %v468
      %v478 = vadd.f32 %v455, %v468
      %v479 = vadd.f32 %v456, %v468
      %v480 = vadd.f32 %v457, %v468
      %v481 = vadd.f32 %v458, %v468
      %v482 = vadd.f32 %v459, %v468
      %v483 = vadd.f32 %v460, %v468
      %v484 = vadd.f32 %v461, %v468
      %v485 = vadd.f32 %v462, %v468
      %v486 = vmax.f32 %v470, 0.0
      %v487 = vmax.f32 %v471, 0.0
      %v488 = vmax.f32 %v472, 0.0
      %v489 = vmax.f32 %v473, 0.0
      %v490 = vmax.f32 %v474, 0.0
      %v491 = vmax.f32 %v475, 0.0
      %v492 = vmax.f32 %v476, 0.0
      %v493 = vmax.f32 %v477, 0.0
      %v494 = vmax.f32 %v478, 0.0
      %v495 = vmax.f32 %v479, 0.0
      %v496 = vmax.f32 %v480, 0.0
      %v497 = vmax.f32 %v481, 0.0
      %v498 = vmax.f32 %v482, 0.0
      %v499 = vmax.f32 %v483, 0.0
      %v500 = vmax.f32 %v484, 0.0
      %v501 = vmax.f32 %v485, 0.0
      %502 = vst [vmem:[#allocation9] sm:$0xff] %v486
      %503 = vst [vmem:[#allocation9 + $0x8] sm:$0xff] %v487
      %504 = vst [vmem:[#allocation9 + $0x10] sm:$0xff] %v488
      %505 = vst [vmem:[#allocation9 + $0x18] sm:$0xff] %v489
      %506 = vst [vmem:[#allocation9 + $0x20] sm:$0xff] %v490
      %507 = vst [vmem:[#allocation9 + $0x28] sm:$0xff] %v491
      %508 = vst [vmem:[#allocation9 + $0x30] sm:$0xff] %v492
      %509 = vst [vmem:[#allocation9 + $0x38] sm:$0xff] %v493
      %510 = vst [vmem:[#allocation9 + $0x40] sm:$0xff] %v494
      %511 = vst [vmem:[#allocation9 + $0x48] sm:$0xff] %v495
      %512 = vst [vmem:[#allocation9 + $0x50] sm:$0xff] %v496
      %513 = vst [vmem:[#allocation9 + $0x58] sm:$0xff] %v497
      %514 = vst [vmem:[#allocation9 + $0x60] sm:$0xff] %v498
      %515 = vst [vmem:[#allocation9 + $0x68] sm:$0xff] %v499
      %516 = vst [vmem:[#allocation9 + $0x70] sm:$0xff] %v500
      %517 = vst [vmem:[#allocation9 + $0x78] sm:$0xff] %v501
    $region33: #{vae_forward.23} parent=1 // pred_fallthru
      _
    // Predicated region
    $region34: #{vae_forward.23} parent=1 // pred_check
      _
    $region35: #{vae_forward.23} parent=1 // pred_check_branch
      %519 = sbr.rel (0) target = $region37
    $region36: #{vae_forward.23} parent=1 // pred_region
      %s521 = ssub.s32 2048, 2048
      %522 = vsyncadd [#allocation5], %s521
      %s523 = sshll.u32 [#allocation9], 4
      %s524 = int_to_ptr.vmem [resolvable:$true] %s523
      %529 = dma.vmem_to_hbm [thread:$0]  %s524, 2048, %s3, [#allocation5], 128, 128, 8
    $region37: #{vae_forward.23} parent=1 // pred_fallthru
      _
    // Predicated region
    $region38: #{vae_forward.23} parent=1 // pred_check
      _
    $region39: #{vae_forward.23} parent=1 // pred_check_branch
      %531 = sbr.rel (0) target = $region41
    $region40: #{vae_forward.23} parent=1 // pred_region
      %532 = dma.done [#allocation5], 2048
    $region41: #{vae_forward.23} parent=1 // pred_fallthru
      _
    %533 = vsyncpa [#allocation4], 1
    %534 = vsyncpa [#allocation7], 1
    %535 = vsyncpa [#allocation5], 1

// kernel: vae_forward.24
$region0: #{vae_forward.24}
  #allocation0 [shape = 'u32[]', space=smem, size = 0x4, offset = 0x4, fixed_abs, tag = 'smem constant byte address 0x4 - core index']
  #allocation1 [shape = 'u32[144,128]{1,0:T(1,128)}', space=vmem, size = 0x12000, scoped, tag = 'internal scratch']
  #allocation2 [shape = 'f32[32,128]{1,0:T(8,128)}', space=vmem, size = 0x4000, scoped, tag = 'scratch operand']
  %s0 = inlined_call_operand.hbm [shape: bf16[32,384], index: 0, kind: input, shape index: {}]
  %s1 = inlined_call_operand.hbm [shape: bf16[384,128], index: 1, kind: input, shape index: {}]
  %s2 = inlined_call_operand.hbm [shape: f32[1,128], index: 2, kind: input, shape index: {}]
  %s3 = inlined_call_operand.hbm [shape: f32[32,128], index: 3, kind: output, shape index: {}]
  %s4 = sld [smem:[#allocation0]]
  $region42: #{vae_forward.24} parent=0
    _
  %s6 = ssub.s32 1, %s4
  %s7 = scalar_select 0, %s6, %s4
  $region1: #{vae_forward.24} parent=0
    #allocation3 [shape = 'u8[24576]{0}', space=vmem, size = 0x6000, scoped, tag = 'input window, operand 0, single buffered']
    #allocation4 [shape = 's32[1]{0}', space=sflag, size = 0x4, scoped, tag = 'scoped memory for vae_forward.24']
    #allocation5 [shape = 's32[1]{0}', space=sflag, size = 0x4, scoped, tag = 'scoped memory for vae_forward.24']
    #allocation6 [shape = 'u8[98304]{0}', space=vmem, size = 0x18000, scoped, tag = 'input window, operand 1, single buffered']
    #allocation7 [shape = 's32[1]{0}', space=sflag, size = 0x4, scoped, tag = 'scoped memory for vae_forward.24']
    #allocation8 [shape = 'u8[512]{0}', space=vmem, size = 0x400, scoped, tag = 'input window, operand 2, single buffered']
    #allocation9 [shape = 'u8[16384]{0}', space=vmem, size = 0x4000, scoped, tag = 'output window, operand 0, single buffered']
    %8 = vsyncpa [#allocation4], 0
    %9 = vsyncpa [#allocation7], 0
    %10 = vsyncpa [#allocation5], 0
    // Predicated region
    $region2: #{vae_forward.24} parent=1 // pred_check
      _
    $region3: #{vae_forward.24} parent=1 // pred_check_branch
      %12 = sbr.rel (0) target = $region5
    $region4: #{vae_forward.24} parent=1 // pred_region
      %s14 = ssub.s32 768, 768
      %15 = vsyncadd [#allocation4], %s14
      %s16 = sshll.u32 [#allocation3], 4
      %s17 = int_to_ptr.vmem [resolvable:$true] %s16
      %22 = dma.hbm_to_vmem [thread:$0]  %s0, 768, %s17, [#allocation4], 192, 192, 12
    $region5: #{vae_forward.24} parent=1 // pred_fallthru
      _
    // Predicated region
    $region6: #{vae_forward.24} parent=1 // pred_check
      _
    $region7: #{vae_forward.24} parent=1 // pred_check_branch
      %24 = sbr.rel (0) target = $region9
    $region8: #{vae_forward.24} parent=1 // pred_region
      %s26 = ssub.s32 3072, 3072
      %27 = vsyncadd [#allocation7], %s26
      %s28 = sshll.u32 [#allocation6], 4
      %s29 = int_to_ptr.vmem [resolvable:$true] %s28
      %34 = dma.hbm_to_vmem [thread:$0]  %s1, 3072, %s29, [#allocation7], 64, 64, 4
    $region9: #{vae_forward.24} parent=1 // pred_fallthru
      _
    // Predicated region
    $region10: #{vae_forward.24} parent=1 // pred_check
      _
    $region11: #{vae_forward.24} parent=1 // pred_check_branch
      %36 = sbr.rel (0) target = $region13
    $region12: #{vae_forward.24} parent=1 // pred_region
      %s38 = ssub.s32 16, 16
      %39 = vsyncadd [#allocation7], %s38
      %s41 = sshll.u32 [#allocation8], 4
      %s42 = int_to_ptr.vmem [resolvable:$true] %s41
      %44 = dma.hbm_to_vmem [thread:$0]  %s2, 16, %s42, [#allocation7]
    $region13: #{vae_forward.24} parent=1 // pred_fallthru
      _
    // Predicated region
    $region14: #{vae_forward.24} parent=1 // pred_check
      _
    $region15: #{vae_forward.24} parent=1 // pred_check_branch
      %46 = sbr.rel (0) target = $region17
    $region16: #{vae_forward.24} parent=1 // pred_region
      %47 = dma.done [#allocation4], 768
    $region17: #{vae_forward.24} parent=1 // pred_fallthru
      _
    // Predicated region
    $region18: #{vae_forward.24} parent=1 // pred_check
      _
    $region19: #{vae_forward.24} parent=1 // pred_check_branch
      %49 = sbr.rel (0) target = $region21
    $region20: #{vae_forward.24} parent=1 // pred_region
      %50 = dma.done [#allocation7], 3072
    $region21: #{vae_forward.24} parent=1 // pred_fallthru
      _
    // Predicated region
    $region22: #{vae_forward.24} parent=1 // pred_check
      _
    $region23: #{vae_forward.24} parent=1 // pred_check_branch
      %52 = sbr.rel (0) target = $region25
    $region24: #{vae_forward.24} parent=1 // pred_region
      %53 = dma.done [#allocation7], 16
    $region25: #{vae_forward.24} parent=1 // pred_fallthru
      _
    %p55 = scmp.eq.s32.totalorder 0, 0
    // Predicated region
    $region26: #{vae_forward.24} parent=1 // pred_check
      %p56 = pneg %p55
    $region27: #{vae_forward.24} parent=1 // pred_check_branch
      %58 = sbr.rel (%p56) target = $region29
    $region28: #{vae_forward.24} parent=1 // pred_region
      %59 = vst [vmem:[#allocation2] sm:$0xff] 0.0
      %60 = vst [vmem:[#allocation2 + $0x8] sm:$0xff] 0.0
      %61 = vst [vmem:[#allocation2 + $0x10] sm:$0xff] 0.0
      %62 = vst [vmem:[#allocation2 + $0x18] sm:$0xff] 0.0
    $region29: #{vae_forward.24} parent=1 // pred_fallthru
      _
    %v63 = vld [vmem:[#allocation2] sm:$0xff]
    %v64 = vld [vmem:[#allocation2 + $0x8] sm:$0xff]
    %v65 = vld [vmem:[#allocation2 + $0x10] sm:$0xff]
    %v66 = vld [vmem:[#allocation2 + $0x18] sm:$0xff]
    %v67 = vld [vmem:[#allocation3] sm:$0xff]
    %v68 = vld [vmem:[#allocation3 + $0x8] sm:$0xf]
    %v69 = vld [vmem:[#allocation3 + $0xc] sm:$0xff]
    %v70 = vld [vmem:[#allocation3 + $0x14] sm:$0xf]
    %v71 = vld [vmem:[#allocation3 + $0x18] sm:$0xff]
    %v72 = vld [vmem:[#allocation3 + $0x20] sm:$0xf]
    %v73 = vld [vmem:[#allocation3 + $0x24] sm:$0xff]
    %v74 = vld [vmem:[#allocation3 + $0x2c] sm:$0xf]
    %v75 = vld [vmem:[#allocation6] sm:$0xf]
    %v76 = vld [vmem:[#allocation6 + $0x4] sm:$0xf]
    %v77 = vld [vmem:[#allocation6 + $0x8] sm:$0xf]
    %v78 = vld [vmem:[#allocation6 + $0xc] sm:$0xf]
    %v79 = vld [vmem:[#allocation6 + $0x10] sm:$0xf]
    %v80 = vld [vmem:[#allocation6 + $0x14] sm:$0xf]
    %v81 = vld [vmem:[#allocation6 + $0x18] sm:$0xf]
    %v82 = vld [vmem:[#allocation6 + $0x1c] sm:$0xf]
    %v83 = vld [vmem:[#allocation6 + $0x20] sm:$0xf]
    %v84 = vld [vmem:[#allocation6 + $0x24] sm:$0xf]
    %v85 = vld [vmem:[#allocation6 + $0x28] sm:$0xf]
    %v86 = vld [vmem:[#allocation6 + $0x2c] sm:$0xf]
    %v87 = vld [vmem:[#allocation6 + $0x30] sm:$0xf]
    %v88 = vld [vmem:[#allocation6 + $0x34] sm:$0xf]
    %v89 = vld [vmem:[#allocation6 + $0x38] sm:$0xf]
    %v90 = vld [vmem:[#allocation6 + $0x3c] sm:$0xf]
    %v91 = vld [vmem:[#allocation6 + $0x40] sm:$0xf]
    %v92 = vld [vmem:[#allocation6 + $0x44] sm:$0xf]
    %v93 = vld [vmem:[#allocation6 + $0x48] sm:$0xf]
    %v94 = vld [vmem:[#allocation6 + $0x4c] sm:$0xf]
    %v95 = vld [vmem:[#allocation6 + $0x50] sm:$0xf]
    %v96 = vld [vmem:[#allocation6 + $0x54] sm:$0xf]
    %v97 = vld [vmem:[#allocation6 + $0x58] sm:$0xf]
    %v98 = vld [vmem:[#allocation6 + $0x5c] sm:$0xf]
    %v99 = vld [vmem:[#allocation6 + $0x60] sm:$0xf]
    %v100 = vld [vmem:[#allocation6 + $0x64] sm:$0xf]
    %v101 = vld [vmem:[#allocation6 + $0x68] sm:$0xf]
    %v102 = vld [vmem:[#allocation6 + $0x6c] sm:$0xf]
    %v103 = vld [vmem:[#allocation6 + $0x70] sm:$0xf]
    %v104 = vld [vmem:[#allocation6 + $0x74] sm:$0xf]
    %v105 = vld [vmem:[#allocation6 + $0x78] sm:$0xf]
    %v106 = vld [vmem:[#allocation6 + $0x7c] sm:$0xf]
    %v107 = vld [vmem:[#allocation6 + $0x80] sm:$0xf]
    %v108 = vld [vmem:[#allocation6 + $0x84] sm:$0xf]
    %v109 = vld [vmem:[#allocation6 + $0x88] sm:$0xf]
    %v110 = vld [vmem:[#allocation6 + $0x8c] sm:$0xf]
    %v111 = vld [vmem:[#allocation6 + $0x90] sm:$0xf]
    %v112 = vld [vmem:[#allocation6 + $0x94] sm:$0xf]
    %v113 = vld [vmem:[#allocation6 + $0x98] sm:$0xf]
    %v114 = vld [vmem:[#allocation6 + $0x9c] sm:$0xf]
    %v115 = vld [vmem:[#allocation6 + $0xa0] sm:$0xf]
    %v116 = vld [vmem:[#allocation6 + $0xa4] sm:$0xf]
    %v117 = vld [vmem:[#allocation6 + $0xa8] sm:$0xf]
    %v118 = vld [vmem:[#allocation6 + $0xac] sm:$0xf]
    %v119 = vld [vmem:[#allocation6 + $0xb0] sm:$0xf]
    %v120 = vld [vmem:[#allocation6 + $0xb4] sm:$0xf]
    %v121 = vld [vmem:[#allocation6 + $0xb8] sm:$0xf]
    %v122 = vld [vmem:[#allocation6 + $0xbc] sm:$0xf]
    %v131 = vunpack.c.l.b16 %v67
    %v132 = vunpack.c.h.b16 %v67
    %v133 = vunpack.c.l.b16 %v68
    %v134 = vunpack.c.l.b16 %v69
    %v135 = vunpack.c.h.b16 %v69
    %v136 = vunpack.c.l.b16 %v70
    %v137 = vunpack.c.l.b16 %v71
    %v138 = vunpack.c.h.b16 %v71
    %v139 = vunpack.c.l.b16 %v72
    %v140 = vunpack.c.l.b16 %v73
    %v141 = vunpack.c.h.b16 %v73
    %v142 = vunpack.c.l.b16 %v74
    %v143 = vpack.c.b16 %v134, %v131
    %v144 = vpack.c.b16 %v135, %v132
    %v145 = vpack.c.b16 %v136, %v133
    %v146 = vpack.c.b16 %v140, %v137
    %v147 = vpack.c.b16 %v141, %v138
    %v148 = vpack.c.b16 %v142, %v139
    %v203 = vunpack.c.l.b16 %v75
    %v204 = vunpack.c.l.b16 %v76
    %v205 = vunpack.c.l.b16 %v77
    %v206 = vunpack.c.l.b16 %v78
    %v207 = vunpack.c.l.b16 %v79
    %v208 = vunpack.c.l.b16 %v80
    %v209 = vunpack.c.l.b16 %v81
    %v210 = vunpack.c.l.b16 %v82
    %v211 = vunpack.c.l.b16 %v83
    %v212 = vunpack.c.l.b16 %v84
    %v213 = vunpack.c.l.b16 %v85
    %v214 = vunpack.c.l.b16 %v86
    %v215 = vunpack.c.l.b16 %v87
    %v216 = vunpack.c.l.b16 %v88
    %v217 = vunpack.c.l.b16 %v89
    %v218 = vunpack.c.l.b16 %v90
    %v219 = vunpack.c.l.b16 %v91
    %v220 = vunpack.c.l.b16 %v92
    %v221 = vunpack.c.l.b16 %v93
    %v222 = vunpack.c.l.b16 %v94
    %v223 = vunpack.c.l.b16 %v95
    %v224 = vunpack.c.l.b16 %v96
    %v225 = vunpack.c.l.b16 %v97
    %v226 = vunpack.c.l.b16 %v98
    %v227 = vunpack.c.l.b16 %v99
    %v228 = vunpack.c.l.b16 %v100
    %v229 = vunpack.c.l.b16 %v101
    %v230 = vunpack.c.l.b16 %v102
    %v231 = vunpack.c.l.b16 %v103
    %v232 = vunpack.c.l.b16 %v104
    %v233 = vunpack.c.l.b16 %v105
    %v234 = vunpack.c.l.b16 %v106
    %v235 = vunpack.c.l.b16 %v107
    %v236 = vunpack.c.l.b16 %v108
    %v237 = vunpack.c.l.b16 %v109
    %v238 = vunpack.c.l.b16 %v110
    %v239 = vunpack.c.l.b16 %v111
    %v240 = vunpack.c.l.b16 %v112
    %v241 = vunpack.c.l.b16 %v113
    %v242 = vunpack.c.l.b16 %v114
    %v243 = vunpack.c.l.b16 %v115
    %v244 = vunpack.c.l.b16 %v116
    %v245 = vunpack.c.l.b16 %v117
    %v246 = vunpack.c.l.b16 %v118
    %v247 = vunpack.c.l.b16 %v119
    %v248 = vunpack.c.l.b16 %v120
    %v249 = vunpack.c.l.b16 %v121
    %v250 = vunpack.c.l.b16 %v122
    %v251 = vpack.c.b16 %v204, %v203
    %v252 = vpack.c.b16 %v206, %v205
    %v253 = vpack.c.b16 %v208, %v207
    %v254 = vpack.c.b16 %v210, %v209
    %v255 = vpack.c.b16 %v212, %v211
    %v256 = vpack.c.b16 %v214, %v213
    %v257 = vpack.c.b16 %v216, %v215
    %v258 = vpack.c.b16 %v218, %v217
    %v259 = vpack.c.b16 %v220, %v219
    %v260 = vpack.c.b16 %v222, %v221
    %v261 = vpack.c.b16 %v224, %v223
    %v262 = vpack.c.b16 %v226, %v225
    %v263 = vpack.c.b16 %v228, %v227
    %v264 = vpack.c.b16 %v230, %v229
    %v265 = vpack.c.b16 %v232, %v231
    %v266 = vpack.c.b16 %v234, %v233
    %v267 = vpack.c.b16 %v236, %v235
    %v268 = vpack.c.b16 %v238, %v237
    %v269 = vpack.c.b16 %v240, %v239
    %v270 = vpack.c.b16 %v242, %v241
    %v271 = vpack.c.b16 %v244, %v243
    %v272 = vpack.c.b16 %v246, %v245
    %v273 = vpack.c.b16 %v248, %v247
    %v274 = vpack.c.b16 %v250, %v249
    %299 = vmatprep.subr.bf16.mxu0 0
    %300 = vmatpush1.bf16.msra.mxu0 %v251
    %301 = vmatprep.subr.bf16.mxu0 0
    %302 = vmatpush1.bf16.msra.mxu0 %v252
    %303 = vmatprep.subr.bf16.mxu0 0
    %304 = vmatpush1.bf16.msra.mxu0 %v253
    %305 = vmatprep.subr.bf16.mxu0 0
    %306 = vmatpush1.bf16.msra.mxu0 %v254
    %307 = vmatprep.subr.bf16.mxu0 0
    %308 = vmatpush1.bf16.msra.mxu0 %v255
    %309 = vmatprep.subr.bf16.mxu0 0
    %310 = vmatpush1.bf16.msra.mxu0 %v256
    %311 = vmatprep.subr.bf16.mxu0 0
    %312 = vmatpush1.bf16.msra.mxu0 %v257
    %313 = vmatprep.subr.bf16.mxu0 0
    %314 = vmatpush1.bf16.msra.mxu0 %v258
    %315 = vmatprep.subr.bf16.mxu0 0
    %316 = vmatpush1.bf16.msra.mxu0 %v259
    %317 = vmatprep.subr.bf16.mxu0 0
    %318 = vmatpush1.bf16.msra.mxu0 %v260
    %319 = vmatprep.subr.bf16.mxu0 0
    %320 = vmatpush1.bf16.msra.mxu0 %v261
    %321 = vmatprep.subr.bf16.mxu0 0
    %322 = vmatpush1.bf16.msra.mxu0 %v262
    %323 = vmatprep.subr.bf16.mxu0 0
    %324 = vmatpush1.bf16.msra.mxu0 %v263
    %325 = vmatprep.subr.bf16.mxu0 0
    %326 = vmatpush1.bf16.msra.mxu0 %v264
    %327 = vmatprep.subr.bf16.mxu0 0
    %328 = vmatpush1.bf16.msra.mxu0 %v265
    %329 = vmatprep.subr.bf16.mxu0 0
    %330 = vmatpush1.bf16.msra.mxu0 %v266
    %331 = vmatprep.mubr.bf16.mxu0 %v144
    %332 = vmatmul.mubr.bf16.gmra.mrb[0].mxu0 %v143
    %v333 = vpop.f32.mrb[0].mxu0
    %v334 = vadd.f32 0.0, %v333
    %v335 = vpop.f32.mrb[0].mxu0
    %v336 = vpop.f32.mrb[0].mxu0
    %v337 = vadd.f32 0.0, %v336
    %v338 = vpop.f32.mrb[0].mxu0
    %339 = vmatprep.mubr.bf16.mxu0 %v147
    %340 = vmatmul.mubr.bf16.gmra.mrb[0].mxu0 %v146
    %v341 = vpop.f32.mrb[0].mxu0
    %v342 = vadd.f32 0.0, %v341
    %v343 = vpop.f32.mrb[0].mxu0
    %v344 = vpop.f32.mrb[0].mxu0
    %v345 = vadd.f32 0.0, %v344
    %v346 = vpop.f32.mrb[0].mxu0
    %347 = vdwg.mxu0
    %348 = vmatprep.subr.bf16.mxu0 0
    %349 = vmatpush1.bf16.msra.mxu0 %v267
    %350 = vmatprep.subr.bf16.mxu0 0
    %351 = vmatpush1.bf16.msra.mxu0 %v268
    %352 = vmatprep.subr.bf16.mxu0 0
    %353 = vmatpush1.bf16.msra.mxu0 %v269
    %354 = vmatprep.subr.bf16.mxu0 0
    %355 = vmatpush1.bf16.msra.mxu0 %v270
    %356 = vmatprep.subr.bf16.mxu0 0
    %357 = vmatpush1.bf16.msra.mxu0 %v271
    %358 = vmatprep.subr.bf16.mxu0 0
    %359 = vmatpush1.bf16.msra.mxu0 %v272
    %360 = vmatprep.subr.bf16.mxu0 0
    %361 = vmatpush1.bf16.msra.mxu0 %v273
    %362 = vmatprep.subr.bf16.mxu0 0
    %363 = vmatpush1.bf16.msra.mxu0 %v274
    %364 = vmatprep.subr.bf16.mxu0 0
    %365 = vmatpush1.bf16.msra.mxu0 0
    %366 = vmatprep.subr.bf16.mxu0 0
    %367 = vmatpush1.bf16.msra.mxu0 0
    %368 = vmatprep.subr.bf16.mxu0 0
    %369 = vmatpush1.bf16.msra.mxu0 0
    %370 = vmatprep.subr.bf16.mxu0 0
    %371 = vmatpush1.bf16.msra.mxu0 0
    %372 = vmatprep.subr.bf16.mxu0 0
    %373 = vmatpush1.bf16.msra.mxu0 0
    %374 = vmatprep.subr.bf16.mxu0 0
    %375 = vmatpush1.bf16.msra.mxu0 0
    %376 = vmatprep.subr.bf16.mxu0 0
    %377 = vmatpush1.bf16.msra.mxu0 0
    %378 = vmatprep.subr.bf16.mxu0 0
    %379 = vmatpush1.bf16.msra.mxu0 0
    %380 = vmatprep.mubr.bf16.mxu0 0
    %381 = vmatmul.mubr.bf16.gmra.mrb[0].mxu0 %v145
    %v382 = vpop.f32.mrb[0].mxu0
    %v383 = vadd.f32 %v334, %v382
    %v384 = vpop.f32.mrb[0].mxu0
    %v385 = vpop.f32.mrb[0].mxu0
    %v386 = vadd.f32 %v337, %v385
    %v387 = vpop.f32.mrb[0].mxu0
    %388 = vmatprep.mubr.bf16.mxu0 0
    %389 = vmatmul.mubr.bf16.gmra.mrb[0].mxu0 %v148
    %v390 = vpop.f32.mrb[0].mxu0
    %v391 = vadd.f32 %v342, %v390
    %v392 = vpop.f32.mrb[0].mxu0
    %v393 = vpop.f32.mrb[0].mxu0
    %v394 = vadd.f32 %v345, %v393
    %v395 = vpop.f32.mrb[0].mxu0
    %396 = vdwg.mxu0
    %v397 = vadd.f32 %v63, %v383
    %v398 = vadd.f32 %v64, %v386
    %v399 = vadd.f32 %v65, %v391
    %v400 = vadd.f32 %v66, %v394
    %401 = vst [vmem:[#allocation2] sm:$0xff] %v397
    %402 = vst [vmem:[#allocation2 + $0x8] sm:$0xff] %v398
    %403 = vst [vmem:[#allocation2 + $0x10] sm:$0xff] %v399
    %404 = vst [vmem:[#allocation2 + $0x18] sm:$0xff] %v400
    // Predicated region
    $region30: #{vae_forward.24} parent=1 // pred_check
      %p405 = pneg %p55
    $region31: #{vae_forward.24} parent=1 // pred_check_branch
      %407 = sbr.rel (%p405) target = $region33
    $region32: #{vae_forward.24} parent=1 // pred_region
      %v408 = vld [vmem:[#allocation2] sm:$0xff]
      %v409 = vld [vmem:[#allocation2 + $0x8] sm:$0xff]
      %v410 = vld [vmem:[#allocation2 + $0x10] sm:$0xff]
      %v411 = vld [vmem:[#allocation2 + $0x18] sm:$0xff]
      %v412 = vld [vmem:[#allocation8] sm:$0x1]
      %v414 = vlaneseq
      %v415 = vshrl.u32 %v414, 7
      %v416 = vsub.s32 0, %v415
      %v417 = vrot.slane %v412, %v416
      %v419 = vadd.f32 %v408, %v417
      %v420 = vadd.f32 %v409, %v417
      %v421 = vadd.f32 %v410, %v417
      %v422 = vadd.f32 %v411, %v417
      %v423 = vmax.f32 %v419, 0.0
      %v424 = vmax.f32 %v420, 0.0
      %v425 = vmax.f32 %v421, 0.0
      %v426 = vmax.f32 %v422, 0.0
      %427 = vst [vmem:[#allocation9] sm:$0xff] %v423
      %428 = vst [vmem:[#allocation9 + $0x8] sm:$0xff] %v424
      %429 = vst [vmem:[#allocation9 + $0x10] sm:$0xff] %v425
      %430 = vst [vmem:[#allocation9 + $0x18] sm:$0xff] %v426
    $region33: #{vae_forward.24} parent=1 // pred_fallthru
      _
    // Predicated region
    $region34: #{vae_forward.24} parent=1 // pred_check
      _
    $region35: #{vae_forward.24} parent=1 // pred_check_branch
      %432 = sbr.rel (0) target = $region37
    $region36: #{vae_forward.24} parent=1 // pred_region
      %s434 = ssub.s32 512, 512
      %435 = vsyncadd [#allocation5], %s434
      %s436 = sshll.u32 [#allocation9], 4
      %s437 = int_to_ptr.vmem [resolvable:$true] %s436
      %442 = dma.vmem_to_hbm [thread:$0]  %s437, 512, %s3, [#allocation5], 128, 128, 8
    $region37: #{vae_forward.24} parent=1 // pred_fallthru
      _
    // Predicated region
    $region38: #{vae_forward.24} parent=1 // pred_check
      _
    $region39: #{vae_forward.24} parent=1 // pred_check_branch
      %444 = sbr.rel (0) target = $region41
    $region40: #{vae_forward.24} parent=1 // pred_region
      %445 = dma.done [#allocation5], 512
    $region41: #{vae_forward.24} parent=1 // pred_fallthru
      _
    %446 = vsyncpa [#allocation4], 1
    %447 = vsyncpa [#allocation7], 1
    %448 = vsyncpa [#allocation5], 1

// kernel: vae_forward.25
$region0: #{vae_forward.25}
  #allocation0 [shape = 'u32[]', space=smem, size = 0x4, offset = 0x4, fixed_abs, tag = 'smem constant byte address 0x4 - core index']
  #allocation1 [shape = 'u32[144,128]{1,0:T(1,128)}', space=vmem, size = 0x12000, scoped, tag = 'internal scratch']
  #allocation2 [shape = 'f32[32,128]{1,0:T(8,128)}', space=vmem, size = 0x4000, scoped, tag = 'scratch operand']
  %s0 = inlined_call_operand.hbm [shape: bf16[32,640], index: 0, kind: input, shape index: {}]
  %s1 = inlined_call_operand.hbm [shape: bf16[640,128], index: 1, kind: input, shape index: {}]
  %s2 = inlined_call_operand.hbm [shape: f32[1,128], index: 2, kind: input, shape index: {}]
  %s3 = inlined_call_operand.hbm [shape: f32[32,128], index: 3, kind: output, shape index: {}]
  %s4 = sld [smem:[#allocation0]]
  $region65: #{vae_forward.25} parent=0
    _
  %s6 = ssub.s32 1, %s4
  %s7 = scalar_select 0, %s6, %s4
  $region1: #{vae_forward.25} parent=0
    #allocation3 [shape = 'u8[16384]{0}', space=vmem, size = 0x4000, scoped, tag = 'input window, operand 0']
    #allocation4 [shape = 's32[2]{0}', space=sflag, size = 0x8, scoped, tag = 'scoped memory for vae_forward.25']
    #allocation5 [shape = 's32[2]{0}', space=sflag, size = 0x8, scoped, tag = 'scoped memory for vae_forward.25']
    #allocation6 [shape = 'u8[65536]{0}', space=vmem, size = 0x10000, scoped, tag = 'input window, operand 1']
    #allocation7 [shape = 's32[2]{0}', space=sflag, size = 0x8, scoped, tag = 'scoped memory for vae_forward.25']
    #allocation8 [shape = 'u8[512]{0}', space=vmem, size = 0x400, scoped, tag = 'input window, operand 2, single buffered']
    #allocation9 [shape = 'u8[16384]{0}', space=vmem, size = 0x4000, scoped, tag = 'output window, operand 0, single buffered']
    %8 = vsyncpa [#allocation4], 0
    %s9 = scalar_lea.sflag [#allocation4], 1
    %10 = vsyncpa %s9, 0
    %11 = vsyncpa [#allocation7], 0
    %s12 = scalar_lea.sflag [#allocation7], 1
    %13 = vsyncpa %s12, 0
    %14 = vsyncpa [#allocation5], 0
    loop: start=0, step=1, limit=7
    $region2: #{vae_forward.25} parent=1 // loop_pre_header
      _
    $region3: #{vae_forward.25} parent=1 // loop_header
      %s16 = sphi 0, %s20
      %p17 = scmp.ge.s32.totalorder %s16, 7
      %s23 = sphi 0, %s42
      %s24 = sphi 0, %s38
      %s25 = sphi 0, %s34
      %s26 = sphi 0, %s23
      %s27 = sphi 0, %s24
      %s28 = sphi 0, %s25
      %s29 = sphi 0, %s26
      %s30 = sphi 0, %s27
      %s31 = sphi 0, %s28
      %s47 = sphi 0, %s49
      %s50 = sphi 0, %s47
      %s51 = sphi 0, %s50
      %s67 = sphi 0, %s51
      %s75 = sphi 0, %s77
      %s78 = sphi 0, %s75
      %s79 = sphi 0, %s78
      %s95 = sphi 0, %s79
      %s101 = sphi 0, %s103
      %s104 = sphi 0, %s101
      %s105 = sphi 0, %s104
      %s121 = sphi 0, %s105
      %s129 = sphi 0, %s131
      %s132 = sphi 0, %s129
      %s133 = sphi 0, %s132
      %s149 = sphi 0, %s133
    $region4: #{vae_forward.25} parent=1 // loop_header_branch
      %19 = sbr.rel (%p17) target = $region8
    $region5: #{vae_forward.25} parent=1 // loop_body
      %s21 = ssub.s32 %s16, 1
      %s22 = ssub.s32 %s16, 2
      %s32 = sadd.s32 1, %s25
      %p33 = scmp.ge.s32.totalorder %s32, 5
      %s34 = scalar_select %p33, 0, %s32
      %s35 = sadd.s32 1, %s24
      %s36 = scalar_select %p33, %s35, %s24
      %p37 = scmp.ge.s32.totalorder %s36, 1
      %s38 = scalar_select %p37, 0, %s36
      %s39 = sadd.s32 1, %s23
      %s40 = scalar_select %p37, %s39, %s23
      %p41 = scmp.ge.s32.totalorder %s40, 1
      %s42 = scalar_select %p41, 0, %s40
      %s43 = ssub.s32 %s23, %s42
      %s44 = ssub.s32 %s25, %s34
      %s45 = sor.u32 %s43, %s44
      %p46 = scmp.eq.s32.totalorder %s45, 0
      %s48 = sadd.s32 %s47, 1
      %s49 = scalar_select %p46, %s47, %s48
      %p52 = pneg %p46
      %p53 = scmp.eq.s32.totalorder %s16, 4
      %p54 = por %p52, %p53
      %p55 = scmp.ne.s32.totalorder %s47, %s50
      %p56 = scmp.eq.s32.totalorder %s16, 0
      %p57 = por %p55, %p56
      %p58 = scmp.ne.s32.totalorder %s47, %s50
      %p59 = scmp.eq.s32.totalorder %s21, 4
      %p60 = por %p58, %p59
      %p61 = scmp.ne.s32.totalorder %s50, %s51
      %p62 = scmp.eq.s32.totalorder %s21, 0
      %p63 = por %p61, %p62
      %p64 = scmp.ne.s32.totalorder %s50, %s51
      %p65 = scmp.eq.s32.totalorder %s22, 4
      %p66 = por %p64, %p65
      %p68 = scmp.ne.s32.totalorder %s51, %s67
      %p69 = scmp.eq.s32.totalorder %s22, 0
      %p70 = por %p68, %p69
      %s71 = ssub.s32 %s25, %s34
      %s72 = ssub.s32 %s24, %s38
      %s73 = sor.u32 %s71, %s72
      %p74 = scmp.eq.s32.totalorder %s73, 0
      %s76 = sadd.s32 %s75, 1
      %s77 = scalar_select %p74, %s75, %s76
      %p80 = pneg %p74
      %p81 = scmp.eq.s32.totalorder %s16, 4
      %p82 = por %p80, %p81
      %p83 = scmp.ne.s32.totalorder %s75, %s78
      %p84 = scmp.eq.s32.totalorder %s16, 0
      %p85 = por %p83, %p84
      %p86 = scmp.ne.s32.totalorder %s75, %s78
      %p87 = scmp.eq.s32.totalorder %s21, 4
      %p88 = por %p86, %p87
      %p89 = scmp.ne.s32.totalorder %s78, %s79
      %p90 = scmp.eq.s32.totalorder %s21, 0
      %p91 = por %p89, %p90
      %p92 = scmp.ne.s32.totalorder %s78, %s79
      %p93 = scmp.eq.s32.totalorder %s22, 4
      %p94 = por %p92, %p93
      %p96 = scmp.ne.s32.totalorder %s79, %s95
      %p97 = scmp.eq.s32.totalorder %s22, 0
      %p98 = por %p96, %p97
      %s99 = ssub.s32 %s24, %s38
      %p100 = scmp.eq.s32.totalorder %s99, 0
      %s102 = sadd.s32 %s101, 1
      %s103 = scalar_select %p100, %s101, %s102
      %p106 = pneg %p100
      %p107 = scmp.eq.s32.totalorder %s16, 4
      %p108 = por %p106, %p107
      %p109 = scmp.ne.s32.totalorder %s101, %s104
      %p110 = scmp.eq.s32.totalorder %s16, 0
      %p111 = por %p109, %p110
      %p112 = scmp.ne.s32.totalorder %s101, %s104
      %p113 = scmp.eq.s32.totalorder %s21, 4
      %p114 = por %p112, %p113
      %p115 = scmp.ne.s32.totalorder %s104, %s105
      %p116 = scmp.eq.s32.totalorder %s21, 0
      %p117 = por %p115, %p116
      %p118 = scmp.ne.s32.totalorder %s104, %s105
      %p119 = scmp.eq.s32.totalorder %s22, 4
      %p120 = por %p118, %p119
      %p122 = scmp.ne.s32.totalorder %s105, %s121
      %p123 = scmp.eq.s32.totalorder %s22, 0
      %p124 = por %p122, %p123
      %s125 = ssub.s32 %s23, %s42
      %s126 = ssub.s32 %s24, %s38
      %s127 = sor.u32 %s125, %s126
      %p128 = scmp.eq.s32.totalorder %s127, 0
      %s130 = sadd.s32 %s129, 1
      %s131 = scalar_select %p128, %s129, %s130
      %p134 = pneg %p128
      %p135 = scmp.eq.s32.totalorder %s16, 4
      %p136 = por %p134, %p135
      %p137 = scmp.ne.s32.totalorder %s129, %s132
      %p138 = scmp.eq.s32.totalorder %s16, 0
      %p139 = por %p137, %p138
      %p140 = scmp.ne.s32.totalorder %s129, %s132
      %p141 = scmp.eq.s32.totalorder %s21, 4
      %p142 = por %p140, %p141
      %p143 = scmp.ne.s32.totalorder %s132, %s133
      %p144 = scmp.eq.s32.totalorder %s21, 0
      %p145 = por %p143, %p144
      %p146 = scmp.ne.s32.totalorder %s132, %s133
      %p147 = scmp.eq.s32.totalorder %s22, 4
      %p148 = por %p146, %p147
      %p150 = scmp.ne.s32.totalorder %s133, %s149
      %p151 = scmp.eq.s32.totalorder %s22, 0
      %p152 = por %p150, %p151
      %p153 = scmp.le.s32.totalorder 1, %s16
      %p154 = scmp.lt.s32.totalorder %s16, 6
      %p155 = pnand %p153, %p154
      %p156 = pneg %p155
      // Predicated region
      $region9: #{vae_forward.25} parent=5 // pred_check
        _
      $region10: #{vae_forward.25} parent=5 // pred_check_branch
        %158 = sbr.rel (%p155) target = $region12
      $region11: #{vae_forward.25} parent=5 // pred_region
        %s159 = ssub.s32 %s16, 1
        // Predicated region
        $region13: #{vae_forward.25} parent=11 // pred_check
          %p160 = pneg %p117
        $region14: #{vae_forward.25} parent=11 // pred_check_branch
          %162 = sbr.rel (%p160) target = $region16
        $region15: #{vae_forward.25} parent=11 // pred_region
          %s164 = ssub.s32 16, 16
          %165 = vsyncadd [#allocation7], %s164
          %s166 = smul.addr %s27, 16
          %s167 = scalar_lea.hbm %s2, %s166
          %s169 = sshll.u32 [#allocation8], 4
          %s170 = int_to_ptr.vmem [resolvable:$true] %s169
          %172 = dma.hbm_to_vmem [thread:$0]  %s167, 16, %s170, [#allocation7]
        $region16: #{vae_forward.25} parent=11 // pred_fallthru
          _
      $region12: #{vae_forward.25} parent=5 // pred_fallthru
        _
      %p173 = scmp.lt.s32.totalorder %s16, 5
      // Predicated region
      $region17: #{vae_forward.25} parent=5 // pred_check
        %p174 = pneg %p173
      $region18: #{vae_forward.25} parent=5 // pred_check_branch
        %176 = sbr.rel (%p174) target = $region20
      $region19: #{vae_forward.25} parent=5 // pred_region
        // Predicated region
        $region21: #{vae_forward.25} parent=19 // pred_check
          %p177 = pneg %p57
        $region22: #{vae_forward.25} parent=19 // pred_check_branch
          %179 = sbr.rel (%p177) target = $region24
        $region23: #{vae_forward.25} parent=19 // pred_region
          %s180 = sand.u32 %s47, 1
          %s181 = scalar_lea.sflag [#allocation4], %s180
          %s182 = sand.u32 %s47, 1
          %s183 = smul.addr %s182, 16
          %s184 = scalar_lea.vmem [#allocation3], %s183
          %s185 = smul.u32 4, %s23
          %s187 = ssub.s32 256, 256
          %188 = vsyncadd %s181, %s187
          %s189 = smul.addr %s185, 5
          %s190 = sadd.s32 %s25, %s189
          %s191 = smul.addr %s190, 64
          %s192 = scalar_lea.hbm %s0, %s191
          %s193 = sshll.u32 %s184, 4
          %s194 = int_to_ptr.vmem [resolvable:$true] %s193
          %199 = dma.hbm_to_vmem [thread:$0]  %s192, 256, %s194, %s181, 320, 64, 4
        $region24: #{vae_forward.25} parent=19 // pred_fallthru
          _
        // Predicated region
        $region25: #{vae_forward.25} parent=19 // pred_check
          %p200 = pneg %p85
        $region26: #{vae_forward.25} parent=19 // pred_check_branch
          %202 = sbr.rel (%p200) target = $region28
        $region27: #{vae_forward.25} parent=19 // pred_region
          %s203 = sand.u32 %s16, 1
          %s204 = scalar_lea.sflag [#allocation7], %s203
          %s205 = sand.u32 %s75, 1
          %s206 = smul.addr %s205, 64
          %s207 = scalar_lea.vmem [#allocation6], %s206
          %s208 = smul.u32 16, %s25
          %s210 = ssub.s32 1024, 1024
          %211 = vsyncadd %s204, %s210
          %s212 = sadd.s32 %s24, %s208
          %s213 = smul.addr %s212, 64
          %s214 = scalar_lea.hbm %s1, %s213
          %s215 = sshll.u32 %s207, 4
          %s216 = int_to_ptr.vmem [resolvable:$true] %s215
          %221 = dma.hbm_to_vmem [thread:$0]  %s214, 1024, %s216, %s204, 64, 64, 4
        $region28: #{vae_forward.25} parent=19 // pred_fallthru
          _
      $region20: #{vae_forward.25} parent=5 // pred_fallthru
        _
      %p222 = scmp.le.s32.totalorder 1, %s16
      %p223 = scmp.lt.s32.totalorder %s16, 6
      %p224 = pnand %p222, %p223
      %p225 = pneg %p224
      // Predicated region
      $region29: #{vae_forward.25} parent=5 // pred_check
        _
      $region30: #{vae_forward.25} parent=5 // pred_check_branch
        %227 = sbr.rel (%p224) target = $region32
      $region31: #{vae_forward.25} parent=5 // pred_region
        %s228 = ssub.s32 %s16, 1
        %s229 = sand.u32 %s50, 1
        %s230 = scalar_lea.sflag [#allocation4], %s229
        %s231 = sand.u32 %s50, 1
        %s232 = smul.addr %s231, 16
        %s233 = scalar_lea.vmem [#allocation3], %s232
        // Predicated region
        $region33: #{vae_forward.25} parent=31 // pred_check
          %p234 = pneg %p63
        $region34: #{vae_forward.25} parent=31 // pred_check_branch
          %236 = sbr.rel (%p234) target = $region36
        $region35: #{vae_forward.25} parent=31 // pred_region
          %237 = dma.done %s230, 256
        $region36: #{vae_forward.25} parent=31 // pred_fallthru
          _
        %s238 = sand.u32 %s21, 1
        %s239 = scalar_lea.sflag [#allocation7], %s238
        %s240 = sand.u32 %s78, 1
        %s241 = smul.addr %s240, 64
        %s242 = scalar_lea.vmem [#allocation6], %s241
        // Predicated region
        $region37: #{vae_forward.25} parent=31 // pred_check
          %p243 = pneg %p91
        $region38: #{vae_forward.25} parent=31 // pred_check_branch
          %245 = sbr.rel (%p243) target = $region40
        $region39: #{vae_forward.25} parent=31 // pred_region
          %246 = dma.done %s239, 1024
        $region40: #{vae_forward.25} parent=31 // pred_fallthru
          _
        // Predicated region
        $region41: #{vae_forward.25} parent=31 // pred_check
          %p247 = pneg %p117
        $region42: #{vae_forward.25} parent=31 // pred_check_branch
          %249 = sbr.rel (%p247) target = $region44
        $region43: #{vae_forward.25} parent=31 // pred_region
          %250 = dma.done [#allocation7], 16
        $region44: #{vae_forward.25} parent=31 // pred_fallthru
          _
        %s251 = sand.u32 %s50, 1
        %s252 = scalar_lea.sflag [#allocation4], %s251
        %s253 = sand.u32 %s50, 1
        %s254 = smul.addr %s253, 16
        %s255 = scalar_lea.vmem [#allocation3], %s254
        %p256 = pneg %p63
        %p257 = pneg %p60
        %s258 = sand.u32 %s21, 1
        %s259 = scalar_lea.sflag [#allocation7], %s258
        %s260 = sand.u32 %s78, 1
        %s261 = smul.addr %s260, 64
        %s262 = scalar_lea.vmem [#allocation6], %s261
        %p263 = pneg %p91
        %p264 = pneg %p88
        %p265 = pneg %p117
        %p266 = pneg %p114
        %p267 = pneg %p145
        %p268 = pneg %p142
        %s269 = smul.u32 4, %s26
        %s270 = smul.u32 16, %s28
        %s271 = smul.u32 4, %s26
        %p273 = scmp.eq.s32.totalorder %s28, 0
        // Predicated region
        $region45: #{vae_forward.25} parent=31 // pred_check
          %p274 = pneg %p273
        $region46: #{vae_forward.25} parent=31 // pred_check_branch
          %276 = sbr.rel (%p274) target = $region48
        $region47: #{vae_forward.25} parent=31 // pred_region
          %277 = vst [vmem:[#allocation2] sm:$0xff] 0.0
          %278 = vst [vmem:[#allocation2 + $0x8] sm:$0xff] 0.0
          %279 = vst [vmem:[#allocation2 + $0x10] sm:$0xff] 0.0
          %280 = vst [vmem:[#allocation2 + $0x18] sm:$0xff] 0.0
        $region48: #{vae_forward.25} parent=31 // pred_fallthru
          _
        %v281 = vld [vmem:[#allocation2] sm:$0xff]
        %v282 = vld [vmem:[#allocation2 + $0x8] sm:$0xff]
        %v283 = vld [vmem:[#allocation2 + $0x10] sm:$0xff]
        %v284 = vld [vmem:[#allocation2 + $0x18] sm:$0xff]
        %v285 = vld [vmem:[%s233] sm:$0xf]
        %v286 = vld [vmem:[%s233 + $0x4] sm:$0xf]
        %v287 = vld [vmem:[%s233 + $0x8] sm:$0xf]
        %v288 = vld [vmem:[%s233 + $0xc] sm:$0xf]
        %v289 = vld [vmem:[%s242] sm:$0xf]
        %v290 = vld [vmem:[%s242 + $0x4] sm:$0xf]
        %v291 = vld [vmem:[%s242 + $0x8] sm:$0xf]
        %v292 = vld [vmem:[%s242 + $0xc] sm:$0xf]
        %v293 = vld [vmem:[%s242 + $0x10] sm:$0xf]
        %v294 = vld [vmem:[%s242 + $0x14] sm:$0xf]
        %v295 = vld [vmem:[%s242 + $0x18] sm:$0xf]
        %v296 = vld [vmem:[%s242 + $0x1c] sm:$0xf]
        %v297 = vld [vmem:[%s242 + $0x20] sm:$0xf]
        %v298 = vld [vmem:[%s242 + $0x24] sm:$0xf]
        %v299 = vld [vmem:[%s242 + $0x28] sm:$0xf]
        %v300 = vld [vmem:[%s242 + $0x2c] sm:$0xf]
        %v301 = vld [vmem:[%s242 + $0x30] sm:$0xf]
        %v302 = vld [vmem:[%s242 + $0x34] sm:$0xf]
        %v303 = vld [vmem:[%s242 + $0x38] sm:$0xf]
        %v304 = vld [vmem:[%s242 + $0x3c] sm:$0xf]
        %v309 = vunpack.c.l.b16 %v285
        %v310 = vunpack.c.l.b16 %v286
        %v311 = vunpack.c.l.b16 %v287
        %v312 = vunpack.c.l.b16 %v288
        %v313 = vpack.c.b16 %v310, %v309
        %v314 = vpack.c.b16 %v312, %v311
        %v333 = vunpack.c.l.b16 %v289
        %v334 = vunpack.c.l.b16 %v290
        %v335 = vunpack.c.l.b16 %v291
        %v336 = vunpack.c.l.b16 %v292
        %v337 = vunpack.c.l.b16 %v293
        %v338 = vunpack.c.l.b16 %v294
        %v339 = vunpack.c.l.b16 %v295
        %v340 = vunpack.c.l.b16 %v296
        %v341 = vunpack.c.l.b16 %v297
        %v342 = vunpack.c.l.b16 %v298
        %v343 = vunpack.c.l.b16 %v299
        %v344 = vunpack.c.l.b16 %v300
        %v345 = vunpack.c.l.b16 %v301
        %v346 = vunpack.c.l.b16 %v302
        %v347 = vunpack.c.l.b16 %v303
        %v348 = vunpack.c.l.b16 %v304
        %v349 = vpack.c.b16 %v334, %v333
        %v350 = vpack.c.b16 %v336, %v335
        %v351 = vpack.c.b16 %v338, %v337
        %v352 = vpack.c.b16 %v340, %v339
        %v353 = vpack.c.b16 %v342, %v341
        %v354 = vpack.c.b16 %v344, %v343
        %v355 = vpack.c.b16 %v346, %v345
        %v356 = vpack.c.b16 %v348, %v347
        %365 = vmatprep.subr.bf16.mxu0 0
        %366 = vmatpush1.bf16.msra.mxu0 %v349
        %367 = vmatprep.subr.bf16.mxu0 0
        %368 = vmatpush1.bf16.msra.mxu0 %v350
        %369 = vmatprep.subr.bf16.mxu0 0
        %370 = vmatpush1.bf16.msra.mxu0 %v351
        %371 = vmatprep.subr.bf16.mxu0 0
        %372 = vmatpush1.bf16.msra.mxu0 %v352
        %373 = vmatprep.subr.bf16.mxu0 0
        %374 = vmatpush1.bf16.msra.mxu0 %v353
        %375 = vmatprep.subr.bf16.mxu0 0
        %376 = vmatpush1.bf16.msra.mxu0 %v354
        %377 = vmatprep.subr.bf16.mxu0 0
        %378 = vmatpush1.bf16.msra.mxu0 %v355
        %379 = vmatprep.subr.bf16.mxu0 0
        %380 = vmatpush1.bf16.msra.mxu0 %v356
        %381 = vmatprep.subr.bf16.mxu0 0
        %382 = vmatpush1.bf16.msra.mxu0 0
        %383 = vmatprep.subr.bf16.mxu0 0
        %384 = vmatpush1.bf16.msra.mxu0 0
        %385 = vmatprep.subr.bf16.mxu0 0
        %386 = vmatpush1.bf16.msra.mxu0 0
        %387 = vmatprep.subr.bf16.mxu0 0
        %388 = vmatpush1.bf16.msra.mxu0 0
        %389 = vmatprep.subr.bf16.mxu0 0
        %390 = vmatpush1.bf16.msra.mxu0 0
        %391 = vmatprep.subr.bf16.mxu0 0
        %392 = vmatpush1.bf16.msra.mxu0 0
        %393 = vmatprep.subr.bf16.mxu0 0
        %394 = vmatpush1.bf16.msra.mxu0 0
        %395 = vmatprep.subr.bf16.mxu0 0
        %396 = vmatpush1.bf16.msra.mxu0 0
        %397 = vmatprep.mubr.bf16.mxu0 0
        %398 = vmatmul.mubr.bf16.gmra.mrb[0].mxu0 %v313
        %v399 = vpop.f32.mrb[0].mxu0
        %v400 = vadd.f32 0.0, %v399
        %v401 = vpop.f32.mrb[0].mxu0
        %v402 = vpop.f32.mrb[0].mxu0
        %v403 = vadd.f32 0.0, %v402
        %v404 = vpop.f32.mrb[0].mxu0
        %405 = vmatprep.mubr.bf16.mxu0 0
        %406 = vmatmul.mubr.bf16.gmra.mrb[0].mxu0 %v314
        %v407 = vpop.f32.mrb[0].mxu0
        %v408 = vadd.f32 0.0, %v407
        %v409 = vpop.f32.mrb[0].mxu0
        %v410 = vpop.f32.mrb[0].mxu0
        %v411 = vadd.f32 0.0, %v410
        %v412 = vpop.f32.mrb[0].mxu0
        %413 = vdwg.mxu0
        %v414 = vadd.f32 %v281, %v400
        %v415 = vadd.f32 %v282, %v403
        %v416 = vadd.f32 %v283, %v408
        %v417 = vadd.f32 %v284, %v411
        %418 = vst [vmem:[#allocation2] sm:$0xff] %v414
        %419 = vst [vmem:[#allocation2 + $0x8] sm:$0xff] %v415
        %420 = vst [vmem:[#allocation2 + $0x10] sm:$0xff] %v416
        %421 = vst [vmem:[#allocation2 + $0x18] sm:$0xff] %v417
        %p422 = scmp.eq.s32.totalorder %s28, 4
        // Predicated region
        $region49: #{vae_forward.25} parent=31 // pred_check
          %p423 = pneg %p422
        $region50: #{vae_forward.25} parent=31 // pred_check_branch
          %425 = sbr.rel (%p423) target = $region52
        $region51: #{vae_forward.25} parent=31 // pred_region
          %v426 = vld [vmem:[#allocation2] sm:$0xff]
          %v427 = vld [vmem:[#allocation2 + $0x8] sm:$0xff]
          %v428 = vld [vmem:[#allocation2 + $0x10] sm:$0xff]
          %v429 = vld [vmem:[#allocation2 + $0x18] sm:$0xff]
          %v430 = vld [vmem:[#allocation8] sm:$0x1]
          %v432 = vlaneseq
          %v433 = vshrl.u32 %v432, 7
          %v434 = vsub.s32 0, %v433
          %v435 = vrot.slane %v430, %v434
          %v437 = vadd.f32 %v426, %v435
          %v438 = vadd.f32 %v427, %v435
          %v439 = vadd.f32 %v428, %v435
          %v440 = vadd.f32 %v429, %v435
          %v441 = vmax.f32 %v437, 0.0
          %v442 = vmax.f32 %v438, 0.0
          %v443 = vmax.f32 %v439, 0.0
          %v444 = vmax.f32 %v440, 0.0
          %445 = vst [vmem:[#allocation9] sm:$0xff] %v441
          %446 = vst [vmem:[#allocation9 + $0x8] sm:$0xff] %v442
          %447 = vst [vmem:[#allocation9 + $0x10] sm:$0xff] %v443
          %448 = vst [vmem:[#allocation9 + $0x18] sm:$0xff] %v444
        $region52: #{vae_forward.25} parent=31 // pred_fallthru
          _
        // Predicated region
        $region53: #{vae_forward.25} parent=31 // pred_check
          %p449 = pneg %p142
        $region54: #{vae_forward.25} parent=31 // pred_check_branch
          %451 = sbr.rel (%p449) target = $region56
        $region55: #{vae_forward.25} parent=31 // pred_region
          %s452 = smul.u32 4, %s26
          %s454 = ssub.s32 512, 512
          %455 = vsyncadd [#allocation5], %s454
          %s456 = sadd.s32 %s27, %s452
          %s457 = smul.addr %s456, 128
          %s458 = scalar_lea.hbm %s3, %s457
          %s459 = sshll.u32 [#allocation9], 4
          %s460 = int_to_ptr.vmem [resolvable:$true] %s459
          %465 = dma.vmem_to_hbm [thread:$0]  %s460, 512, %s458, [#allocation5], 128, 128, 8
        $region56: #{vae_forward.25} parent=31 // pred_fallthru
          _
        // Predicated region
        $region57: #{vae_forward.25} parent=31 // pred_check
          %p466 = pneg %p142
        $region58: #{vae_forward.25} parent=31 // pred_check_branch
          %468 = sbr.rel (%p466) target = $region60
        $region59: #{vae_forward.25} parent=31 // pred_region
          %469 = dma.done [#allocation5], 512
        $region60: #{vae_forward.25} parent=31 // pred_fallthru
          _
      $region32: #{vae_forward.25} parent=5 // pred_fallthru
        _
      %p470 = scmp.le.s32.totalorder 2, %s16
      // Predicated region
      $region61: #{vae_forward.25} parent=5 // pred_check
        %p471 = pneg %p470
      $region62: #{vae_forward.25} parent=5 // pred_check_branch
        %473 = sbr.rel (%p471) target = $region64
      $region63: #{vae_forward.25} parent=5 // pred_region
        %s474 = ssub.s32 %s16, 2
      $region64: #{vae_forward.25} parent=5 // pred_fallthru
        _
    $region6: #{vae_forward.25} parent=1 // loop_footer
      %s20 = sadd.s32 1, %s16
    $region7: #{vae_forward.25} parent=1 // loop_footer_branch
      %15 = sbr.rel target = $region3
    $region8: #{vae_forward.25} parent=1 // loop_exit
      _
    %475 = vsyncpa [#allocation4], 1
    %s476 = scalar_lea.sflag [#allocation4], 1
    %477 = vsyncpa %s476, 1
    %478 = vsyncpa [#allocation7], 1
    %s479 = scalar_lea.sflag [#allocation7], 1
    %480 = vsyncpa %s479, 1
    %481 = vsyncpa [#allocation5], 1
    %s482 = scalar_lea.sflag [#allocation5], 1
    %483 = vsyncpa %s482, 1

// kernel: vae_forward.26
$region0: #{vae_forward.26}
  #allocation0 [shape = 'u32[]', space=smem, size = 0x4, offset = 0x4, fixed_abs, tag = 'smem constant byte address 0x4 - core index']
  #allocation1 [shape = 'u32[144,128]{1,0:T(1,128)}', space=vmem, size = 0x12000, scoped, tag = 'internal scratch']
  #allocation2 [shape = 'f32[8,128]{1,0:T(8,128)}', space=vmem, size = 0x1000, scoped, tag = 'scratch operand']
  %s0 = inlined_call_operand.hbm [shape: bf16[8,1152], index: 0, kind: input, shape index: {}]
  %s1 = inlined_call_operand.hbm [shape: bf16[1152,128], index: 1, kind: input, shape index: {}]
  %s2 = inlined_call_operand.hbm [shape: f32[1,128], index: 2, kind: input, shape index: {}]
  %s3 = inlined_call_operand.hbm [shape: f32[8,128], index: 3, kind: output, shape index: {}]
  %s4 = sld [smem:[#allocation0]]
  $region65: #{vae_forward.26} parent=0
    _
  %s6 = ssub.s32 1, %s4
  %s7 = scalar_select 0, %s6, %s4
  $region1: #{vae_forward.26} parent=0
    #allocation3 [shape = 'u8[12288]{0}', space=vmem, size = 0x3000, scoped, tag = 'input window, operand 0']
    #allocation4 [shape = 's32[2]{0}', space=sflag, size = 0x8, scoped, tag = 'scoped memory for vae_forward.26']
    #allocation5 [shape = 's32[2]{0}', space=sflag, size = 0x8, scoped, tag = 'scoped memory for vae_forward.26']
    #allocation6 [shape = 'u8[196608]{0}', space=vmem, size = 0x30000, scoped, tag = 'input window, operand 1']
    #allocation7 [shape = 's32[2]{0}', space=sflag, size = 0x8, scoped, tag = 'scoped memory for vae_forward.26']
    #allocation8 [shape = 'u8[512]{0}', space=vmem, size = 0x400, scoped, tag = 'input window, operand 2, single buffered']
    #allocation9 [shape = 'u8[4096]{0}', space=vmem, size = 0x1000, scoped, tag = 'output window, operand 0, single buffered']
    %8 = vsyncpa [#allocation4], 0
    %s9 = scalar_lea.sflag [#allocation4], 1
    %10 = vsyncpa %s9, 0
    %11 = vsyncpa [#allocation7], 0
    %s12 = scalar_lea.sflag [#allocation7], 1
    %13 = vsyncpa %s12, 0
    %14 = vsyncpa [#allocation5], 0
    loop: start=0, step=1, limit=5
    $region2: #{vae_forward.26} parent=1 // loop_pre_header
      _
    $region3: #{vae_forward.26} parent=1 // loop_header
      %s16 = sphi 0, %s20
      %p17 = scmp.ge.s32.totalorder %s16, 5
      %s23 = sphi 0, %s42
      %s24 = sphi 0, %s38
      %s25 = sphi 0, %s34
      %s26 = sphi 0, %s23
      %s27 = sphi 0, %s24
      %s28 = sphi 0, %s25
      %s29 = sphi 0, %s26
      %s30 = sphi 0, %s27
      %s31 = sphi 0, %s28
      %s47 = sphi 0, %s49
      %s50 = sphi 0, %s47
      %s51 = sphi 0, %s50
      %s67 = sphi 0, %s51
      %s75 = sphi 0, %s77
      %s78 = sphi 0, %s75
      %s79 = sphi 0, %s78
      %s95 = sphi 0, %s79
      %s101 = sphi 0, %s103
      %s104 = sphi 0, %s101
      %s105 = sphi 0, %s104
      %s121 = sphi 0, %s105
      %s129 = sphi 0, %s131
      %s132 = sphi 0, %s129
      %s133 = sphi 0, %s132
      %s149 = sphi 0, %s133
    $region4: #{vae_forward.26} parent=1 // loop_header_branch
      %19 = sbr.rel (%p17) target = $region8
    $region5: #{vae_forward.26} parent=1 // loop_body
      %s21 = ssub.s32 %s16, 1
      %s22 = ssub.s32 %s16, 2
      %s32 = sadd.s32 1, %s25
      %p33 = scmp.ge.s32.totalorder %s32, 3
      %s34 = scalar_select %p33, 0, %s32
      %s35 = sadd.s32 1, %s24
      %s36 = scalar_select %p33, %s35, %s24
      %p37 = scmp.ge.s32.totalorder %s36, 1
      %s38 = scalar_select %p37, 0, %s36
      %s39 = sadd.s32 1, %s23
      %s40 = scalar_select %p37, %s39, %s23
      %p41 = scmp.ge.s32.totalorder %s40, 1
      %s42 = scalar_select %p41, 0, %s40
      %s43 = ssub.s32 %s23, %s42
      %s44 = ssub.s32 %s25, %s34
      %s45 = sor.u32 %s43, %s44
      %p46 = scmp.eq.s32.totalorder %s45, 0
      %s48 = sadd.s32 %s47, 1
      %s49 = scalar_select %p46, %s47, %s48
      %p52 = pneg %p46
      %p53 = scmp.eq.s32.totalorder %s16, 2
      %p54 = por %p52, %p53
      %p55 = scmp.ne.s32.totalorder %s47, %s50
      %p56 = scmp.eq.s32.totalorder %s16, 0
      %p57 = por %p55, %p56
      %p58 = scmp.ne.s32.totalorder %s47, %s50
      %p59 = scmp.eq.s32.totalorder %s21, 2
      %p60 = por %p58, %p59
      %p61 = scmp.ne.s32.totalorder %s50, %s51
      %p62 = scmp.eq.s32.totalorder %s21, 0
      %p63 = por %p61, %p62
      %p64 = scmp.ne.s32.totalorder %s50, %s51
      %p65 = scmp.eq.s32.totalorder %s22, 2
      %p66 = por %p64, %p65
      %p68 = scmp.ne.s32.totalorder %s51, %s67
      %p69 = scmp.eq.s32.totalorder %s22, 0
      %p70 = por %p68, %p69
      %s71 = ssub.s32 %s25, %s34
      %s72 = ssub.s32 %s24, %s38
      %s73 = sor.u32 %s71, %s72
      %p74 = scmp.eq.s32.totalorder %s73, 0
      %s76 = sadd.s32 %s75, 1
      %s77 = scalar_select %p74, %s75, %s76
      %p80 = pneg %p74
      %p81 = scmp.eq.s32.totalorder %s16, 2
      %p82 = por %p80, %p81
      %p83 = scmp.ne.s32.totalorder %s75, %s78
      %p84 = scmp.eq.s32.totalorder %s16, 0
      %p85 = por %p83, %p84
      %p86 = scmp.ne.s32.totalorder %s75, %s78
      %p87 = scmp.eq.s32.totalorder %s21, 2
      %p88 = por %p86, %p87
      %p89 = scmp.ne.s32.totalorder %s78, %s79
      %p90 = scmp.eq.s32.totalorder %s21, 0
      %p91 = por %p89, %p90
      %p92 = scmp.ne.s32.totalorder %s78, %s79
      %p93 = scmp.eq.s32.totalorder %s22, 2
      %p94 = por %p92, %p93
      %p96 = scmp.ne.s32.totalorder %s79, %s95
      %p97 = scmp.eq.s32.totalorder %s22, 0
      %p98 = por %p96, %p97
      %s99 = ssub.s32 %s24, %s38
      %p100 = scmp.eq.s32.totalorder %s99, 0
      %s102 = sadd.s32 %s101, 1
      %s103 = scalar_select %p100, %s101, %s102
      %p106 = pneg %p100
      %p107 = scmp.eq.s32.totalorder %s16, 2
      %p108 = por %p106, %p107
      %p109 = scmp.ne.s32.totalorder %s101, %s104
      %p110 = scmp.eq.s32.totalorder %s16, 0
      %p111 = por %p109, %p110
      %p112 = scmp.ne.s32.totalorder %s101, %s104
      %p113 = scmp.eq.s32.totalorder %s21, 2
      %p114 = por %p112, %p113
      %p115 = scmp.ne.s32.totalorder %s104, %s105
      %p116 = scmp.eq.s32.totalorder %s21, 0
      %p117 = por %p115, %p116
      %p118 = scmp.ne.s32.totalorder %s104, %s105
      %p119 = scmp.eq.s32.totalorder %s22, 2
      %p120 = por %p118, %p119
      %p122 = scmp.ne.s32.totalorder %s105, %s121
      %p123 = scmp.eq.s32.totalorder %s22, 0
      %p124 = por %p122, %p123
      %s125 = ssub.s32 %s23, %s42
      %s126 = ssub.s32 %s24, %s38
      %s127 = sor.u32 %s125, %s126
      %p128 = scmp.eq.s32.totalorder %s127, 0
      %s130 = sadd.s32 %s129, 1
      %s131 = scalar_select %p128, %s129, %s130
      %p134 = pneg %p128
      %p135 = scmp.eq.s32.totalorder %s16, 2
      %p136 = por %p134, %p135
      %p137 = scmp.ne.s32.totalorder %s129, %s132
      %p138 = scmp.eq.s32.totalorder %s16, 0
      %p139 = por %p137, %p138
      %p140 = scmp.ne.s32.totalorder %s129, %s132
      %p141 = scmp.eq.s32.totalorder %s21, 2
      %p142 = por %p140, %p141
      %p143 = scmp.ne.s32.totalorder %s132, %s133
      %p144 = scmp.eq.s32.totalorder %s21, 0
      %p145 = por %p143, %p144
      %p146 = scmp.ne.s32.totalorder %s132, %s133
      %p147 = scmp.eq.s32.totalorder %s22, 2
      %p148 = por %p146, %p147
      %p150 = scmp.ne.s32.totalorder %s133, %s149
      %p151 = scmp.eq.s32.totalorder %s22, 0
      %p152 = por %p150, %p151
      %p153 = scmp.le.s32.totalorder 1, %s16
      %p154 = scmp.lt.s32.totalorder %s16, 4
      %p155 = pnand %p153, %p154
      %p156 = pneg %p155
      // Predicated region
      $region9: #{vae_forward.26} parent=5 // pred_check
        _
      $region10: #{vae_forward.26} parent=5 // pred_check_branch
        %158 = sbr.rel (%p155) target = $region12
      $region11: #{vae_forward.26} parent=5 // pred_region
        %s159 = ssub.s32 %s16, 1
        // Predicated region
        $region13: #{vae_forward.26} parent=11 // pred_check
          %p160 = pneg %p117
        $region14: #{vae_forward.26} parent=11 // pred_check_branch
          %162 = sbr.rel (%p160) target = $region16
        $region15: #{vae_forward.26} parent=11 // pred_region
          %s164 = ssub.s32 16, 16
          %165 = vsyncadd [#allocation7], %s164
          %s166 = smul.addr %s27, 16
          %s167 = scalar_lea.hbm %s2, %s166
          %s169 = sshll.u32 [#allocation8], 4
          %s170 = int_to_ptr.vmem [resolvable:$true] %s169
          %172 = dma.hbm_to_vmem [thread:$0]  %s167, 16, %s170, [#allocation7]
        $region16: #{vae_forward.26} parent=11 // pred_fallthru
          _
      $region12: #{vae_forward.26} parent=5 // pred_fallthru
        _
      %p173 = scmp.lt.s32.totalorder %s16, 3
      // Predicated region
      $region17: #{vae_forward.26} parent=5 // pred_check
        %p174 = pneg %p173
      $region18: #{vae_forward.26} parent=5 // pred_check_branch
        %176 = sbr.rel (%p174) target = $region20
      $region19: #{vae_forward.26} parent=5 // pred_region
        // Predicated region
        $region21: #{vae_forward.26} parent=19 // pred_check
          %p177 = pneg %p57
        $region22: #{vae_forward.26} parent=19 // pred_check_branch
          %179 = sbr.rel (%p177) target = $region24
        $region23: #{vae_forward.26} parent=19 // pred_region
          %s180 = sand.u32 %s47, 1
          %s181 = scalar_lea.sflag [#allocation4], %s180
          %s182 = sand.u32 %s47, 1
          %s183 = smul.addr %s182, 12
          %s184 = scalar_lea.vmem [#allocation3], %s183
          %s185 = smul.u32 3, %s25
          %s187 = ssub.s32 192, 192
          %188 = vsyncadd %s181, %s187
          %s189 = smul.addr %s23, 9
          %s190 = sadd.s32 %s185, %s189
          %s191 = smul.addr %s190, 64
          %s192 = scalar_lea.hbm %s0, %s191
          %s194 = sshll.u32 %s184, 4
          %s195 = int_to_ptr.vmem [resolvable:$true] %s194
          %197 = dma.hbm_to_vmem [thread:$0]  %s192, 192, %s195, %s181
        $region24: #{vae_forward.26} parent=19 // pred_fallthru
          _
        // Predicated region
        $region25: #{vae_forward.26} parent=19 // pred_check
          %p198 = pneg %p85
        $region26: #{vae_forward.26} parent=19 // pred_check_branch
          %200 = sbr.rel (%p198) target = $region28
        $region27: #{vae_forward.26} parent=19 // pred_region
          %s201 = sand.u32 %s16, 1
          %s202 = scalar_lea.sflag [#allocation7], %s201
          %s203 = sand.u32 %s75, 1
          %s204 = smul.addr %s203, 192
          %s205 = scalar_lea.vmem [#allocation6], %s204
          %s206 = smul.u32 48, %s25
          %s208 = ssub.s32 3072, 3072
          %209 = vsyncadd %s202, %s208
          %s210 = sadd.s32 %s24, %s206
          %s211 = smul.addr %s210, 64
          %s212 = scalar_lea.hbm %s1, %s211
          %s213 = sshll.u32 %s205, 4
          %s214 = int_to_ptr.vmem [resolvable:$true] %s213
          %219 = dma.hbm_to_vmem [thread:$0]  %s212, 3072, %s214, %s202, 64, 64, 4
        $region28: #{vae_forward.26} parent=19 // pred_fallthru
          _
      $region20: #{vae_forward.26} parent=5 // pred_fallthru
        _
      %p220 = scmp.le.s32.totalorder 1, %s16
      %p221 = scmp.lt.s32.totalorder %s16, 4
      %p222 = pnand %p220, %p221
      %p223 = pneg %p222
      // Predicated region
      $region29: #{vae_forward.26} parent=5 // pred_check
        _
      $region30: #{vae_forward.26} parent=5 // pred_check_branch
        %225 = sbr.rel (%p222) target = $region32
      $region31: #{vae_forward.26} parent=5 // pred_region
        %s226 = ssub.s32 %s16, 1
        %s227 = sand.u32 %s50, 1
        %s228 = scalar_lea.sflag [#allocation4], %s227
        %s229 = sand.u32 %s50, 1
        %s230 = smul.addr %s229, 12
        %s231 = scalar_lea.vmem [#allocation3], %s230
        // Predicated region
        $region33: #{vae_forward.26} parent=31 // pred_check
          %p232 = pneg %p63
        $region34: #{vae_forward.26} parent=31 // pred_check_branch
          %234 = sbr.rel (%p232) target = $region36
        $region35: #{vae_forward.26} parent=31 // pred_region
          %235 = dma.done %s228, 192
        $region36: #{vae_forward.26} parent=31 // pred_fallthru
          _
        %s236 = sand.u32 %s21, 1
        %s237 = scalar_lea.sflag [#allocation7], %s236
        %s238 = sand.u32 %s78, 1
        %s239 = smul.addr %s238, 192
        %s240 = scalar_lea.vmem [#allocation6], %s239
        // Predicated region
        $region37: #{vae_forward.26} parent=31 // pred_check
          %p241 = pneg %p91
        $region38: #{vae_forward.26} parent=31 // pred_check_branch
          %243 = sbr.rel (%p241) target = $region40
        $region39: #{vae_forward.26} parent=31 // pred_region
          %244 = dma.done %s237, 3072
        $region40: #{vae_forward.26} parent=31 // pred_fallthru
          _
        // Predicated region
        $region41: #{vae_forward.26} parent=31 // pred_check
          %p245 = pneg %p117
        $region42: #{vae_forward.26} parent=31 // pred_check_branch
          %247 = sbr.rel (%p245) target = $region44
        $region43: #{vae_forward.26} parent=31 // pred_region
          %248 = dma.done [#allocation7], 16
        $region44: #{vae_forward.26} parent=31 // pred_fallthru
          _
        %s249 = sand.u32 %s50, 1
        %s250 = scalar_lea.sflag [#allocation4], %s249
        %s251 = sand.u32 %s50, 1
        %s252 = smul.addr %s251, 12
        %s253 = scalar_lea.vmem [#allocation3], %s252
        %p254 = pneg %p63
        %p255 = pneg %p60
        %s256 = sand.u32 %s21, 1
        %s257 = scalar_lea.sflag [#allocation7], %s256
        %s258 = sand.u32 %s78, 1
        %s259 = smul.addr %s258, 192
        %s260 = scalar_lea.vmem [#allocation6], %s259
        %p261 = pneg %p91
        %p262 = pneg %p88
        %p263 = pneg %p117
        %p264 = pneg %p114
        %p265 = pneg %p145
        %p266 = pneg %p142
        %s267 = smul.u32 3, %s28
        %s268 = smul.u32 48, %s28
        %p270 = scmp.eq.s32.totalorder %s28, 0
        // Predicated region
        $region45: #{vae_forward.26} parent=31 // pred_check
          %p271 = pneg %p270
        $region46: #{vae_forward.26} parent=31 // pred_check_branch
          %273 = sbr.rel (%p271) target = $region48
        $region47: #{vae_forward.26} parent=31 // pred_region
          %274 = vst [vmem:[#allocation2] sm:$0xff] 0.0
        $region48: #{vae_forward.26} parent=31 // pred_fallthru
          _
        %v275 = vld [vmem:[#allocation2] sm:$0xff]
        %v276 = vld [vmem:[%s231] sm:$0xff]
        %v277 = vld [vmem:[%s231 + $0x8] sm:$0xf]
        %v278 = vld [vmem:[%s240] sm:$0xf]
        %v279 = vld [vmem:[%s240 + $0x4] sm:$0xf]
        %v280 = vld [vmem:[%s240 + $0x8] sm:$0xf]
        %v281 = vld [vmem:[%s240 + $0xc] sm:$0xf]
        %v282 = vld [vmem:[%s240 + $0x10] sm:$0xf]
        %v283 = vld [vmem:[%s240 + $0x14] sm:$0xf]
        %v284 = vld [vmem:[%s240 + $0x18] sm:$0xf]
        %v285 = vld [vmem:[%s240 + $0x1c] sm:$0xf]
        %v286 = vld [vmem:[%s240 + $0x20] sm:$0xf]
        %v287 = vld [vmem:[%s240 + $0x24] sm:$0xf]
        %v288 = vld [vmem:[%s240 + $0x28] sm:$0xf]
        %v289 = vld [vmem:[%s240 + $0x2c] sm:$0xf]
        %v290 = vld [vmem:[%s240 + $0x30] sm:$0xf]
        %v291 = vld [vmem:[%s240 + $0x34] sm:$0xf]
        %v292 = vld [vmem:[%s240 + $0x38] sm:$0xf]
        %v293 = vld [vmem:[%s240 + $0x3c] sm:$0xf]
        %v294 = vld [vmem:[%s240 + $0x40] sm:$0xf]
        %v295 = vld [vmem:[%s240 + $0x44] sm:$0xf]
        %v296 = vld [vmem:[%s240 + $0x48] sm:$0xf]
        %v297 = vld [vmem:[%s240 + $0x4c] sm:$0xf]
        %v298 = vld [vmem:[%s240 + $0x50] sm:$0xf]
        %v299 = vld [vmem:[%s240 + $0x54] sm:$0xf]
        %v300 = vld [vmem:[%s240 + $0x58] sm:$0xf]
        %v301 = vld [vmem:[%s240 + $0x5c] sm:$0xf]
        %v302 = vld [vmem:[%s240 + $0x60] sm:$0xf]
        %v303 = vld [vmem:[%s240 + $0x64] sm:$0xf]
        %v304 = vld [vmem:[%s240 + $0x68] sm:$0xf]
        %v305 = vld [vmem:[%s240 + $0x6c] sm:$0xf]
        %v306 = vld [vmem:[%s240 + $0x70] sm:$0xf]
        %v307 = vld [vmem:[%s240 + $0x74] sm:$0xf]
        %v308 = vld [vmem:[%s240 + $0x78] sm:$0xf]
        %v309 = vld [vmem:[%s240 + $0x7c] sm:$0xf]
        %v310 = vld [vmem:[%s240 + $0x80] sm:$0xf]
        %v311 = vld [vmem:[%s240 + $0x84] sm:$0xf]
        %v312 = vld [vmem:[%s240 + $0x88] sm:$0xf]
        %v313 = vld [vmem:[%s240 + $0x8c] sm:$0xf]
        %v314 = vld [vmem:[%s240 + $0x90] sm:$0xf]
        %v315 = vld [vmem:[%s240 + $0x94] sm:$0xf]
        %v316 = vld [vmem:[%s240 + $0x98] sm:$0xf]
        %v317 = vld [vmem:[%s240 + $0x9c] sm:$0xf]
        %v318 = vld [vmem:[%s240 + $0xa0] sm:$0xf]
        %v319 = vld [vmem:[%s240 + $0xa4] sm:$0xf]
        %v320 = vld [vmem:[%s240 + $0xa8] sm:$0xf]
        %v321 = vld [vmem:[%s240 + $0xac] sm:$0xf]
        %v322 = vld [vmem:[%s240 + $0xb0] sm:$0xf]
        %v323 = vld [vmem:[%s240 + $0xb4] sm:$0xf]
        %v324 = vld [vmem:[%s240 + $0xb8] sm:$0xf]
        %v325 = vld [vmem:[%s240 + $0xbc] sm:$0xf]
        %v328 = vunpack.c.l.b16 %v276
        %v329 = vunpack.c.h.b16 %v276
        %v330 = vunpack.c.l.b16 %v277
        %v331 = vpack.c.b16 %v328, %v328
        %v332 = vpack.c.b16 %v329, %v329
        %v333 = vpack.c.b16 %v330, %v330
        %v385 = vunpack.c.l.b16 %v278
        %v386 = vunpack.c.l.b16 %v279
        %v387 = vunpack.c.l.b16 %v280
        %v388 = vunpack.c.l.b16 %v281
        %v389 = vunpack.c.l.b16 %v282
        %v390 = vunpack.c.l.b16 %v283
        %v391 = vunpack.c.l.b16 %v284
        %v392 = vunpack.c.l.b16 %v285
        %v393 = vunpack.c.l.b16 %v286
        %v394 = vunpack.c.l.b16 %v287
        %v395 = vunpack.c.l.b16 %v288
        %v396 = vunpack.c.l.b16 %v289
        %v397 = vunpack.c.l.b16 %v290
        %v398 = vunpack.c.l.b16 %v291
        %v399 = vunpack.c.l.b16 %v292
        %v400 = vunpack.c.l.b16 %v293
        %v401 = vunpack.c.l.b16 %v294
        %v402 = vunpack.c.l.b16 %v295
        %v403 = vunpack.c.l.b16 %v296
        %v404 = vunpack.c.l.b16 %v297
        %v405 = vunpack.c.l.b16 %v298
        %v406 = vunpack.c.l.b16 %v299
        %v407 = vunpack.c.l.b16 %v300
        %v408 = vunpack.c.l.b16 %v301
        %v409 = vunpack.c.l.b16 %v302
        %v410 = vunpack.c.l.b16 %v303
        %v411 = vunpack.c.l.b16 %v304
        %v412 = vunpack.c.l.b16 %v305
        %v413 = vunpack.c.l.b16 %v306
        %v414 = vunpack.c.l.b16 %v307
        %v415 = vunpack.c.l.b16 %v308
        %v416 = vunpack.c.l.b16 %v309
        %v417 = vunpack.c.l.b16 %v310
        %v418 = vunpack.c.l.b16 %v311
        %v419 = vunpack.c.l.b16 %v312
        %v420 = vunpack.c.l.b16 %v313
        %v421 = vunpack.c.l.b16 %v314
        %v422 = vunpack.c.l.b16 %v315
        %v423 = vunpack.c.l.b16 %v316
        %v424 = vunpack.c.l.b16 %v317
        %v425 = vunpack.c.l.b16 %v318
        %v426 = vunpack.c.l.b16 %v319
        %v427 = vunpack.c.l.b16 %v320
        %v428 = vunpack.c.l.b16 %v321
        %v429 = vunpack.c.l.b16 %v322
        %v430 = vunpack.c.l.b16 %v323
        %v431 = vunpack.c.l.b16 %v324
        %v432 = vunpack.c.l.b16 %v325
        %v433 = vpack.c.b16 %v386, %v385
        %v434 = vpack.c.b16 %v388, %v387
        %v435 = vpack.c.b16 %v390, %v389
        %v436 = vpack.c.b16 %v392, %v391
        %v437 = vpack.c.b16 %v394, %v393
        %v438 = vpack.c.b16 %v396, %v395
        %v439 = vpack.c.b16 %v398, %v397
        %v440 = vpack.c.b16 %v400, %v399
        %v441 = vpack.c.b16 %v402, %v401
        %v442 = vpack.c.b16 %v404, %v403
        %v443 = vpack.c.b16 %v406, %v405
        %v444 = vpack.c.b16 %v408, %v407
        %v445 = vpack.c.b16 %v410, %v409
        %v446 = vpack.c.b16 %v412, %v411
        %v447 = vpack.c.b16 %v414, %v413
        %v448 = vpack.c.b16 %v416, %v415
        %v449 = vpack.c.b16 %v418, %v417
        %v450 = vpack.c.b16 %v420, %v419
        %v451 = vpack.c.b16 %v422, %v421
        %v452 = vpack.c.b16 %v424, %v423
        %v453 = vpack.c.b16 %v426, %v425
        %v454 = vpack.c.b16 %v428, %v427
        %v455 = vpack.c.b16 %v430, %v429
        %v456 = vpack.c.b16 %v432, %v431
        %481 = vmatprep.subr.bf16.mxu0 0
        %482 = vmatpush1.bf16.msra.mxu0 %v433
        %483 = vmatprep.subr.bf16.mxu0 0
        %484 = vmatpush1.bf16.msra.mxu0 %v434
        %485 = vmatprep.subr.bf16.mxu0 0
        %486 = vmatpush1.bf16.msra.mxu0 %v435
        %487 = vmatprep.subr.bf16.mxu0 0
        %488 = vmatpush1.bf16.msra.mxu0 %v436
        %489 = vmatprep.subr.bf16.mxu0 0
        %490 = vmatpush1.bf16.msra.mxu0 %v437
        %491 = vmatprep.subr.bf16.mxu0 0
        %492 = vmatpush1.bf16.msra.mxu0 %v438
        %493 = vmatprep.subr.bf16.mxu0 0
        %494 = vmatpush1.bf16.msra.mxu0 %v439
        %495 = vmatprep.subr.bf16.mxu0 0
        %496 = vmatpush1.bf16.msra.mxu0 %v440
        %497 = vmatprep.subr.bf16.mxu0 0
        %498 = vmatpush1.bf16.msra.mxu0 %v441
        %499 = vmatprep.subr.bf16.mxu0 0
        %500 = vmatpush1.bf16.msra.mxu0 %v442
        %501 = vmatprep.subr.bf16.mxu0 0
        %502 = vmatpush1.bf16.msra.mxu0 %v443
        %503 = vmatprep.subr.bf16.mxu0 0
        %504 = vmatpush1.bf16.msra.mxu0 %v444
        %505 = vmatprep.subr.bf16.mxu0 0
        %506 = vmatpush1.bf16.msra.mxu0 %v445
        %507 = vmatprep.subr.bf16.mxu0 0
        %508 = vmatpush1.bf16.msra.mxu0 %v446
        %509 = vmatprep.subr.bf16.mxu0 0
        %510 = vmatpush1.bf16.msra.mxu0 %v447
        %511 = vmatprep.subr.bf16.mxu0 0
        %512 = vmatpush1.bf16.msra.mxu0 %v448
        %513 = vmatprep.mubr.bf16.mxu0 %v332
        %514 = vmatmul.mubr.bf16.gmra.mrb[0].mxu0 %v331
        %v515 = vpop.f32.mrb[0].mxu0
        %v516 = vadd.f32 0.0, %v515
        %v517 = vpop.f32.mrb[0].mxu0
        %v518 = vpop.f32.mrb[0].mxu0
        %v519 = vpop.f32.mrb[0].mxu0
        %520 = vdwg.mxu0
        %521 = vmatprep.subr.bf16.mxu0 0
        %522 = vmatpush1.bf16.msra.mxu0 %v449
        %523 = vmatprep.subr.bf16.mxu0 0
        %524 = vmatpush1.bf16.msra.mxu0 %v450
        %525 = vmatprep.subr.bf16.mxu0 0
        %526 = vmatpush1.bf16.msra.mxu0 %v451
        %527 = vmatprep.subr.bf16.mxu0 0
        %528 = vmatpush1.bf16.msra.mxu0 %v452
        %529 = vmatprep.subr.bf16.mxu0 0
        %530 = vmatpush1.bf16.msra.mxu0 %v453
        %531 = vmatprep.subr.bf16.mxu0 0
        %532 = vmatpush1.bf16.msra.mxu0 %v454
        %533 = vmatprep.subr.bf16.mxu0 0
        %534 = vmatpush1.bf16.msra.mxu0 %v455
        %535 = vmatprep.subr.bf16.mxu0 0
        %536 = vmatpush1.bf16.msra.mxu0 %v456
        %537 = vmatprep.subr.bf16.mxu0 0
        %538 = vmatpush1.bf16.msra.mxu0 0
        %539 = vmatprep.subr.bf16.mxu0 0
        %540 = vmatpush1.bf16.msra.mxu0 0
        %541 = vmatprep.subr.bf16.mxu0 0
        %542 = vmatpush1.bf16.msra.mxu0 0
        %543 = vmatprep.subr.bf16.mxu0 0
        %544 = vmatpush1.bf16.msra.mxu0 0
        %545 = vmatprep.subr.bf16.mxu0 0
        %546 = vmatpush1.bf16.msra.mxu0 0
        %547 = vmatprep.subr.bf16.mxu0 0
        %548 = vmatpush1.bf16.msra.mxu0 0
        %549 = vmatprep.subr.bf16.mxu0 0
        %550 = vmatpush1.bf16.msra.mxu0 0
        %551 = vmatprep.subr.bf16.mxu0 0
        %552 = vmatpush1.bf16.msra.mxu0 0
        %553 = vmatprep.mubr.bf16.mxu0 0
        %554 = vmatmul.mubr.bf16.gmra.mrb[0].mxu0 %v333
        %v555 = vpop.f32.mrb[0].mxu0
        %v556 = vadd.f32 %v516, %v555
        %v557 = vpop.f32.mrb[0].mxu0
        %v558 = vpop.f32.mrb[0].mxu0
        %v559 = vpop.f32.mrb[0].mxu0
        %560 = vdwg.mxu0
        %v561 = vadd.f32 %v275, %v556
        %562 = vst [vmem:[#allocation2] sm:$0xff] %v561
        %p563 = scmp.eq.s32.totalorder %s28, 2
        // Predicated region
        $region49: #{vae_forward.26} parent=31 // pred_check
          %p564 = pneg %p563
        $region50: #{vae_forward.26} parent=31 // pred_check_branch
          %566 = sbr.rel (%p564) target = $region52
        $region51: #{vae_forward.26} parent=31 // pred_region
          %v567 = vld [vmem:[#allocation2] sm:$0xff]
          %v568 = vld [vmem:[#allocation8] sm:$0x1]
          %v570 = vlaneseq
          %v571 = vshrl.u32 %v570, 7
          %v572 = vsub.s32 0, %v571
          %v573 = vrot.slane %v568, %v572
          %v575 = vadd.f32 %v567, %v573
          %v576 = vmax.f32 %v575, 0.0
          %577 = vst [vmem:[#allocation9] sm:$0xff] %v576
        $region52: #{vae_forward.26} parent=31 // pred_fallthru
          _
        // Predicated region
        $region53: #{vae_forward.26} parent=31 // pred_check
          %p578 = pneg %p142
        $region54: #{vae_forward.26} parent=31 // pred_check_branch
          %580 = sbr.rel (%p578) target = $region56
        $region55: #{vae_forward.26} parent=31 // pred_region
          %s582 = ssub.s32 128, 128
          %583 = vsyncadd [#allocation5], %s582
          %s584 = sadd.s32 %s27, %s26
          %s585 = smul.addr %s584, 128
          %s586 = scalar_lea.hbm %s3, %s585
          %s588 = sshll.u32 [#allocation9], 4
          %s589 = int_to_ptr.vmem [resolvable:$true] %s588
          %591 = dma.vmem_to_hbm [thread:$0]  %s589, 128, %s586, [#allocation5]
        $region56: #{vae_forward.26} parent=31 // pred_fallthru
          _
        // Predicated region
        $region57: #{vae_forward.26} parent=31 // pred_check
          %p592 = pneg %p142
        $region58: #{vae_forward.26} parent=31 // pred_check_branch
          %594 = sbr.rel (%p592) target = $region60
        $region59: #{vae_forward.26} parent=31 // pred_region
          %595 = dma.done [#allocation5], 128
        $region60: #{vae_forward.26} parent=31 // pred_fallthru
          _
      $region32: #{vae_forward.26} parent=5 // pred_fallthru
        _
      %p596 = scmp.le.s32.totalorder 2, %s16
      // Predicated region
      $region61: #{vae_forward.26} parent=5 // pred_check
        %p597 = pneg %p596
      $region62: #{vae_forward.26} parent=5 // pred_check_branch
        %599 = sbr.rel (%p597) target = $region64
      $region63: #{vae_forward.26} parent=5 // pred_region
        %s600 = ssub.s32 %s16, 2
      $region64: #{vae_forward.26} parent=5 // pred_fallthru
        _
    $region6: #{vae_forward.26} parent=1 // loop_footer
      %s20 = sadd.s32 1, %s16
    $region7: #{vae_forward.26} parent=1 // loop_footer_branch
      %15 = sbr.rel target = $region3
    $region8: #{vae_forward.26} parent=1 // loop_exit
      _
    %601 = vsyncpa [#allocation4], 1
    %s602 = scalar_lea.sflag [#allocation4], 1
    %603 = vsyncpa %s602, 1
    %604 = vsyncpa [#allocation7], 1
    %s605 = scalar_lea.sflag [#allocation7], 1
    %606 = vsyncpa %s605, 1
    %607 = vsyncpa [#allocation5], 1
    %s608 = scalar_lea.sflag [#allocation5], 1
    %609 = vsyncpa %s608, 1

// kernel: vae_forward.28
$region0: #{vae_forward.28}
  #allocation0 [shape = 'u32[]', space=smem, size = 0x4, offset = 0x4, fixed_abs, tag = 'smem constant byte address 0x4 - core index']
  #allocation1 [shape = 'u32[144,128]{1,0:T(1,128)}', space=vmem, size = 0x12000, scoped, tag = 'internal scratch']
  %s0 = inlined_call_operand.vmem [shape: f32[8,128], index: 0, kind: input, shape index: {}]
  %s1 = inlined_call_operand.vmem [shape: f32[8,128], index: 1, kind: input, shape index: {}]
  %s2 = inlined_call_operand.vmem [shape: f32[8,128], index: 2, kind: input, shape index: {}]
  %s3 = inlined_call_operand.vmem [shape: f32[8,128], index: 3, kind: output, shape index: {}]
  %s4 = sld [smem:[#allocation0]]
  $region22: #{vae_forward.28} parent=0
    _
  %s6 = ssub.s32 1, %s4
  %s7 = scalar_select 0, %s6, %s4
  // Predicated region
  $region2: #{vae_forward.28} parent=0 // pred_check
    _
  $region3: #{vae_forward.28} parent=0 // pred_check_branch
    %9 = sbr.rel (0) target = $region5
  $region4: #{vae_forward.28} parent=0 // pred_region
    _
  $region5: #{vae_forward.28} parent=0 // pred_fallthru
    _
  // Predicated region
  $region6: #{vae_forward.28} parent=0 // pred_check
    _
  $region7: #{vae_forward.28} parent=0 // pred_check_branch
    %11 = sbr.rel (0) target = $region9
  $region8: #{vae_forward.28} parent=0 // pred_region
    _
  $region9: #{vae_forward.28} parent=0 // pred_fallthru
    _
  // Predicated region
  $region10: #{vae_forward.28} parent=0 // pred_check
    _
  $region11: #{vae_forward.28} parent=0 // pred_check_branch
    %13 = sbr.rel (0) target = $region13
  $region12: #{vae_forward.28} parent=0 // pred_region
    _
  $region13: #{vae_forward.28} parent=0 // pred_fallthru
    _
  %v14 = vld [vmem:[%s1] sm:$0xff]
  %v15 = vmul.f32 %v14, 0.5
  %v16 = vmul.f32 %v15, 1.442695
  %v17 = vpow.pop %v16
  %v18 = vld [vmem:[%s0] sm:$0xff]
  %v19 = vld [vmem:[%s2] sm:$0xff]
  %v20 = vmul.f32 %v19, %v17
  %v21 = vadd.f32 %v18, %v20
  %22 = vst [vmem:[%s3] sm:$0xff] %v21
  // Predicated region
  $region14: #{vae_forward.28} parent=0 // pred_check
    _
  $region15: #{vae_forward.28} parent=0 // pred_check_branch
    %24 = sbr.rel (0) target = $region17
  $region16: #{vae_forward.28} parent=0 // pred_region
    _
  $region17: #{vae_forward.28} parent=0 // pred_fallthru
    _
  // Predicated region
  $region18: #{vae_forward.28} parent=0 // pred_check
    _
  $region19: #{vae_forward.28} parent=0 // pred_check_branch
    %26 = sbr.rel (0) target = $region21
  $region20: #{vae_forward.28} parent=0 // pred_region
    _
  $region21: #{vae_forward.28} parent=0 // pred_fallthru
    _

// kernel: vae_forward.27
$region0: #{vae_forward.27}
  #allocation0 [shape = 'u32[]', space=smem, size = 0x4, offset = 0x4, fixed_abs, tag = 'smem constant byte address 0x4 - core index']
  #allocation1 [shape = 'u32[144,128]{1,0:T(1,128)}', space=vmem, size = 0x12000, scoped, tag = 'internal scratch']
  #allocation2 [shape = 'f32[8,128]{1,0:T(8,128)}', space=vmem, size = 0x1000, scoped, tag = 'scratch operand']
  %s0 = inlined_call_operand.hbm [shape: bf16[8,512], index: 0, kind: input, shape index: {}]
  %s1 = inlined_call_operand.hbm [shape: bf16[512,128], index: 1, kind: input, shape index: {}]
  %s2 = inlined_call_operand.hbm [shape: f32[1,128], index: 2, kind: input, shape index: {}]
  %s3 = inlined_call_operand.hbm [shape: f32[8,128], index: 3, kind: output, shape index: {}]
  %s4 = sld [smem:[#allocation0]]
  $region42: #{vae_forward.27} parent=0
    _
  %s6 = ssub.s32 1, %s4
  %s7 = scalar_select 0, %s6, %s4
  $region1: #{vae_forward.27} parent=0
    #allocation3 [shape = 'u8[8192]{0}', space=vmem, size = 0x2000, scoped, tag = 'input window, operand 0, single buffered']
    #allocation4 [shape = 's32[1]{0}', space=sflag, size = 0x4, scoped, tag = 'scoped memory for vae_forward.27']
    #allocation5 [shape = 's32[1]{0}', space=sflag, size = 0x4, scoped, tag = 'scoped memory for vae_forward.27']
    #allocation6 [shape = 'u8[131072]{0}', space=vmem, size = 0x20000, scoped, tag = 'input window, operand 1, single buffered']
    #allocation7 [shape = 's32[1]{0}', space=sflag, size = 0x4, scoped, tag = 'scoped memory for vae_forward.27']
    #allocation8 [shape = 'u8[512]{0}', space=vmem, size = 0x400, scoped, tag = 'input window, operand 2, single buffered']
    #allocation9 [shape = 'u8[4096]{0}', space=vmem, size = 0x1000, scoped, tag = 'output window, operand 0, single buffered']
    %8 = vsyncpa [#allocation4], 0
    %9 = vsyncpa [#allocation7], 0
    %10 = vsyncpa [#allocation5], 0
    // Predicated region
    $region2: #{vae_forward.27} parent=1 // pred_check
      _
    $region3: #{vae_forward.27} parent=1 // pred_check_branch
      %12 = sbr.rel (0) target = $region5
    $region4: #{vae_forward.27} parent=1 // pred_region
      %s14 = ssub.s32 256, 256
      %15 = vsyncadd [#allocation4], %s14
      %s17 = sshll.u32 [#allocation3], 4
      %s18 = int_to_ptr.vmem [resolvable:$true] %s17
      %20 = dma.hbm_to_vmem [thread:$0]  %s0, 256, %s18, [#allocation4]
    $region5: #{vae_forward.27} parent=1 // pred_fallthru
      _
    // Predicated region
    $region6: #{vae_forward.27} parent=1 // pred_check
      _
    $region7: #{vae_forward.27} parent=1 // pred_check_branch
      %22 = sbr.rel (0) target = $region9
    $region8: #{vae_forward.27} parent=1 // pred_region
      %s24 = ssub.s32 4096, 4096
      %25 = vsyncadd [#allocation7], %s24
      %s26 = sshll.u32 [#allocation6], 4
      %s27 = int_to_ptr.vmem [resolvable:$true] %s26
      %32 = dma.hbm_to_vmem [thread:$0]  %s1, 4096, %s27, [#allocation7], 64, 64, 4
    $region9: #{vae_forward.27} parent=1 // pred_fallthru
      _
    // Predicated region
    $region10: #{vae_forward.27} parent=1 // pred_check
      _
    $region11: #{vae_forward.27} parent=1 // pred_check_branch
      %34 = sbr.rel (0) target = $region13
    $region12: #{vae_forward.27} parent=1 // pred_region
      %s36 = ssub.s32 16, 16
      %37 = vsyncadd [#allocation7], %s36
      %s39 = sshll.u32 [#allocation8], 4
      %s40 = int_to_ptr.vmem [resolvable:$true] %s39
      %42 = dma.hbm_to_vmem [thread:$0]  %s2, 16, %s40, [#allocation7]
    $region13: #{vae_forward.27} parent=1 // pred_fallthru
      _
    // Predicated region
    $region14: #{vae_forward.27} parent=1 // pred_check
      _
    $region15: #{vae_forward.27} parent=1 // pred_check_branch
      %44 = sbr.rel (0) target = $region17
    $region16: #{vae_forward.27} parent=1 // pred_region
      %45 = dma.done [#allocation4], 256
    $region17: #{vae_forward.27} parent=1 // pred_fallthru
      _
    // Predicated region
    $region18: #{vae_forward.27} parent=1 // pred_check
      _
    $region19: #{vae_forward.27} parent=1 // pred_check_branch
      %47 = sbr.rel (0) target = $region21
    $region20: #{vae_forward.27} parent=1 // pred_region
      %48 = dma.done [#allocation7], 4096
    $region21: #{vae_forward.27} parent=1 // pred_fallthru
      _
    // Predicated region
    $region22: #{vae_forward.27} parent=1 // pred_check
      _
    $region23: #{vae_forward.27} parent=1 // pred_check_branch
      %50 = sbr.rel (0) target = $region25
    $region24: #{vae_forward.27} parent=1 // pred_region
      %51 = dma.done [#allocation7], 16
    $region25: #{vae_forward.27} parent=1 // pred_fallthru
      _
    %p53 = scmp.eq.s32.totalorder 0, 0
    // Predicated region
    $region26: #{vae_forward.27} parent=1 // pred_check
      %p54 = pneg %p53
    $region27: #{vae_forward.27} parent=1 // pred_check_branch
      %56 = sbr.rel (%p54) target = $region29
    $region28: #{vae_forward.27} parent=1 // pred_region
      %57 = vst [vmem:[#allocation2] sm:$0xff] 0.0
    $region29: #{vae_forward.27} parent=1 // pred_fallthru
      _
    %v58 = vld [vmem:[#allocation2] sm:$0xff]
    %v59 = vld [vmem:[#allocation3] sm:$0xff]
    %v60 = vld [vmem:[#allocation3 + $0x8] sm:$0xff]
    %v61 = vld [vmem:[#allocation6] sm:$0xf]
    %v62 = vld [vmem:[#allocation6 + $0x4] sm:$0xf]
    %v63 = vld [vmem:[#allocation6 + $0x8] sm:$0xf]
    %v64 = vld [vmem:[#allocation6 + $0xc] sm:$0xf]
    %v65 = vld [vmem:[#allocation6 + $0x10] sm:$0xf]
    %v66 = vld [vmem:[#allocation6 + $0x14] sm:$0xf]
    %v67 = vld [vmem:[#allocation6 + $0x18] sm:$0xf]
    %v68 = vld [vmem:[#allocation6 + $0x1c] sm:$0xf]
    %v69 = vld [vmem:[#allocation6 + $0x20] sm:$0xf]
    %v70 = vld [vmem:[#allocation6 + $0x24] sm:$0xf]
    %v71 = vld [vmem:[#allocation6 + $0x28] sm:$0xf]
    %v72 = vld [vmem:[#allocation6 + $0x2c] sm:$0xf]
    %v73 = vld [vmem:[#allocation6 + $0x30] sm:$0xf]
    %v74 = vld [vmem:[#allocation6 + $0x34] sm:$0xf]
    %v75 = vld [vmem:[#allocation6 + $0x38] sm:$0xf]
    %v76 = vld [vmem:[#allocation6 + $0x3c] sm:$0xf]
    %v77 = vld [vmem:[#allocation6 + $0x40] sm:$0xf]
    %v78 = vld [vmem:[#allocation6 + $0x44] sm:$0xf]
    %v79 = vld [vmem:[#allocation6 + $0x48] sm:$0xf]
    %v80 = vld [vmem:[#allocation6 + $0x4c] sm:$0xf]
    %v81 = vld [vmem:[#allocation6 + $0x50] sm:$0xf]
    %v82 = vld [vmem:[#allocation6 + $0x54] sm:$0xf]
    %v83 = vld [vmem:[#allocation6 + $0x58] sm:$0xf]
    %v84 = vld [vmem:[#allocation6 + $0x5c] sm:$0xf]
    %v85 = vld [vmem:[#allocation6 + $0x60] sm:$0xf]
    %v86 = vld [vmem:[#allocation6 + $0x64] sm:$0xf]
    %v87 = vld [vmem:[#allocation6 + $0x68] sm:$0xf]
    %v88 = vld [vmem:[#allocation6 + $0x6c] sm:$0xf]
    %v89 = vld [vmem:[#allocation6 + $0x70] sm:$0xf]
    %v90 = vld [vmem:[#allocation6 + $0x74] sm:$0xf]
    %v91 = vld [vmem:[#allocation6 + $0x78] sm:$0xf]
    %v92 = vld [vmem:[#allocation6 + $0x7c] sm:$0xf]
    %v93 = vld [vmem:[#allocation6 + $0x80] sm:$0xf]
    %v94 = vld [vmem:[#allocation6 + $0x84] sm:$0xf]
    %v95 = vld [vmem:[#allocation6 + $0x88] sm:$0xf]
    %v96 = vld [vmem:[#allocation6 + $0x8c] sm:$0xf]
    %v97 = vld [vmem:[#allocation6 + $0x90] sm:$0xf]
    %v98 = vld [vmem:[#allocation6 + $0x94] sm:$0xf]
    %v99 = vld [vmem:[#allocation6 + $0x98] sm:$0xf]
    %v100 = vld [vmem:[#allocation6 + $0x9c] sm:$0xf]
    %v101 = vld [vmem:[#allocation6 + $0xa0] sm:$0xf]
    %v102 = vld [vmem:[#allocation6 + $0xa4] sm:$0xf]
    %v103 = vld [vmem:[#allocation6 + $0xa8] sm:$0xf]
    %v104 = vld [vmem:[#allocation6 + $0xac] sm:$0xf]
    %v105 = vld [vmem:[#allocation6 + $0xb0] sm:$0xf]
    %v106 = vld [vmem:[#allocation6 + $0xb4] sm:$0xf]
    %v107 = vld [vmem:[#allocation6 + $0xb8] sm:$0xf]
    %v108 = vld [vmem:[#allocation6 + $0xbc] sm:$0xf]
    %v109 = vld [vmem:[#allocation6 + $0xc0] sm:$0xf]
    %v110 = vld [vmem:[#allocation6 + $0xc4] sm:$0xf]
    %v111 = vld [vmem:[#allocation6 + $0xc8] sm:$0xf]
    %v112 = vld [vmem:[#allocation6 + $0xcc] sm:$0xf]
    %v113 = vld [vmem:[#allocation6 + $0xd0] sm:$0xf]
    %v114 = vld [vmem:[#allocation6 + $0xd4] sm:$0xf]
    %v115 = vld [vmem:[#allocation6 + $0xd8] sm:$0xf]
    %v116 = vld [vmem:[#allocation6 + $0xdc] sm:$0xf]
    %v117 = vld [vmem:[#allocation6 + $0xe0] sm:$0xf]
    %v118 = vld [vmem:[#allocation6 + $0xe4] sm:$0xf]
    %v119 = vld [vmem:[#allocation6 + $0xe8] sm:$0xf]
    %v120 = vld [vmem:[#allocation6 + $0xec] sm:$0xf]
    %v121 = vld [vmem:[#allocation6 + $0xf0] sm:$0xf]
    %v122 = vld [vmem:[#allocation6 + $0xf4] sm:$0xf]
    %v123 = vld [vmem:[#allocation6 + $0xf8] sm:$0xf]
    %v124 = vld [vmem:[#allocation6 + $0xfc] sm:$0xf]
    %v127 = vunpack.c.l.b16 %v59
    %v128 = vunpack.c.h.b16 %v59
    %v129 = vunpack.c.l.b16 %v60
    %v130 = vunpack.c.h.b16 %v60
    %v131 = vpack.c.b16 %v127, %v127
    %v132 = vpack.c.b16 %v128, %v128
    %v133 = vpack.c.b16 %v129, %v129
    %v134 = vpack.c.b16 %v130, %v130
    %v203 = vunpack.c.l.b16 %v61
    %v204 = vunpack.c.l.b16 %v62
    %v205 = vunpack.c.l.b16 %v63
    %v206 = vunpack.c.l.b16 %v64
    %v207 = vunpack.c.l.b16 %v65
    %v208 = vunpack.c.l.b16 %v66
    %v209 = vunpack.c.l.b16 %v67
    %v210 = vunpack.c.l.b16 %v68
    %v211 = vunpack.c.l.b16 %v69
    %v212 = vunpack.c.l.b16 %v70
    %v213 = vunpack.c.l.b16 %v71
    %v214 = vunpack.c.l.b16 %v72
    %v215 = vunpack.c.l.b16 %v73
    %v216 = vunpack.c.l.b16 %v74
    %v217 = vunpack.c.l.b16 %v75
    %v218 = vunpack.c.l.b16 %v76
    %v219 = vunpack.c.l.b16 %v77
    %v220 = vunpack.c.l.b16 %v78
    %v221 = vunpack.c.l.b16 %v79
    %v222 = vunpack.c.l.b16 %v80
    %v223 = vunpack.c.l.b16 %v81
    %v224 = vunpack.c.l.b16 %v82
    %v225 = vunpack.c.l.b16 %v83
    %v226 = vunpack.c.l.b16 %v84
    %v227 = vunpack.c.l.b16 %v85
    %v228 = vunpack.c.l.b16 %v86
    %v229 = vunpack.c.l.b16 %v87
    %v230 = vunpack.c.l.b16 %v88
    %v231 = vunpack.c.l.b16 %v89
    %v232 = vunpack.c.l.b16 %v90
    %v233 = vunpack.c.l.b16 %v91
    %v234 = vunpack.c.l.b16 %v92
    %v235 = vunpack.c.l.b16 %v93
    %v236 = vunpack.c.l.b16 %v94
    %v237 = vunpack.c.l.b16 %v95
    %v238 = vunpack.c.l.b16 %v96
    %v239 = vunpack.c.l.b16 %v97
    %v240 = vunpack.c.l.b16 %v98
    %v241 = vunpack.c.l.b16 %v99
    %v242 = vunpack.c.l.b16 %v100
    %v243 = vunpack.c.l.b16 %v101
    %v244 = vunpack.c.l.b16 %v102
    %v245 = vunpack.c.l.b16 %v103
    %v246 = vunpack.c.l.b16 %v104
    %v247 = vunpack.c.l.b16 %v105
    %v248 = vunpack.c.l.b16 %v106
    %v249 = vunpack.c.l.b16 %v107
    %v250 = vunpack.c.l.b16 %v108
    %v251 = vunpack.c.l.b16 %v109
    %v252 = vunpack.c.l.b16 %v110
    %v253 = vunpack.c.l.b16 %v111
    %v254 = vunpack.c.l.b16 %v112
    %v255 = vunpack.c.l.b16 %v113
    %v256 = vunpack.c.l.b16 %v114
    %v257 = vunpack.c.l.b16 %v115
    %v258 = vunpack.c.l.b16 %v116
    %v259 = vunpack.c.l.b16 %v117
    %v260 = vunpack.c.l.b16 %v118
    %v261 = vunpack.c.l.b16 %v119
    %v262 = vunpack.c.l.b16 %v120
    %v263 = vunpack.c.l.b16 %v121
    %v264 = vunpack.c.l.b16 %v122
    %v265 = vunpack.c.l.b16 %v123
    %v266 = vunpack.c.l.b16 %v124
    %v267 = vpack.c.b16 %v204, %v203
    %v268 = vpack.c.b16 %v206, %v205
    %v269 = vpack.c.b16 %v208, %v207
    %v270 = vpack.c.b16 %v210, %v209
    %v271 = vpack.c.b16 %v212, %v211
    %v272 = vpack.c.b16 %v214, %v213
    %v273 = vpack.c.b16 %v216, %v215
    %v274 = vpack.c.b16 %v218, %v217
    %v275 = vpack.c.b16 %v220, %v219
    %v276 = vpack.c.b16 %v222, %v221
    %v277 = vpack.c.b16 %v224, %v223
    %v278 = vpack.c.b16 %v226, %v225
    %v279 = vpack.c.b16 %v228, %v227
    %v280 = vpack.c.b16 %v230, %v229
    %v281 = vpack.c.b16 %v232, %v231
    %v282 = vpack.c.b16 %v234, %v233
    %v283 = vpack.c.b16 %v236, %v235
    %v284 = vpack.c.b16 %v238, %v237
    %v285 = vpack.c.b16 %v240, %v239
    %v286 = vpack.c.b16 %v242, %v241
    %v287 = vpack.c.b16 %v244, %v243
    %v288 = vpack.c.b16 %v246, %v245
    %v289 = vpack.c.b16 %v248, %v247
    %v290 = vpack.c.b16 %v250, %v249
    %v291 = vpack.c.b16 %v252, %v251
    %v292 = vpack.c.b16 %v254, %v253
    %v293 = vpack.c.b16 %v256, %v255
    %v294 = vpack.c.b16 %v258, %v257
    %v295 = vpack.c.b16 %v260, %v259
    %v296 = vpack.c.b16 %v262, %v261
    %v297 = vpack.c.b16 %v264, %v263
    %v298 = vpack.c.b16 %v266, %v265
    %331 = vmatprep.subr.bf16.mxu0 0
    %332 = vmatpush1.bf16.msra.mxu0 %v267
    %333 = vmatprep.subr.bf16.mxu0 0
    %334 = vmatpush1.bf16.msra.mxu0 %v268
    %335 = vmatprep.subr.bf16.mxu0 0
    %336 = vmatpush1.bf16.msra.mxu0 %v269
    %337 = vmatprep.subr.bf16.mxu0 0
    %338 = vmatpush1.bf16.msra.mxu0 %v270
    %339 = vmatprep.subr.bf16.mxu0 0
    %340 = vmatpush1.bf16.msra.mxu0 %v271
    %341 = vmatprep.subr.bf16.mxu0 0
    %342 = vmatpush1.bf16.msra.mxu0 %v272
    %343 = vmatprep.subr.bf16.mxu0 0
    %344 = vmatpush1.bf16.msra.mxu0 %v273
    %345 = vmatprep.subr.bf16.mxu0 0
    %346 = vmatpush1.bf16.msra.mxu0 %v274
    %347 = vmatprep.subr.bf16.mxu0 0
    %348 = vmatpush1.bf16.msra.mxu0 %v275
    %349 = vmatprep.subr.bf16.mxu0 0
    %350 = vmatpush1.bf16.msra.mxu0 %v276
    %351 = vmatprep.subr.bf16.mxu0 0
    %352 = vmatpush1.bf16.msra.mxu0 %v277
    %353 = vmatprep.subr.bf16.mxu0 0
    %354 = vmatpush1.bf16.msra.mxu0 %v278
    %355 = vmatprep.subr.bf16.mxu0 0
    %356 = vmatpush1.bf16.msra.mxu0 %v279
    %357 = vmatprep.subr.bf16.mxu0 0
    %358 = vmatpush1.bf16.msra.mxu0 %v280
    %359 = vmatprep.subr.bf16.mxu0 0
    %360 = vmatpush1.bf16.msra.mxu0 %v281
    %361 = vmatprep.subr.bf16.mxu0 0
    %362 = vmatpush1.bf16.msra.mxu0 %v282
    %363 = vmatprep.mubr.bf16.mxu0 %v132
    %364 = vmatmul.mubr.bf16.gmra.mrb[0].mxu0 %v131
    %v365 = vpop.f32.mrb[0].mxu0
    %v366 = vadd.f32 0.0, %v365
    %v367 = vpop.f32.mrb[0].mxu0
    %v368 = vpop.f32.mrb[0].mxu0
    %v369 = vpop.f32.mrb[0].mxu0
    %370 = vdwg.mxu0
    %371 = vmatprep.subr.bf16.mxu0 0
    %372 = vmatpush1.bf16.msra.mxu0 %v283
    %373 = vmatprep.subr.bf16.mxu0 0
    %374 = vmatpush1.bf16.msra.mxu0 %v284
    %375 = vmatprep.subr.bf16.mxu0 0
    %376 = vmatpush1.bf16.msra.mxu0 %v285
    %377 = vmatprep.subr.bf16.mxu0 0
    %378 = vmatpush1.bf16.msra.mxu0 %v286
    %379 = vmatprep.subr.bf16.mxu0 0
    %380 = vmatpush1.bf16.msra.mxu0 %v287
    %381 = vmatprep.subr.bf16.mxu0 0
    %382 = vmatpush1.bf16.msra.mxu0 %v288
    %383 = vmatprep.subr.bf16.mxu0 0
    %384 = vmatpush1.bf16.msra.mxu0 %v289
    %385 = vmatprep.subr.bf16.mxu0 0
    %386 = vmatpush1.bf16.msra.mxu0 %v290
    %387 = vmatprep.subr.bf16.mxu0 0
    %388 = vmatpush1.bf16.msra.mxu0 %v291
    %389 = vmatprep.subr.bf16.mxu0 0
    %390 = vmatpush1.bf16.msra.mxu0 %v292
    %391 = vmatprep.subr.bf16.mxu0 0
    %392 = vmatpush1.bf16.msra.mxu0 %v293
    %393 = vmatprep.subr.bf16.mxu0 0
    %394 = vmatpush1.bf16.msra.mxu0 %v294
    %395 = vmatprep.subr.bf16.mxu0 0
    %396 = vmatpush1.bf16.msra.mxu0 %v295
    %397 = vmatprep.subr.bf16.mxu0 0
    %398 = vmatpush1.bf16.msra.mxu0 %v296
    %399 = vmatprep.subr.bf16.mxu0 0
    %400 = vmatpush1.bf16.msra.mxu0 %v297
    %401 = vmatprep.subr.bf16.mxu0 0
    %402 = vmatpush1.bf16.msra.mxu0 %v298
    %403 = vmatprep.mubr.bf16.mxu0 %v134
    %404 = vmatmul.mubr.bf16.gmra.mrb[0].mxu0 %v133
    %v405 = vpop.f32.mrb[0].mxu0
    %v406 = vadd.f32 %v366, %v405
    %v407 = vpop.f32.mrb[0].mxu0
    %v408 = vpop.f32.mrb[0].mxu0
    %v409 = vpop.f32.mrb[0].mxu0
    %410 = vdwg.mxu0
    %v411 = vadd.f32 %v58, %v406
    %412 = vst [vmem:[#allocation2] sm:$0xff] %v411
    // Predicated region
    $region30: #{vae_forward.27} parent=1 // pred_check
      %p413 = pneg %p53
    $region31: #{vae_forward.27} parent=1 // pred_check_branch
      %415 = sbr.rel (%p413) target = $region33
    $region32: #{vae_forward.27} parent=1 // pred_region
      %v416 = vld [vmem:[#allocation2] sm:$0xff]
      %v417 = vld [vmem:[#allocation8] sm:$0x1]
      %v419 = vlaneseq
      %v420 = vshrl.u32 %v419, 7
      %v421 = vsub.s32 0, %v420
      %v422 = vrot.slane %v417, %v421
      %v424 = vadd.f32 %v416, %v422
      %425 = vst [vmem:[#allocation9] sm:$0xff] %v424
    $region33: #{vae_forward.27} parent=1 // pred_fallthru
      _
    // Predicated region
    $region34: #{vae_forward.27} parent=1 // pred_check
      _
    $region35: #{vae_forward.27} parent=1 // pred_check_branch
      %427 = sbr.rel (0) target = $region37
    $region36: #{vae_forward.27} parent=1 // pred_region
      %s429 = ssub.s32 128, 128
      %430 = vsyncadd [#allocation5], %s429
      %s432 = sshll.u32 [#allocation9], 4
      %s433 = int_to_ptr.vmem [resolvable:$true] %s432
      %435 = dma.vmem_to_hbm [thread:$0]  %s433, 128, %s3, [#allocation5]
    $region37: #{vae_forward.27} parent=1 // pred_fallthru
      _
    // Predicated region
    $region38: #{vae_forward.27} parent=1 // pred_check
      _
    $region39: #{vae_forward.27} parent=1 // pred_check_branch
      %437 = sbr.rel (0) target = $region41
    $region40: #{vae_forward.27} parent=1 // pred_region
      %438 = dma.done [#allocation5], 128
    $region41: #{vae_forward.27} parent=1 // pred_fallthru
      _
    %439 = vsyncpa [#allocation4], 1
    %440 = vsyncpa [#allocation7], 1
    %441 = vsyncpa [#allocation5], 1

// kernel: vae_forward.29
$region0: #{vae_forward.29}
  #allocation0 [shape = 'u32[]', space=smem, size = 0x4, offset = 0x4, fixed_abs, tag = 'smem constant byte address 0x4 - core index']
  #allocation1 [shape = 'u32[144,128]{1,0:T(1,128)}', space=vmem, size = 0x12000, scoped, tag = 'internal scratch']
  #allocation2 [shape = 'f32[8,256]{1,0:T(8,128)}', space=vmem, size = 0x2000, scoped, tag = 'scratch operand']
  %s0 = inlined_call_operand.hbm [shape: bf16[8,128], index: 0, kind: input, shape index: {}]
  %s1 = inlined_call_operand.hbm [shape: bf16[128,512], index: 1, kind: input, shape index: {}]
  %s2 = inlined_call_operand.hbm [shape: f32[1,512], index: 2, kind: input, shape index: {}]
  %s3 = inlined_call_operand.hbm [shape: f32[8,512], index: 3, kind: output, shape index: {}]
  %s4 = sld [smem:[#allocation0]]
  $region65: #{vae_forward.29} parent=0
    _
  %s6 = ssub.s32 1, %s4
  %s7 = scalar_select 0, %s6, %s4
  $region1: #{vae_forward.29} parent=0
    #allocation3 [shape = 'u8[2048]{0}', space=vmem, size = 0x800, scoped, tag = 'input window, operand 0, single buffered']
    #allocation4 [shape = 's32[2]{0}', space=sflag, size = 0x8, scoped, tag = 'scoped memory for vae_forward.29']
    #allocation5 [shape = 's32[2]{0}', space=sflag, size = 0x8, scoped, tag = 'scoped memory for vae_forward.29']
    #allocation6 [shape = 'u8[131072]{0}', space=vmem, size = 0x20000, scoped, tag = 'input window, operand 1']
    #allocation7 [shape = 's32[2]{0}', space=sflag, size = 0x8, scoped, tag = 'scoped memory for vae_forward.29']
    #allocation8 [shape = 'u8[2048]{0}', space=vmem, size = 0x800, scoped, tag = 'input window, operand 2']
    #allocation9 [shape = 'u8[16384]{0}', space=vmem, size = 0x4000, scoped, tag = 'output window, operand 0']
    %8 = vsyncpa [#allocation4], 0
    %9 = vsyncpa [#allocation7], 0
    %s10 = scalar_lea.sflag [#allocation7], 1
    %11 = vsyncpa %s10, 0
    %12 = vsyncpa [#allocation5], 0
    %s13 = scalar_lea.sflag [#allocation5], 1
    %14 = vsyncpa %s13, 0
    loop: start=0, step=1, limit=4
    $region2: #{vae_forward.29} parent=1 // loop_pre_header
      _
    $region3: #{vae_forward.29} parent=1 // loop_header
      %s16 = sphi 0, %s20
      %p17 = scmp.ge.s32.totalorder %s16, 4
      %s23 = sphi 0, %s42
      %s24 = sphi 0, %s38
      %s25 = sphi 0, %s34
      %s26 = sphi 0, %s23
      %s27 = sphi 0, %s24
      %s28 = sphi 0, %s25
      %s29 = sphi 0, %s26
      %s30 = sphi 0, %s27
      %s31 = sphi 0, %s28
      %s47 = sphi 0, %s49
      %s50 = sphi 0, %s47
      %s51 = sphi 0, %s50
      %s67 = sphi 0, %s51
      %s75 = sphi 0, %s77
      %s78 = sphi 0, %s75
      %s79 = sphi 0, %s78
      %s95 = sphi 0, %s79
      %s101 = sphi 0, %s103
      %s104 = sphi 0, %s101
      %s105 = sphi 0, %s104
      %s121 = sphi 0, %s105
      %s129 = sphi 0, %s131
      %s132 = sphi 0, %s129
      %s133 = sphi 0, %s132
      %s149 = sphi 0, %s133
    $region4: #{vae_forward.29} parent=1 // loop_header_branch
      %19 = sbr.rel (%p17) target = $region8
    $region5: #{vae_forward.29} parent=1 // loop_body
      %s21 = ssub.s32 %s16, 1
      %s22 = ssub.s32 %s16, 2
      %s32 = sadd.s32 1, %s25
      %p33 = scmp.ge.s32.totalorder %s32, 1
      %s34 = scalar_select %p33, 0, %s32
      %s35 = sadd.s32 1, %s24
      %s36 = scalar_select %p33, %s35, %s24
      %p37 = scmp.ge.s32.totalorder %s36, 2
      %s38 = scalar_select %p37, 0, %s36
      %s39 = sadd.s32 1, %s23
      %s40 = scalar_select %p37, %s39, %s23
      %p41 = scmp.ge.s32.totalorder %s40, 1
      %s42 = scalar_select %p41, 0, %s40
      %s43 = ssub.s32 %s23, %s42
      %s44 = ssub.s32 %s25, %s34
      %s45 = sor.u32 %s43, %s44
      %p46 = scmp.eq.s32.totalorder %s45, 0
      %s48 = sadd.s32 %s47, 1
      %s49 = scalar_select %p46, %s47, %s48
      %p52 = pneg %p46
      %p53 = scmp.eq.s32.totalorder %s16, 1
      %p54 = por %p52, %p53
      %p55 = scmp.ne.s32.totalorder %s47, %s50
      %p56 = scmp.eq.s32.totalorder %s16, 0
      %p57 = por %p55, %p56
      %p58 = scmp.ne.s32.totalorder %s47, %s50
      %p59 = scmp.eq.s32.totalorder %s21, 1
      %p60 = por %p58, %p59
      %p61 = scmp.ne.s32.totalorder %s50, %s51
      %p62 = scmp.eq.s32.totalorder %s21, 0
      %p63 = por %p61, %p62
      %p64 = scmp.ne.s32.totalorder %s50, %s51
      %p65 = scmp.eq.s32.totalorder %s22, 1
      %p66 = por %p64, %p65
      %p68 = scmp.ne.s32.totalorder %s51, %s67
      %p69 = scmp.eq.s32.totalorder %s22, 0
      %p70 = por %p68, %p69
      %s71 = ssub.s32 %s25, %s34
      %s72 = ssub.s32 %s24, %s38
      %s73 = sor.u32 %s71, %s72
      %p74 = scmp.eq.s32.totalorder %s73, 0
      %s76 = sadd.s32 %s75, 1
      %s77 = scalar_select %p74, %s75, %s76
      %p80 = pneg %p74
      %p81 = scmp.eq.s32.totalorder %s16, 1
      %p82 = por %p80, %p81
      %p83 = scmp.ne.s32.totalorder %s75, %s78
      %p84 = scmp.eq.s32.totalorder %s16, 0
      %p85 = por %p83, %p84
      %p86 = scmp.ne.s32.totalorder %s75, %s78
      %p87 = scmp.eq.s32.totalorder %s21, 1
      %p88 = por %p86, %p87
      %p89 = scmp.ne.s32.totalorder %s78, %s79
      %p90 = scmp.eq.s32.totalorder %s21, 0
      %p91 = por %p89, %p90
      %p92 = scmp.ne.s32.totalorder %s78, %s79
      %p93 = scmp.eq.s32.totalorder %s22, 1
      %p94 = por %p92, %p93
      %p96 = scmp.ne.s32.totalorder %s79, %s95
      %p97 = scmp.eq.s32.totalorder %s22, 0
      %p98 = por %p96, %p97
      %s99 = ssub.s32 %s24, %s38
      %p100 = scmp.eq.s32.totalorder %s99, 0
      %s102 = sadd.s32 %s101, 1
      %s103 = scalar_select %p100, %s101, %s102
      %p106 = pneg %p100
      %p107 = scmp.eq.s32.totalorder %s16, 1
      %p108 = por %p106, %p107
      %p109 = scmp.ne.s32.totalorder %s101, %s104
      %p110 = scmp.eq.s32.totalorder %s16, 0
      %p111 = por %p109, %p110
      %p112 = scmp.ne.s32.totalorder %s101, %s104
      %p113 = scmp.eq.s32.totalorder %s21, 1
      %p114 = por %p112, %p113
      %p115 = scmp.ne.s32.totalorder %s104, %s105
      %p116 = scmp.eq.s32.totalorder %s21, 0
      %p117 = por %p115, %p116
      %p118 = scmp.ne.s32.totalorder %s104, %s105
      %p119 = scmp.eq.s32.totalorder %s22, 1
      %p120 = por %p118, %p119
      %p122 = scmp.ne.s32.totalorder %s105, %s121
      %p123 = scmp.eq.s32.totalorder %s22, 0
      %p124 = por %p122, %p123
      %s125 = ssub.s32 %s23, %s42
      %s126 = ssub.s32 %s24, %s38
      %s127 = sor.u32 %s125, %s126
      %p128 = scmp.eq.s32.totalorder %s127, 0
      %s130 = sadd.s32 %s129, 1
      %s131 = scalar_select %p128, %s129, %s130
      %p134 = pneg %p128
      %p135 = scmp.eq.s32.totalorder %s16, 1
      %p136 = por %p134, %p135
      %p137 = scmp.ne.s32.totalorder %s129, %s132
      %p138 = scmp.eq.s32.totalorder %s16, 0
      %p139 = por %p137, %p138
      %p140 = scmp.ne.s32.totalorder %s129, %s132
      %p141 = scmp.eq.s32.totalorder %s21, 1
      %p142 = por %p140, %p141
      %p143 = scmp.ne.s32.totalorder %s132, %s133
      %p144 = scmp.eq.s32.totalorder %s21, 0
      %p145 = por %p143, %p144
      %p146 = scmp.ne.s32.totalorder %s132, %s133
      %p147 = scmp.eq.s32.totalorder %s22, 1
      %p148 = por %p146, %p147
      %p150 = scmp.ne.s32.totalorder %s133, %s149
      %p151 = scmp.eq.s32.totalorder %s22, 0
      %p152 = por %p150, %p151
      %p153 = scmp.le.s32.totalorder 1, %s16
      %p154 = scmp.lt.s32.totalorder %s16, 3
      %p155 = pnand %p153, %p154
      %p156 = pneg %p155
      // Predicated region
      $region9: #{vae_forward.29} parent=5 // pred_check
        _
      $region10: #{vae_forward.29} parent=5 // pred_check_branch
        %158 = sbr.rel (%p155) target = $region12
      $region11: #{vae_forward.29} parent=5 // pred_region
        %s159 = ssub.s32 %s16, 1
        // Predicated region
        $region13: #{vae_forward.29} parent=11 // pred_check
          %p160 = pneg %p63
        $region14: #{vae_forward.29} parent=11 // pred_check_branch
          %162 = sbr.rel (%p160) target = $region16
        $region15: #{vae_forward.29} parent=11 // pred_region
          %s164 = ssub.s32 64, 64
          %165 = vsyncadd [#allocation4], %s164
          %s166 = sadd.s32 %s28, %s26
          %s167 = smul.addr %s166, 64
          %s168 = scalar_lea.hbm %s0, %s167
          %s170 = sshll.u32 [#allocation3], 4
          %s171 = int_to_ptr.vmem [resolvable:$true] %s170
          %173 = dma.hbm_to_vmem [thread:$0]  %s168, 64, %s171, [#allocation4]
        $region16: #{vae_forward.29} parent=11 // pred_fallthru
          _
      $region12: #{vae_forward.29} parent=5 // pred_fallthru
        _
      %p174 = scmp.lt.s32.totalorder %s16, 2
      // Predicated region
      $region17: #{vae_forward.29} parent=5 // pred_check
        %p175 = pneg %p174
      $region18: #{vae_forward.29} parent=5 // pred_check_branch
        %177 = sbr.rel (%p175) target = $region20
      $region19: #{vae_forward.29} parent=5 // pred_region
        // Predicated region
        $region21: #{vae_forward.29} parent=19 // pred_check
          %p178 = pneg %p85
        $region22: #{vae_forward.29} parent=19 // pred_check_branch
          %180 = sbr.rel (%p178) target = $region24
        $region23: #{vae_forward.29} parent=19 // pred_region
          %s181 = sand.u32 %s16, 1
          %s182 = scalar_lea.sflag [#allocation7], %s181
          %s183 = sand.u32 %s75, 1
          %s184 = smul.addr %s183, 128
          %s185 = scalar_lea.vmem [#allocation6], %s184
          %s186 = smul.u32 16, %s25
          %s187 = smul.u32 2, %s24
          %s189 = ssub.s32 2048, 2048
          %190 = vsyncadd %s182, %s189
          %s191 = smul.addr %s186, 4
          %s192 = sadd.s32 %s187, %s191
          %s193 = smul.addr %s192, 64
          %s194 = scalar_lea.hbm %s1, %s193
          %s195 = sshll.u32 %s185, 4
          %s196 = int_to_ptr.vmem [resolvable:$true] %s195
          %201 = dma.hbm_to_vmem [thread:$0]  %s194, 2048, %s196, %s182, 256, 128, 8
        $region24: #{vae_forward.29} parent=19 // pred_fallthru
          _
        // Predicated region
        $region25: #{vae_forward.29} parent=19 // pred_check
          %p202 = pneg %p111
        $region26: #{vae_forward.29} parent=19 // pred_check_branch
          %204 = sbr.rel (%p202) target = $region28
        $region27: #{vae_forward.29} parent=19 // pred_region
          %s205 = sand.u32 %s16, 1
          %s206 = scalar_lea.sflag [#allocation7], %s205
          %s207 = sand.u32 %s101, 1
          %s208 = smul.addr %s207, 2
          %s209 = scalar_lea.vmem [#allocation8], %s208
          %s210 = smul.u32 2, %s24
          %s212 = ssub.s32 32, 32
          %213 = vsyncadd %s206, %s212
          %s214 = smul.addr %s210, 16
          %s215 = scalar_lea.hbm %s2, %s214
          %s217 = sshll.u32 %s209, 4
          %s218 = int_to_ptr.vmem [resolvable:$true] %s217
          %220 = dma.hbm_to_vmem [thread:$0]  %s215, 32, %s218, %s206
        $region28: #{vae_forward.29} parent=19 // pred_fallthru
          _
      $region20: #{vae_forward.29} parent=5 // pred_fallthru
        _
      %p221 = scmp.le.s32.totalorder 1, %s16
      %p222 = scmp.lt.s32.totalorder %s16, 3
      %p223 = pnand %p221, %p222
      %p224 = pneg %p223
      // Predicated region
      $region29: #{vae_forward.29} parent=5 // pred_check
        _
      $region30: #{vae_forward.29} parent=5 // pred_check_branch
        %226 = sbr.rel (%p223) target = $region32
      $region31: #{vae_forward.29} parent=5 // pred_region
        %s227 = ssub.s32 %s16, 1
        // Predicated region
        $region33: #{vae_forward.29} parent=31 // pred_check
          %p228 = pneg %p63
        $region34: #{vae_forward.29} parent=31 // pred_check_branch
          %230 = sbr.rel (%p228) target = $region36
        $region35: #{vae_forward.29} parent=31 // pred_region
          %231 = dma.done [#allocation4], 64
        $region36: #{vae_forward.29} parent=31 // pred_fallthru
          _
        %s232 = sand.u32 %s21, 1
        %s233 = scalar_lea.sflag [#allocation7], %s232
        %s234 = sand.u32 %s78, 1
        %s235 = smul.addr %s234, 128
        %s236 = scalar_lea.vmem [#allocation6], %s235
        // Predicated region
        $region37: #{vae_forward.29} parent=31 // pred_check
          %p237 = pneg %p91
        $region38: #{vae_forward.29} parent=31 // pred_check_branch
          %239 = sbr.rel (%p237) target = $region40
        $region39: #{vae_forward.29} parent=31 // pred_region
          %240 = dma.done %s233, 2048
        $region40: #{vae_forward.29} parent=31 // pred_fallthru
          _
        %s241 = sand.u32 %s21, 1
        %s242 = scalar_lea.sflag [#allocation7], %s241
        %s243 = sand.u32 %s104, 1
        %s244 = smul.addr %s243, 2
        %s245 = scalar_lea.vmem [#allocation8], %s244
        // Predicated region
        $region41: #{vae_forward.29} parent=31 // pred_check
          %p246 = pneg %p117
        $region42: #{vae_forward.29} parent=31 // pred_check_branch
          %248 = sbr.rel (%p246) target = $region44
        $region43: #{vae_forward.29} parent=31 // pred_region
          %249 = dma.done %s242, 32
        $region44: #{vae_forward.29} parent=31 // pred_fallthru
          _
        %p250 = pneg %p63
        %p251 = pneg %p60
        %s252 = sand.u32 %s21, 1
        %s253 = scalar_lea.sflag [#allocation7], %s252
        %s254 = sand.u32 %s78, 1
        %s255 = smul.addr %s254, 128
        %s256 = scalar_lea.vmem [#allocation6], %s255
        %p257 = pneg %p91
        %p258 = pneg %p88
        %s259 = sand.u32 %s21, 1
        %s260 = scalar_lea.sflag [#allocation7], %s259
        %s261 = sand.u32 %s104, 1
        %s262 = smul.addr %s261, 2
        %s263 = scalar_lea.vmem [#allocation8], %s262
        %p264 = pneg %p117
        %p265 = pneg %p114
        %p266 = pneg %p145
        %p267 = pneg %p142
        %s268 = sand.u32 %s132, 1
        %s269 = scalar_lea.sflag [#allocation5], %s268
        %s270 = sand.u32 %s132, 1
        %s271 = smul.addr %s270, 16
        %s272 = scalar_lea.vmem [#allocation9], %s271
        %s273 = smul.u32 16, %s28
        %s274 = smul.u32 2, %s27
        %s275 = smul.u32 2, %s27
        %s276 = smul.u32 2, %s27
        %p278 = scmp.eq.s32.totalorder %s28, 0
        // Predicated region
        $region45: #{vae_forward.29} parent=31 // pred_check
          %p279 = pneg %p278
        $region46: #{vae_forward.29} parent=31 // pred_check_branch
          %281 = sbr.rel (%p279) target = $region48
        $region47: #{vae_forward.29} parent=31 // pred_region
          %282 = vst [vmem:[#allocation2] sm:$0xff] 0.0
          %283 = vst [vmem:[#allocation2 + $0x8] sm:$0xff] 0.0
        $region48: #{vae_forward.29} parent=31 // pred_fallthru
          _
        %v284 = vld [vmem:[#allocation2] sm:$0xff]
        %v285 = vld [vmem:[#allocation2 + $0x8] sm:$0xff]
        %v286 = vld [vmem:[#allocation3] sm:$0xf]
        %v287 = vld [vmem:[%s236] sm:$0xff]
        %v288 = vld [vmem:[%s236 + $0x8] sm:$0xff]
        %v289 = vld [vmem:[%s236 + $0x10] sm:$0xff]
        %v290 = vld [vmem:[%s236 + $0x18] sm:$0xff]
        %v291 = vld [vmem:[%s236 + $0x20] sm:$0xff]
        %v292 = vld [vmem:[%s236 + $0x28] sm:$0xff]
        %v293 = vld [vmem:[%s236 + $0x30] sm:$0xff]
        %v294 = vld [vmem:[%s236 + $0x38] sm:$0xff]
        %v295 = vld [vmem:[%s236 + $0x40] sm:$0xff]
        %v296 = vld [vmem:[%s236 + $0x48] sm:$0xff]
        %v297 = vld [vmem:[%s236 + $0x50] sm:$0xff]
        %v298 = vld [vmem:[%s236 + $0x58] sm:$0xff]
        %v299 = vld [vmem:[%s236 + $0x60] sm:$0xff]
        %v300 = vld [vmem:[%s236 + $0x68] sm:$0xff]
        %v301 = vld [vmem:[%s236 + $0x70] sm:$0xff]
        %v302 = vld [vmem:[%s236 + $0x78] sm:$0xff]
        %v319 = vunpack.c.l.b16 %v287
        %v320 = vunpack.c.h.b16 %v287
        %v321 = vunpack.c.l.b16 %v288
        %v322 = vunpack.c.h.b16 %v288
        %v323 = vunpack.c.l.b16 %v289
        %v324 = vunpack.c.h.b16 %v289
        %v325 = vunpack.c.l.b16 %v290
        %v326 = vunpack.c.h.b16 %v290
        %v327 = vunpack.c.l.b16 %v291
        %v328 = vunpack.c.h.b16 %v291
        %v329 = vunpack.c.l.b16 %v292
        %v330 = vunpack.c.h.b16 %v292
        %v331 = vunpack.c.l.b16 %v293
        %v332 = vunpack.c.h.b16 %v293
        %v333 = vunpack.c.l.b16 %v294
        %v334 = vunpack.c.h.b16 %v294
        %v335 = vunpack.c.l.b16 %v295
        %v336 = vunpack.c.h.b16 %v295
        %v337 = vunpack.c.l.b16 %v296
        %v338 = vunpack.c.h.b16 %v296
        %v339 = vunpack.c.l.b16 %v297
        %v340 = vunpack.c.h.b16 %v297
        %v341 = vunpack.c.l.b16 %v298
        %v342 = vunpack.c.h.b16 %v298
        %v343 = vunpack.c.l.b16 %v299
        %v344 = vunpack.c.h.b16 %v299
        %v345 = vunpack.c.l.b16 %v300
        %v346 = vunpack.c.h.b16 %v300
        %v347 = vunpack.c.l.b16 %v301
        %v348 = vunpack.c.h.b16 %v301
        %v349 = vunpack.c.l.b16 %v302
        %v350 = vunpack.c.h.b16 %v302
        %v351 = vpack.c.b16 %v321, %v319
        %v352 = vpack.c.b16 %v322, %v320
        %v353 = vpack.c.b16 %v325, %v323
        %v354 = vpack.c.b16 %v326, %v324
        %v355 = vpack.c.b16 %v329, %v327
        %v356 = vpack.c.b16 %v330, %v328
        %v357 = vpack.c.b16 %v333, %v331
        %v358 = vpack.c.b16 %v334, %v332
        %v359 = vpack.c.b16 %v337, %v335
        %v360 = vpack.c.b16 %v338, %v336
        %v361 = vpack.c.b16 %v341, %v339
        %v362 = vpack.c.b16 %v342, %v340
        %v363 = vpack.c.b16 %v345, %v343
        %v364 = vpack.c.b16 %v346, %v344
        %v365 = vpack.c.b16 %v349, %v347
        %v366 = vpack.c.b16 %v350, %v348
        %383 = vmatprep.subr.bf16.mxu0 %v352
        %384 = vmatpush1.bf16.msra.mxu0 %v351
        %385 = vmatprep.subr.bf16.mxu0 %v354
        %386 = vmatpush1.bf16.msra.mxu0 %v353
        %387 = vmatprep.subr.bf16.mxu0 %v356
        %388 = vmatpush1.bf16.msra.mxu0 %v355
        %389 = vmatprep.subr.bf16.mxu0 %v358
        %390 = vmatpush1.bf16.msra.mxu0 %v357
        %391 = vmatprep.subr.bf16.mxu0 %v360
        %392 = vmatpush1.bf16.msra.mxu0 %v359
        %393 = vmatprep.subr.bf16.mxu0 %v362
        %394 = vmatpush1.bf16.msra.mxu0 %v361
        %395 = vmatprep.subr.bf16.mxu0 %v364
        %396 = vmatpush1.bf16.msra.mxu0 %v363
        %397 = vmatprep.subr.bf16.mxu0 %v366
        %398 = vmatpush1.bf16.msra.mxu0 %v365
        %399 = vmatprep.subr.bf16.mxu0 0
        %400 = vmatpush1.bf16.msra.mxu0 0
        %401 = vmatprep.subr.bf16.mxu0 0
        %402 = vmatpush1.bf16.msra.mxu0 0
        %403 = vmatprep.subr.bf16.mxu0 0
        %404 = vmatpush1.bf16.msra.mxu0 0
        %405 = vmatprep.subr.bf16.mxu0 0
        %406 = vmatpush1.bf16.msra.mxu0 0
        %407 = vmatprep.subr.bf16.mxu0 0
        %408 = vmatpush1.bf16.msra.mxu0 0
        %409 = vmatprep.subr.bf16.mxu0 0
        %410 = vmatpush1.bf16.msra.mxu0 0
        %411 = vmatprep.subr.bf16.mxu0 0
        %412 = vmatpush1.bf16.msra.mxu0 0
        %413 = vmatprep.subr.bf16.mxu0 0
        %414 = vmatpush1.bf16.msra.mxu0 0
        %415 = vmatprep.mubr.bf16.mxu0 0
        %416 = vmatmul.mubr.bf16.gmra.mrb[0].mxu0 %v286
        %v417 = vpop.f32.mrb[0].mxu0
        %v418 = vadd.f32 0.0, %v417
        %v419 = vpop.f32.mrb[0].mxu0
        %v420 = vadd.f32 0.0, %v419
        %v421 = vpop.f32.mrb[0].mxu0
        %v422 = vpop.f32.mrb[0].mxu0
        %423 = vdwg.mxu0
        %v424 = vadd.f32 %v284, %v418
        %v425 = vadd.f32 %v285, %v420
        %426 = vst [vmem:[#allocation2] sm:$0xff] %v424
        %427 = vst [vmem:[#allocation2 + $0x8] sm:$0xff] %v425
        // Predicated region
        $region49: #{vae_forward.29} parent=31 // pred_check
          %p428 = pneg %p278
        $region50: #{vae_forward.29} parent=31 // pred_check_branch
          %430 = sbr.rel (%p428) target = $region52
        $region51: #{vae_forward.29} parent=31 // pred_region
          %v431 = vld [vmem:[#allocation2] sm:$0xff]
          %v432 = vld [vmem:[#allocation2 + $0x8] sm:$0xff]
          %v433 = vld [vmem:[%s245] sm:$0x3]
          %v435 = vlaneseq
          %v436 = vshrl.u32 %v435, 7
          %v437 = vsub.s32 0, %v436
          %v438 = vrot.slane %v433, %v437
          %v439 = vlaneseq
          %v440 = vshrl.u32 %v439, 7
          %v441 = vsub.s32 1, %v440
          %v442 = vrot.slane %v433, %v441
          %v445 = vadd.f32 %v431, %v438
          %v446 = vadd.f32 %v432, %v442
          %v447 = vmax.f32 %v445, 0.0
          %v448 = vmax.f32 %v446, 0.0
          %449 = vst [vmem:[%s272] sm:$0xff] %v447
          %450 = vst [vmem:[%s272 + $0x8] sm:$0xff] %v448
        $region52: #{vae_forward.29} parent=31 // pred_fallthru
          _
        %s451 = sand.u32 %s132, 1
        %s452 = scalar_lea.sflag [#allocation5], %s451
        %s453 = sand.u32 %s132, 1
        %s454 = smul.addr %s453, 16
        %s455 = scalar_lea.vmem [#allocation9], %s454
        // Predicated region
        $region53: #{vae_forward.29} parent=31 // pred_check
          %p456 = pneg %p142
        $region54: #{vae_forward.29} parent=31 // pred_check_branch
          %458 = sbr.rel (%p456) target = $region56
        $region55: #{vae_forward.29} parent=31 // pred_region
          %s459 = smul.u32 2, %s27
          %s461 = ssub.s32 256, 256
          %462 = vsyncadd %s452, %s461
          %s463 = smul.addr %s26, 4
          %s464 = sadd.s32 %s459, %s463
          %s465 = smul.addr %s464, 128
          %s466 = scalar_lea.hbm %s3, %s465
          %s468 = sshll.u32 %s455, 4
          %s469 = int_to_ptr.vmem [resolvable:$true] %s468
          %471 = dma.vmem_to_hbm [thread:$0]  %s469, 256, %s466, %s452
        $region56: #{vae_forward.29} parent=31 // pred_fallthru
          _
      $region32: #{vae_forward.29} parent=5 // pred_fallthru
        _
      %p472 = scmp.le.s32.totalorder 2, %s16
      // Predicated region
      $region57: #{vae_forward.29} parent=5 // pred_check
        %p473 = pneg %p472
      $region58: #{vae_forward.29} parent=5 // pred_check_branch
        %475 = sbr.rel (%p473) target = $region60
      $region59: #{vae_forward.29} parent=5 // pred_region
        %s476 = ssub.s32 %s16, 2
        // Predicated region
        $region61: #{vae_forward.29} parent=59 // pred_check
          %p477 = pneg %p148
        $region62: #{vae_forward.29} parent=59 // pred_check_branch
          %479 = sbr.rel (%p477) target = $region64
        $region63: #{vae_forward.29} parent=59 // pred_region
          %s480 = sand.u32 %s133, 1
          %s481 = scalar_lea.sflag [#allocation5], %s480
          %s482 = sand.u32 %s133, 1
          %s483 = smul.addr %s482, 16
          %s484 = scalar_lea.vmem [#allocation9], %s483
          %485 = dma.done %s481, 256
        $region64: #{vae_forward.29} parent=59 // pred_fallthru
          _
      $region60: #{vae_forward.29} parent=5 // pred_fallthru
        _
    $region6: #{vae_forward.29} parent=1 // loop_footer
      %s20 = sadd.s32 1, %s16
    $region7: #{vae_forward.29} parent=1 // loop_footer_branch
      %15 = sbr.rel target = $region3
    $region8: #{vae_forward.29} parent=1 // loop_exit
      _
    %486 = vsyncpa [#allocation4], 1
    %s487 = scalar_lea.sflag [#allocation4], 1
    %488 = vsyncpa %s487, 1
    %489 = vsyncpa [#allocation7], 1
    %s490 = scalar_lea.sflag [#allocation7], 1
    %491 = vsyncpa %s490, 1
    %492 = vsyncpa [#allocation5], 1
    %s493 = scalar_lea.sflag [#allocation5], 1
    %494 = vsyncpa %s493, 1

// kernel: vae_forward.33
$region0: #{vae_forward.33}
  #allocation0 [shape = 'u32[]', space=smem, size = 0x4, offset = 0x4, fixed_abs, tag = 'smem constant byte address 0x4 - core index']
  #allocation1 [shape = 'u32[144,128]{1,0:T(1,128)}', space=vmem, size = 0x12000, scoped, tag = 'internal scratch']
  #allocation2 [shape = 'f32[8,128]{1,0:T(8,128)}', space=vmem, size = 0x1000, scoped, tag = 'scratch operand']
  %s0 = inlined_call_operand.hbm [shape: bf16[8,512], index: 0, kind: input, shape index: {}]
  %s1 = inlined_call_operand.hbm [shape: bf16[512,128], index: 1, kind: input, shape index: {}]
  %s2 = inlined_call_operand.hbm [shape: f32[1,128], index: 2, kind: input, shape index: {}]
  %s3 = inlined_call_operand.hbm [shape: f32[8,128], index: 3, kind: output, shape index: {}]
  %s4 = sld [smem:[#allocation0]]
  $region42: #{vae_forward.33} parent=0
    _
  %s6 = ssub.s32 1, %s4
  %s7 = scalar_select 0, %s6, %s4
  $region1: #{vae_forward.33} parent=0
    #allocation3 [shape = 'u8[8192]{0}', space=vmem, size = 0x2000, scoped, tag = 'input window, operand 0, single buffered']
    #allocation4 [shape = 's32[1]{0}', space=sflag, size = 0x4, scoped, tag = 'scoped memory for vae_forward.33']
    #allocation5 [shape = 's32[1]{0}', space=sflag, size = 0x4, scoped, tag = 'scoped memory for vae_forward.33']
    #allocation6 [shape = 'u8[131072]{0}', space=vmem, size = 0x20000, scoped, tag = 'input window, operand 1, single buffered']
    #allocation7 [shape = 's32[1]{0}', space=sflag, size = 0x4, scoped, tag = 'scoped memory for vae_forward.33']
    #allocation8 [shape = 'u8[512]{0}', space=vmem, size = 0x400, scoped, tag = 'input window, operand 2, single buffered']
    #allocation9 [shape = 'u8[4096]{0}', space=vmem, size = 0x1000, scoped, tag = 'output window, operand 0, single buffered']
    %8 = vsyncpa [#allocation4], 0
    %9 = vsyncpa [#allocation7], 0
    %10 = vsyncpa [#allocation5], 0
    // Predicated region
    $region2: #{vae_forward.33} parent=1 // pred_check
      _
    $region3: #{vae_forward.33} parent=1 // pred_check_branch
      %12 = sbr.rel (0) target = $region5
    $region4: #{vae_forward.33} parent=1 // pred_region
      %s14 = ssub.s32 256, 256
      %15 = vsyncadd [#allocation4], %s14
      %s17 = sshll.u32 [#allocation3], 4
      %s18 = int_to_ptr.vmem [resolvable:$true] %s17
      %20 = dma.hbm_to_vmem [thread:$0]  %s0, 256, %s18, [#allocation4]
    $region5: #{vae_forward.33} parent=1 // pred_fallthru
      _
    // Predicated region
    $region6: #{vae_forward.33} parent=1 // pred_check
      _
    $region7: #{vae_forward.33} parent=1 // pred_check_branch
      %22 = sbr.rel (0) target = $region9
    $region8: #{vae_forward.33} parent=1 // pred_region
      %s24 = ssub.s32 4096, 4096
      %25 = vsyncadd [#allocation7], %s24
      %s26 = sshll.u32 [#allocation6], 4
      %s27 = int_to_ptr.vmem [resolvable:$true] %s26
      %32 = dma.hbm_to_vmem [thread:$0]  %s1, 4096, %s27, [#allocation7], 64, 64, 4
    $region9: #{vae_forward.33} parent=1 // pred_fallthru
      _
    // Predicated region
    $region10: #{vae_forward.33} parent=1 // pred_check
      _
    $region11: #{vae_forward.33} parent=1 // pred_check_branch
      %34 = sbr.rel (0) target = $region13
    $region12: #{vae_forward.33} parent=1 // pred_region
      %s36 = ssub.s32 16, 16
      %37 = vsyncadd [#allocation7], %s36
      %s39 = sshll.u32 [#allocation8], 4
      %s40 = int_to_ptr.vmem [resolvable:$true] %s39
      %42 = dma.hbm_to_vmem [thread:$0]  %s2, 16, %s40, [#allocation7]
    $region13: #{vae_forward.33} parent=1 // pred_fallthru
      _
    // Predicated region
    $region14: #{vae_forward.33} parent=1 // pred_check
      _
    $region15: #{vae_forward.33} parent=1 // pred_check_branch
      %44 = sbr.rel (0) target = $region17
    $region16: #{vae_forward.33} parent=1 // pred_region
      %45 = dma.done [#allocation4], 256
    $region17: #{vae_forward.33} parent=1 // pred_fallthru
      _
    // Predicated region
    $region18: #{vae_forward.33} parent=1 // pred_check
      _
    $region19: #{vae_forward.33} parent=1 // pred_check_branch
      %47 = sbr.rel (0) target = $region21
    $region20: #{vae_forward.33} parent=1 // pred_region
      %48 = dma.done [#allocation7], 4096
    $region21: #{vae_forward.33} parent=1 // pred_fallthru
      _
    // Predicated region
    $region22: #{vae_forward.33} parent=1 // pred_check
      _
    $region23: #{vae_forward.33} parent=1 // pred_check_branch
      %50 = sbr.rel (0) target = $region25
    $region24: #{vae_forward.33} parent=1 // pred_region
      %51 = dma.done [#allocation7], 16
    $region25: #{vae_forward.33} parent=1 // pred_fallthru
      _
    %p53 = scmp.eq.s32.totalorder 0, 0
    // Predicated region
    $region26: #{vae_forward.33} parent=1 // pred_check
      %p54 = pneg %p53
    $region27: #{vae_forward.33} parent=1 // pred_check_branch
      %56 = sbr.rel (%p54) target = $region29
    $region28: #{vae_forward.33} parent=1 // pred_region
      %57 = vst [vmem:[#allocation2] sm:$0xff] 0.0
    $region29: #{vae_forward.33} parent=1 // pred_fallthru
      _
    %v58 = vld [vmem:[#allocation2] sm:$0xff]
    %v59 = vld [vmem:[#allocation3] sm:$0xff]
    %v60 = vld [vmem:[#allocation3 + $0x8] sm:$0xff]
    %v61 = vld [vmem:[#allocation6] sm:$0xf]
    %v62 = vld [vmem:[#allocation6 + $0x4] sm:$0xf]
    %v63 = vld [vmem:[#allocation6 + $0x8] sm:$0xf]
    %v64 = vld [vmem:[#allocation6 + $0xc] sm:$0xf]
    %v65 = vld [vmem:[#allocation6 + $0x10] sm:$0xf]
    %v66 = vld [vmem:[#allocation6 + $0x14] sm:$0xf]
    %v67 = vld [vmem:[#allocation6 + $0x18] sm:$0xf]
    %v68 = vld [vmem:[#allocation6 + $0x1c] sm:$0xf]
    %v69 = vld [vmem:[#allocation6 + $0x20] sm:$0xf]
    %v70 = vld [vmem:[#allocation6 + $0x24] sm:$0xf]
    %v71 = vld [vmem:[#allocation6 + $0x28] sm:$0xf]
    %v72 = vld [vmem:[#allocation6 + $0x2c] sm:$0xf]
    %v73 = vld [vmem:[#allocation6 + $0x30] sm:$0xf]
    %v74 = vld [vmem:[#allocation6 + $0x34] sm:$0xf]
    %v75 = vld [vmem:[#allocation6 + $0x38] sm:$0xf]
    %v76 = vld [vmem:[#allocation6 + $0x3c] sm:$0xf]
    %v77 = vld [vmem:[#allocation6 + $0x40] sm:$0xf]
    %v78 = vld [vmem:[#allocation6 + $0x44] sm:$0xf]
    %v79 = vld [vmem:[#allocation6 + $0x48] sm:$0xf]
    %v80 = vld [vmem:[#allocation6 + $0x4c] sm:$0xf]
    %v81 = vld [vmem:[#allocation6 + $0x50] sm:$0xf]
    %v82 = vld [vmem:[#allocation6 + $0x54] sm:$0xf]
    %v83 = vld [vmem:[#allocation6 + $0x58] sm:$0xf]
    %v84 = vld [vmem:[#allocation6 + $0x5c] sm:$0xf]
    %v85 = vld [vmem:[#allocation6 + $0x60] sm:$0xf]
    %v86 = vld [vmem:[#allocation6 + $0x64] sm:$0xf]
    %v87 = vld [vmem:[#allocation6 + $0x68] sm:$0xf]
    %v88 = vld [vmem:[#allocation6 + $0x6c] sm:$0xf]
    %v89 = vld [vmem:[#allocation6 + $0x70] sm:$0xf]
    %v90 = vld [vmem:[#allocation6 + $0x74] sm:$0xf]
    %v91 = vld [vmem:[#allocation6 + $0x78] sm:$0xf]
    %v92 = vld [vmem:[#allocation6 + $0x7c] sm:$0xf]
    %v93 = vld [vmem:[#allocation6 + $0x80] sm:$0xf]
    %v94 = vld [vmem:[#allocation6 + $0x84] sm:$0xf]
    %v95 = vld [vmem:[#allocation6 + $0x88] sm:$0xf]
    %v96 = vld [vmem:[#allocation6 + $0x8c] sm:$0xf]
    %v97 = vld [vmem:[#allocation6 + $0x90] sm:$0xf]
    %v98 = vld [vmem:[#allocation6 + $0x94] sm:$0xf]
    %v99 = vld [vmem:[#allocation6 + $0x98] sm:$0xf]
    %v100 = vld [vmem:[#allocation6 + $0x9c] sm:$0xf]
    %v101 = vld [vmem:[#allocation6 + $0xa0] sm:$0xf]
    %v102 = vld [vmem:[#allocation6 + $0xa4] sm:$0xf]
    %v103 = vld [vmem:[#allocation6 + $0xa8] sm:$0xf]
    %v104 = vld [vmem:[#allocation6 + $0xac] sm:$0xf]
    %v105 = vld [vmem:[#allocation6 + $0xb0] sm:$0xf]
    %v106 = vld [vmem:[#allocation6 + $0xb4] sm:$0xf]
    %v107 = vld [vmem:[#allocation6 + $0xb8] sm:$0xf]
    %v108 = vld [vmem:[#allocation6 + $0xbc] sm:$0xf]
    %v109 = vld [vmem:[#allocation6 + $0xc0] sm:$0xf]
    %v110 = vld [vmem:[#allocation6 + $0xc4] sm:$0xf]
    %v111 = vld [vmem:[#allocation6 + $0xc8] sm:$0xf]
    %v112 = vld [vmem:[#allocation6 + $0xcc] sm:$0xf]
    %v113 = vld [vmem:[#allocation6 + $0xd0] sm:$0xf]
    %v114 = vld [vmem:[#allocation6 + $0xd4] sm:$0xf]
    %v115 = vld [vmem:[#allocation6 + $0xd8] sm:$0xf]
    %v116 = vld [vmem:[#allocation6 + $0xdc] sm:$0xf]
    %v117 = vld [vmem:[#allocation6 + $0xe0] sm:$0xf]
    %v118 = vld [vmem:[#allocation6 + $0xe4] sm:$0xf]
    %v119 = vld [vmem:[#allocation6 + $0xe8] sm:$0xf]
    %v120 = vld [vmem:[#allocation6 + $0xec] sm:$0xf]
    %v121 = vld [vmem:[#allocation6 + $0xf0] sm:$0xf]
    %v122 = vld [vmem:[#allocation6 + $0xf4] sm:$0xf]
    %v123 = vld [vmem:[#allocation6 + $0xf8] sm:$0xf]
    %v124 = vld [vmem:[#allocation6 + $0xfc] sm:$0xf]
    %v127 = vunpack.c.l.b16 %v59
    %v128 = vunpack.c.h.b16 %v59
    %v129 = vunpack.c.l.b16 %v60
    %v130 = vunpack.c.h.b16 %v60
    %v131 = vpack.c.b16 %v127, %v127
    %v132 = vpack.c.b16 %v128, %v128
    %v133 = vpack.c.b16 %v129, %v129
    %v134 = vpack.c.b16 %v130, %v130
    %v203 = vunpack.c.l.b16 %v61
    %v204 = vunpack.c.l.b16 %v62
    %v205 = vunpack.c.l.b16 %v63
    %v206 = vunpack.c.l.b16 %v64
    %v207 = vunpack.c.l.b16 %v65
    %v208 = vunpack.c.l.b16 %v66
    %v209 = vunpack.c.l.b16 %v67
    %v210 = vunpack.c.l.b16 %v68
    %v211 = vunpack.c.l.b16 %v69
    %v212 = vunpack.c.l.b16 %v70
    %v213 = vunpack.c.l.b16 %v71
    %v214 = vunpack.c.l.b16 %v72
    %v215 = vunpack.c.l.b16 %v73
    %v216 = vunpack.c.l.b16 %v74
    %v217 = vunpack.c.l.b16 %v75
    %v218 = vunpack.c.l.b16 %v76
    %v219 = vunpack.c.l.b16 %v77
    %v220 = vunpack.c.l.b16 %v78
    %v221 = vunpack.c.l.b16 %v79
    %v222 = vunpack.c.l.b16 %v80
    %v223 = vunpack.c.l.b16 %v81
    %v224 = vunpack.c.l.b16 %v82
    %v225 = vunpack.c.l.b16 %v83
    %v226 = vunpack.c.l.b16 %v84
    %v227 = vunpack.c.l.b16 %v85
    %v228 = vunpack.c.l.b16 %v86
    %v229 = vunpack.c.l.b16 %v87
    %v230 = vunpack.c.l.b16 %v88
    %v231 = vunpack.c.l.b16 %v89
    %v232 = vunpack.c.l.b16 %v90
    %v233 = vunpack.c.l.b16 %v91
    %v234 = vunpack.c.l.b16 %v92
    %v235 = vunpack.c.l.b16 %v93
    %v236 = vunpack.c.l.b16 %v94
    %v237 = vunpack.c.l.b16 %v95
    %v238 = vunpack.c.l.b16 %v96
    %v239 = vunpack.c.l.b16 %v97
    %v240 = vunpack.c.l.b16 %v98
    %v241 = vunpack.c.l.b16 %v99
    %v242 = vunpack.c.l.b16 %v100
    %v243 = vunpack.c.l.b16 %v101
    %v244 = vunpack.c.l.b16 %v102
    %v245 = vunpack.c.l.b16 %v103
    %v246 = vunpack.c.l.b16 %v104
    %v247 = vunpack.c.l.b16 %v105
    %v248 = vunpack.c.l.b16 %v106
    %v249 = vunpack.c.l.b16 %v107
    %v250 = vunpack.c.l.b16 %v108
    %v251 = vunpack.c.l.b16 %v109
    %v252 = vunpack.c.l.b16 %v110
    %v253 = vunpack.c.l.b16 %v111
    %v254 = vunpack.c.l.b16 %v112
    %v255 = vunpack.c.l.b16 %v113
    %v256 = vunpack.c.l.b16 %v114
    %v257 = vunpack.c.l.b16 %v115
    %v258 = vunpack.c.l.b16 %v116
    %v259 = vunpack.c.l.b16 %v117
    %v260 = vunpack.c.l.b16 %v118
    %v261 = vunpack.c.l.b16 %v119
    %v262 = vunpack.c.l.b16 %v120
    %v263 = vunpack.c.l.b16 %v121
    %v264 = vunpack.c.l.b16 %v122
    %v265 = vunpack.c.l.b16 %v123
    %v266 = vunpack.c.l.b16 %v124
    %v267 = vpack.c.b16 %v204, %v203
    %v268 = vpack.c.b16 %v206, %v205
    %v269 = vpack.c.b16 %v208, %v207
    %v270 = vpack.c.b16 %v210, %v209
    %v271 = vpack.c.b16 %v212, %v211
    %v272 = vpack.c.b16 %v214, %v213
    %v273 = vpack.c.b16 %v216, %v215
    %v274 = vpack.c.b16 %v218, %v217
    %v275 = vpack.c.b16 %v220, %v219
    %v276 = vpack.c.b16 %v222, %v221
    %v277 = vpack.c.b16 %v224, %v223
    %v278 = vpack.c.b16 %v226, %v225
    %v279 = vpack.c.b16 %v228, %v227
    %v280 = vpack.c.b16 %v230, %v229
    %v281 = vpack.c.b16 %v232, %v231
    %v282 = vpack.c.b16 %v234, %v233
    %v283 = vpack.c.b16 %v236, %v235
    %v284 = vpack.c.b16 %v238, %v237
    %v285 = vpack.c.b16 %v240, %v239
    %v286 = vpack.c.b16 %v242, %v241
    %v287 = vpack.c.b16 %v244, %v243
    %v288 = vpack.c.b16 %v246, %v245
    %v289 = vpack.c.b16 %v248, %v247
    %v290 = vpack.c.b16 %v250, %v249
    %v291 = vpack.c.b16 %v252, %v251
    %v292 = vpack.c.b16 %v254, %v253
    %v293 = vpack.c.b16 %v256, %v255
    %v294 = vpack.c.b16 %v258, %v257
    %v295 = vpack.c.b16 %v260, %v259
    %v296 = vpack.c.b16 %v262, %v261
    %v297 = vpack.c.b16 %v264, %v263
    %v298 = vpack.c.b16 %v266, %v265
    %331 = vmatprep.subr.bf16.mxu0 0
    %332 = vmatpush1.bf16.msra.mxu0 %v267
    %333 = vmatprep.subr.bf16.mxu0 0
    %334 = vmatpush1.bf16.msra.mxu0 %v268
    %335 = vmatprep.subr.bf16.mxu0 0
    %336 = vmatpush1.bf16.msra.mxu0 %v269
    %337 = vmatprep.subr.bf16.mxu0 0
    %338 = vmatpush1.bf16.msra.mxu0 %v270
    %339 = vmatprep.subr.bf16.mxu0 0
    %340 = vmatpush1.bf16.msra.mxu0 %v271
    %341 = vmatprep.subr.bf16.mxu0 0
    %342 = vmatpush1.bf16.msra.mxu0 %v272
    %343 = vmatprep.subr.bf16.mxu0 0
    %344 = vmatpush1.bf16.msra.mxu0 %v273
    %345 = vmatprep.subr.bf16.mxu0 0
    %346 = vmatpush1.bf16.msra.mxu0 %v274
    %347 = vmatprep.subr.bf16.mxu0 0
    %348 = vmatpush1.bf16.msra.mxu0 %v275
    %349 = vmatprep.subr.bf16.mxu0 0
    %350 = vmatpush1.bf16.msra.mxu0 %v276
    %351 = vmatprep.subr.bf16.mxu0 0
    %352 = vmatpush1.bf16.msra.mxu0 %v277
    %353 = vmatprep.subr.bf16.mxu0 0
    %354 = vmatpush1.bf16.msra.mxu0 %v278
    %355 = vmatprep.subr.bf16.mxu0 0
    %356 = vmatpush1.bf16.msra.mxu0 %v279
    %357 = vmatprep.subr.bf16.mxu0 0
    %358 = vmatpush1.bf16.msra.mxu0 %v280
    %359 = vmatprep.subr.bf16.mxu0 0
    %360 = vmatpush1.bf16.msra.mxu0 %v281
    %361 = vmatprep.subr.bf16.mxu0 0
    %362 = vmatpush1.bf16.msra.mxu0 %v282
    %363 = vmatprep.mubr.bf16.mxu0 %v132
    %364 = vmatmul.mubr.bf16.gmra.mrb[0].mxu0 %v131
    %v365 = vpop.f32.mrb[0].mxu0
    %v366 = vadd.f32 0.0, %v365
    %v367 = vpop.f32.mrb[0].mxu0
    %v368 = vpop.f32.mrb[0].mxu0
    %v369 = vpop.f32.mrb[0].mxu0
    %370 = vdwg.mxu0
    %371 = vmatprep.subr.bf16.mxu0 0
    %372 = vmatpush1.bf16.msra.mxu0 %v283
    %373 = vmatprep.subr.bf16.mxu0 0
    %374 = vmatpush1.bf16.msra.mxu0 %v284
    %375 = vmatprep.subr.bf16.mxu0 0
    %376 = vmatpush1.bf16.msra.mxu0 %v285
    %377 = vmatprep.subr.bf16.mxu0 0
    %378 = vmatpush1.bf16.msra.mxu0 %v286
    %379 = vmatprep.subr.bf16.mxu0 0
    %380 = vmatpush1.bf16.msra.mxu0 %v287
    %381 = vmatprep.subr.bf16.mxu0 0
    %382 = vmatpush1.bf16.msra.mxu0 %v288
    %383 = vmatprep.subr.bf16.mxu0 0
    %384 = vmatpush1.bf16.msra.mxu0 %v289
    %385 = vmatprep.subr.bf16.mxu0 0
    %386 = vmatpush1.bf16.msra.mxu0 %v290
    %387 = vmatprep.subr.bf16.mxu0 0
    %388 = vmatpush1.bf16.msra.mxu0 %v291
    %389 = vmatprep.subr.bf16.mxu0 0
    %390 = vmatpush1.bf16.msra.mxu0 %v292
    %391 = vmatprep.subr.bf16.mxu0 0
    %392 = vmatpush1.bf16.msra.mxu0 %v293
    %393 = vmatprep.subr.bf16.mxu0 0
    %394 = vmatpush1.bf16.msra.mxu0 %v294
    %395 = vmatprep.subr.bf16.mxu0 0
    %396 = vmatpush1.bf16.msra.mxu0 %v295
    %397 = vmatprep.subr.bf16.mxu0 0
    %398 = vmatpush1.bf16.msra.mxu0 %v296
    %399 = vmatprep.subr.bf16.mxu0 0
    %400 = vmatpush1.bf16.msra.mxu0 %v297
    %401 = vmatprep.subr.bf16.mxu0 0
    %402 = vmatpush1.bf16.msra.mxu0 %v298
    %403 = vmatprep.mubr.bf16.mxu0 %v134
    %404 = vmatmul.mubr.bf16.gmra.mrb[0].mxu0 %v133
    %v405 = vpop.f32.mrb[0].mxu0
    %v406 = vadd.f32 %v366, %v405
    %v407 = vpop.f32.mrb[0].mxu0
    %v408 = vpop.f32.mrb[0].mxu0
    %v409 = vpop.f32.mrb[0].mxu0
    %410 = vdwg.mxu0
    %v411 = vadd.f32 %v58, %v406
    %412 = vst [vmem:[#allocation2] sm:$0xff] %v411
    // Predicated region
    $region30: #{vae_forward.33} parent=1 // pred_check
      %p413 = pneg %p53
    $region31: #{vae_forward.33} parent=1 // pred_check_branch
      %415 = sbr.rel (%p413) target = $region33
    $region32: #{vae_forward.33} parent=1 // pred_region
      %v416 = vld [vmem:[#allocation2] sm:$0xff]
      %v417 = vld [vmem:[#allocation8] sm:$0x1]
      %v419 = vlaneseq
      %v420 = vshrl.u32 %v419, 7
      %v421 = vsub.s32 0, %v420
      %v422 = vrot.slane %v417, %v421
      %v424 = vadd.f32 %v416, %v422
      %v425 = vmax.f32 %v424, 0.0
      %426 = vst [vmem:[#allocation9] sm:$0xff] %v425
    $region33: #{vae_forward.33} parent=1 // pred_fallthru
      _
    // Predicated region
    $region34: #{vae_forward.33} parent=1 // pred_check
      _
    $region35: #{vae_forward.33} parent=1 // pred_check_branch
      %428 = sbr.rel (0) target = $region37
    $region36: #{vae_forward.33} parent=1 // pred_region
      %s430 = ssub.s32 128, 128
      %431 = vsyncadd [#allocation5], %s430
      %s433 = sshll.u32 [#allocation9], 4
      %s434 = int_to_ptr.vmem [resolvable:$true] %s433
      %436 = dma.vmem_to_hbm [thread:$0]  %s434, 128, %s3, [#allocation5]
    $region37: #{vae_forward.33} parent=1 // pred_fallthru
      _
    // Predicated region
    $region38: #{vae_forward.33} parent=1 // pred_check
      _
    $region39: #{vae_forward.33} parent=1 // pred_check_branch
      %438 = sbr.rel (0) target = $region41
    $region40: #{vae_forward.33} parent=1 // pred_region
      %439 = dma.done [#allocation5], 128
    $region41: #{vae_forward.33} parent=1 // pred_fallthru
      _
    %440 = vsyncpa [#allocation4], 1
    %441 = vsyncpa [#allocation7], 1
    %442 = vsyncpa [#allocation5], 1

// kernel: vae_forward.32
$region0: #{vae_forward.32}
  #allocation0 [shape = 'u32[]', space=smem, size = 0x4, offset = 0x4, fixed_abs, tag = 'smem constant byte address 0x4 - core index']
  #allocation1 [shape = 'u32[144,128]{1,0:T(1,128)}', space=vmem, size = 0x12000, scoped, tag = 'internal scratch']
  #allocation2 [shape = 'f32[8,128]{1,0:T(8,128)}', space=vmem, size = 0x1000, scoped, tag = 'scratch operand']
  %s0 = inlined_call_operand.hbm [shape: bf16[8,256], index: 0, kind: input, shape index: {}]
  %s1 = inlined_call_operand.hbm [shape: bf16[256,128], index: 1, kind: input, shape index: {}]
  %s2 = inlined_call_operand.hbm [shape: f32[1,128], index: 2, kind: input, shape index: {}]
  %s3 = inlined_call_operand.hbm [shape: f32[8,128], index: 3, kind: output, shape index: {}]
  %s4 = sld [smem:[#allocation0]]
  $region42: #{vae_forward.32} parent=0
    _
  %s6 = ssub.s32 1, %s4
  %s7 = scalar_select 0, %s6, %s4
  $region1: #{vae_forward.32} parent=0
    #allocation3 [shape = 'u8[4096]{0}', space=vmem, size = 0x1000, scoped, tag = 'input window, operand 0, single buffered']
    #allocation4 [shape = 's32[1]{0}', space=sflag, size = 0x4, scoped, tag = 'scoped memory for vae_forward.32']
    #allocation5 [shape = 's32[1]{0}', space=sflag, size = 0x4, scoped, tag = 'scoped memory for vae_forward.32']
    #allocation6 [shape = 'u8[65536]{0}', space=vmem, size = 0x10000, scoped, tag = 'input window, operand 1, single buffered']
    #allocation7 [shape = 's32[1]{0}', space=sflag, size = 0x4, scoped, tag = 'scoped memory for vae_forward.32']
    #allocation8 [shape = 'u8[512]{0}', space=vmem, size = 0x400, scoped, tag = 'input window, operand 2, single buffered']
    #allocation9 [shape = 'u8[4096]{0}', space=vmem, size = 0x1000, scoped, tag = 'output window, operand 0, single buffered']
    %8 = vsyncpa [#allocation4], 0
    %9 = vsyncpa [#allocation7], 0
    %10 = vsyncpa [#allocation5], 0
    // Predicated region
    $region2: #{vae_forward.32} parent=1 // pred_check
      _
    $region3: #{vae_forward.32} parent=1 // pred_check_branch
      %12 = sbr.rel (0) target = $region5
    $region4: #{vae_forward.32} parent=1 // pred_region
      %s14 = ssub.s32 128, 128
      %15 = vsyncadd [#allocation4], %s14
      %s17 = sshll.u32 [#allocation3], 4
      %s18 = int_to_ptr.vmem [resolvable:$true] %s17
      %20 = dma.hbm_to_vmem [thread:$0]  %s0, 128, %s18, [#allocation4]
    $region5: #{vae_forward.32} parent=1 // pred_fallthru
      _
    // Predicated region
    $region6: #{vae_forward.32} parent=1 // pred_check
      _
    $region7: #{vae_forward.32} parent=1 // pred_check_branch
      %22 = sbr.rel (0) target = $region9
    $region8: #{vae_forward.32} parent=1 // pred_region
      %s24 = ssub.s32 2048, 2048
      %25 = vsyncadd [#allocation7], %s24
      %s26 = sshll.u32 [#allocation6], 4
      %s27 = int_to_ptr.vmem [resolvable:$true] %s26
      %32 = dma.hbm_to_vmem [thread:$0]  %s1, 2048, %s27, [#allocation7], 64, 64, 4
    $region9: #{vae_forward.32} parent=1 // pred_fallthru
      _
    // Predicated region
    $region10: #{vae_forward.32} parent=1 // pred_check
      _
    $region11: #{vae_forward.32} parent=1 // pred_check_branch
      %34 = sbr.rel (0) target = $region13
    $region12: #{vae_forward.32} parent=1 // pred_region
      %s36 = ssub.s32 16, 16
      %37 = vsyncadd [#allocation7], %s36
      %s39 = sshll.u32 [#allocation8], 4
      %s40 = int_to_ptr.vmem [resolvable:$true] %s39
      %42 = dma.hbm_to_vmem [thread:$0]  %s2, 16, %s40, [#allocation7]
    $region13: #{vae_forward.32} parent=1 // pred_fallthru
      _
    // Predicated region
    $region14: #{vae_forward.32} parent=1 // pred_check
      _
    $region15: #{vae_forward.32} parent=1 // pred_check_branch
      %44 = sbr.rel (0) target = $region17
    $region16: #{vae_forward.32} parent=1 // pred_region
      %45 = dma.done [#allocation4], 128
    $region17: #{vae_forward.32} parent=1 // pred_fallthru
      _
    // Predicated region
    $region18: #{vae_forward.32} parent=1 // pred_check
      _
    $region19: #{vae_forward.32} parent=1 // pred_check_branch
      %47 = sbr.rel (0) target = $region21
    $region20: #{vae_forward.32} parent=1 // pred_region
      %48 = dma.done [#allocation7], 2048
    $region21: #{vae_forward.32} parent=1 // pred_fallthru
      _
    // Predicated region
    $region22: #{vae_forward.32} parent=1 // pred_check
      _
    $region23: #{vae_forward.32} parent=1 // pred_check_branch
      %50 = sbr.rel (0) target = $region25
    $region24: #{vae_forward.32} parent=1 // pred_region
      %51 = dma.done [#allocation7], 16
    $region25: #{vae_forward.32} parent=1 // pred_fallthru
      _
    %p53 = scmp.eq.s32.totalorder 0, 0
    // Predicated region
    $region26: #{vae_forward.32} parent=1 // pred_check
      %p54 = pneg %p53
    $region27: #{vae_forward.32} parent=1 // pred_check_branch
      %56 = sbr.rel (%p54) target = $region29
    $region28: #{vae_forward.32} parent=1 // pred_region
      %57 = vst [vmem:[#allocation2] sm:$0xff] 0.0
    $region29: #{vae_forward.32} parent=1 // pred_fallthru
      _
    %v58 = vld [vmem:[#allocation2] sm:$0xff]
    %v59 = vld [vmem:[#allocation3] sm:$0xff]
    %v60 = vld [vmem:[#allocation6] sm:$0xf]
    %v61 = vld [vmem:[#allocation6 + $0x4] sm:$0xf]
    %v62 = vld [vmem:[#allocation6 + $0x8] sm:$0xf]
    %v63 = vld [vmem:[#allocation6 + $0xc] sm:$0xf]
    %v64 = vld [vmem:[#allocation6 + $0x10] sm:$0xf]
    %v65 = vld [vmem:[#allocation6 + $0x14] sm:$0xf]
    %v66 = vld [vmem:[#allocation6 + $0x18] sm:$0xf]
    %v67 = vld [vmem:[#allocation6 + $0x1c] sm:$0xf]
    %v68 = vld [vmem:[#allocation6 + $0x20] sm:$0xf]
    %v69 = vld [vmem:[#allocation6 + $0x24] sm:$0xf]
    %v70 = vld [vmem:[#allocation6 + $0x28] sm:$0xf]
    %v71 = vld [vmem:[#allocation6 + $0x2c] sm:$0xf]
    %v72 = vld [vmem:[#allocation6 + $0x30] sm:$0xf]
    %v73 = vld [vmem:[#allocation6 + $0x34] sm:$0xf]
    %v74 = vld [vmem:[#allocation6 + $0x38] sm:$0xf]
    %v75 = vld [vmem:[#allocation6 + $0x3c] sm:$0xf]
    %v76 = vld [vmem:[#allocation6 + $0x40] sm:$0xf]
    %v77 = vld [vmem:[#allocation6 + $0x44] sm:$0xf]
    %v78 = vld [vmem:[#allocation6 + $0x48] sm:$0xf]
    %v79 = vld [vmem:[#allocation6 + $0x4c] sm:$0xf]
    %v80 = vld [vmem:[#allocation6 + $0x50] sm:$0xf]
    %v81 = vld [vmem:[#allocation6 + $0x54] sm:$0xf]
    %v82 = vld [vmem:[#allocation6 + $0x58] sm:$0xf]
    %v83 = vld [vmem:[#allocation6 + $0x5c] sm:$0xf]
    %v84 = vld [vmem:[#allocation6 + $0x60] sm:$0xf]
    %v85 = vld [vmem:[#allocation6 + $0x64] sm:$0xf]
    %v86 = vld [vmem:[#allocation6 + $0x68] sm:$0xf]
    %v87 = vld [vmem:[#allocation6 + $0x6c] sm:$0xf]
    %v88 = vld [vmem:[#allocation6 + $0x70] sm:$0xf]
    %v89 = vld [vmem:[#allocation6 + $0x74] sm:$0xf]
    %v90 = vld [vmem:[#allocation6 + $0x78] sm:$0xf]
    %v91 = vld [vmem:[#allocation6 + $0x7c] sm:$0xf]
    %v93 = vunpack.c.l.b16 %v59
    %v94 = vunpack.c.h.b16 %v59
    %v95 = vpack.c.b16 %v93, %v93
    %v96 = vpack.c.b16 %v94, %v94
    %v131 = vunpack.c.l.b16 %v60
    %v132 = vunpack.c.l.b16 %v61
    %v133 = vunpack.c.l.b16 %v62
    %v134 = vunpack.c.l.b16 %v63
    %v135 = vunpack.c.l.b16 %v64
    %v136 = vunpack.c.l.b16 %v65
    %v137 = vunpack.c.l.b16 %v66
    %v138 = vunpack.c.l.b16 %v67
    %v139 = vunpack.c.l.b16 %v68
    %v140 = vunpack.c.l.b16 %v69
    %v141 = vunpack.c.l.b16 %v70
    %v142 = vunpack.c.l.b16 %v71
    %v143 = vunpack.c.l.b16 %v72
    %v144 = vunpack.c.l.b16 %v73
    %v145 = vunpack.c.l.b16 %v74
    %v146 = vunpack.c.l.b16 %v75
    %v147 = vunpack.c.l.b16 %v76
    %v148 = vunpack.c.l.b16 %v77
    %v149 = vunpack.c.l.b16 %v78
    %v150 = vunpack.c.l.b16 %v79
    %v151 = vunpack.c.l.b16 %v80
    %v152 = vunpack.c.l.b16 %v81
    %v153 = vunpack.c.l.b16 %v82
    %v154 = vunpack.c.l.b16 %v83
    %v155 = vunpack.c.l.b16 %v84
    %v156 = vunpack.c.l.b16 %v85
    %v157 = vunpack.c.l.b16 %v86
    %v158 = vunpack.c.l.b16 %v87
    %v159 = vunpack.c.l.b16 %v88
    %v160 = vunpack.c.l.b16 %v89
    %v161 = vunpack.c.l.b16 %v90
    %v162 = vunpack.c.l.b16 %v91
    %v163 = vpack.c.b16 %v132, %v131
    %v164 = vpack.c.b16 %v134, %v133
    %v165 = vpack.c.b16 %v136, %v135
    %v166 = vpack.c.b16 %v138, %v137
    %v167 = vpack.c.b16 %v140, %v139
    %v168 = vpack.c.b16 %v142, %v141
    %v169 = vpack.c.b16 %v144, %v143
    %v170 = vpack.c.b16 %v146, %v145
    %v171 = vpack.c.b16 %v148, %v147
    %v172 = vpack.c.b16 %v150, %v149
    %v173 = vpack.c.b16 %v152, %v151
    %v174 = vpack.c.b16 %v154, %v153
    %v175 = vpack.c.b16 %v156, %v155
    %v176 = vpack.c.b16 %v158, %v157
    %v177 = vpack.c.b16 %v160, %v159
    %v178 = vpack.c.b16 %v162, %v161
    %195 = vmatprep.subr.bf16.mxu0 0
    %196 = vmatpush1.bf16.msra.mxu0 %v163
    %197 = vmatprep.subr.bf16.mxu0 0
    %198 = vmatpush1.bf16.msra.mxu0 %v164
    %199 = vmatprep.subr.bf16.mxu0 0
    %200 = vmatpush1.bf16.msra.mxu0 %v165
    %201 = vmatprep.subr.bf16.mxu0 0
    %202 = vmatpush1.bf16.msra.mxu0 %v166
    %203 = vmatprep.subr.bf16.mxu0 0
    %204 = vmatpush1.bf16.msra.mxu0 %v167
    %205 = vmatprep.subr.bf16.mxu0 0
    %206 = vmatpush1.bf16.msra.mxu0 %v168
    %207 = vmatprep.subr.bf16.mxu0 0
    %208 = vmatpush1.bf16.msra.mxu0 %v169
    %209 = vmatprep.subr.bf16.mxu0 0
    %210 = vmatpush1.bf16.msra.mxu0 %v170
    %211 = vmatprep.subr.bf16.mxu0 0
    %212 = vmatpush1.bf16.msra.mxu0 %v171
    %213 = vmatprep.subr.bf16.mxu0 0
    %214 = vmatpush1.bf16.msra.mxu0 %v172
    %215 = vmatprep.subr.bf16.mxu0 0
    %216 = vmatpush1.bf16.msra.mxu0 %v173
    %217 = vmatprep.subr.bf16.mxu0 0
    %218 = vmatpush1.bf16.msra.mxu0 %v174
    %219 = vmatprep.subr.bf16.mxu0 0
    %220 = vmatpush1.bf16.msra.mxu0 %v175
    %221 = vmatprep.subr.bf16.mxu0 0
    %222 = vmatpush1.bf16.msra.mxu0 %v176
    %223 = vmatprep.subr.bf16.mxu0 0
    %224 = vmatpush1.bf16.msra.mxu0 %v177
    %225 = vmatprep.subr.bf16.mxu0 0
    %226 = vmatpush1.bf16.msra.mxu0 %v178
    %227 = vmatprep.mubr.bf16.mxu0 %v96
    %228 = vmatmul.mubr.bf16.gmra.mrb[0].mxu0 %v95
    %v229 = vpop.f32.mrb[0].mxu0
    %v230 = vadd.f32 0.0, %v229
    %v231 = vpop.f32.mrb[0].mxu0
    %v232 = vpop.f32.mrb[0].mxu0
    %v233 = vpop.f32.mrb[0].mxu0
    %234 = vdwg.mxu0
    %v235 = vadd.f32 %v58, %v230
    %236 = vst [vmem:[#allocation2] sm:$0xff] %v235
    // Predicated region
    $region30: #{vae_forward.32} parent=1 // pred_check
      %p237 = pneg %p53
    $region31: #{vae_forward.32} parent=1 // pred_check_branch
      %239 = sbr.rel (%p237) target = $region33
    $region32: #{vae_forward.32} parent=1 // pred_region
      %v240 = vld [vmem:[#allocation2] sm:$0xff]
      %v241 = vld [vmem:[#allocation8] sm:$0x1]
      %v243 = vlaneseq
      %v244 = vshrl.u32 %v243, 7
      %v245 = vsub.s32 0, %v244
      %v246 = vrot.slane %v241, %v245
      %v248 = vadd.f32 %v240, %v246
      %v249 = vmax.f32 %v248, 0.0
      %250 = vst [vmem:[#allocation9] sm:$0xff] %v249
    $region33: #{vae_forward.32} parent=1 // pred_fallthru
      _
    // Predicated region
    $region34: #{vae_forward.32} parent=1 // pred_check
      _
    $region35: #{vae_forward.32} parent=1 // pred_check_branch
      %252 = sbr.rel (0) target = $region37
    $region36: #{vae_forward.32} parent=1 // pred_region
      %s254 = ssub.s32 128, 128
      %255 = vsyncadd [#allocation5], %s254
      %s257 = sshll.u32 [#allocation9], 4
      %s258 = int_to_ptr.vmem [resolvable:$true] %s257
      %260 = dma.vmem_to_hbm [thread:$0]  %s258, 128, %s3, [#allocation5]
    $region37: #{vae_forward.32} parent=1 // pred_fallthru
      _
    // Predicated region
    $region38: #{vae_forward.32} parent=1 // pred_check
      _
    $region39: #{vae_forward.32} parent=1 // pred_check_branch
      %262 = sbr.rel (0) target = $region41
    $region40: #{vae_forward.32} parent=1 // pred_region
      %263 = dma.done [#allocation5], 128
    $region41: #{vae_forward.32} parent=1 // pred_fallthru
      _
    %264 = vsyncpa [#allocation4], 1
    %265 = vsyncpa [#allocation7], 1
    %266 = vsyncpa [#allocation5], 1

// kernel: vae_forward.30
$region0: #{vae_forward.30}
  #allocation0 [shape = 'u32[]', space=smem, size = 0x4, offset = 0x4, fixed_abs, tag = 'smem constant byte address 0x4 - core index']
  #allocation1 [shape = 'u32[144,128]{1,0:T(1,128)}', space=vmem, size = 0x12000, scoped, tag = 'internal scratch']
  #allocation2 [shape = 'f32[8,128]{1,0:T(8,128)}', space=vmem, size = 0x1000, scoped, tag = 'scratch operand']
  %s0 = inlined_call_operand.hbm [shape: bf16[8,128], index: 0, kind: input, shape index: {}]
  %s1 = inlined_call_operand.hbm [shape: bf16[128,128], index: 1, kind: input, shape index: {}]
  %s2 = inlined_call_operand.hbm [shape: f32[1,128], index: 2, kind: input, shape index: {}]
  %s3 = inlined_call_operand.hbm [shape: f32[8,128], index: 3, kind: output, shape index: {}]
  %s4 = sld [smem:[#allocation0]]
  $region42: #{vae_forward.30} parent=0
    _
  %s6 = ssub.s32 1, %s4
  %s7 = scalar_select 0, %s6, %s4
  $region1: #{vae_forward.30} parent=0
    #allocation3 [shape = 'u8[2048]{0}', space=vmem, size = 0x800, scoped, tag = 'input window, operand 0, single buffered']
    #allocation4 [shape = 's32[1]{0}', space=sflag, size = 0x4, scoped, tag = 'scoped memory for vae_forward.30']
    #allocation5 [shape = 's32[1]{0}', space=sflag, size = 0x4, scoped, tag = 'scoped memory for vae_forward.30']
    #allocation6 [shape = 'u8[32768]{0}', space=vmem, size = 0x8000, scoped, tag = 'input window, operand 1, single buffered']
    #allocation7 [shape = 's32[1]{0}', space=sflag, size = 0x4, scoped, tag = 'scoped memory for vae_forward.30']
    #allocation8 [shape = 'u8[512]{0}', space=vmem, size = 0x400, scoped, tag = 'input window, operand 2, single buffered']
    #allocation9 [shape = 'u8[4096]{0}', space=vmem, size = 0x1000, scoped, tag = 'output window, operand 0, single buffered']
    %8 = vsyncpa [#allocation4], 0
    %9 = vsyncpa [#allocation7], 0
    %10 = vsyncpa [#allocation5], 0
    // Predicated region
    $region2: #{vae_forward.30} parent=1 // pred_check
      _
    $region3: #{vae_forward.30} parent=1 // pred_check_branch
      %12 = sbr.rel (0) target = $region5
    $region4: #{vae_forward.30} parent=1 // pred_region
      %s14 = ssub.s32 64, 64
      %15 = vsyncadd [#allocation4], %s14
      %s17 = sshll.u32 [#allocation3], 4
      %s18 = int_to_ptr.vmem [resolvable:$true] %s17
      %20 = dma.hbm_to_vmem [thread:$0]  %s0, 64, %s18, [#allocation4]
    $region5: #{vae_forward.30} parent=1 // pred_fallthru
      _
    // Predicated region
    $region6: #{vae_forward.30} parent=1 // pred_check
      _
    $region7: #{vae_forward.30} parent=1 // pred_check_branch
      %22 = sbr.rel (0) target = $region9
    $region8: #{vae_forward.30} parent=1 // pred_region
      %s24 = ssub.s32 1024, 1024
      %25 = vsyncadd [#allocation7], %s24
      %s26 = sshll.u32 [#allocation6], 4
      %s27 = int_to_ptr.vmem [resolvable:$true] %s26
      %32 = dma.hbm_to_vmem [thread:$0]  %s1, 1024, %s27, [#allocation7], 64, 64, 4
    $region9: #{vae_forward.30} parent=1 // pred_fallthru
      _
    // Predicated region
    $region10: #{vae_forward.30} parent=1 // pred_check
      _
    $region11: #{vae_forward.30} parent=1 // pred_check_branch
      %34 = sbr.rel (0) target = $region13
    $region12: #{vae_forward.30} parent=1 // pred_region
      %s36 = ssub.s32 16, 16
      %37 = vsyncadd [#allocation7], %s36
      %s39 = sshll.u32 [#allocation8], 4
      %s40 = int_to_ptr.vmem [resolvable:$true] %s39
      %42 = dma.hbm_to_vmem [thread:$0]  %s2, 16, %s40, [#allocation7]
    $region13: #{vae_forward.30} parent=1 // pred_fallthru
      _
    // Predicated region
    $region14: #{vae_forward.30} parent=1 // pred_check
      _
    $region15: #{vae_forward.30} parent=1 // pred_check_branch
      %44 = sbr.rel (0) target = $region17
    $region16: #{vae_forward.30} parent=1 // pred_region
      %45 = dma.done [#allocation4], 64
    $region17: #{vae_forward.30} parent=1 // pred_fallthru
      _
    // Predicated region
    $region18: #{vae_forward.30} parent=1 // pred_check
      _
    $region19: #{vae_forward.30} parent=1 // pred_check_branch
      %47 = sbr.rel (0) target = $region21
    $region20: #{vae_forward.30} parent=1 // pred_region
      %48 = dma.done [#allocation7], 1024
    $region21: #{vae_forward.30} parent=1 // pred_fallthru
      _
    // Predicated region
    $region22: #{vae_forward.30} parent=1 // pred_check
      _
    $region23: #{vae_forward.30} parent=1 // pred_check_branch
      %50 = sbr.rel (0) target = $region25
    $region24: #{vae_forward.30} parent=1 // pred_region
      %51 = dma.done [#allocation7], 16
    $region25: #{vae_forward.30} parent=1 // pred_fallthru
      _
    %p53 = scmp.eq.s32.totalorder 0, 0
    // Predicated region
    $region26: #{vae_forward.30} parent=1 // pred_check
      %p54 = pneg %p53
    $region27: #{vae_forward.30} parent=1 // pred_check_branch
      %56 = sbr.rel (%p54) target = $region29
    $region28: #{vae_forward.30} parent=1 // pred_region
      %57 = vst [vmem:[#allocation2] sm:$0xff] 0.0
    $region29: #{vae_forward.30} parent=1 // pred_fallthru
      _
    %v58 = vld [vmem:[#allocation2] sm:$0xff]
    %v59 = vld [vmem:[#allocation3] sm:$0xf]
    %v60 = vld [vmem:[#allocation6] sm:$0xf]
    %v61 = vld [vmem:[#allocation6 + $0x4] sm:$0xf]
    %v62 = vld [vmem:[#allocation6 + $0x8] sm:$0xf]
    %v63 = vld [vmem:[#allocation6 + $0xc] sm:$0xf]
    %v64 = vld [vmem:[#allocation6 + $0x10] sm:$0xf]
    %v65 = vld [vmem:[#allocation6 + $0x14] sm:$0xf]
    %v66 = vld [vmem:[#allocation6 + $0x18] sm:$0xf]
    %v67 = vld [vmem:[#allocation6 + $0x1c] sm:$0xf]
    %v68 = vld [vmem:[#allocation6 + $0x20] sm:$0xf]
    %v69 = vld [vmem:[#allocation6 + $0x24] sm:$0xf]
    %v70 = vld [vmem:[#allocation6 + $0x28] sm:$0xf]
    %v71 = vld [vmem:[#allocation6 + $0x2c] sm:$0xf]
    %v72 = vld [vmem:[#allocation6 + $0x30] sm:$0xf]
    %v73 = vld [vmem:[#allocation6 + $0x34] sm:$0xf]
    %v74 = vld [vmem:[#allocation6 + $0x38] sm:$0xf]
    %v75 = vld [vmem:[#allocation6 + $0x3c] sm:$0xf]
    %v92 = vunpack.c.l.b16 %v60
    %v93 = vunpack.c.l.b16 %v61
    %v94 = vunpack.c.l.b16 %v62
    %v95 = vunpack.c.l.b16 %v63
    %v96 = vunpack.c.l.b16 %v64
    %v97 = vunpack.c.l.b16 %v65
    %v98 = vunpack.c.l.b16 %v66
    %v99 = vunpack.c.l.b16 %v67
    %v100 = vunpack.c.l.b16 %v68
    %v101 = vunpack.c.l.b16 %v69
    %v102 = vunpack.c.l.b16 %v70
    %v103 = vunpack.c.l.b16 %v71
    %v104 = vunpack.c.l.b16 %v72
    %v105 = vunpack.c.l.b16 %v73
    %v106 = vunpack.c.l.b16 %v74
    %v107 = vunpack.c.l.b16 %v75
    %v108 = vpack.c.b16 %v93, %v92
    %v109 = vpack.c.b16 %v95, %v94
    %v110 = vpack.c.b16 %v97, %v96
    %v111 = vpack.c.b16 %v99, %v98
    %v112 = vpack.c.b16 %v101, %v100
    %v113 = vpack.c.b16 %v103, %v102
    %v114 = vpack.c.b16 %v105, %v104
    %v115 = vpack.c.b16 %v107, %v106
    %124 = vmatprep.subr.bf16.mxu0 0
    %125 = vmatpush1.bf16.msra.mxu0 %v108
    %126 = vmatprep.subr.bf16.mxu0 0
    %127 = vmatpush1.bf16.msra.mxu0 %v109
    %128 = vmatprep.subr.bf16.mxu0 0
    %129 = vmatpush1.bf16.msra.mxu0 %v110
    %130 = vmatprep.subr.bf16.mxu0 0
    %131 = vmatpush1.bf16.msra.mxu0 %v111
    %132 = vmatprep.subr.bf16.mxu0 0
    %133 = vmatpush1.bf16.msra.mxu0 %v112
    %134 = vmatprep.subr.bf16.mxu0 0
    %135 = vmatpush1.bf16.msra.mxu0 %v113
    %136 = vmatprep.subr.bf16.mxu0 0
    %137 = vmatpush1.bf16.msra.mxu0 %v114
    %138 = vmatprep.subr.bf16.mxu0 0
    %139 = vmatpush1.bf16.msra.mxu0 %v115
    %140 = vmatprep.subr.bf16.mxu0 0
    %141 = vmatpush1.bf16.msra.mxu0 0
    %142 = vmatprep.subr.bf16.mxu0 0
    %143 = vmatpush1.bf16.msra.mxu0 0
    %144 = vmatprep.subr.bf16.mxu0 0
    %145 = vmatpush1.bf16.msra.mxu0 0
    %146 = vmatprep.subr.bf16.mxu0 0
    %147 = vmatpush1.bf16.msra.mxu0 0
    %148 = vmatprep.subr.bf16.mxu0 0
    %149 = vmatpush1.bf16.msra.mxu0 0
    %150 = vmatprep.subr.bf16.mxu0 0
    %151 = vmatpush1.bf16.msra.mxu0 0
    %152 = vmatprep.subr.bf16.mxu0 0
    %153 = vmatpush1.bf16.msra.mxu0 0
    %154 = vmatprep.subr.bf16.mxu0 0
    %155 = vmatpush1.bf16.msra.mxu0 0
    %156 = vmatprep.mubr.bf16.mxu0 0
    %157 = vmatmul.mubr.bf16.gmra.mrb[0].mxu0 %v59
    %v158 = vpop.f32.mrb[0].mxu0
    %v159 = vadd.f32 0.0, %v158
    %v160 = vpop.f32.mrb[0].mxu0
    %v161 = vpop.f32.mrb[0].mxu0
    %v162 = vpop.f32.mrb[0].mxu0
    %163 = vdwg.mxu0
    %v164 = vadd.f32 %v58, %v159
    %165 = vst [vmem:[#allocation2] sm:$0xff] %v164
    // Predicated region
    $region30: #{vae_forward.30} parent=1 // pred_check
      %p166 = pneg %p53
    $region31: #{vae_forward.30} parent=1 // pred_check_branch
      %168 = sbr.rel (%p166) target = $region33
    $region32: #{vae_forward.30} parent=1 // pred_region
      %v169 = vld [vmem:[#allocation2] sm:$0xff]
      %v170 = vld [vmem:[#allocation8] sm:$0x1]
      %v172 = vlaneseq
      %v173 = vshrl.u32 %v172, 7
      %v174 = vsub.s32 0, %v173
      %v175 = vrot.slane %v170, %v174
      %v177 = vadd.f32 %v169, %v175
      %v178 = vmax.f32 %v177, 0.0
      %179 = vst [vmem:[#allocation9] sm:$0xff] %v178
    $region33: #{vae_forward.30} parent=1 // pred_fallthru
      _
    // Predicated region
    $region34: #{vae_forward.30} parent=1 // pred_check
      _
    $region35: #{vae_forward.30} parent=1 // pred_check_branch
      %181 = sbr.rel (0) target = $region37
    $region36: #{vae_forward.30} parent=1 // pred_region
      %s183 = ssub.s32 128, 128
      %184 = vsyncadd [#allocation5], %s183
      %s186 = sshll.u32 [#allocation9], 4
      %s187 = int_to_ptr.vmem [resolvable:$true] %s186
      %189 = dma.vmem_to_hbm [thread:$0]  %s187, 128, %s3, [#allocation5]
    $region37: #{vae_forward.30} parent=1 // pred_fallthru
      _
    // Predicated region
    $region38: #{vae_forward.30} parent=1 // pred_check
      _
    $region39: #{vae_forward.30} parent=1 // pred_check_branch
      %191 = sbr.rel (0) target = $region41
    $region40: #{vae_forward.30} parent=1 // pred_region
      %192 = dma.done [#allocation5], 128
    $region41: #{vae_forward.30} parent=1 // pred_fallthru
      _
    %193 = vsyncpa [#allocation4], 1
    %194 = vsyncpa [#allocation7], 1
    %195 = vsyncpa [#allocation5], 1

// kernel: vae_forward.34
$region0: #{vae_forward.34}
  #allocation0 [shape = 'u32[]', space=smem, size = 0x4, offset = 0x4, fixed_abs, tag = 'smem constant byte address 0x4 - core index']
  #allocation1 [shape = 'u32[144,128]{1,0:T(1,128)}', space=vmem, size = 0x12000, scoped, tag = 'internal scratch']
  #allocation2 [shape = 'f32[32,128]{1,0:T(8,128)}', space=vmem, size = 0x4000, scoped, tag = 'scratch operand']
  %s0 = inlined_call_operand.hbm [shape: bf16[32,1152], index: 0, kind: input, shape index: {}]
  %s1 = inlined_call_operand.hbm [shape: bf16[1152,128], index: 1, kind: input, shape index: {}]
  %s2 = inlined_call_operand.hbm [shape: f32[1,128], index: 2, kind: input, shape index: {}]
  %s3 = inlined_call_operand.hbm [shape: f32[32,128], index: 3, kind: output, shape index: {}]
  %s4 = sld [smem:[#allocation0]]
  $region65: #{vae_forward.34} parent=0
    _
  %s6 = ssub.s32 1, %s4
  %s7 = scalar_select 0, %s6, %s4
  $region1: #{vae_forward.34} parent=0
    #allocation3 [shape = 'u8[49152]{0}', space=vmem, size = 0xc000, scoped, tag = 'input window, operand 0']
    #allocation4 [shape = 's32[2]{0}', space=sflag, size = 0x8, scoped, tag = 'scoped memory for vae_forward.34']
    #allocation5 [shape = 's32[2]{0}', space=sflag, size = 0x8, scoped, tag = 'scoped memory for vae_forward.34']
    #allocation6 [shape = 'u8[196608]{0}', space=vmem, size = 0x30000, scoped, tag = 'input window, operand 1']
    #allocation7 [shape = 's32[2]{0}', space=sflag, size = 0x8, scoped, tag = 'scoped memory for vae_forward.34']
    #allocation8 [shape = 'u8[512]{0}', space=vmem, size = 0x400, scoped, tag = 'input window, operand 2, single buffered']
    #allocation9 [shape = 'u8[16384]{0}', space=vmem, size = 0x4000, scoped, tag = 'output window, operand 0, single buffered']
    %8 = vsyncpa [#allocation4], 0
    %s9 = scalar_lea.sflag [#allocation4], 1
    %10 = vsyncpa %s9, 0
    %11 = vsyncpa [#allocation7], 0
    %s12 = scalar_lea.sflag [#allocation7], 1
    %13 = vsyncpa %s12, 0
    %14 = vsyncpa [#allocation5], 0
    loop: start=0, step=1, limit=5
    $region2: #{vae_forward.34} parent=1 // loop_pre_header
      _
    $region3: #{vae_forward.34} parent=1 // loop_header
      %s16 = sphi 0, %s20
      %p17 = scmp.ge.s32.totalorder %s16, 5
      %s23 = sphi 0, %s42
      %s24 = sphi 0, %s38
      %s25 = sphi 0, %s34
      %s26 = sphi 0, %s23
      %s27 = sphi 0, %s24
      %s28 = sphi 0, %s25
      %s29 = sphi 0, %s26
      %s30 = sphi 0, %s27
      %s31 = sphi 0, %s28
      %s47 = sphi 0, %s49
      %s50 = sphi 0, %s47
      %s51 = sphi 0, %s50
      %s67 = sphi 0, %s51
      %s75 = sphi 0, %s77
      %s78 = sphi 0, %s75
      %s79 = sphi 0, %s78
      %s95 = sphi 0, %s79
      %s101 = sphi 0, %s103
      %s104 = sphi 0, %s101
      %s105 = sphi 0, %s104
      %s121 = sphi 0, %s105
      %s129 = sphi 0, %s131
      %s132 = sphi 0, %s129
      %s133 = sphi 0, %s132
      %s149 = sphi 0, %s133
    $region4: #{vae_forward.34} parent=1 // loop_header_branch
      %19 = sbr.rel (%p17) target = $region8
    $region5: #{vae_forward.34} parent=1 // loop_body
      %s21 = ssub.s32 %s16, 1
      %s22 = ssub.s32 %s16, 2
      %s32 = sadd.s32 1, %s25
      %p33 = scmp.ge.s32.totalorder %s32, 3
      %s34 = scalar_select %p33, 0, %s32
      %s35 = sadd.s32 1, %s24
      %s36 = scalar_select %p33, %s35, %s24
      %p37 = scmp.ge.s32.totalorder %s36, 1
      %s38 = scalar_select %p37, 0, %s36
      %s39 = sadd.s32 1, %s23
      %s40 = scalar_select %p37, %s39, %s23
      %p41 = scmp.ge.s32.totalorder %s40, 1
      %s42 = scalar_select %p41, 0, %s40
      %s43 = ssub.s32 %s23, %s42
      %s44 = ssub.s32 %s25, %s34
      %s45 = sor.u32 %s43, %s44
      %p46 = scmp.eq.s32.totalorder %s45, 0
      %s48 = sadd.s32 %s47, 1
      %s49 = scalar_select %p46, %s47, %s48
      %p52 = pneg %p46
      %p53 = scmp.eq.s32.totalorder %s16, 2
      %p54 = por %p52, %p53
      %p55 = scmp.ne.s32.totalorder %s47, %s50
      %p56 = scmp.eq.s32.totalorder %s16, 0
      %p57 = por %p55, %p56
      %p58 = scmp.ne.s32.totalorder %s47, %s50
      %p59 = scmp.eq.s32.totalorder %s21, 2
      %p60 = por %p58, %p59
      %p61 = scmp.ne.s32.totalorder %s50, %s51
      %p62 = scmp.eq.s32.totalorder %s21, 0
      %p63 = por %p61, %p62
      %p64 = scmp.ne.s32.totalorder %s50, %s51
      %p65 = scmp.eq.s32.totalorder %s22, 2
      %p66 = por %p64, %p65
      %p68 = scmp.ne.s32.totalorder %s51, %s67
      %p69 = scmp.eq.s32.totalorder %s22, 0
      %p70 = por %p68, %p69
      %s71 = ssub.s32 %s25, %s34
      %s72 = ssub.s32 %s24, %s38
      %s73 = sor.u32 %s71, %s72
      %p74 = scmp.eq.s32.totalorder %s73, 0
      %s76 = sadd.s32 %s75, 1
      %s77 = scalar_select %p74, %s75, %s76
      %p80 = pneg %p74
      %p81 = scmp.eq.s32.totalorder %s16, 2
      %p82 = por %p80, %p81
      %p83 = scmp.ne.s32.totalorder %s75, %s78
      %p84 = scmp.eq.s32.totalorder %s16, 0
      %p85 = por %p83, %p84
      %p86 = scmp.ne.s32.totalorder %s75, %s78
      %p87 = scmp.eq.s32.totalorder %s21, 2
      %p88 = por %p86, %p87
      %p89 = scmp.ne.s32.totalorder %s78, %s79
      %p90 = scmp.eq.s32.totalorder %s21, 0
      %p91 = por %p89, %p90
      %p92 = scmp.ne.s32.totalorder %s78, %s79
      %p93 = scmp.eq.s32.totalorder %s22, 2
      %p94 = por %p92, %p93
      %p96 = scmp.ne.s32.totalorder %s79, %s95
      %p97 = scmp.eq.s32.totalorder %s22, 0
      %p98 = por %p96, %p97
      %s99 = ssub.s32 %s24, %s38
      %p100 = scmp.eq.s32.totalorder %s99, 0
      %s102 = sadd.s32 %s101, 1
      %s103 = scalar_select %p100, %s101, %s102
      %p106 = pneg %p100
      %p107 = scmp.eq.s32.totalorder %s16, 2
      %p108 = por %p106, %p107
      %p109 = scmp.ne.s32.totalorder %s101, %s104
      %p110 = scmp.eq.s32.totalorder %s16, 0
      %p111 = por %p109, %p110
      %p112 = scmp.ne.s32.totalorder %s101, %s104
      %p113 = scmp.eq.s32.totalorder %s21, 2
      %p114 = por %p112, %p113
      %p115 = scmp.ne.s32.totalorder %s104, %s105
      %p116 = scmp.eq.s32.totalorder %s21, 0
      %p117 = por %p115, %p116
      %p118 = scmp.ne.s32.totalorder %s104, %s105
      %p119 = scmp.eq.s32.totalorder %s22, 2
      %p120 = por %p118, %p119
      %p122 = scmp.ne.s32.totalorder %s105, %s121
      %p123 = scmp.eq.s32.totalorder %s22, 0
      %p124 = por %p122, %p123
      %s125 = ssub.s32 %s23, %s42
      %s126 = ssub.s32 %s24, %s38
      %s127 = sor.u32 %s125, %s126
      %p128 = scmp.eq.s32.totalorder %s127, 0
      %s130 = sadd.s32 %s129, 1
      %s131 = scalar_select %p128, %s129, %s130
      %p134 = pneg %p128
      %p135 = scmp.eq.s32.totalorder %s16, 2
      %p136 = por %p134, %p135
      %p137 = scmp.ne.s32.totalorder %s129, %s132
      %p138 = scmp.eq.s32.totalorder %s16, 0
      %p139 = por %p137, %p138
      %p140 = scmp.ne.s32.totalorder %s129, %s132
      %p141 = scmp.eq.s32.totalorder %s21, 2
      %p142 = por %p140, %p141
      %p143 = scmp.ne.s32.totalorder %s132, %s133
      %p144 = scmp.eq.s32.totalorder %s21, 0
      %p145 = por %p143, %p144
      %p146 = scmp.ne.s32.totalorder %s132, %s133
      %p147 = scmp.eq.s32.totalorder %s22, 2
      %p148 = por %p146, %p147
      %p150 = scmp.ne.s32.totalorder %s133, %s149
      %p151 = scmp.eq.s32.totalorder %s22, 0
      %p152 = por %p150, %p151
      %p153 = scmp.le.s32.totalorder 1, %s16
      %p154 = scmp.lt.s32.totalorder %s16, 4
      %p155 = pnand %p153, %p154
      %p156 = pneg %p155
      // Predicated region
      $region9: #{vae_forward.34} parent=5 // pred_check
        _
      $region10: #{vae_forward.34} parent=5 // pred_check_branch
        %158 = sbr.rel (%p155) target = $region12
      $region11: #{vae_forward.34} parent=5 // pred_region
        %s159 = ssub.s32 %s16, 1
        // Predicated region
        $region13: #{vae_forward.34} parent=11 // pred_check
          %p160 = pneg %p117
        $region14: #{vae_forward.34} parent=11 // pred_check_branch
          %162 = sbr.rel (%p160) target = $region16
        $region15: #{vae_forward.34} parent=11 // pred_region
          %s164 = ssub.s32 16, 16
          %165 = vsyncadd [#allocation7], %s164
          %s166 = smul.addr %s27, 16
          %s167 = scalar_lea.hbm %s2, %s166
          %s169 = sshll.u32 [#allocation8], 4
          %s170 = int_to_ptr.vmem [resolvable:$true] %s169
          %172 = dma.hbm_to_vmem [thread:$0]  %s167, 16, %s170, [#allocation7]
        $region16: #{vae_forward.34} parent=11 // pred_fallthru
          _
      $region12: #{vae_forward.34} parent=5 // pred_fallthru
        _
      %p173 = scmp.lt.s32.totalorder %s16, 3
      // Predicated region
      $region17: #{vae_forward.34} parent=5 // pred_check
        %p174 = pneg %p173
      $region18: #{vae_forward.34} parent=5 // pred_check_branch
        %176 = sbr.rel (%p174) target = $region20
      $region19: #{vae_forward.34} parent=5 // pred_region
        // Predicated region
        $region21: #{vae_forward.34} parent=19 // pred_check
          %p177 = pneg %p57
        $region22: #{vae_forward.34} parent=19 // pred_check_branch
          %179 = sbr.rel (%p177) target = $region24
        $region23: #{vae_forward.34} parent=19 // pred_region
          %s180 = sand.u32 %s47, 1
          %s181 = scalar_lea.sflag [#allocation4], %s180
          %s182 = sand.u32 %s47, 1
          %s183 = smul.addr %s182, 48
          %s184 = scalar_lea.vmem [#allocation3], %s183
          %s185 = smul.u32 4, %s23
          %s186 = smul.u32 3, %s25
          %s188 = ssub.s32 768, 768
          %189 = vsyncadd %s181, %s188
          %s190 = smul.addr %s185, 9
          %s191 = sadd.s32 %s186, %s190
          %s192 = smul.addr %s191, 64
          %s193 = scalar_lea.hbm %s0, %s192
          %s194 = sshll.u32 %s184, 4
          %s195 = int_to_ptr.vmem [resolvable:$true] %s194
          %200 = dma.hbm_to_vmem [thread:$0]  %s193, 768, %s195, %s181, 576, 192, 12
        $region24: #{vae_forward.34} parent=19 // pred_fallthru
          _
        // Predicated region
        $region25: #{vae_forward.34} parent=19 // pred_check
          %p201 = pneg %p85
        $region26: #{vae_forward.34} parent=19 // pred_check_branch
          %203 = sbr.rel (%p201) target = $region28
        $region27: #{vae_forward.34} parent=19 // pred_region
          %s204 = sand.u32 %s16, 1
          %s205 = scalar_lea.sflag [#allocation7], %s204
          %s206 = sand.u32 %s75, 1
          %s207 = smul.addr %s206, 192
          %s208 = scalar_lea.vmem [#allocation6], %s207
          %s209 = smul.u32 48, %s25
          %s211 = ssub.s32 3072, 3072
          %212 = vsyncadd %s205, %s211
          %s213 = sadd.s32 %s24, %s209
          %s214 = smul.addr %s213, 64
          %s215 = scalar_lea.hbm %s1, %s214
          %s216 = sshll.u32 %s208, 4
          %s217 = int_to_ptr.vmem [resolvable:$true] %s216
          %222 = dma.hbm_to_vmem [thread:$0]  %s215, 3072, %s217, %s205, 64, 64, 4
        $region28: #{vae_forward.34} parent=19 // pred_fallthru
          _
      $region20: #{vae_forward.34} parent=5 // pred_fallthru
        _
      %p223 = scmp.le.s32.totalorder 1, %s16
      %p224 = scmp.lt.s32.totalorder %s16, 4
      %p225 = pnand %p223, %p224
      %p226 = pneg %p225
      // Predicated region
      $region29: #{vae_forward.34} parent=5 // pred_check
        _
      $region30: #{vae_forward.34} parent=5 // pred_check_branch
        %228 = sbr.rel (%p225) target = $region32
      $region31: #{vae_forward.34} parent=5 // pred_region
        %s229 = ssub.s32 %s16, 1
        %s230 = sand.u32 %s50, 1
        %s231 = scalar_lea.sflag [#allocation4], %s230
        %s232 = sand.u32 %s50, 1
        %s233 = smul.addr %s232, 48
        %s234 = scalar_lea.vmem [#allocation3], %s233
        // Predicated region
        $region33: #{vae_forward.34} parent=31 // pred_check
          %p235 = pneg %p63
        $region34: #{vae_forward.34} parent=31 // pred_check_branch
          %237 = sbr.rel (%p235) target = $region36
        $region35: #{vae_forward.34} parent=31 // pred_region
          %238 = dma.done %s231, 768
        $region36: #{vae_forward.34} parent=31 // pred_fallthru
          _
        %s239 = sand.u32 %s21, 1
        %s240 = scalar_lea.sflag [#allocation7], %s239
        %s241 = sand.u32 %s78, 1
        %s242 = smul.addr %s241, 192
        %s243 = scalar_lea.vmem [#allocation6], %s242
        // Predicated region
        $region37: #{vae_forward.34} parent=31 // pred_check
          %p244 = pneg %p91
        $region38: #{vae_forward.34} parent=31 // pred_check_branch
          %246 = sbr.rel (%p244) target = $region40
        $region39: #{vae_forward.34} parent=31 // pred_region
          %247 = dma.done %s240, 3072
        $region40: #{vae_forward.34} parent=31 // pred_fallthru
          _
        // Predicated region
        $region41: #{vae_forward.34} parent=31 // pred_check
          %p248 = pneg %p117
        $region42: #{vae_forward.34} parent=31 // pred_check_branch
          %250 = sbr.rel (%p248) target = $region44
        $region43: #{vae_forward.34} parent=31 // pred_region
          %251 = dma.done [#allocation7], 16
        $region44: #{vae_forward.34} parent=31 // pred_fallthru
          _
        %s252 = sand.u32 %s50, 1
        %s253 = scalar_lea.sflag [#allocation4], %s252
        %s254 = sand.u32 %s50, 1
        %s255 = smul.addr %s254, 48
        %s256 = scalar_lea.vmem [#allocation3], %s255
        %p257 = pneg %p63
        %p258 = pneg %p60
        %s259 = sand.u32 %s21, 1
        %s260 = scalar_lea.sflag [#allocation7], %s259
        %s261 = sand.u32 %s78, 1
        %s262 = smul.addr %s261, 192
        %s263 = scalar_lea.vmem [#allocation6], %s262
        %p264 = pneg %p91
        %p265 = pneg %p88
        %p266 = pneg %p117
        %p267 = pneg %p114
        %p268 = pneg %p145
        %p269 = pneg %p142
        %s270 = smul.u32 4, %s26
        %s271 = smul.u32 3, %s28
        %s272 = smul.u32 48, %s28
        %s273 = smul.u32 4, %s26
        %p275 = scmp.eq.s32.totalorder %s28, 0
        // Predicated region
        $region45: #{vae_forward.34} parent=31 // pred_check
          %p276 = pneg %p275
        $region46: #{vae_forward.34} parent=31 // pred_check_branch
          %278 = sbr.rel (%p276) target = $region48
        $region47: #{vae_forward.34} parent=31 // pred_region
          %279 = vst [vmem:[#allocation2] sm:$0xff] 0.0
          %280 = vst [vmem:[#allocation2 + $0x8] sm:$0xff] 0.0
          %281 = vst [vmem:[#allocation2 + $0x10] sm:$0xff] 0.0
          %282 = vst [vmem:[#allocation2 + $0x18] sm:$0xff] 0.0
        $region48: #{vae_forward.34} parent=31 // pred_fallthru
          _
        %v283 = vld [vmem:[#allocation2] sm:$0xff]
        %v284 = vld [vmem:[#allocation2 + $0x8] sm:$0xff]
        %v285 = vld [vmem:[#allocation2 + $0x10] sm:$0xff]
        %v286 = vld [vmem:[#allocation2 + $0x18] sm:$0xff]
        %v287 = vld [vmem:[%s234] sm:$0xff]
        %v288 = vld [vmem:[%s234 + $0x8] sm:$0xf]
        %v289 = vld [vmem:[%s234 + $0xc] sm:$0xff]
        %v290 = vld [vmem:[%s234 + $0x14] sm:$0xf]
        %v291 = vld [vmem:[%s234 + $0x18] sm:$0xff]
        %v292 = vld [vmem:[%s234 + $0x20] sm:$0xf]
        %v293 = vld [vmem:[%s234 + $0x24] sm:$0xff]
        %v294 = vld [vmem:[%s234 + $0x2c] sm:$0xf]
        %v295 = vld [vmem:[%s243] sm:$0xf]
        %v296 = vld [vmem:[%s243 + $0x4] sm:$0xf]
        %v297 = vld [vmem:[%s243 + $0x8] sm:$0xf]
        %v298 = vld [vmem:[%s243 + $0xc] sm:$0xf]
        %v299 = vld [vmem:[%s243 + $0x10] sm:$0xf]
        %v300 = vld [vmem:[%s243 + $0x14] sm:$0xf]
        %v301 = vld [vmem:[%s243 + $0x18] sm:$0xf]
        %v302 = vld [vmem:[%s243 + $0x1c] sm:$0xf]
        %v303 = vld [vmem:[%s243 + $0x20] sm:$0xf]
        %v304 = vld [vmem:[%s243 + $0x24] sm:$0xf]
        %v305 = vld [vmem:[%s243 + $0x28] sm:$0xf]
        %v306 = vld [vmem:[%s243 + $0x2c] sm:$0xf]
        %v307 = vld [vmem:[%s243 + $0x30] sm:$0xf]
        %v308 = vld [vmem:[%s243 + $0x34] sm:$0xf]
        %v309 = vld [vmem:[%s243 + $0x38] sm:$0xf]
        %v310 = vld [vmem:[%s243 + $0x3c] sm:$0xf]
        %v311 = vld [vmem:[%s243 + $0x40] sm:$0xf]
        %v312 = vld [vmem:[%s243 + $0x44] sm:$0xf]
        %v313 = vld [vmem:[%s243 + $0x48] sm:$0xf]
        %v314 = vld [vmem:[%s243 + $0x4c] sm:$0xf]
        %v315 = vld [vmem:[%s243 + $0x50] sm:$0xf]
        %v316 = vld [vmem:[%s243 + $0x54] sm:$0xf]
        %v317 = vld [vmem:[%s243 + $0x58] sm:$0xf]
        %v318 = vld [vmem:[%s243 + $0x5c] sm:$0xf]
        %v319 = vld [vmem:[%s243 + $0x60] sm:$0xf]
        %v320 = vld [vmem:[%s243 + $0x64] sm:$0xf]
        %v321 = vld [vmem:[%s243 + $0x68] sm:$0xf]
        %v322 = vld [vmem:[%s243 + $0x6c] sm:$0xf]
        %v323 = vld [vmem:[%s243 + $0x70] sm:$0xf]
        %v324 = vld [vmem:[%s243 + $0x74] sm:$0xf]
        %v325 = vld [vmem:[%s243 + $0x78] sm:$0xf]
        %v326 = vld [vmem:[%s243 + $0x7c] sm:$0xf]
        %v327 = vld [vmem:[%s243 + $0x80] sm:$0xf]
        %v328 = vld [vmem:[%s243 + $0x84] sm:$0xf]
        %v329 = vld [vmem:[%s243 + $0x88] sm:$0xf]
        %v330 = vld [vmem:[%s243 + $0x8c] sm:$0xf]
        %v331 = vld [vmem:[%s243 + $0x90] sm:$0xf]
        %v332 = vld [vmem:[%s243 + $0x94] sm:$0xf]
        %v333 = vld [vmem:[%s243 + $0x98] sm:$0xf]
        %v334 = vld [vmem:[%s243 + $0x9c] sm:$0xf]
        %v335 = vld [vmem:[%s243 + $0xa0] sm:$0xf]
        %v336 = vld [vmem:[%s243 + $0xa4] sm:$0xf]
        %v337 = vld [vmem:[%s243 + $0xa8] sm:$0xf]
        %v338 = vld [vmem:[%s243 + $0xac] sm:$0xf]
        %v339 = vld [vmem:[%s243 + $0xb0] sm:$0xf]
        %v340 = vld [vmem:[%s243 + $0xb4] sm:$0xf]
        %v341 = vld [vmem:[%s243 + $0xb8] sm:$0xf]
        %v342 = vld [vmem:[%s243 + $0xbc] sm:$0xf]
        %v351 = vunpack.c.l.b16 %v287
        %v352 = vunpack.c.h.b16 %v287
        %v353 = vunpack.c.l.b16 %v288
        %v354 = vunpack.c.l.b16 %v289
        %v355 = vunpack.c.h.b16 %v289
        %v356 = vunpack.c.l.b16 %v290
        %v357 = vunpack.c.l.b16 %v291
        %v358 = vunpack.c.h.b16 %v291
        %v359 = vunpack.c.l.b16 %v292
        %v360 = vunpack.c.l.b16 %v293
        %v361 = vunpack.c.h.b16 %v293
        %v362 = vunpack.c.l.b16 %v294
        %v363 = vpack.c.b16 %v354, %v351
        %v364 = vpack.c.b16 %v355, %v352
        %v365 = vpack.c.b16 %v356, %v353
        %v366 = vpack.c.b16 %v360, %v357
        %v367 = vpack.c.b16 %v361, %v358
        %v368 = vpack.c.b16 %v362, %v359
        %v423 = vunpack.c.l.b16 %v295
        %v424 = vunpack.c.l.b16 %v296
        %v425 = vunpack.c.l.b16 %v297
        %v426 = vunpack.c.l.b16 %v298
        %v427 = vunpack.c.l.b16 %v299
        %v428 = vunpack.c.l.b16 %v300
        %v429 = vunpack.c.l.b16 %v301
        %v430 = vunpack.c.l.b16 %v302
        %v431 = vunpack.c.l.b16 %v303
        %v432 = vunpack.c.l.b16 %v304
        %v433 = vunpack.c.l.b16 %v305
        %v434 = vunpack.c.l.b16 %v306
        %v435 = vunpack.c.l.b16 %v307
        %v436 = vunpack.c.l.b16 %v308
        %v437 = vunpack.c.l.b16 %v309
        %v438 = vunpack.c.l.b16 %v310
        %v439 = vunpack.c.l.b16 %v311
        %v440 = vunpack.c.l.b16 %v312
        %v441 = vunpack.c.l.b16 %v313
        %v442 = vunpack.c.l.b16 %v314
        %v443 = vunpack.c.l.b16 %v315
        %v444 = vunpack.c.l.b16 %v316
        %v445 = vunpack.c.l.b16 %v317
        %v446 = vunpack.c.l.b16 %v318
        %v447 = vunpack.c.l.b16 %v319
        %v448 = vunpack.c.l.b16 %v320
        %v449 = vunpack.c.l.b16 %v321
        %v450 = vunpack.c.l.b16 %v322
        %v451 = vunpack.c.l.b16 %v323
        %v452 = vunpack.c.l.b16 %v324
        %v453 = vunpack.c.l.b16 %v325
        %v454 = vunpack.c.l.b16 %v326
        %v455 = vunpack.c.l.b16 %v327
        %v456 = vunpack.c.l.b16 %v328
        %v457 = vunpack.c.l.b16 %v329
        %v458 = vunpack.c.l.b16 %v330
        %v459 = vunpack.c.l.b16 %v331
        %v460 = vunpack.c.l.b16 %v332
        %v461 = vunpack.c.l.b16 %v333
        %v462 = vunpack.c.l.b16 %v334
        %v463 = vunpack.c.l.b16 %v335
        %v464 = vunpack.c.l.b16 %v336
        %v465 = vunpack.c.l.b16 %v337
        %v466 = vunpack.c.l.b16 %v338
        %v467 = vunpack.c.l.b16 %v339
        %v468 = vunpack.c.l.b16 %v340
        %v469 = vunpack.c.l.b16 %v341
        %v470 = vunpack.c.l.b16 %v342
        %v471 = vpack.c.b16 %v424, %v423
        %v472 = vpack.c.b16 %v426, %v425
        %v473 = vpack.c.b16 %v428, %v427
        %v474 = vpack.c.b16 %v430, %v429
        %v475 = vpack.c.b16 %v432, %v431
        %v476 = vpack.c.b16 %v434, %v433
        %v477 = vpack.c.b16 %v436, %v435
        %v478 = vpack.c.b16 %v438, %v437
        %v479 = vpack.c.b16 %v440, %v439
        %v480 = vpack.c.b16 %v442, %v441
        %v481 = vpack.c.b16 %v444, %v443
        %v482 = vpack.c.b16 %v446, %v445
        %v483 = vpack.c.b16 %v448, %v447
        %v484 = vpack.c.b16 %v450, %v449
        %v485 = vpack.c.b16 %v452, %v451
        %v486 = vpack.c.b16 %v454, %v453
        %v487 = vpack.c.b16 %v456, %v455
        %v488 = vpack.c.b16 %v458, %v457
        %v489 = vpack.c.b16 %v460, %v459
        %v490 = vpack.c.b16 %v462, %v461
        %v491 = vpack.c.b16 %v464, %v463
        %v492 = vpack.c.b16 %v466, %v465
        %v493 = vpack.c.b16 %v468, %v467
        %v494 = vpack.c.b16 %v470, %v469
        %519 = vmatprep.subr.bf16.mxu0 0
        %520 = vmatpush1.bf16.msra.mxu0 %v471
        %521 = vmatprep.subr.bf16.mxu0 0
        %522 = vmatpush1.bf16.msra.mxu0 %v472
        %523 = vmatprep.subr.bf16.mxu0 0
        %524 = vmatpush1.bf16.msra.mxu0 %v473
        %525 = vmatprep.subr.bf16.mxu0 0
        %526 = vmatpush1.bf16.msra.mxu0 %v474
        %527 = vmatprep.subr.bf16.mxu0 0
        %528 = vmatpush1.bf16.msra.mxu0 %v475
        %529 = vmatprep.subr.bf16.mxu0 0
        %530 = vmatpush1.bf16.msra.mxu0 %v476
        %531 = vmatprep.subr.bf16.mxu0 0
        %532 = vmatpush1.bf16.msra.mxu0 %v477
        %533 = vmatprep.subr.bf16.mxu0 0
        %534 = vmatpush1.bf16.msra.mxu0 %v478
        %535 = vmatprep.subr.bf16.mxu0 0
        %536 = vmatpush1.bf16.msra.mxu0 %v479
        %537 = vmatprep.subr.bf16.mxu0 0
        %538 = vmatpush1.bf16.msra.mxu0 %v480
        %539 = vmatprep.subr.bf16.mxu0 0
        %540 = vmatpush1.bf16.msra.mxu0 %v481
        %541 = vmatprep.subr.bf16.mxu0 0
        %542 = vmatpush1.bf16.msra.mxu0 %v482
        %543 = vmatprep.subr.bf16.mxu0 0
        %544 = vmatpush1.bf16.msra.mxu0 %v483
        %545 = vmatprep.subr.bf16.mxu0 0
        %546 = vmatpush1.bf16.msra.mxu0 %v484
        %547 = vmatprep.subr.bf16.mxu0 0
        %548 = vmatpush1.bf16.msra.mxu0 %v485
        %549 = vmatprep.subr.bf16.mxu0 0
        %550 = vmatpush1.bf16.msra.mxu0 %v486
        %551 = vmatprep.mubr.bf16.mxu0 %v364
        %552 = vmatmul.mubr.bf16.gmra.mrb[0].mxu0 %v363
        %v553 = vpop.f32.mrb[0].mxu0
        %v554 = vadd.f32 0.0, %v553
        %v555 = vpop.f32.mrb[0].mxu0
        %v556 = vpop.f32.mrb[0].mxu0
        %v557 = vadd.f32 0.0, %v556
        %v558 = vpop.f32.mrb[0].mxu0
        %559 = vmatprep.mubr.bf16.mxu0 %v367
        %560 = vmatmul.mubr.bf16.gmra.mrb[0].mxu0 %v366
        %v561 = vpop.f32.mrb[0].mxu0
        %v562 = vadd.f32 0.0, %v561
        %v563 = vpop.f32.mrb[0].mxu0
        %v564 = vpop.f32.mrb[0].mxu0
        %v565 = vadd.f32 0.0, %v564
        %v566 = vpop.f32.mrb[0].mxu0
        %567 = vdwg.mxu0
        %568 = vmatprep.subr.bf16.mxu0 0
        %569 = vmatpush1.bf16.msra.mxu0 %v487
        %570 = vmatprep.subr.bf16.mxu0 0
        %571 = vmatpush1.bf16.msra.mxu0 %v488
        %572 = vmatprep.subr.bf16.mxu0 0
        %573 = vmatpush1.bf16.msra.mxu0 %v489
        %574 = vmatprep.subr.bf16.mxu0 0
        %575 = vmatpush1.bf16.msra.mxu0 %v490
        %576 = vmatprep.subr.bf16.mxu0 0
        %577 = vmatpush1.bf16.msra.mxu0 %v491
        %578 = vmatprep.subr.bf16.mxu0 0
        %579 = vmatpush1.bf16.msra.mxu0 %v492
        %580 = vmatprep.subr.bf16.mxu0 0
        %581 = vmatpush1.bf16.msra.mxu0 %v493
        %582 = vmatprep.subr.bf16.mxu0 0
        %583 = vmatpush1.bf16.msra.mxu0 %v494
        %584 = vmatprep.subr.bf16.mxu0 0
        %585 = vmatpush1.bf16.msra.mxu0 0
        %586 = vmatprep.subr.bf16.mxu0 0
        %587 = vmatpush1.bf16.msra.mxu0 0
        %588 = vmatprep.subr.bf16.mxu0 0
        %589 = vmatpush1.bf16.msra.mxu0 0
        %590 = vmatprep.subr.bf16.mxu0 0
        %591 = vmatpush1.bf16.msra.mxu0 0
        %592 = vmatprep.subr.bf16.mxu0 0
        %593 = vmatpush1.bf16.msra.mxu0 0
        %594 = vmatprep.subr.bf16.mxu0 0
        %595 = vmatpush1.bf16.msra.mxu0 0
        %596 = vmatprep.subr.bf16.mxu0 0
        %597 = vmatpush1.bf16.msra.mxu0 0
        %598 = vmatprep.subr.bf16.mxu0 0
        %599 = vmatpush1.bf16.msra.mxu0 0
        %600 = vmatprep.mubr.bf16.mxu0 0
        %601 = vmatmul.mubr.bf16.gmra.mrb[0].mxu0 %v365
        %v602 = vpop.f32.mrb[0].mxu0
        %v603 = vadd.f32 %v554, %v602
        %v604 = vpop.f32.mrb[0].mxu0
        %v605 = vpop.f32.mrb[0].mxu0
        %v606 = vadd.f32 %v557, %v605
        %v607 = vpop.f32.mrb[0].mxu0
        %608 = vmatprep.mubr.bf16.mxu0 0
        %609 = vmatmul.mubr.bf16.gmra.mrb[0].mxu0 %v368
        %v610 = vpop.f32.mrb[0].mxu0
        %v611 = vadd.f32 %v562, %v610
        %v612 = vpop.f32.mrb[0].mxu0
        %v613 = vpop.f32.mrb[0].mxu0
        %v614 = vadd.f32 %v565, %v613
        %v615 = vpop.f32.mrb[0].mxu0
        %616 = vdwg.mxu0
        %v617 = vadd.f32 %v283, %v603
        %v618 = vadd.f32 %v284, %v606
        %v619 = vadd.f32 %v285, %v611
        %v620 = vadd.f32 %v286, %v614
        %621 = vst [vmem:[#allocation2] sm:$0xff] %v617
        %622 = vst [vmem:[#allocation2 + $0x8] sm:$0xff] %v618
        %623 = vst [vmem:[#allocation2 + $0x10] sm:$0xff] %v619
        %624 = vst [vmem:[#allocation2 + $0x18] sm:$0xff] %v620
        %p625 = scmp.eq.s32.totalorder %s28, 2
        // Predicated region
        $region49: #{vae_forward.34} parent=31 // pred_check
          %p626 = pneg %p625
        $region50: #{vae_forward.34} parent=31 // pred_check_branch
          %628 = sbr.rel (%p626) target = $region52
        $region51: #{vae_forward.34} parent=31 // pred_region
          %v629 = vld [vmem:[#allocation2] sm:$0xff]
          %v630 = vld [vmem:[#allocation2 + $0x8] sm:$0xff]
          %v631 = vld [vmem:[#allocation2 + $0x10] sm:$0xff]
          %v632 = vld [vmem:[#allocation2 + $0x18] sm:$0xff]
          %v633 = vld [vmem:[#allocation8] sm:$0x1]
          %v635 = vlaneseq
          %v636 = vshrl.u32 %v635, 7
          %v637 = vsub.s32 0, %v636
          %v638 = vrot.slane %v633, %v637
          %v640 = vadd.f32 %v629, %v638
          %v641 = vadd.f32 %v630, %v638
          %v642 = vadd.f32 %v631, %v638
          %v643 = vadd.f32 %v632, %v638
          %v644 = vmax.f32 %v640, 0.0
          %v645 = vmax.f32 %v641, 0.0
          %v646 = vmax.f32 %v642, 0.0
          %v647 = vmax.f32 %v643, 0.0
          %648 = vst [vmem:[#allocation9] sm:$0xff] %v644
          %649 = vst [vmem:[#allocation9 + $0x8] sm:$0xff] %v645
          %650 = vst [vmem:[#allocation9 + $0x10] sm:$0xff] %v646
          %651 = vst [vmem:[#allocation9 + $0x18] sm:$0xff] %v647
        $region52: #{vae_forward.34} parent=31 // pred_fallthru
          _
        // Predicated region
        $region53: #{vae_forward.34} parent=31 // pred_check
          %p652 = pneg %p142
        $region54: #{vae_forward.34} parent=31 // pred_check_branch
          %654 = sbr.rel (%p652) target = $region56
        $region55: #{vae_forward.34} parent=31 // pred_region
          %s655 = smul.u32 4, %s26
          %s657 = ssub.s32 512, 512
          %658 = vsyncadd [#allocation5], %s657
          %s659 = sadd.s32 %s27, %s655
          %s660 = smul.addr %s659, 128
          %s661 = scalar_lea.hbm %s3, %s660
          %s662 = sshll.u32 [#allocation9], 4
          %s663 = int_to_ptr.vmem [resolvable:$true] %s662
          %668 = dma.vmem_to_hbm [thread:$0]  %s663, 512, %s661, [#allocation5], 128, 128, 8
        $region56: #{vae_forward.34} parent=31 // pred_fallthru
          _
        // Predicated region
        $region57: #{vae_forward.34} parent=31 // pred_check
          %p669 = pneg %p142
        $region58: #{vae_forward.34} parent=31 // pred_check_branch
          %671 = sbr.rel (%p669) target = $region60
        $region59: #{vae_forward.34} parent=31 // pred_region
          %672 = dma.done [#allocation5], 512
        $region60: #{vae_forward.34} parent=31 // pred_fallthru
          _
      $region32: #{vae_forward.34} parent=5 // pred_fallthru
        _
      %p673 = scmp.le.s32.totalorder 2, %s16
      // Predicated region
      $region61: #{vae_forward.34} parent=5 // pred_check
        %p674 = pneg %p673
      $region62: #{vae_forward.34} parent=5 // pred_check_branch
        %676 = sbr.rel (%p674) target = $region64
      $region63: #{vae_forward.34} parent=5 // pred_region
        %s677 = ssub.s32 %s16, 2
      $region64: #{vae_forward.34} parent=5 // pred_fallthru
        _
    $region6: #{vae_forward.34} parent=1 // loop_footer
      %s20 = sadd.s32 1, %s16
    $region7: #{vae_forward.34} parent=1 // loop_footer_branch
      %15 = sbr.rel target = $region3
    $region8: #{vae_forward.34} parent=1 // loop_exit
      _
    %678 = vsyncpa [#allocation4], 1
    %s679 = scalar_lea.sflag [#allocation4], 1
    %680 = vsyncpa %s679, 1
    %681 = vsyncpa [#allocation7], 1
    %s682 = scalar_lea.sflag [#allocation7], 1
    %683 = vsyncpa %s682, 1
    %684 = vsyncpa [#allocation5], 1
    %s685 = scalar_lea.sflag [#allocation5], 1
    %686 = vsyncpa %s685, 1

// kernel: vae_forward.38
$region0: #{vae_forward.38}
  #allocation0 [shape = 'u32[]', space=smem, size = 0x4, offset = 0x4, fixed_abs, tag = 'smem constant byte address 0x4 - core index']
  #allocation1 [shape = 'u32[144,128]{1,0:T(1,128)}', space=vmem, size = 0x12000, scoped, tag = 'internal scratch']
  #allocation2 [shape = 'f32[32,128]{1,0:T(8,128)}', space=vmem, size = 0x4000, scoped, tag = 'scratch operand']
  %s0 = inlined_call_operand.hbm [shape: bf16[32,256], index: 0, kind: input, shape index: {}]
  %s1 = inlined_call_operand.hbm [shape: bf16[256,128], index: 1, kind: input, shape index: {}]
  %s2 = inlined_call_operand.hbm [shape: f32[1,128], index: 2, kind: input, shape index: {}]
  %s3 = inlined_call_operand.hbm [shape: f32[32,128], index: 3, kind: output, shape index: {}]
  %s4 = sld [smem:[#allocation0]]
  $region42: #{vae_forward.38} parent=0
    _
  %s6 = ssub.s32 1, %s4
  %s7 = scalar_select 0, %s6, %s4
  $region1: #{vae_forward.38} parent=0
    #allocation3 [shape = 'u8[16384]{0}', space=vmem, size = 0x4000, scoped, tag = 'input window, operand 0, single buffered']
    #allocation4 [shape = 's32[1]{0}', space=sflag, size = 0x4, scoped, tag = 'scoped memory for vae_forward.38']
    #allocation5 [shape = 's32[1]{0}', space=sflag, size = 0x4, scoped, tag = 'scoped memory for vae_forward.38']
    #allocation6 [shape = 'u8[65536]{0}', space=vmem, size = 0x10000, scoped, tag = 'input window, operand 1, single buffered']
    #allocation7 [shape = 's32[1]{0}', space=sflag, size = 0x4, scoped, tag = 'scoped memory for vae_forward.38']
    #allocation8 [shape = 'u8[512]{0}', space=vmem, size = 0x400, scoped, tag = 'input window, operand 2, single buffered']
    #allocation9 [shape = 'u8[16384]{0}', space=vmem, size = 0x4000, scoped, tag = 'output window, operand 0, single buffered']
    %8 = vsyncpa [#allocation4], 0
    %9 = vsyncpa [#allocation7], 0
    %10 = vsyncpa [#allocation5], 0
    // Predicated region
    $region2: #{vae_forward.38} parent=1 // pred_check
      _
    $region3: #{vae_forward.38} parent=1 // pred_check_branch
      %12 = sbr.rel (0) target = $region5
    $region4: #{vae_forward.38} parent=1 // pred_region
      %s14 = ssub.s32 512, 512
      %15 = vsyncadd [#allocation4], %s14
      %s16 = sshll.u32 [#allocation3], 4
      %s17 = int_to_ptr.vmem [resolvable:$true] %s16
      %22 = dma.hbm_to_vmem [thread:$0]  %s0, 512, %s17, [#allocation4], 128, 128, 8
    $region5: #{vae_forward.38} parent=1 // pred_fallthru
      _
    // Predicated region
    $region6: #{vae_forward.38} parent=1 // pred_check
      _
    $region7: #{vae_forward.38} parent=1 // pred_check_branch
      %24 = sbr.rel (0) target = $region9
    $region8: #{vae_forward.38} parent=1 // pred_region
      %s26 = ssub.s32 2048, 2048
      %27 = vsyncadd [#allocation7], %s26
      %s28 = sshll.u32 [#allocation6], 4
      %s29 = int_to_ptr.vmem [resolvable:$true] %s28
      %34 = dma.hbm_to_vmem [thread:$0]  %s1, 2048, %s29, [#allocation7], 64, 64, 4
    $region9: #{vae_forward.38} parent=1 // pred_fallthru
      _
    // Predicated region
    $region10: #{vae_forward.38} parent=1 // pred_check
      _
    $region11: #{vae_forward.38} parent=1 // pred_check_branch
      %36 = sbr.rel (0) target = $region13
    $region12: #{vae_forward.38} parent=1 // pred_region
      %s38 = ssub.s32 16, 16
      %39 = vsyncadd [#allocation7], %s38
      %s41 = sshll.u32 [#allocation8], 4
      %s42 = int_to_ptr.vmem [resolvable:$true] %s41
      %44 = dma.hbm_to_vmem [thread:$0]  %s2, 16, %s42, [#allocation7]
    $region13: #{vae_forward.38} parent=1 // pred_fallthru
      _
    // Predicated region
    $region14: #{vae_forward.38} parent=1 // pred_check
      _
    $region15: #{vae_forward.38} parent=1 // pred_check_branch
      %46 = sbr.rel (0) target = $region17
    $region16: #{vae_forward.38} parent=1 // pred_region
      %47 = dma.done [#allocation4], 512
    $region17: #{vae_forward.38} parent=1 // pred_fallthru
      _
    // Predicated region
    $region18: #{vae_forward.38} parent=1 // pred_check
      _
    $region19: #{vae_forward.38} parent=1 // pred_check_branch
      %49 = sbr.rel (0) target = $region21
    $region20: #{vae_forward.38} parent=1 // pred_region
      %50 = dma.done [#allocation7], 2048
    $region21: #{vae_forward.38} parent=1 // pred_fallthru
      _
    // Predicated region
    $region22: #{vae_forward.38} parent=1 // pred_check
      _
    $region23: #{vae_forward.38} parent=1 // pred_check_branch
      %52 = sbr.rel (0) target = $region25
    $region24: #{vae_forward.38} parent=1 // pred_region
      %53 = dma.done [#allocation7], 16
    $region25: #{vae_forward.38} parent=1 // pred_fallthru
      _
    %p55 = scmp.eq.s32.totalorder 0, 0
    // Predicated region
    $region26: #{vae_forward.38} parent=1 // pred_check
      %p56 = pneg %p55
    $region27: #{vae_forward.38} parent=1 // pred_check_branch
      %58 = sbr.rel (%p56) target = $region29
    $region28: #{vae_forward.38} parent=1 // pred_region
      %59 = vst [vmem:[#allocation2] sm:$0xff] 0.0
      %60 = vst [vmem:[#allocation2 + $0x8] sm:$0xff] 0.0
      %61 = vst [vmem:[#allocation2 + $0x10] sm:$0xff] 0.0
      %62 = vst [vmem:[#allocation2 + $0x18] sm:$0xff] 0.0
    $region29: #{vae_forward.38} parent=1 // pred_fallthru
      _
    %v63 = vld [vmem:[#allocation2] sm:$0xff]
    %v64 = vld [vmem:[#allocation2 + $0x8] sm:$0xff]
    %v65 = vld [vmem:[#allocation2 + $0x10] sm:$0xff]
    %v66 = vld [vmem:[#allocation2 + $0x18] sm:$0xff]
    %v67 = vld [vmem:[#allocation3] sm:$0xff]
    %v68 = vld [vmem:[#allocation3 + $0x8] sm:$0xff]
    %v69 = vld [vmem:[#allocation3 + $0x10] sm:$0xff]
    %v70 = vld [vmem:[#allocation3 + $0x18] sm:$0xff]
    %v71 = vld [vmem:[#allocation6] sm:$0xf]
    %v72 = vld [vmem:[#allocation6 + $0x4] sm:$0xf]
    %v73 = vld [vmem:[#allocation6 + $0x8] sm:$0xf]
    %v74 = vld [vmem:[#allocation6 + $0xc] sm:$0xf]
    %v75 = vld [vmem:[#allocation6 + $0x10] sm:$0xf]
    %v76 = vld [vmem:[#allocation6 + $0x14] sm:$0xf]
    %v77 = vld [vmem:[#allocation6 + $0x18] sm:$0xf]
    %v78 = vld [vmem:[#allocation6 + $0x1c] sm:$0xf]
    %v79 = vld [vmem:[#allocation6 + $0x20] sm:$0xf]
    %v80 = vld [vmem:[#allocation6 + $0x24] sm:$0xf]
    %v81 = vld [vmem:[#allocation6 + $0x28] sm:$0xf]
    %v82 = vld [vmem:[#allocation6 + $0x2c] sm:$0xf]
    %v83 = vld [vmem:[#allocation6 + $0x30] sm:$0xf]
    %v84 = vld [vmem:[#allocation6 + $0x34] sm:$0xf]
    %v85 = vld [vmem:[#allocation6 + $0x38] sm:$0xf]
    %v86 = vld [vmem:[#allocation6 + $0x3c] sm:$0xf]
    %v87 = vld [vmem:[#allocation6 + $0x40] sm:$0xf]
    %v88 = vld [vmem:[#allocation6 + $0x44] sm:$0xf]
    %v89 = vld [vmem:[#allocation6 + $0x48] sm:$0xf]
    %v90 = vld [vmem:[#allocation6 + $0x4c] sm:$0xf]
    %v91 = vld [vmem:[#allocation6 + $0x50] sm:$0xf]
    %v92 = vld [vmem:[#allocation6 + $0x54] sm:$0xf]
    %v93 = vld [vmem:[#allocation6 + $0x58] sm:$0xf]
    %v94 = vld [vmem:[#allocation6 + $0x5c] sm:$0xf]
    %v95 = vld [vmem:[#allocation6 + $0x60] sm:$0xf]
    %v96 = vld [vmem:[#allocation6 + $0x64] sm:$0xf]
    %v97 = vld [vmem:[#allocation6 + $0x68] sm:$0xf]
    %v98 = vld [vmem:[#allocation6 + $0x6c] sm:$0xf]
    %v99 = vld [vmem:[#allocation6 + $0x70] sm:$0xf]
    %v100 = vld [vmem:[#allocation6 + $0x74] sm:$0xf]
    %v101 = vld [vmem:[#allocation6 + $0x78] sm:$0xf]
    %v102 = vld [vmem:[#allocation6 + $0x7c] sm:$0xf]
    %v107 = vunpack.c.l.b16 %v67
    %v108 = vunpack.c.h.b16 %v67
    %v109 = vunpack.c.l.b16 %v68
    %v110 = vunpack.c.h.b16 %v68
    %v111 = vunpack.c.l.b16 %v69
    %v112 = vunpack.c.h.b16 %v69
    %v113 = vunpack.c.l.b16 %v70
    %v114 = vunpack.c.h.b16 %v70
    %v115 = vpack.c.b16 %v109, %v107
    %v116 = vpack.c.b16 %v110, %v108
    %v117 = vpack.c.b16 %v113, %v111
    %v118 = vpack.c.b16 %v114, %v112
    %v155 = vunpack.c.l.b16 %v71
    %v156 = vunpack.c.l.b16 %v72
    %v157 = vunpack.c.l.b16 %v73
    %v158 = vunpack.c.l.b16 %v74
    %v159 = vunpack.c.l.b16 %v75
    %v160 = vunpack.c.l.b16 %v76
    %v161 = vunpack.c.l.b16 %v77
    %v162 = vunpack.c.l.b16 %v78
    %v163 = vunpack.c.l.b16 %v79
    %v164 = vunpack.c.l.b16 %v80
    %v165 = vunpack.c.l.b16 %v81
    %v166 = vunpack.c.l.b16 %v82
    %v167 = vunpack.c.l.b16 %v83
    %v168 = vunpack.c.l.b16 %v84
    %v169 = vunpack.c.l.b16 %v85
    %v170 = vunpack.c.l.b16 %v86
    %v171 = vunpack.c.l.b16 %v87
    %v172 = vunpack.c.l.b16 %v88
    %v173 = vunpack.c.l.b16 %v89
    %v174 = vunpack.c.l.b16 %v90
    %v175 = vunpack.c.l.b16 %v91
    %v176 = vunpack.c.l.b16 %v92
    %v177 = vunpack.c.l.b16 %v93
    %v178 = vunpack.c.l.b16 %v94
    %v179 = vunpack.c.l.b16 %v95
    %v180 = vunpack.c.l.b16 %v96
    %v181 = vunpack.c.l.b16 %v97
    %v182 = vunpack.c.l.b16 %v98
    %v183 = vunpack.c.l.b16 %v99
    %v184 = vunpack.c.l.b16 %v100
    %v185 = vunpack.c.l.b16 %v101
    %v186 = vunpack.c.l.b16 %v102
    %v187 = vpack.c.b16 %v156, %v155
    %v188 = vpack.c.b16 %v158, %v157
    %v189 = vpack.c.b16 %v160, %v159
    %v190 = vpack.c.b16 %v162, %v161
    %v191 = vpack.c.b16 %v164, %v163
    %v192 = vpack.c.b16 %v166, %v165
    %v193 = vpack.c.b16 %v168, %v167
    %v194 = vpack.c.b16 %v170, %v169
    %v195 = vpack.c.b16 %v172, %v171
    %v196 = vpack.c.b16 %v174, %v173
    %v197 = vpack.c.b16 %v176, %v175
    %v198 = vpack.c.b16 %v178, %v177
    %v199 = vpack.c.b16 %v180, %v179
    %v200 = vpack.c.b16 %v182, %v181
    %v201 = vpack.c.b16 %v184, %v183
    %v202 = vpack.c.b16 %v186, %v185
    %219 = vmatprep.subr.bf16.mxu0 0
    %220 = vmatpush1.bf16.msra.mxu0 %v187
    %221 = vmatprep.subr.bf16.mxu0 0
    %222 = vmatpush1.bf16.msra.mxu0 %v188
    %223 = vmatprep.subr.bf16.mxu0 0
    %224 = vmatpush1.bf16.msra.mxu0 %v189
    %225 = vmatprep.subr.bf16.mxu0 0
    %226 = vmatpush1.bf16.msra.mxu0 %v190
    %227 = vmatprep.subr.bf16.mxu0 0
    %228 = vmatpush1.bf16.msra.mxu0 %v191
    %229 = vmatprep.subr.bf16.mxu0 0
    %230 = vmatpush1.bf16.msra.mxu0 %v192
    %231 = vmatprep.subr.bf16.mxu0 0
    %232 = vmatpush1.bf16.msra.mxu0 %v193
    %233 = vmatprep.subr.bf16.mxu0 0
    %234 = vmatpush1.bf16.msra.mxu0 %v194
    %235 = vmatprep.subr.bf16.mxu0 0
    %236 = vmatpush1.bf16.msra.mxu0 %v195
    %237 = vmatprep.subr.bf16.mxu0 0
    %238 = vmatpush1.bf16.msra.mxu0 %v196
    %239 = vmatprep.subr.bf16.mxu0 0
    %240 = vmatpush1.bf16.msra.mxu0 %v197
    %241 = vmatprep.subr.bf16.mxu0 0
    %242 = vmatpush1.bf16.msra.mxu0 %v198
    %243 = vmatprep.subr.bf16.mxu0 0
    %244 = vmatpush1.bf16.msra.mxu0 %v199
    %245 = vmatprep.subr.bf16.mxu0 0
    %246 = vmatpush1.bf16.msra.mxu0 %v200
    %247 = vmatprep.subr.bf16.mxu0 0
    %248 = vmatpush1.bf16.msra.mxu0 %v201
    %249 = vmatprep.subr.bf16.mxu0 0
    %250 = vmatpush1.bf16.msra.mxu0 %v202
    %251 = vmatprep.mubr.bf16.mxu0 %v116
    %252 = vmatmul.mubr.bf16.gmra.mrb[0].mxu0 %v115
    %v253 = vpop.f32.mrb[0].mxu0
    %v254 = vadd.f32 0.0, %v253
    %v255 = vpop.f32.mrb[0].mxu0
    %v256 = vpop.f32.mrb[0].mxu0
    %v257 = vadd.f32 0.0, %v256
    %v258 = vpop.f32.mrb[0].mxu0
    %259 = vmatprep.mubr.bf16.mxu0 %v118
    %260 = vmatmul.mubr.bf16.gmra.mrb[0].mxu0 %v117
    %v261 = vpop.f32.mrb[0].mxu0
    %v262 = vadd.f32 0.0, %v261
    %v263 = vpop.f32.mrb[0].mxu0
    %v264 = vpop.f32.mrb[0].mxu0
    %v265 = vadd.f32 0.0, %v264
    %v266 = vpop.f32.mrb[0].mxu0
    %267 = vdwg.mxu0
    %v268 = vadd.f32 %v63, %v254
    %v269 = vadd.f32 %v64, %v257
    %v270 = vadd.f32 %v65, %v262
    %v271 = vadd.f32 %v66, %v265
    %272 = vst [vmem:[#allocation2] sm:$0xff] %v268
    %273 = vst [vmem:[#allocation2 + $0x8] sm:$0xff] %v269
    %274 = vst [vmem:[#allocation2 + $0x10] sm:$0xff] %v270
    %275 = vst [vmem:[#allocation2 + $0x18] sm:$0xff] %v271
    // Predicated region
    $region30: #{vae_forward.38} parent=1 // pred_check
      %p276 = pneg %p55
    $region31: #{vae_forward.38} parent=1 // pred_check_branch
      %278 = sbr.rel (%p276) target = $region33
    $region32: #{vae_forward.38} parent=1 // pred_region
      %v279 = vld [vmem:[#allocation2] sm:$0xff]
      %v280 = vld [vmem:[#allocation2 + $0x8] sm:$0xff]
      %v281 = vld [vmem:[#allocation2 + $0x10] sm:$0xff]
      %v282 = vld [vmem:[#allocation2 + $0x18] sm:$0xff]
      %v283 = vld [vmem:[#allocation8] sm:$0x1]
      %v285 = vlaneseq
      %v286 = vshrl.u32 %v285, 7
      %v287 = vsub.s32 0, %v286
      %v288 = vrot.slane %v283, %v287
      %v290 = vadd.f32 %v279, %v288
      %v291 = vadd.f32 %v280, %v288
      %v292 = vadd.f32 %v281, %v288
      %v293 = vadd.f32 %v282, %v288
      %v294 = vmax.f32 %v290, 0.0
      %v295 = vmax.f32 %v291, 0.0
      %v296 = vmax.f32 %v292, 0.0
      %v297 = vmax.f32 %v293, 0.0
      %298 = vst [vmem:[#allocation9] sm:$0xff] %v294
      %299 = vst [vmem:[#allocation9 + $0x8] sm:$0xff] %v295
      %300 = vst [vmem:[#allocation9 + $0x10] sm:$0xff] %v296
      %301 = vst [vmem:[#allocation9 + $0x18] sm:$0xff] %v297
    $region33: #{vae_forward.38} parent=1 // pred_fallthru
      _
    // Predicated region
    $region34: #{vae_forward.38} parent=1 // pred_check
      _
    $region35: #{vae_forward.38} parent=1 // pred_check_branch
      %303 = sbr.rel (0) target = $region37
    $region36: #{vae_forward.38} parent=1 // pred_region
      %s305 = ssub.s32 512, 512
      %306 = vsyncadd [#allocation5], %s305
      %s307 = sshll.u32 [#allocation9], 4
      %s308 = int_to_ptr.vmem [resolvable:$true] %s307
      %313 = dma.vmem_to_hbm [thread:$0]  %s308, 512, %s3, [#allocation5], 128, 128, 8
    $region37: #{vae_forward.38} parent=1 // pred_fallthru
      _
    // Predicated region
    $region38: #{vae_forward.38} parent=1 // pred_check
      _
    $region39: #{vae_forward.38} parent=1 // pred_check_branch
      %315 = sbr.rel (0) target = $region41
    $region40: #{vae_forward.38} parent=1 // pred_region
      %316 = dma.done [#allocation5], 512
    $region41: #{vae_forward.38} parent=1 // pred_fallthru
      _
    %317 = vsyncpa [#allocation4], 1
    %318 = vsyncpa [#allocation7], 1
    %319 = vsyncpa [#allocation5], 1

// kernel: vae_forward.37
$region0: #{vae_forward.37}
  #allocation0 [shape = 'u32[]', space=smem, size = 0x4, offset = 0x4, fixed_abs, tag = 'smem constant byte address 0x4 - core index']
  #allocation1 [shape = 'u32[144,128]{1,0:T(1,128)}', space=vmem, size = 0x12000, scoped, tag = 'internal scratch']
  #allocation2 [shape = 'f32[32,128]{1,0:T(8,128)}', space=vmem, size = 0x4000, scoped, tag = 'scratch operand']
  %s0 = inlined_call_operand.hbm [shape: bf16[32,128], index: 0, kind: input, shape index: {}]
  %s1 = inlined_call_operand.hbm [shape: bf16[128,128], index: 1, kind: input, shape index: {}]
  %s2 = inlined_call_operand.hbm [shape: f32[1,128], index: 2, kind: input, shape index: {}]
  %s3 = inlined_call_operand.hbm [shape: f32[32,128], index: 3, kind: output, shape index: {}]
  %s4 = sld [smem:[#allocation0]]
  $region42: #{vae_forward.37} parent=0
    _
  %s6 = ssub.s32 1, %s4
  %s7 = scalar_select 0, %s6, %s4
  $region1: #{vae_forward.37} parent=0
    #allocation3 [shape = 'u8[8192]{0}', space=vmem, size = 0x2000, scoped, tag = 'input window, operand 0, single buffered']
    #allocation4 [shape = 's32[1]{0}', space=sflag, size = 0x4, scoped, tag = 'scoped memory for vae_forward.37']
    #allocation5 [shape = 's32[1]{0}', space=sflag, size = 0x4, scoped, tag = 'scoped memory for vae_forward.37']
    #allocation6 [shape = 'u8[32768]{0}', space=vmem, size = 0x8000, scoped, tag = 'input window, operand 1, single buffered']
    #allocation7 [shape = 's32[1]{0}', space=sflag, size = 0x4, scoped, tag = 'scoped memory for vae_forward.37']
    #allocation8 [shape = 'u8[512]{0}', space=vmem, size = 0x400, scoped, tag = 'input window, operand 2, single buffered']
    #allocation9 [shape = 'u8[16384]{0}', space=vmem, size = 0x4000, scoped, tag = 'output window, operand 0, single buffered']
    %8 = vsyncpa [#allocation4], 0
    %9 = vsyncpa [#allocation7], 0
    %10 = vsyncpa [#allocation5], 0
    // Predicated region
    $region2: #{vae_forward.37} parent=1 // pred_check
      _
    $region3: #{vae_forward.37} parent=1 // pred_check_branch
      %12 = sbr.rel (0) target = $region5
    $region4: #{vae_forward.37} parent=1 // pred_region
      %s14 = ssub.s32 256, 256
      %15 = vsyncadd [#allocation4], %s14
      %s16 = sshll.u32 [#allocation3], 4
      %s17 = int_to_ptr.vmem [resolvable:$true] %s16
      %22 = dma.hbm_to_vmem [thread:$0]  %s0, 256, %s17, [#allocation4], 64, 64, 4
    $region5: #{vae_forward.37} parent=1 // pred_fallthru
      _
    // Predicated region
    $region6: #{vae_forward.37} parent=1 // pred_check
      _
    $region7: #{vae_forward.37} parent=1 // pred_check_branch
      %24 = sbr.rel (0) target = $region9
    $region8: #{vae_forward.37} parent=1 // pred_region
      %s26 = ssub.s32 1024, 1024
      %27 = vsyncadd [#allocation7], %s26
      %s28 = sshll.u32 [#allocation6], 4
      %s29 = int_to_ptr.vmem [resolvable:$true] %s28
      %34 = dma.hbm_to_vmem [thread:$0]  %s1, 1024, %s29, [#allocation7], 64, 64, 4
    $region9: #{vae_forward.37} parent=1 // pred_fallthru
      _
    // Predicated region
    $region10: #{vae_forward.37} parent=1 // pred_check
      _
    $region11: #{vae_forward.37} parent=1 // pred_check_branch
      %36 = sbr.rel (0) target = $region13
    $region12: #{vae_forward.37} parent=1 // pred_region
      %s38 = ssub.s32 16, 16
      %39 = vsyncadd [#allocation7], %s38
      %s41 = sshll.u32 [#allocation8], 4
      %s42 = int_to_ptr.vmem [resolvable:$true] %s41
      %44 = dma.hbm_to_vmem [thread:$0]  %s2, 16, %s42, [#allocation7]
    $region13: #{vae_forward.37} parent=1 // pred_fallthru
      _
    // Predicated region
    $region14: #{vae_forward.37} parent=1 // pred_check
      _
    $region15: #{vae_forward.37} parent=1 // pred_check_branch
      %46 = sbr.rel (0) target = $region17
    $region16: #{vae_forward.37} parent=1 // pred_region
      %47 = dma.done [#allocation4], 256
    $region17: #{vae_forward.37} parent=1 // pred_fallthru
      _
    // Predicated region
    $region18: #{vae_forward.37} parent=1 // pred_check
      _
    $region19: #{vae_forward.37} parent=1 // pred_check_branch
      %49 = sbr.rel (0) target = $region21
    $region20: #{vae_forward.37} parent=1 // pred_region
      %50 = dma.done [#allocation7], 1024
    $region21: #{vae_forward.37} parent=1 // pred_fallthru
      _
    // Predicated region
    $region22: #{vae_forward.37} parent=1 // pred_check
      _
    $region23: #{vae_forward.37} parent=1 // pred_check_branch
      %52 = sbr.rel (0) target = $region25
    $region24: #{vae_forward.37} parent=1 // pred_region
      %53 = dma.done [#allocation7], 16
    $region25: #{vae_forward.37} parent=1 // pred_fallthru
      _
    %p55 = scmp.eq.s32.totalorder 0, 0
    // Predicated region
    $region26: #{vae_forward.37} parent=1 // pred_check
      %p56 = pneg %p55
    $region27: #{vae_forward.37} parent=1 // pred_check_branch
      %58 = sbr.rel (%p56) target = $region29
    $region28: #{vae_forward.37} parent=1 // pred_region
      %59 = vst [vmem:[#allocation2] sm:$0xff] 0.0
      %60 = vst [vmem:[#allocation2 + $0x8] sm:$0xff] 0.0
      %61 = vst [vmem:[#allocation2 + $0x10] sm:$0xff] 0.0
      %62 = vst [vmem:[#allocation2 + $0x18] sm:$0xff] 0.0
    $region29: #{vae_forward.37} parent=1 // pred_fallthru
      _
    %v63 = vld [vmem:[#allocation2] sm:$0xff]
    %v64 = vld [vmem:[#allocation2 + $0x8] sm:$0xff]
    %v65 = vld [vmem:[#allocation2 + $0x10] sm:$0xff]
    %v66 = vld [vmem:[#allocation2 + $0x18] sm:$0xff]
    %v67 = vld [vmem:[#allocation3] sm:$0xf]
    %v68 = vld [vmem:[#allocation3 + $0x4] sm:$0xf]
    %v69 = vld [vmem:[#allocation3 + $0x8] sm:$0xf]
    %v70 = vld [vmem:[#allocation3 + $0xc] sm:$0xf]
    %v71 = vld [vmem:[#allocation6] sm:$0xf]
    %v72 = vld [vmem:[#allocation6 + $0x4] sm:$0xf]
    %v73 = vld [vmem:[#allocation6 + $0x8] sm:$0xf]
    %v74 = vld [vmem:[#allocation6 + $0xc] sm:$0xf]
    %v75 = vld [vmem:[#allocation6 + $0x10] sm:$0xf]
    %v76 = vld [vmem:[#allocation6 + $0x14] sm:$0xf]
    %v77 = vld [vmem:[#allocation6 + $0x18] sm:$0xf]
    %v78 = vld [vmem:[#allocation6 + $0x1c] sm:$0xf]
    %v79 = vld [vmem:[#allocation6 + $0x20] sm:$0xf]
    %v80 = vld [vmem:[#allocation6 + $0x24] sm:$0xf]
    %v81 = vld [vmem:[#allocation6 + $0x28] sm:$0xf]
    %v82 = vld [vmem:[#allocation6 + $0x2c] sm:$0xf]
    %v83 = vld [vmem:[#allocation6 + $0x30] sm:$0xf]
    %v84 = vld [vmem:[#allocation6 + $0x34] sm:$0xf]
    %v85 = vld [vmem:[#allocation6 + $0x38] sm:$0xf]
    %v86 = vld [vmem:[#allocation6 + $0x3c] sm:$0xf]
    %v91 = vunpack.c.l.b16 %v67
    %v92 = vunpack.c.l.b16 %v68
    %v93 = vunpack.c.l.b16 %v69
    %v94 = vunpack.c.l.b16 %v70
    %v95 = vpack.c.b16 %v92, %v91
    %v96 = vpack.c.b16 %v94, %v93
    %v115 = vunpack.c.l.b16 %v71
    %v116 = vunpack.c.l.b16 %v72
    %v117 = vunpack.c.l.b16 %v73
    %v118 = vunpack.c.l.b16 %v74
    %v119 = vunpack.c.l.b16 %v75
    %v120 = vunpack.c.l.b16 %v76
    %v121 = vunpack.c.l.b16 %v77
    %v122 = vunpack.c.l.b16 %v78
    %v123 = vunpack.c.l.b16 %v79
    %v124 = vunpack.c.l.b16 %v80
    %v125 = vunpack.c.l.b16 %v81
    %v126 = vunpack.c.l.b16 %v82
    %v127 = vunpack.c.l.b16 %v83
    %v128 = vunpack.c.l.b16 %v84
    %v129 = vunpack.c.l.b16 %v85
    %v130 = vunpack.c.l.b16 %v86
    %v131 = vpack.c.b16 %v116, %v115
    %v132 = vpack.c.b16 %v118, %v117
    %v133 = vpack.c.b16 %v120, %v119
    %v134 = vpack.c.b16 %v122, %v121
    %v135 = vpack.c.b16 %v124, %v123
    %v136 = vpack.c.b16 %v126, %v125
    %v137 = vpack.c.b16 %v128, %v127
    %v138 = vpack.c.b16 %v130, %v129
    %147 = vmatprep.subr.bf16.mxu0 0
    %148 = vmatpush1.bf16.msra.mxu0 %v131
    %149 = vmatprep.subr.bf16.mxu0 0
    %150 = vmatpush1.bf16.msra.mxu0 %v132
    %151 = vmatprep.subr.bf16.mxu0 0
    %152 = vmatpush1.bf16.msra.mxu0 %v133
    %153 = vmatprep.subr.bf16.mxu0 0
    %154 = vmatpush1.bf16.msra.mxu0 %v134
    %155 = vmatprep.subr.bf16.mxu0 0
    %156 = vmatpush1.bf16.msra.mxu0 %v135
    %157 = vmatprep.subr.bf16.mxu0 0
    %158 = vmatpush1.bf16.msra.mxu0 %v136
    %159 = vmatprep.subr.bf16.mxu0 0
    %160 = vmatpush1.bf16.msra.mxu0 %v137
    %161 = vmatprep.subr.bf16.mxu0 0
    %162 = vmatpush1.bf16.msra.mxu0 %v138
    %163 = vmatprep.subr.bf16.mxu0 0
    %164 = vmatpush1.bf16.msra.mxu0 0
    %165 = vmatprep.subr.bf16.mxu0 0
    %166 = vmatpush1.bf16.msra.mxu0 0
    %167 = vmatprep.subr.bf16.mxu0 0
    %168 = vmatpush1.bf16.msra.mxu0 0
    %169 = vmatprep.subr.bf16.mxu0 0
    %170 = vmatpush1.bf16.msra.mxu0 0
    %171 = vmatprep.subr.bf16.mxu0 0
    %172 = vmatpush1.bf16.msra.mxu0 0
    %173 = vmatprep.subr.bf16.mxu0 0
    %174 = vmatpush1.bf16.msra.mxu0 0
    %175 = vmatprep.subr.bf16.mxu0 0
    %176 = vmatpush1.bf16.msra.mxu0 0
    %177 = vmatprep.subr.bf16.mxu0 0
    %178 = vmatpush1.bf16.msra.mxu0 0
    %179 = vmatprep.mubr.bf16.mxu0 0
    %180 = vmatmul.mubr.bf16.gmra.mrb[0].mxu0 %v95
    %v181 = vpop.f32.mrb[0].mxu0
    %v182 = vadd.f32 0.0, %v181
    %v183 = vpop.f32.mrb[0].mxu0
    %v184 = vpop.f32.mrb[0].mxu0
    %v185 = vadd.f32 0.0, %v184
    %v186 = vpop.f32.mrb[0].mxu0
    %187 = vmatprep.mubr.bf16.mxu0 0
    %188 = vmatmul.mubr.bf16.gmra.mrb[0].mxu0 %v96
    %v189 = vpop.f32.mrb[0].mxu0
    %v190 = vadd.f32 0.0, %v189
    %v191 = vpop.f32.mrb[0].mxu0
    %v192 = vpop.f32.mrb[0].mxu0
    %v193 = vadd.f32 0.0, %v192
    %v194 = vpop.f32.mrb[0].mxu0
    %195 = vdwg.mxu0
    %v196 = vadd.f32 %v63, %v182
    %v197 = vadd.f32 %v64, %v185
    %v198 = vadd.f32 %v65, %v190
    %v199 = vadd.f32 %v66, %v193
    %200 = vst [vmem:[#allocation2] sm:$0xff] %v196
    %201 = vst [vmem:[#allocation2 + $0x8] sm:$0xff] %v197
    %202 = vst [vmem:[#allocation2 + $0x10] sm:$0xff] %v198
    %203 = vst [vmem:[#allocation2 + $0x18] sm:$0xff] %v199
    // Predicated region
    $region30: #{vae_forward.37} parent=1 // pred_check
      %p204 = pneg %p55
    $region31: #{vae_forward.37} parent=1 // pred_check_branch
      %206 = sbr.rel (%p204) target = $region33
    $region32: #{vae_forward.37} parent=1 // pred_region
      %v207 = vld [vmem:[#allocation2] sm:$0xff]
      %v208 = vld [vmem:[#allocation2 + $0x8] sm:$0xff]
      %v209 = vld [vmem:[#allocation2 + $0x10] sm:$0xff]
      %v210 = vld [vmem:[#allocation2 + $0x18] sm:$0xff]
      %v211 = vld [vmem:[#allocation8] sm:$0x1]
      %v213 = vlaneseq
      %v214 = vshrl.u32 %v213, 7
      %v215 = vsub.s32 0, %v214
      %v216 = vrot.slane %v211, %v215
      %v218 = vadd.f32 %v207, %v216
      %v219 = vadd.f32 %v208, %v216
      %v220 = vadd.f32 %v209, %v216
      %v221 = vadd.f32 %v210, %v216
      %v222 = vmax.f32 %v218, 0.0
      %v223 = vmax.f32 %v219, 0.0
      %v224 = vmax.f32 %v220, 0.0
      %v225 = vmax.f32 %v221, 0.0
      %226 = vst [vmem:[#allocation9] sm:$0xff] %v222
      %227 = vst [vmem:[#allocation9 + $0x8] sm:$0xff] %v223
      %228 = vst [vmem:[#allocation9 + $0x10] sm:$0xff] %v224
      %229 = vst [vmem:[#allocation9 + $0x18] sm:$0xff] %v225
    $region33: #{vae_forward.37} parent=1 // pred_fallthru
      _
    // Predicated region
    $region34: #{vae_forward.37} parent=1 // pred_check
      _
    $region35: #{vae_forward.37} parent=1 // pred_check_branch
      %231 = sbr.rel (0) target = $region37
    $region36: #{vae_forward.37} parent=1 // pred_region
      %s233 = ssub.s32 512, 512
      %234 = vsyncadd [#allocation5], %s233
      %s235 = sshll.u32 [#allocation9], 4
      %s236 = int_to_ptr.vmem [resolvable:$true] %s235
      %241 = dma.vmem_to_hbm [thread:$0]  %s236, 512, %s3, [#allocation5], 128, 128, 8
    $region37: #{vae_forward.37} parent=1 // pred_fallthru
      _
    // Predicated region
    $region38: #{vae_forward.37} parent=1 // pred_check
      _
    $region39: #{vae_forward.37} parent=1 // pred_check_branch
      %243 = sbr.rel (0) target = $region41
    $region40: #{vae_forward.37} parent=1 // pred_region
      %244 = dma.done [#allocation5], 512
    $region41: #{vae_forward.37} parent=1 // pred_fallthru
      _
    %245 = vsyncpa [#allocation4], 1
    %246 = vsyncpa [#allocation7], 1
    %247 = vsyncpa [#allocation5], 1

// kernel: vae_forward.39
$region0: #{vae_forward.39}
  #allocation0 [shape = 'u32[]', space=smem, size = 0x4, offset = 0x4, fixed_abs, tag = 'smem constant byte address 0x4 - core index']
  #allocation1 [shape = 'u32[144,128]{1,0:T(1,128)}', space=vmem, size = 0x12000, scoped, tag = 'internal scratch']
  #allocation2 [shape = 'f32[128,128]{1,0:T(8,128)}', space=vmem, size = 0x10000, scoped, tag = 'scratch operand']
  %s0 = inlined_call_operand.hbm [shape: bf16[128,384], index: 0, kind: input, shape index: {}]
  %s1 = inlined_call_operand.hbm [shape: bf16[384,128], index: 1, kind: input, shape index: {}]
  %s2 = inlined_call_operand.hbm [shape: f32[1,128], index: 2, kind: input, shape index: {}]
  %s3 = inlined_call_operand.hbm [shape: f32[128,128], index: 3, kind: output, shape index: {}]
  %s4 = sld [smem:[#allocation0]]
  $region42: #{vae_forward.39} parent=0
    _
  %s6 = ssub.s32 1, %s4
  %s7 = scalar_select 0, %s6, %s4
  $region1: #{vae_forward.39} parent=0
    #allocation3 [shape = 'u8[98304]{0}', space=vmem, size = 0x18000, scoped, tag = 'input window, operand 0, single buffered']
    #allocation4 [shape = 's32[1]{0}', space=sflag, size = 0x4, scoped, tag = 'scoped memory for vae_forward.39']
    #allocation5 [shape = 's32[1]{0}', space=sflag, size = 0x4, scoped, tag = 'scoped memory for vae_forward.39']
    #allocation6 [shape = 'u8[98304]{0}', space=vmem, size = 0x18000, scoped, tag = 'input window, operand 1, single buffered']
    #allocation7 [shape = 's32[1]{0}', space=sflag, size = 0x4, scoped, tag = 'scoped memory for vae_forward.39']
    #allocation8 [shape = 'u8[512]{0}', space=vmem, size = 0x400, scoped, tag = 'input window, operand 2, single buffered']
    #allocation9 [shape = 'u8[65536]{0}', space=vmem, size = 0x10000, scoped, tag = 'output window, operand 0, single buffered']
    %8 = vsyncpa [#allocation4], 0
    %9 = vsyncpa [#allocation7], 0
    %10 = vsyncpa [#allocation5], 0
    // Predicated region
    $region2: #{vae_forward.39} parent=1 // pred_check
      _
    $region3: #{vae_forward.39} parent=1 // pred_check_branch
      %12 = sbr.rel (0) target = $region5
    $region4: #{vae_forward.39} parent=1 // pred_region
      %s14 = ssub.s32 3072, 3072
      %15 = vsyncadd [#allocation4], %s14
      %s16 = sshll.u32 [#allocation3], 4
      %s17 = int_to_ptr.vmem [resolvable:$true] %s16
      %22 = dma.hbm_to_vmem [thread:$0]  %s0, 3072, %s17, [#allocation4], 192, 192, 12
    $region5: #{vae_forward.39} parent=1 // pred_fallthru
      _
    // Predicated region
    $region6: #{vae_forward.39} parent=1 // pred_check
      _
    $region7: #{vae_forward.39} parent=1 // pred_check_branch
      %24 = sbr.rel (0) target = $region9
    $region8: #{vae_forward.39} parent=1 // pred_region
      %s26 = ssub.s32 3072, 3072
      %27 = vsyncadd [#allocation7], %s26
      %s28 = sshll.u32 [#allocation6], 4
      %s29 = int_to_ptr.vmem [resolvable:$true] %s28
      %34 = dma.hbm_to_vmem [thread:$0]  %s1, 3072, %s29, [#allocation7], 64, 64, 4
    $region9: #{vae_forward.39} parent=1 // pred_fallthru
      _
    // Predicated region
    $region10: #{vae_forward.39} parent=1 // pred_check
      _
    $region11: #{vae_forward.39} parent=1 // pred_check_branch
      %36 = sbr.rel (0) target = $region13
    $region12: #{vae_forward.39} parent=1 // pred_region
      %s38 = ssub.s32 16, 16
      %39 = vsyncadd [#allocation7], %s38
      %s41 = sshll.u32 [#allocation8], 4
      %s42 = int_to_ptr.vmem [resolvable:$true] %s41
      %44 = dma.hbm_to_vmem [thread:$0]  %s2, 16, %s42, [#allocation7]
    $region13: #{vae_forward.39} parent=1 // pred_fallthru
      _
    // Predicated region
    $region14: #{vae_forward.39} parent=1 // pred_check
      _
    $region15: #{vae_forward.39} parent=1 // pred_check_branch
      %46 = sbr.rel (0) target = $region17
    $region16: #{vae_forward.39} parent=1 // pred_region
      %47 = dma.done [#allocation4], 3072
    $region17: #{vae_forward.39} parent=1 // pred_fallthru
      _
    // Predicated region
    $region18: #{vae_forward.39} parent=1 // pred_check
      _
    $region19: #{vae_forward.39} parent=1 // pred_check_branch
      %49 = sbr.rel (0) target = $region21
    $region20: #{vae_forward.39} parent=1 // pred_region
      %50 = dma.done [#allocation7], 3072
    $region21: #{vae_forward.39} parent=1 // pred_fallthru
      _
    // Predicated region
    $region22: #{vae_forward.39} parent=1 // pred_check
      _
    $region23: #{vae_forward.39} parent=1 // pred_check_branch
      %52 = sbr.rel (0) target = $region25
    $region24: #{vae_forward.39} parent=1 // pred_region
      %53 = dma.done [#allocation7], 16
    $region25: #{vae_forward.39} parent=1 // pred_fallthru
      _
    %p55 = scmp.eq.s32.totalorder 0, 0
    // Predicated region
    $region26: #{vae_forward.39} parent=1 // pred_check
      %p56 = pneg %p55
    $region27: #{vae_forward.39} parent=1 // pred_check_branch
      %58 = sbr.rel (%p56) target = $region29
    $region28: #{vae_forward.39} parent=1 // pred_region
      %59 = vst [vmem:[#allocation2] sm:$0xff] 0.0
      %60 = vst [vmem:[#allocation2 + $0x8] sm:$0xff] 0.0
      %61 = vst [vmem:[#allocation2 + $0x10] sm:$0xff] 0.0
      %62 = vst [vmem:[#allocation2 + $0x18] sm:$0xff] 0.0
      %63 = vst [vmem:[#allocation2 + $0x20] sm:$0xff] 0.0
      %64 = vst [vmem:[#allocation2 + $0x28] sm:$0xff] 0.0
      %65 = vst [vmem:[#allocation2 + $0x30] sm:$0xff] 0.0
      %66 = vst [vmem:[#allocation2 + $0x38] sm:$0xff] 0.0
      %67 = vst [vmem:[#allocation2 + $0x40] sm:$0xff] 0.0
      %68 = vst [vmem:[#allocation2 + $0x48] sm:$0xff] 0.0
      %69 = vst [vmem:[#allocation2 + $0x50] sm:$0xff] 0.0
      %70 = vst [vmem:[#allocation2 + $0x58] sm:$0xff] 0.0
      %71 = vst [vmem:[#allocation2 + $0x60] sm:$0xff] 0.0
      %72 = vst [vmem:[#allocation2 + $0x68] sm:$0xff] 0.0
      %73 = vst [vmem:[#allocation2 + $0x70] sm:$0xff] 0.0
      %74 = vst [vmem:[#allocation2 + $0x78] sm:$0xff] 0.0
    $region29: #{vae_forward.39} parent=1 // pred_fallthru
      _
    %v75 = vld [vmem:[#allocation2] sm:$0xff]
    %v76 = vld [vmem:[#allocation2 + $0x8] sm:$0xff]
    %v77 = vld [vmem:[#allocation2 + $0x10] sm:$0xff]
    %v78 = vld [vmem:[#allocation2 + $0x18] sm:$0xff]
    %v79 = vld [vmem:[#allocation2 + $0x20] sm:$0xff]
    %v80 = vld [vmem:[#allocation2 + $0x28] sm:$0xff]
    %v81 = vld [vmem:[#allocation2 + $0x30] sm:$0xff]
    %v82 = vld [vmem:[#allocation2 + $0x38] sm:$0xff]
    %v83 = vld [vmem:[#allocation2 + $0x40] sm:$0xff]
    %v84 = vld [vmem:[#allocation2 + $0x48] sm:$0xff]
    %v85 = vld [vmem:[#allocation2 + $0x50] sm:$0xff]
    %v86 = vld [vmem:[#allocation2 + $0x58] sm:$0xff]
    %v87 = vld [vmem:[#allocation2 + $0x60] sm:$0xff]
    %v88 = vld [vmem:[#allocation2 + $0x68] sm:$0xff]
    %v89 = vld [vmem:[#allocation2 + $0x70] sm:$0xff]
    %v90 = vld [vmem:[#allocation2 + $0x78] sm:$0xff]
    %v91 = vld [vmem:[#allocation3] sm:$0xff]
    %v92 = vld [vmem:[#allocation3 + $0x8] sm:$0xf]
    %v93 = vld [vmem:[#allocation3 + $0xc] sm:$0xff]
    %v94 = vld [vmem:[#allocation3 + $0x14] sm:$0xf]
    %v95 = vld [vmem:[#allocation3 + $0x18] sm:$0xff]
    %v96 = vld [vmem:[#allocation3 + $0x20] sm:$0xf]
    %v97 = vld [vmem:[#allocation3 + $0x24] sm:$0xff]
    %v98 = vld [vmem:[#allocation3 + $0x2c] sm:$0xf]
    %v99 = vld [vmem:[#allocation3 + $0x30] sm:$0xff]
    %v100 = vld [vmem:[#allocation3 + $0x38] sm:$0xf]
    %v101 = vld [vmem:[#allocation3 + $0x3c] sm:$0xff]
    %v102 = vld [vmem:[#allocation3 + $0x44] sm:$0xf]
    %v103 = vld [vmem:[#allocation3 + $0x48] sm:$0xff]
    %v104 = vld [vmem:[#allocation3 + $0x50] sm:$0xf]
    %v105 = vld [vmem:[#allocation3 + $0x54] sm:$0xff]
    %v106 = vld [vmem:[#allocation3 + $0x5c] sm:$0xf]
    %v107 = vld [vmem:[#allocation3 + $0x60] sm:$0xff]
    %v108 = vld [vmem:[#allocation3 + $0x68] sm:$0xf]
    %v109 = vld [vmem:[#allocation3 + $0x6c] sm:$0xff]
    %v110 = vld [vmem:[#allocation3 + $0x74] sm:$0xf]
    %v111 = vld [vmem:[#allocation3 + $0x78] sm:$0xff]
    %v112 = vld [vmem:[#allocation3 + $0x80] sm:$0xf]
    %v113 = vld [vmem:[#allocation3 + $0x84] sm:$0xff]
    %v114 = vld [vmem:[#allocation3 + $0x8c] sm:$0xf]
    %v115 = vld [vmem:[#allocation3 + $0x90] sm:$0xff]
    %v116 = vld [vmem:[#allocation3 + $0x98] sm:$0xf]
    %v117 = vld [vmem:[#allocation3 + $0x9c] sm:$0xff]
    %v118 = vld [vmem:[#allocation3 + $0xa4] sm:$0xf]
    %v119 = vld [vmem:[#allocation3 + $0xa8] sm:$0xff]
    %v120 = vld [vmem:[#allocation3 + $0xb0] sm:$0xf]
    %v121 = vld [vmem:[#allocation3 + $0xb4] sm:$0xff]
    %v122 = vld [vmem:[#allocation3 + $0xbc] sm:$0xf]
    %v123 = vld [vmem:[#allocation6] sm:$0xf]
    %v124 = vld [vmem:[#allocation6 + $0x4] sm:$0xf]
    %v125 = vld [vmem:[#allocation6 + $0x8] sm:$0xf]
    %v126 = vld [vmem:[#allocation6 + $0xc] sm:$0xf]
    %v127 = vld [vmem:[#allocation6 + $0x10] sm:$0xf]
    %v128 = vld [vmem:[#allocation6 + $0x14] sm:$0xf]
    %v129 = vld [vmem:[#allocation6 + $0x18] sm:$0xf]
    %v130 = vld [vmem:[#allocation6 + $0x1c] sm:$0xf]
    %v131 = vld [vmem:[#allocation6 + $0x20] sm:$0xf]
    %v132 = vld [vmem:[#allocation6 + $0x24] sm:$0xf]
    %v133 = vld [vmem:[#allocation6 + $0x28] sm:$0xf]
    %v134 = vld [vmem:[#allocation6 + $0x2c] sm:$0xf]
    %v135 = vld [vmem:[#allocation6 + $0x30] sm:$0xf]
    %v136 = vld [vmem:[#allocation6 + $0x34] sm:$0xf]
    %v137 = vld [vmem:[#allocation6 + $0x38] sm:$0xf]
    %v138 = vld [vmem:[#allocation6 + $0x3c] sm:$0xf]
    %v139 = vld [vmem:[#allocation6 + $0x40] sm:$0xf]
    %v140 = vld [vmem:[#allocation6 + $0x44] sm:$0xf]
    %v141 = vld [vmem:[#allocation6 + $0x48] sm:$0xf]
    %v142 = vld [vmem:[#allocation6 + $0x4c] sm:$0xf]
    %v143 = vld [vmem:[#allocation6 + $0x50] sm:$0xf]
    %v144 = vld [vmem:[#allocation6 + $0x54] sm:$0xf]
    %v145 = vld [vmem:[#allocation6 + $0x58] sm:$0xf]
    %v146 = vld [vmem:[#allocation6 + $0x5c] sm:$0xf]
    %v147 = vld [vmem:[#allocation6 + $0x60] sm:$0xf]
    %v148 = vld [vmem:[#allocation6 + $0x64] sm:$0xf]
    %v149 = vld [vmem:[#allocation6 + $0x68] sm:$0xf]
    %v150 = vld [vmem:[#allocation6 + $0x6c] sm:$0xf]
    %v151 = vld [vmem:[#allocation6 + $0x70] sm:$0xf]
    %v152 = vld [vmem:[#allocation6 + $0x74] sm:$0xf]
    %v153 = vld [vmem:[#allocation6 + $0x78] sm:$0xf]
    %v154 = vld [vmem:[#allocation6 + $0x7c] sm:$0xf]
    %v155 = vld [vmem:[#allocation6 + $0x80] sm:$0xf]
    %v156 = vld [vmem:[#allocation6 + $0x84] sm:$0xf]
    %v157 = vld [vmem:[#allocation6 + $0x88] sm:$0xf]
    %v158 = vld [vmem:[#allocation6 + $0x8c] sm:$0xf]
    %v159 = vld [vmem:[#allocation6 + $0x90] sm:$0xf]
    %v160 = vld [vmem:[#allocation6 + $0x94] sm:$0xf]
    %v161 = vld [vmem:[#allocation6 + $0x98] sm:$0xf]
    %v162 = vld [vmem:[#allocation6 + $0x9c] sm:$0xf]
    %v163 = vld [vmem:[#allocation6 + $0xa0] sm:$0xf]
    %v164 = vld [vmem:[#allocation6 + $0xa4] sm:$0xf]
    %v165 = vld [vmem:[#allocation6 + $0xa8] sm:$0xf]
    %v166 = vld [vmem:[#allocation6 + $0xac] sm:$0xf]
    %v167 = vld [vmem:[#allocation6 + $0xb0] sm:$0xf]
    %v168 = vld [vmem:[#allocation6 + $0xb4] sm:$0xf]
    %v169 = vld [vmem:[#allocation6 + $0xb8] sm:$0xf]
    %v170 = vld [vmem:[#allocation6 + $0xbc] sm:$0xf]
    %v203 = vunpack.c.l.b16 %v91
    %v204 = vunpack.c.h.b16 %v91
    %v205 = vunpack.c.l.b16 %v92
    %v206 = vunpack.c.l.b16 %v93
    %v207 = vunpack.c.h.b16 %v93
    %v208 = vunpack.c.l.b16 %v94
    %v209 = vunpack.c.l.b16 %v95
    %v210 = vunpack.c.h.b16 %v95
    %v211 = vunpack.c.l.b16 %v96
    %v212 = vunpack.c.l.b16 %v97
    %v213 = vunpack.c.h.b16 %v97
    %v214 = vunpack.c.l.b16 %v98
    %v215 = vunpack.c.l.b16 %v99
    %v216 = vunpack.c.h.b16 %v99
    %v217 = vunpack.c.l.b16 %v100
    %v218 = vunpack.c.l.b16 %v101
    %v219 = vunpack.c.h.b16 %v101
    %v220 = vunpack.c.l.b16 %v102
    %v221 = vunpack.c.l.b16 %v103
    %v222 = vunpack.c.h.b16 %v103
    %v223 = vunpack.c.l.b16 %v104
    %v224 = vunpack.c.l.b16 %v105
    %v225 = vunpack.c.h.b16 %v105
    %v226 = vunpack.c.l.b16 %v106
    %v227 = vunpack.c.l.b16 %v107
    %v228 = vunpack.c.h.b16 %v107
    %v229 = vunpack.c.l.b16 %v108
    %v230 = vunpack.c.l.b16 %v109
    %v231 = vunpack.c.h.b16 %v109
    %v232 = vunpack.c.l.b16 %v110
    %v233 = vunpack.c.l.b16 %v111
    %v234 = vunpack.c.h.b16 %v111
    %v235 = vunpack.c.l.b16 %v112
    %v236 = vunpack.c.l.b16 %v113
    %v237 = vunpack.c.h.b16 %v113
    %v238 = vunpack.c.l.b16 %v114
    %v239 = vunpack.c.l.b16 %v115
    %v240 = vunpack.c.h.b16 %v115
    %v241 = vunpack.c.l.b16 %v116
    %v242 = vunpack.c.l.b16 %v117
    %v243 = vunpack.c.h.b16 %v117
    %v244 = vunpack.c.l.b16 %v118
    %v245 = vunpack.c.l.b16 %v119
    %v246 = vunpack.c.h.b16 %v119
    %v247 = vunpack.c.l.b16 %v120
    %v248 = vunpack.c.l.b16 %v121
    %v249 = vunpack.c.h.b16 %v121
    %v250 = vunpack.c.l.b16 %v122
    %v251 = vpack.c.b16 %v206, %v203
    %v252 = vpack.c.b16 %v207, %v204
    %v253 = vpack.c.b16 %v208, %v205
    %v254 = vpack.c.b16 %v212, %v209
    %v255 = vpack.c.b16 %v213, %v210
    %v256 = vpack.c.b16 %v214, %v211
    %v257 = vpack.c.b16 %v218, %v215
    %v258 = vpack.c.b16 %v219, %v216
    %v259 = vpack.c.b16 %v220, %v217
    %v260 = vpack.c.b16 %v224, %v221
    %v261 = vpack.c.b16 %v225, %v222
    %v262 = vpack.c.b16 %v226, %v223
    %v263 = vpack.c.b16 %v230, %v227
    %v264 = vpack.c.b16 %v231, %v228
    %v265 = vpack.c.b16 %v232, %v229
    %v266 = vpack.c.b16 %v236, %v233
    %v267 = vpack.c.b16 %v237, %v234
    %v268 = vpack.c.b16 %v238, %v235
    %v269 = vpack.c.b16 %v242, %v239
    %v270 = vpack.c.b16 %v243, %v240
    %v271 = vpack.c.b16 %v244, %v241
    %v272 = vpack.c.b16 %v248, %v245
    %v273 = vpack.c.b16 %v249, %v246
    %v274 = vpack.c.b16 %v250, %v247
    %v347 = vunpack.c.l.b16 %v123
    %v348 = vunpack.c.l.b16 %v124
    %v349 = vunpack.c.l.b16 %v125
    %v350 = vunpack.c.l.b16 %v126
    %v351 = vunpack.c.l.b16 %v127
    %v352 = vunpack.c.l.b16 %v128
    %v353 = vunpack.c.l.b16 %v129
    %v354 = vunpack.c.l.b16 %v130
    %v355 = vunpack.c.l.b16 %v131
    %v356 = vunpack.c.l.b16 %v132
    %v357 = vunpack.c.l.b16 %v133
    %v358 = vunpack.c.l.b16 %v134
    %v359 = vunpack.c.l.b16 %v135
    %v360 = vunpack.c.l.b16 %v136
    %v361 = vunpack.c.l.b16 %v137
    %v362 = vunpack.c.l.b16 %v138
    %v363 = vunpack.c.l.b16 %v139
    %v364 = vunpack.c.l.b16 %v140
    %v365 = vunpack.c.l.b16 %v141
    %v366 = vunpack.c.l.b16 %v142
    %v367 = vunpack.c.l.b16 %v143
    %v368 = vunpack.c.l.b16 %v144
    %v369 = vunpack.c.l.b16 %v145
    %v370 = vunpack.c.l.b16 %v146
    %v371 = vunpack.c.l.b16 %v147
    %v372 = vunpack.c.l.b16 %v148
    %v373 = vunpack.c.l.b16 %v149
    %v374 = vunpack.c.l.b16 %v150
    %v375 = vunpack.c.l.b16 %v151
    %v376 = vunpack.c.l.b16 %v152
    %v377 = vunpack.c.l.b16 %v153
    %v378 = vunpack.c.l.b16 %v154
    %v379 = vunpack.c.l.b16 %v155
    %v380 = vunpack.c.l.b16 %v156
    %v381 = vunpack.c.l.b16 %v157
    %v382 = vunpack.c.l.b16 %v158
    %v383 = vunpack.c.l.b16 %v159
    %v384 = vunpack.c.l.b16 %v160
    %v385 = vunpack.c.l.b16 %v161
    %v386 = vunpack.c.l.b16 %v162
    %v387 = vunpack.c.l.b16 %v163
    %v388 = vunpack.c.l.b16 %v164
    %v389 = vunpack.c.l.b16 %v165
    %v390 = vunpack.c.l.b16 %v166
    %v391 = vunpack.c.l.b16 %v167
    %v392 = vunpack.c.l.b16 %v168
    %v393 = vunpack.c.l.b16 %v169
    %v394 = vunpack.c.l.b16 %v170
    %v395 = vpack.c.b16 %v348, %v347
    %v396 = vpack.c.b16 %v350, %v349
    %v397 = vpack.c.b16 %v352, %v351
    %v398 = vpack.c.b16 %v354, %v353
    %v399 = vpack.c.b16 %v356, %v355
    %v400 = vpack.c.b16 %v358, %v357
    %v401 = vpack.c.b16 %v360, %v359
    %v402 = vpack.c.b16 %v362, %v361
    %v403 = vpack.c.b16 %v364, %v363
    %v404 = vpack.c.b16 %v366, %v365
    %v405 = vpack.c.b16 %v368, %v367
    %v406 = vpack.c.b16 %v370, %v369
    %v407 = vpack.c.b16 %v372, %v371
    %v408 = vpack.c.b16 %v374, %v373
    %v409 = vpack.c.b16 %v376, %v375
    %v410 = vpack.c.b16 %v378, %v377
    %v411 = vpack.c.b16 %v380, %v379
    %v412 = vpack.c.b16 %v382, %v381
    %v413 = vpack.c.b16 %v384, %v383
    %v414 = vpack.c.b16 %v386, %v385
    %v415 = vpack.c.b16 %v388, %v387
    %v416 = vpack.c.b16 %v390, %v389
    %v417 = vpack.c.b16 %v392, %v391
    %v418 = vpack.c.b16 %v394, %v393
    %443 = vmatprep.subr.bf16.mxu0 0
    %444 = vmatpush1.bf16.msra.mxu0 %v395
    %445 = vmatprep.subr.bf16.mxu0 0
    %446 = vmatpush1.bf16.msra.mxu0 %v396
    %447 = vmatprep.subr.bf16.mxu0 0
    %448 = vmatpush1.bf16.msra.mxu0 %v397
    %449 = vmatprep.subr.bf16.mxu0 0
    %450 = vmatpush1.bf16.msra.mxu0 %v398
    %451 = vmatprep.subr.bf16.mxu0 0
    %452 = vmatpush1.bf16.msra.mxu0 %v399
    %453 = vmatprep.subr.bf16.mxu0 0
    %454 = vmatpush1.bf16.msra.mxu0 %v400
    %455 = vmatprep.subr.bf16.mxu0 0
    %456 = vmatpush1.bf16.msra.mxu0 %v401
    %457 = vmatprep.subr.bf16.mxu0 0
    %458 = vmatpush1.bf16.msra.mxu0 %v402
    %459 = vmatprep.subr.bf16.mxu0 0
    %460 = vmatpush1.bf16.msra.mxu0 %v403
    %461 = vmatprep.subr.bf16.mxu0 0
    %462 = vmatpush1.bf16.msra.mxu0 %v404
    %463 = vmatprep.subr.bf16.mxu0 0
    %464 = vmatpush1.bf16.msra.mxu0 %v405
    %465 = vmatprep.subr.bf16.mxu0 0
    %466 = vmatpush1.bf16.msra.mxu0 %v406
    %467 = vmatprep.subr.bf16.mxu0 0
    %468 = vmatpush1.bf16.msra.mxu0 %v407
    %469 = vmatprep.subr.bf16.mxu0 0
    %470 = vmatpush1.bf16.msra.mxu0 %v408
    %471 = vmatprep.subr.bf16.mxu0 0
    %472 = vmatpush1.bf16.msra.mxu0 %v409
    %473 = vmatprep.subr.bf16.mxu0 0
    %474 = vmatpush1.bf16.msra.mxu0 %v410
    %475 = vmatprep.mubr.bf16.mxu0 %v252
    %476 = vmatmul.mubr.bf16.gmra.mrb[0].mxu0 %v251
    %v477 = vpop.f32.mrb[0].mxu0
    %v478 = vadd.f32 0.0, %v477
    %v479 = vpop.f32.mrb[0].mxu0
    %v480 = vpop.f32.mrb[0].mxu0
    %v481 = vadd.f32 0.0, %v480
    %v482 = vpop.f32.mrb[0].mxu0
    %483 = vmatprep.mubr.bf16.mxu0 %v255
    %484 = vmatmul.mubr.bf16.gmra.mrb[0].mxu0 %v254
    %v485 = vpop.f32.mrb[0].mxu0
    %v486 = vadd.f32 0.0, %v485
    %v487 = vpop.f32.mrb[0].mxu0
    %v488 = vpop.f32.mrb[0].mxu0
    %v489 = vadd.f32 0.0, %v488
    %v490 = vpop.f32.mrb[0].mxu0
    %491 = vmatprep.mubr.bf16.mxu0 %v258
    %492 = vmatmul.mubr.bf16.gmra.mrb[0].mxu0 %v257
    %v493 = vpop.f32.mrb[0].mxu0
    %v494 = vadd.f32 0.0, %v493
    %v495 = vpop.f32.mrb[0].mxu0
    %v496 = vpop.f32.mrb[0].mxu0
    %v497 = vadd.f32 0.0, %v496
    %v498 = vpop.f32.mrb[0].mxu0
    %499 = vmatprep.mubr.bf16.mxu0 %v261
    %500 = vmatmul.mubr.bf16.gmra.mrb[0].mxu0 %v260
    %v501 = vpop.f32.mrb[0].mxu0
    %v502 = vadd.f32 0.0, %v501
    %v503 = vpop.f32.mrb[0].mxu0
    %v504 = vpop.f32.mrb[0].mxu0
    %v505 = vadd.f32 0.0, %v504
    %v506 = vpop.f32.mrb[0].mxu0
    %507 = vmatprep.mubr.bf16.mxu0 %v264
    %508 = vmatmul.mubr.bf16.gmra.mrb[0].mxu0 %v263
    %v509 = vpop.f32.mrb[0].mxu0
    %v510 = vadd.f32 0.0, %v509
    %v511 = vpop.f32.mrb[0].mxu0
    %v512 = vpop.f32.mrb[0].mxu0
    %v513 = vadd.f32 0.0, %v512
    %v514 = vpop.f32.mrb[0].mxu0
    %515 = vmatprep.mubr.bf16.mxu0 %v267
    %516 = vmatmul.mubr.bf16.gmra.mrb[0].mxu0 %v266
    %v517 = vpop.f32.mrb[0].mxu0
    %v518 = vadd.f32 0.0, %v517
    %v519 = vpop.f32.mrb[0].mxu0
    %v520 = vpop.f32.mrb[0].mxu0
    %v521 = vadd.f32 0.0, %v520
    %v522 = vpop.f32.mrb[0].mxu0
    %523 = vmatprep.mubr.bf16.mxu0 %v270
    %524 = vmatmul.mubr.bf16.gmra.mrb[0].mxu0 %v269
    %v525 = vpop.f32.mrb[0].mxu0
    %v526 = vadd.f32 0.0, %v525
    %v527 = vpop.f32.mrb[0].mxu0
    %v528 = vpop.f32.mrb[0].mxu0
    %v529 = vadd.f32 0.0, %v528
    %v530 = vpop.f32.mrb[0].mxu0
    %531 = vmatprep.mubr.bf16.mxu0 %v273
    %532 = vmatmul.mubr.bf16.gmra.mrb[0].mxu0 %v272
    %v533 = vpop.f32.mrb[0].mxu0
    %v534 = vadd.f32 0.0, %v533
    %v535 = vpop.f32.mrb[0].mxu0
    %v536 = vpop.f32.mrb[0].mxu0
    %v537 = vadd.f32 0.0, %v536
    %v538 = vpop.f32.mrb[0].mxu0
    %539 = vdwg.mxu0
    %540 = vmatprep.subr.bf16.mxu0 0
    %541 = vmatpush1.bf16.msra.mxu0 %v411
    %542 = vmatprep.subr.bf16.mxu0 0
    %543 = vmatpush1.bf16.msra.mxu0 %v412
    %544 = vmatprep.subr.bf16.mxu0 0
    %545 = vmatpush1.bf16.msra.mxu0 %v413
    %546 = vmatprep.subr.bf16.mxu0 0
    %547 = vmatpush1.bf16.msra.mxu0 %v414
    %548 = vmatprep.subr.bf16.mxu0 0
    %549 = vmatpush1.bf16.msra.mxu0 %v415
    %550 = vmatprep.subr.bf16.mxu0 0
    %551 = vmatpush1.bf16.msra.mxu0 %v416
    %552 = vmatprep.subr.bf16.mxu0 0
    %553 = vmatpush1.bf16.msra.mxu0 %v417
    %554 = vmatprep.subr.bf16.mxu0 0
    %555 = vmatpush1.bf16.msra.mxu0 %v418
    %556 = vmatprep.subr.bf16.mxu0 0
    %557 = vmatpush1.bf16.msra.mxu0 0
    %558 = vmatprep.subr.bf16.mxu0 0
    %559 = vmatpush1.bf16.msra.mxu0 0
    %560 = vmatprep.subr.bf16.mxu0 0
    %561 = vmatpush1.bf16.msra.mxu0 0
    %562 = vmatprep.subr.bf16.mxu0 0
    %563 = vmatpush1.bf16.msra.mxu0 0
    %564 = vmatprep.subr.bf16.mxu0 0
    %565 = vmatpush1.bf16.msra.mxu0 0
    %566 = vmatprep.subr.bf16.mxu0 0
    %567 = vmatpush1.bf16.msra.mxu0 0
    %568 = vmatprep.subr.bf16.mxu0 0
    %569 = vmatpush1.bf16.msra.mxu0 0
    %570 = vmatprep.subr.bf16.mxu0 0
    %571 = vmatpush1.bf16.msra.mxu0 0
    %572 = vmatprep.mubr.bf16.mxu0 0
    %573 = vmatmul.mubr.bf16.gmra.mrb[0].mxu0 %v253
    %v574 = vpop.f32.mrb[0].mxu0
    %v575 = vadd.f32 %v478, %v574
    %v576 = vpop.f32.mrb[0].mxu0
    %v577 = vpop.f32.mrb[0].mxu0
    %v578 = vadd.f32 %v481, %v577
    %v579 = vpop.f32.mrb[0].mxu0
    %580 = vmatprep.mubr.bf16.mxu0 0
    %581 = vmatmul.mubr.bf16.gmra.mrb[0].mxu0 %v256
    %v582 = vpop.f32.mrb[0].mxu0
    %v583 = vadd.f32 %v486, %v582
    %v584 = vpop.f32.mrb[0].mxu0
    %v585 = vpop.f32.mrb[0].mxu0
    %v586 = vadd.f32 %v489, %v585
    %v587 = vpop.f32.mrb[0].mxu0
    %588 = vmatprep.mubr.bf16.mxu0 0
    %589 = vmatmul.mubr.bf16.gmra.mrb[0].mxu0 %v259
    %v590 = vpop.f32.mrb[0].mxu0
    %v591 = vadd.f32 %v494, %v590
    %v592 = vpop.f32.mrb[0].mxu0
    %v593 = vpop.f32.mrb[0].mxu0
    %v594 = vadd.f32 %v497, %v593
    %v595 = vpop.f32.mrb[0].mxu0
    %596 = vmatprep.mubr.bf16.mxu0 0
    %597 = vmatmul.mubr.bf16.gmra.mrb[0].mxu0 %v262
    %v598 = vpop.f32.mrb[0].mxu0
    %v599 = vadd.f32 %v502, %v598
    %v600 = vpop.f32.mrb[0].mxu0
    %v601 = vpop.f32.mrb[0].mxu0
    %v602 = vadd.f32 %v505, %v601
    %v603 = vpop.f32.mrb[0].mxu0
    %604 = vmatprep.mubr.bf16.mxu0 0
    %605 = vmatmul.mubr.bf16.gmra.mrb[0].mxu0 %v265
    %v606 = vpop.f32.mrb[0].mxu0
    %v607 = vadd.f32 %v510, %v606
    %v608 = vpop.f32.mrb[0].mxu0
    %v609 = vpop.f32.mrb[0].mxu0
    %v610 = vadd.f32 %v513, %v609
    %v611 = vpop.f32.mrb[0].mxu0
    %612 = vmatprep.mubr.bf16.mxu0 0
    %613 = vmatmul.mubr.bf16.gmra.mrb[0].mxu0 %v268
    %v614 = vpop.f32.mrb[0].mxu0
    %v615 = vadd.f32 %v518, %v614
    %v616 = vpop.f32.mrb[0].mxu0
    %v617 = vpop.f32.mrb[0].mxu0
    %v618 = vadd.f32 %v521, %v617
    %v619 = vpop.f32.mrb[0].mxu0
    %620 = vmatprep.mubr.bf16.mxu0 0
    %621 = vmatmul.mubr.bf16.gmra.mrb[0].mxu0 %v271
    %v622 = vpop.f32.mrb[0].mxu0
    %v623 = vadd.f32 %v526, %v622
    %v624 = vpop.f32.mrb[0].mxu0
    %v625 = vpop.f32.mrb[0].mxu0
    %v626 = vadd.f32 %v529, %v625
    %v627 = vpop.f32.mrb[0].mxu0
    %628 = vmatprep.mubr.bf16.mxu0 0
    %629 = vmatmul.mubr.bf16.gmra.mrb[0].mxu0 %v274
    %v630 = vpop.f32.mrb[0].mxu0
    %v631 = vadd.f32 %v534, %v630
    %v632 = vpop.f32.mrb[0].mxu0
    %v633 = vpop.f32.mrb[0].mxu0
    %v634 = vadd.f32 %v537, %v633
    %v635 = vpop.f32.mrb[0].mxu0
    %636 = vdwg.mxu0
    %v637 = vadd.f32 %v75, %v575
    %v638 = vadd.f32 %v76, %v578
    %v639 = vadd.f32 %v77, %v583
    %v640 = vadd.f32 %v78, %v586
    %v641 = vadd.f32 %v79, %v591
    %v642 = vadd.f32 %v80, %v594
    %v643 = vadd.f32 %v81, %v599
    %v644 = vadd.f32 %v82, %v602
    %v645 = vadd.f32 %v83, %v607
    %v646 = vadd.f32 %v84, %v610
    %v647 = vadd.f32 %v85, %v615
    %v648 = vadd.f32 %v86, %v618
    %v649 = vadd.f32 %v87, %v623
    %v650 = vadd.f32 %v88, %v626
    %v651 = vadd.f32 %v89, %v631
    %v652 = vadd.f32 %v90, %v634
    %653 = vst [vmem:[#allocation2] sm:$0xff] %v637
    %654 = vst [vmem:[#allocation2 + $0x8] sm:$0xff] %v638
    %655 = vst [vmem:[#allocation2 + $0x10] sm:$0xff] %v639
    %656 = vst [vmem:[#allocation2 + $0x18] sm:$0xff] %v640
    %657 = vst [vmem:[#allocation2 + $0x20] sm:$0xff] %v641
    %658 = vst [vmem:[#allocation2 + $0x28] sm:$0xff] %v642
    %659 = vst [vmem:[#allocation2 + $0x30] sm:$0xff] %v643
    %660 = vst [vmem:[#allocation2 + $0x38] sm:$0xff] %v644
    %661 = vst [vmem:[#allocation2 + $0x40] sm:$0xff] %v645
    %662 = vst [vmem:[#allocation2 + $0x48] sm:$0xff] %v646
    %663 = vst [vmem:[#allocation2 + $0x50] sm:$0xff] %v647
    %664 = vst [vmem:[#allocation2 + $0x58] sm:$0xff] %v648
    %665 = vst [vmem:[#allocation2 + $0x60] sm:$0xff] %v649
    %666 = vst [vmem:[#allocation2 + $0x68] sm:$0xff] %v650
    %667 = vst [vmem:[#allocation2 + $0x70] sm:$0xff] %v651
    %668 = vst [vmem:[#allocation2 + $0x78] sm:$0xff] %v652
    // Predicated region
    $region30: #{vae_forward.39} parent=1 // pred_check
      %p669 = pneg %p55
    $region31: #{vae_forward.39} parent=1 // pred_check_branch
      %671 = sbr.rel (%p669) target = $region33
    $region32: #{vae_forward.39} parent=1 // pred_region
      %v672 = vld [vmem:[#allocation2] sm:$0xff]
      %v673 = vld [vmem:[#allocation2 + $0x8] sm:$0xff]
      %v674 = vld [vmem:[#allocation2 + $0x10] sm:$0xff]
      %v675 = vld [vmem:[#allocation2 + $0x18] sm:$0xff]
      %v676 = vld [vmem:[#allocation2 + $0x20] sm:$0xff]
      %v677 = vld [vmem:[#allocation2 + $0x28] sm:$0xff]
      %v678 = vld [vmem:[#allocation2 + $0x30] sm:$0xff]
      %v679 = vld [vmem:[#allocation2 + $0x38] sm:$0xff]
      %v680 = vld [vmem:[#allocation2 + $0x40] sm:$0xff]
      %v681 = vld [vmem:[#allocation2 + $0x48] sm:$0xff]
      %v682 = vld [vmem:[#allocation2 + $0x50] sm:$0xff]
      %v683 = vld [vmem:[#allocation2 + $0x58] sm:$0xff]
      %v684 = vld [vmem:[#allocation2 + $0x60] sm:$0xff]
      %v685 = vld [vmem:[#allocation2 + $0x68] sm:$0xff]
      %v686 = vld [vmem:[#allocation2 + $0x70] sm:$0xff]
      %v687 = vld [vmem:[#allocation2 + $0x78] sm:$0xff]
      %v688 = vld [vmem:[#allocation8] sm:$0x1]
      %v690 = vlaneseq
      %v691 = vshrl.u32 %v690, 7
      %v692 = vsub.s32 0, %v691
      %v693 = vrot.slane %v688, %v692
      %v695 = vadd.f32 %v672, %v693
      %v696 = vadd.f32 %v673, %v693
      %v697 = vadd.f32 %v674, %v693
      %v698 = vadd.f32 %v675, %v693
      %v699 = vadd.f32 %v676, %v693
      %v700 = vadd.f32 %v677, %v693
      %v701 = vadd.f32 %v678, %v693
      %v702 = vadd.f32 %v679, %v693
      %v703 = vadd.f32 %v680, %v693
      %v704 = vadd.f32 %v681, %v693
      %v705 = vadd.f32 %v682, %v693
      %v706 = vadd.f32 %v683, %v693
      %v707 = vadd.f32 %v684, %v693
      %v708 = vadd.f32 %v685, %v693
      %v709 = vadd.f32 %v686, %v693
      %v710 = vadd.f32 %v687, %v693
      %v711 = vmax.f32 %v695, 0.0
      %v712 = vmax.f32 %v696, 0.0
      %v713 = vmax.f32 %v697, 0.0
      %v714 = vmax.f32 %v698, 0.0
      %v715 = vmax.f32 %v699, 0.0
      %v716 = vmax.f32 %v700, 0.0
      %v717 = vmax.f32 %v701, 0.0
      %v718 = vmax.f32 %v702, 0.0
      %v719 = vmax.f32 %v703, 0.0
      %v720 = vmax.f32 %v704, 0.0
      %v721 = vmax.f32 %v705, 0.0
      %v722 = vmax.f32 %v706, 0.0
      %v723 = vmax.f32 %v707, 0.0
      %v724 = vmax.f32 %v708, 0.0
      %v725 = vmax.f32 %v709, 0.0
      %v726 = vmax.f32 %v710, 0.0
      %727 = vst [vmem:[#allocation9] sm:$0xff] %v711
      %728 = vst [vmem:[#allocation9 + $0x8] sm:$0xff] %v712
      %729 = vst [vmem:[#allocation9 + $0x10] sm:$0xff] %v713
      %730 = vst [vmem:[#allocation9 + $0x18] sm:$0xff] %v714
      %731 = vst [vmem:[#allocation9 + $0x20] sm:$0xff] %v715
      %732 = vst [vmem:[#allocation9 + $0x28] sm:$0xff] %v716
      %733 = vst [vmem:[#allocation9 + $0x30] sm:$0xff] %v717
      %734 = vst [vmem:[#allocation9 + $0x38] sm:$0xff] %v718
      %735 = vst [vmem:[#allocation9 + $0x40] sm:$0xff] %v719
      %736 = vst [vmem:[#allocation9 + $0x48] sm:$0xff] %v720
      %737 = vst [vmem:[#allocation9 + $0x50] sm:$0xff] %v721
      %738 = vst [vmem:[#allocation9 + $0x58] sm:$0xff] %v722
      %739 = vst [vmem:[#allocation9 + $0x60] sm:$0xff] %v723
      %740 = vst [vmem:[#allocation9 + $0x68] sm:$0xff] %v724
      %741 = vst [vmem:[#allocation9 + $0x70] sm:$0xff] %v725
      %742 = vst [vmem:[#allocation9 + $0x78] sm:$0xff] %v726
    $region33: #{vae_forward.39} parent=1 // pred_fallthru
      _
    // Predicated region
    $region34: #{vae_forward.39} parent=1 // pred_check
      _
    $region35: #{vae_forward.39} parent=1 // pred_check_branch
      %744 = sbr.rel (0) target = $region37
    $region36: #{vae_forward.39} parent=1 // pred_region
      %s746 = ssub.s32 2048, 2048
      %747 = vsyncadd [#allocation5], %s746
      %s748 = sshll.u32 [#allocation9], 4
      %s749 = int_to_ptr.vmem [resolvable:$true] %s748
      %754 = dma.vmem_to_hbm [thread:$0]  %s749, 2048, %s3, [#allocation5], 128, 128, 8
    $region37: #{vae_forward.39} parent=1 // pred_fallthru
      _
    // Predicated region
    $region38: #{vae_forward.39} parent=1 // pred_check
      _
    $region39: #{vae_forward.39} parent=1 // pred_check_branch
      %756 = sbr.rel (0) target = $region41
    $region40: #{vae_forward.39} parent=1 // pred_region
      %757 = dma.done [#allocation5], 2048
    $region41: #{vae_forward.39} parent=1 // pred_fallthru
      _
    %758 = vsyncpa [#allocation4], 1
    %759 = vsyncpa [#allocation7], 1
    %760 = vsyncpa [#allocation5], 1

// kernel: vae_forward.43
$region0: #{vae_forward.43}
  #allocation0 [shape = 'u32[]', space=smem, size = 0x4, offset = 0x4, fixed_abs, tag = 'smem constant byte address 0x4 - core index']
  #allocation1 [shape = 'u32[144,128]{1,0:T(1,128)}', space=vmem, size = 0x12000, scoped, tag = 'internal scratch']
  #allocation2 [shape = 'f32[128,128]{1,0:T(8,128)}', space=vmem, size = 0x10000, scoped, tag = 'scratch operand']
  %s0 = inlined_call_operand.hbm [shape: bf16[128,128], index: 0, kind: input, shape index: {}]
  %s1 = inlined_call_operand.hbm [shape: bf16[128,128], index: 1, kind: input, shape index: {}]
  %s2 = inlined_call_operand.hbm [shape: f32[1,128], index: 2, kind: input, shape index: {}]
  %s3 = inlined_call_operand.hbm [shape: f32[128,128], index: 3, kind: output, shape index: {}]
  %s4 = sld [smem:[#allocation0]]
  $region42: #{vae_forward.43} parent=0
    _
  %s6 = ssub.s32 1, %s4
  %s7 = scalar_select 0, %s6, %s4
  $region1: #{vae_forward.43} parent=0
    #allocation3 [shape = 'u8[32768]{0}', space=vmem, size = 0x8000, scoped, tag = 'input window, operand 0, single buffered']
    #allocation4 [shape = 's32[1]{0}', space=sflag, size = 0x4, scoped, tag = 'scoped memory for vae_forward.43']
    #allocation5 [shape = 's32[1]{0}', space=sflag, size = 0x4, scoped, tag = 'scoped memory for vae_forward.43']
    #allocation6 [shape = 'u8[32768]{0}', space=vmem, size = 0x8000, scoped, tag = 'input window, operand 1, single buffered']
    #allocation7 [shape = 's32[1]{0}', space=sflag, size = 0x4, scoped, tag = 'scoped memory for vae_forward.43']
    #allocation8 [shape = 'u8[512]{0}', space=vmem, size = 0x400, scoped, tag = 'input window, operand 2, single buffered']
    #allocation9 [shape = 'u8[65536]{0}', space=vmem, size = 0x10000, scoped, tag = 'output window, operand 0, single buffered']
    %8 = vsyncpa [#allocation4], 0
    %9 = vsyncpa [#allocation7], 0
    %10 = vsyncpa [#allocation5], 0
    // Predicated region
    $region2: #{vae_forward.43} parent=1 // pred_check
      _
    $region3: #{vae_forward.43} parent=1 // pred_check_branch
      %12 = sbr.rel (0) target = $region5
    $region4: #{vae_forward.43} parent=1 // pred_region
      %s14 = ssub.s32 1024, 1024
      %15 = vsyncadd [#allocation4], %s14
      %s16 = sshll.u32 [#allocation3], 4
      %s17 = int_to_ptr.vmem [resolvable:$true] %s16
      %22 = dma.hbm_to_vmem [thread:$0]  %s0, 1024, %s17, [#allocation4], 64, 64, 4
    $region5: #{vae_forward.43} parent=1 // pred_fallthru
      _
    // Predicated region
    $region6: #{vae_forward.43} parent=1 // pred_check
      _
    $region7: #{vae_forward.43} parent=1 // pred_check_branch
      %24 = sbr.rel (0) target = $region9
    $region8: #{vae_forward.43} parent=1 // pred_region
      %s26 = ssub.s32 1024, 1024
      %27 = vsyncadd [#allocation7], %s26
      %s28 = sshll.u32 [#allocation6], 4
      %s29 = int_to_ptr.vmem [resolvable:$true] %s28
      %34 = dma.hbm_to_vmem [thread:$0]  %s1, 1024, %s29, [#allocation7], 64, 64, 4
    $region9: #{vae_forward.43} parent=1 // pred_fallthru
      _
    // Predicated region
    $region10: #{vae_forward.43} parent=1 // pred_check
      _
    $region11: #{vae_forward.43} parent=1 // pred_check_branch
      %36 = sbr.rel (0) target = $region13
    $region12: #{vae_forward.43} parent=1 // pred_region
      %s38 = ssub.s32 16, 16
      %39 = vsyncadd [#allocation7], %s38
      %s41 = sshll.u32 [#allocation8], 4
      %s42 = int_to_ptr.vmem [resolvable:$true] %s41
      %44 = dma.hbm_to_vmem [thread:$0]  %s2, 16, %s42, [#allocation7]
    $region13: #{vae_forward.43} parent=1 // pred_fallthru
      _
    // Predicated region
    $region14: #{vae_forward.43} parent=1 // pred_check
      _
    $region15: #{vae_forward.43} parent=1 // pred_check_branch
      %46 = sbr.rel (0) target = $region17
    $region16: #{vae_forward.43} parent=1 // pred_region
      %47 = dma.done [#allocation4], 1024
    $region17: #{vae_forward.43} parent=1 // pred_fallthru
      _
    // Predicated region
    $region18: #{vae_forward.43} parent=1 // pred_check
      _
    $region19: #{vae_forward.43} parent=1 // pred_check_branch
      %49 = sbr.rel (0) target = $region21
    $region20: #{vae_forward.43} parent=1 // pred_region
      %50 = dma.done [#allocation7], 1024
    $region21: #{vae_forward.43} parent=1 // pred_fallthru
      _
    // Predicated region
    $region22: #{vae_forward.43} parent=1 // pred_check
      _
    $region23: #{vae_forward.43} parent=1 // pred_check_branch
      %52 = sbr.rel (0) target = $region25
    $region24: #{vae_forward.43} parent=1 // pred_region
      %53 = dma.done [#allocation7], 16
    $region25: #{vae_forward.43} parent=1 // pred_fallthru
      _
    %p55 = scmp.eq.s32.totalorder 0, 0
    // Predicated region
    $region26: #{vae_forward.43} parent=1 // pred_check
      %p56 = pneg %p55
    $region27: #{vae_forward.43} parent=1 // pred_check_branch
      %58 = sbr.rel (%p56) target = $region29
    $region28: #{vae_forward.43} parent=1 // pred_region
      %59 = vst [vmem:[#allocation2] sm:$0xff] 0.0
      %60 = vst [vmem:[#allocation2 + $0x8] sm:$0xff] 0.0
      %61 = vst [vmem:[#allocation2 + $0x10] sm:$0xff] 0.0
      %62 = vst [vmem:[#allocation2 + $0x18] sm:$0xff] 0.0
      %63 = vst [vmem:[#allocation2 + $0x20] sm:$0xff] 0.0
      %64 = vst [vmem:[#allocation2 + $0x28] sm:$0xff] 0.0
      %65 = vst [vmem:[#allocation2 + $0x30] sm:$0xff] 0.0
      %66 = vst [vmem:[#allocation2 + $0x38] sm:$0xff] 0.0
      %67 = vst [vmem:[#allocation2 + $0x40] sm:$0xff] 0.0
      %68 = vst [vmem:[#allocation2 + $0x48] sm:$0xff] 0.0
      %69 = vst [vmem:[#allocation2 + $0x50] sm:$0xff] 0.0
      %70 = vst [vmem:[#allocation2 + $0x58] sm:$0xff] 0.0
      %71 = vst [vmem:[#allocation2 + $0x60] sm:$0xff] 0.0
      %72 = vst [vmem:[#allocation2 + $0x68] sm:$0xff] 0.0
      %73 = vst [vmem:[#allocation2 + $0x70] sm:$0xff] 0.0
      %74 = vst [vmem:[#allocation2 + $0x78] sm:$0xff] 0.0
    $region29: #{vae_forward.43} parent=1 // pred_fallthru
      _
    %v75 = vld [vmem:[#allocation2] sm:$0xff]
    %v76 = vld [vmem:[#allocation2 + $0x8] sm:$0xff]
    %v77 = vld [vmem:[#allocation2 + $0x10] sm:$0xff]
    %v78 = vld [vmem:[#allocation2 + $0x18] sm:$0xff]
    %v79 = vld [vmem:[#allocation2 + $0x20] sm:$0xff]
    %v80 = vld [vmem:[#allocation2 + $0x28] sm:$0xff]
    %v81 = vld [vmem:[#allocation2 + $0x30] sm:$0xff]
    %v82 = vld [vmem:[#allocation2 + $0x38] sm:$0xff]
    %v83 = vld [vmem:[#allocation2 + $0x40] sm:$0xff]
    %v84 = vld [vmem:[#allocation2 + $0x48] sm:$0xff]
    %v85 = vld [vmem:[#allocation2 + $0x50] sm:$0xff]
    %v86 = vld [vmem:[#allocation2 + $0x58] sm:$0xff]
    %v87 = vld [vmem:[#allocation2 + $0x60] sm:$0xff]
    %v88 = vld [vmem:[#allocation2 + $0x68] sm:$0xff]
    %v89 = vld [vmem:[#allocation2 + $0x70] sm:$0xff]
    %v90 = vld [vmem:[#allocation2 + $0x78] sm:$0xff]
    %v91 = vld [vmem:[#allocation3] sm:$0xf]
    %v92 = vld [vmem:[#allocation3 + $0x4] sm:$0xf]
    %v93 = vld [vmem:[#allocation3 + $0x8] sm:$0xf]
    %v94 = vld [vmem:[#allocation3 + $0xc] sm:$0xf]
    %v95 = vld [vmem:[#allocation3 + $0x10] sm:$0xf]
    %v96 = vld [vmem:[#allocation3 + $0x14] sm:$0xf]
    %v97 = vld [vmem:[#allocation3 + $0x18] sm:$0xf]
    %v98 = vld [vmem:[#allocation3 + $0x1c] sm:$0xf]
    %v99 = vld [vmem:[#allocation3 + $0x20] sm:$0xf]
    %v100 = vld [vmem:[#allocation3 + $0x24] sm:$0xf]
    %v101 = vld [vmem:[#allocation3 + $0x28] sm:$0xf]
    %v102 = vld [vmem:[#allocation3 + $0x2c] sm:$0xf]
    %v103 = vld [vmem:[#allocation3 + $0x30] sm:$0xf]
    %v104 = vld [vmem:[#allocation3 + $0x34] sm:$0xf]
    %v105 = vld [vmem:[#allocation3 + $0x38] sm:$0xf]
    %v106 = vld [vmem:[#allocation3 + $0x3c] sm:$0xf]
    %v107 = vld [vmem:[#allocation6] sm:$0xf]
    %v108 = vld [vmem:[#allocation6 + $0x4] sm:$0xf]
    %v109 = vld [vmem:[#allocation6 + $0x8] sm:$0xf]
    %v110 = vld [vmem:[#allocation6 + $0xc] sm:$0xf]
    %v111 = vld [vmem:[#allocation6 + $0x10] sm:$0xf]
    %v112 = vld [vmem:[#allocation6 + $0x14] sm:$0xf]
    %v113 = vld [vmem:[#allocation6 + $0x18] sm:$0xf]
    %v114 = vld [vmem:[#allocation6 + $0x1c] sm:$0xf]
    %v115 = vld [vmem:[#allocation6 + $0x20] sm:$0xf]
    %v116 = vld [vmem:[#allocation6 + $0x24] sm:$0xf]
    %v117 = vld [vmem:[#allocation6 + $0x28] sm:$0xf]
    %v118 = vld [vmem:[#allocation6 + $0x2c] sm:$0xf]
    %v119 = vld [vmem:[#allocation6 + $0x30] sm:$0xf]
    %v120 = vld [vmem:[#allocation6 + $0x34] sm:$0xf]
    %v121 = vld [vmem:[#allocation6 + $0x38] sm:$0xf]
    %v122 = vld [vmem:[#allocation6 + $0x3c] sm:$0xf]
    %v139 = vunpack.c.l.b16 %v91
    %v140 = vunpack.c.l.b16 %v92
    %v141 = vunpack.c.l.b16 %v93
    %v142 = vunpack.c.l.b16 %v94
    %v143 = vunpack.c.l.b16 %v95
    %v144 = vunpack.c.l.b16 %v96
    %v145 = vunpack.c.l.b16 %v97
    %v146 = vunpack.c.l.b16 %v98
    %v147 = vunpack.c.l.b16 %v99
    %v148 = vunpack.c.l.b16 %v100
    %v149 = vunpack.c.l.b16 %v101
    %v150 = vunpack.c.l.b16 %v102
    %v151 = vunpack.c.l.b16 %v103
    %v152 = vunpack.c.l.b16 %v104
    %v153 = vunpack.c.l.b16 %v105
    %v154 = vunpack.c.l.b16 %v106
    %v155 = vpack.c.b16 %v140, %v139
    %v156 = vpack.c.b16 %v142, %v141
    %v157 = vpack.c.b16 %v144, %v143
    %v158 = vpack.c.b16 %v146, %v145
    %v159 = vpack.c.b16 %v148, %v147
    %v160 = vpack.c.b16 %v150, %v149
    %v161 = vpack.c.b16 %v152, %v151
    %v162 = vpack.c.b16 %v154, %v153
    %v187 = vunpack.c.l.b16 %v107
    %v188 = vunpack.c.l.b16 %v108
    %v189 = vunpack.c.l.b16 %v109
    %v190 = vunpack.c.l.b16 %v110
    %v191 = vunpack.c.l.b16 %v111
    %v192 = vunpack.c.l.b16 %v112
    %v193 = vunpack.c.l.b16 %v113
    %v194 = vunpack.c.l.b16 %v114
    %v195 = vunpack.c.l.b16 %v115
    %v196 = vunpack.c.l.b16 %v116
    %v197 = vunpack.c.l.b16 %v117
    %v198 = vunpack.c.l.b16 %v118
    %v199 = vunpack.c.l.b16 %v119
    %v200 = vunpack.c.l.b16 %v120
    %v201 = vunpack.c.l.b16 %v121
    %v202 = vunpack.c.l.b16 %v122
    %v203 = vpack.c.b16 %v188, %v187
    %v204 = vpack.c.b16 %v190, %v189
    %v205 = vpack.c.b16 %v192, %v191
    %v206 = vpack.c.b16 %v194, %v193
    %v207 = vpack.c.b16 %v196, %v195
    %v208 = vpack.c.b16 %v198, %v197
    %v209 = vpack.c.b16 %v200, %v199
    %v210 = vpack.c.b16 %v202, %v201
    %219 = vmatprep.subr.bf16.mxu0 0
    %220 = vmatpush1.bf16.msra.mxu0 %v203
    %221 = vmatprep.subr.bf16.mxu0 0
    %222 = vmatpush1.bf16.msra.mxu0 %v204
    %223 = vmatprep.subr.bf16.mxu0 0
    %224 = vmatpush1.bf16.msra.mxu0 %v205
    %225 = vmatprep.subr.bf16.mxu0 0
    %226 = vmatpush1.bf16.msra.mxu0 %v206
    %227 = vmatprep.subr.bf16.mxu0 0
    %228 = vmatpush1.bf16.msra.mxu0 %v207
    %229 = vmatprep.subr.bf16.mxu0 0
    %230 = vmatpush1.bf16.msra.mxu0 %v208
    %231 = vmatprep.subr.bf16.mxu0 0
    %232 = vmatpush1.bf16.msra.mxu0 %v209
    %233 = vmatprep.subr.bf16.mxu0 0
    %234 = vmatpush1.bf16.msra.mxu0 %v210
    %235 = vmatprep.subr.bf16.mxu0 0
    %236 = vmatpush1.bf16.msra.mxu0 0
    %237 = vmatprep.subr.bf16.mxu0 0
    %238 = vmatpush1.bf16.msra.mxu0 0
    %239 = vmatprep.subr.bf16.mxu0 0
    %240 = vmatpush1.bf16.msra.mxu0 0
    %241 = vmatprep.subr.bf16.mxu0 0
    %242 = vmatpush1.bf16.msra.mxu0 0
    %243 = vmatprep.subr.bf16.mxu0 0
    %244 = vmatpush1.bf16.msra.mxu0 0
    %245 = vmatprep.subr.bf16.mxu0 0
    %246 = vmatpush1.bf16.msra.mxu0 0
    %247 = vmatprep.subr.bf16.mxu0 0
    %248 = vmatpush1.bf16.msra.mxu0 0
    %249 = vmatprep.subr.bf16.mxu0 0
    %250 = vmatpush1.bf16.msra.mxu0 0
    %251 = vmatprep.mubr.bf16.mxu0 0
    %252 = vmatmul.mubr.bf16.gmra.mrb[0].mxu0 %v155
    %v253 = vpop.f32.mrb[0].mxu0
    %v254 = vadd.f32 0.0, %v253
    %v255 = vpop.f32.mrb[0].mxu0
    %v256 = vpop.f32.mrb[0].mxu0
    %v257 = vadd.f32 0.0, %v256
    %v258 = vpop.f32.mrb[0].mxu0
    %259 = vmatprep.mubr.bf16.mxu0 0
    %260 = vmatmul.mubr.bf16.gmra.mrb[0].mxu0 %v156
    %v261 = vpop.f32.mrb[0].mxu0
    %v262 = vadd.f32 0.0, %v261
    %v263 = vpop.f32.mrb[0].mxu0
    %v264 = vpop.f32.mrb[0].mxu0
    %v265 = vadd.f32 0.0, %v264
    %v266 = vpop.f32.mrb[0].mxu0
    %267 = vmatprep.mubr.bf16.mxu0 0
    %268 = vmatmul.mubr.bf16.gmra.mrb[0].mxu0 %v157
    %v269 = vpop.f32.mrb[0].mxu0
    %v270 = vadd.f32 0.0, %v269
    %v271 = vpop.f32.mrb[0].mxu0
    %v272 = vpop.f32.mrb[0].mxu0
    %v273 = vadd.f32 0.0, %v272
    %v274 = vpop.f32.mrb[0].mxu0
    %275 = vmatprep.mubr.bf16.mxu0 0
    %276 = vmatmul.mubr.bf16.gmra.mrb[0].mxu0 %v158
    %v277 = vpop.f32.mrb[0].mxu0
    %v278 = vadd.f32 0.0, %v277
    %v279 = vpop.f32.mrb[0].mxu0
    %v280 = vpop.f32.mrb[0].mxu0
    %v281 = vadd.f32 0.0, %v280
    %v282 = vpop.f32.mrb[0].mxu0
    %283 = vmatprep.mubr.bf16.mxu0 0
    %284 = vmatmul.mubr.bf16.gmra.mrb[0].mxu0 %v159
    %v285 = vpop.f32.mrb[0].mxu0
    %v286 = vadd.f32 0.0, %v285
    %v287 = vpop.f32.mrb[0].mxu0
    %v288 = vpop.f32.mrb[0].mxu0
    %v289 = vadd.f32 0.0, %v288
    %v290 = vpop.f32.mrb[0].mxu0
    %291 = vmatprep.mubr.bf16.mxu0 0
    %292 = vmatmul.mubr.bf16.gmra.mrb[0].mxu0 %v160
    %v293 = vpop.f32.mrb[0].mxu0
    %v294 = vadd.f32 0.0, %v293
    %v295 = vpop.f32.mrb[0].mxu0
    %v296 = vpop.f32.mrb[0].mxu0
    %v297 = vadd.f32 0.0, %v296
    %v298 = vpop.f32.mrb[0].mxu0
    %299 = vmatprep.mubr.bf16.mxu0 0
    %300 = vmatmul.mubr.bf16.gmra.mrb[0].mxu0 %v161
    %v301 = vpop.f32.mrb[0].mxu0
    %v302 = vadd.f32 0.0, %v301
    %v303 = vpop.f32.mrb[0].mxu0
    %v304 = vpop.f32.mrb[0].mxu0
    %v305 = vadd.f32 0.0, %v304
    %v306 = vpop.f32.mrb[0].mxu0
    %307 = vmatprep.mubr.bf16.mxu0 0
    %308 = vmatmul.mubr.bf16.gmra.mrb[0].mxu0 %v162
    %v309 = vpop.f32.mrb[0].mxu0
    %v310 = vadd.f32 0.0, %v309
    %v311 = vpop.f32.mrb[0].mxu0
    %v312 = vpop.f32.mrb[0].mxu0
    %v313 = vadd.f32 0.0, %v312
    %v314 = vpop.f32.mrb[0].mxu0
    %315 = vdwg.mxu0
    %v316 = vadd.f32 %v75, %v254
    %v317 = vadd.f32 %v76, %v257
    %v318 = vadd.f32 %v77, %v262
    %v319 = vadd.f32 %v78, %v265
    %v320 = vadd.f32 %v79, %v270
    %v321 = vadd.f32 %v80, %v273
    %v322 = vadd.f32 %v81, %v278
    %v323 = vadd.f32 %v82, %v281
    %v324 = vadd.f32 %v83, %v286
    %v325 = vadd.f32 %v84, %v289
    %v326 = vadd.f32 %v85, %v294
    %v327 = vadd.f32 %v86, %v297
    %v328 = vadd.f32 %v87, %v302
    %v329 = vadd.f32 %v88, %v305
    %v330 = vadd.f32 %v89, %v310
    %v331 = vadd.f32 %v90, %v313
    %332 = vst [vmem:[#allocation2] sm:$0xff] %v316
    %333 = vst [vmem:[#allocation2 + $0x8] sm:$0xff] %v317
    %334 = vst [vmem:[#allocation2 + $0x10] sm:$0xff] %v318
    %335 = vst [vmem:[#allocation2 + $0x18] sm:$0xff] %v319
    %336 = vst [vmem:[#allocation2 + $0x20] sm:$0xff] %v320
    %337 = vst [vmem:[#allocation2 + $0x28] sm:$0xff] %v321
    %338 = vst [vmem:[#allocation2 + $0x30] sm:$0xff] %v322
    %339 = vst [vmem:[#allocation2 + $0x38] sm:$0xff] %v323
    %340 = vst [vmem:[#allocation2 + $0x40] sm:$0xff] %v324
    %341 = vst [vmem:[#allocation2 + $0x48] sm:$0xff] %v325
    %342 = vst [vmem:[#allocation2 + $0x50] sm:$0xff] %v326
    %343 = vst [vmem:[#allocation2 + $0x58] sm:$0xff] %v327
    %344 = vst [vmem:[#allocation2 + $0x60] sm:$0xff] %v328
    %345 = vst [vmem:[#allocation2 + $0x68] sm:$0xff] %v329
    %346 = vst [vmem:[#allocation2 + $0x70] sm:$0xff] %v330
    %347 = vst [vmem:[#allocation2 + $0x78] sm:$0xff] %v331
    // Predicated region
    $region30: #{vae_forward.43} parent=1 // pred_check
      %p348 = pneg %p55
    $region31: #{vae_forward.43} parent=1 // pred_check_branch
      %350 = sbr.rel (%p348) target = $region33
    $region32: #{vae_forward.43} parent=1 // pred_region
      %v351 = vld [vmem:[#allocation2] sm:$0xff]
      %v352 = vld [vmem:[#allocation2 + $0x8] sm:$0xff]
      %v353 = vld [vmem:[#allocation2 + $0x10] sm:$0xff]
      %v354 = vld [vmem:[#allocation2 + $0x18] sm:$0xff]
      %v355 = vld [vmem:[#allocation2 + $0x20] sm:$0xff]
      %v356 = vld [vmem:[#allocation2 + $0x28] sm:$0xff]
      %v357 = vld [vmem:[#allocation2 + $0x30] sm:$0xff]
      %v358 = vld [vmem:[#allocation2 + $0x38] sm:$0xff]
      %v359 = vld [vmem:[#allocation2 + $0x40] sm:$0xff]
      %v360 = vld [vmem:[#allocation2 + $0x48] sm:$0xff]
      %v361 = vld [vmem:[#allocation2 + $0x50] sm:$0xff]
      %v362 = vld [vmem:[#allocation2 + $0x58] sm:$0xff]
      %v363 = vld [vmem:[#allocation2 + $0x60] sm:$0xff]
      %v364 = vld [vmem:[#allocation2 + $0x68] sm:$0xff]
      %v365 = vld [vmem:[#allocation2 + $0x70] sm:$0xff]
      %v366 = vld [vmem:[#allocation2 + $0x78] sm:$0xff]
      %v367 = vld [vmem:[#allocation8] sm:$0x1]
      %v369 = vlaneseq
      %v370 = vshrl.u32 %v369, 7
      %v371 = vsub.s32 0, %v370
      %v372 = vrot.slane %v367, %v371
      %v374 = vadd.f32 %v351, %v372
      %v375 = vadd.f32 %v352, %v372
      %v376 = vadd.f32 %v353, %v372
      %v377 = vadd.f32 %v354, %v372
      %v378 = vadd.f32 %v355, %v372
      %v379 = vadd.f32 %v356, %v372
      %v380 = vadd.f32 %v357, %v372
      %v381 = vadd.f32 %v358, %v372
      %v382 = vadd.f32 %v359, %v372
      %v383 = vadd.f32 %v360, %v372
      %v384 = vadd.f32 %v361, %v372
      %v385 = vadd.f32 %v362, %v372
      %v386 = vadd.f32 %v363, %v372
      %v387 = vadd.f32 %v364, %v372
      %v388 = vadd.f32 %v365, %v372
      %v389 = vadd.f32 %v366, %v372
      %390 = vst [vmem:[#allocation9] sm:$0xff] %v374
      %391 = vst [vmem:[#allocation9 + $0x8] sm:$0xff] %v375
      %392 = vst [vmem:[#allocation9 + $0x10] sm:$0xff] %v376
      %393 = vst [vmem:[#allocation9 + $0x18] sm:$0xff] %v377
      %394 = vst [vmem:[#allocation9 + $0x20] sm:$0xff] %v378
      %395 = vst [vmem:[#allocation9 + $0x28] sm:$0xff] %v379
      %396 = vst [vmem:[#allocation9 + $0x30] sm:$0xff] %v380
      %397 = vst [vmem:[#allocation9 + $0x38] sm:$0xff] %v381
      %398 = vst [vmem:[#allocation9 + $0x40] sm:$0xff] %v382
      %399 = vst [vmem:[#allocation9 + $0x48] sm:$0xff] %v383
      %400 = vst [vmem:[#allocation9 + $0x50] sm:$0xff] %v384
      %401 = vst [vmem:[#allocation9 + $0x58] sm:$0xff] %v385
      %402 = vst [vmem:[#allocation9 + $0x60] sm:$0xff] %v386
      %403 = vst [vmem:[#allocation9 + $0x68] sm:$0xff] %v387
      %404 = vst [vmem:[#allocation9 + $0x70] sm:$0xff] %v388
      %405 = vst [vmem:[#allocation9 + $0x78] sm:$0xff] %v389
    $region33: #{vae_forward.43} parent=1 // pred_fallthru
      _
    // Predicated region
    $region34: #{vae_forward.43} parent=1 // pred_check
      _
    $region35: #{vae_forward.43} parent=1 // pred_check_branch
      %407 = sbr.rel (0) target = $region37
    $region36: #{vae_forward.43} parent=1 // pred_region
      %s409 = ssub.s32 2048, 2048
      %410 = vsyncadd [#allocation5], %s409
      %s411 = sshll.u32 [#allocation9], 4
      %s412 = int_to_ptr.vmem [resolvable:$true] %s411
      %417 = dma.vmem_to_hbm [thread:$0]  %s412, 2048, %s3, [#allocation5], 128, 128, 8
    $region37: #{vae_forward.43} parent=1 // pred_fallthru
      _
    // Predicated region
    $region38: #{vae_forward.43} parent=1 // pred_check
      _
    $region39: #{vae_forward.43} parent=1 // pred_check_branch
      %419 = sbr.rel (0) target = $region41
    $region40: #{vae_forward.43} parent=1 // pred_region
      %420 = dma.done [#allocation5], 2048
    $region41: #{vae_forward.43} parent=1 // pred_fallthru
      _
    %421 = vsyncpa [#allocation4], 1
    %422 = vsyncpa [#allocation7], 1
    %423 = vsyncpa [#allocation5], 1

</llo_original>
